<compile_context>
chip_gen: v7x
topology: tpu7x:2x2x1
jax: 0.10.0
libtpu: 0.0.40
codegen_flags: <defaults>
</compile_context>

<pallas_src>
import jax
import jax.numpy as jnp
from jax.experimental import pallas as pl
from jax.experimental.pallas import tpu as pltpu

LANE = 128


def _relu(v):
    return jnp.maximum(v, 0.0)


def _round_up(n, m):
    return (n + m - 1) // m * m


def encoder_decoder_kernel(
    x_ref,
    w_in_ref, b_in_ref,
    w_h1_ref, b_h1_ref,
    w_h2_ref, b_h2_ref,
    w_lat_ref, b_lat_ref,
    w_h3a_ref, w_h3b_ref, b_h3_ref,
    w_h4a_ref, w_h4b_ref, b_h4_ref,
    w_out_a_ref, w_out_b_ref, b_out_ref,
    o_ref,
):
    f32 = jnp.float32
    bf16 = jnp.bfloat16

    # Input tile is lane-padded to 128 and already bf16; padded lanes of x and
    # padded rows of w_in are zero, so the product is unchanged.
    x = x_ref[...]

    # x1 = relu(input(x)); drop_in(p=0.0) is identity.
    x1 = _relu(jnp.dot(x, w_in_ref[...], preferred_element_type=f32) + b_in_ref[...])
    x1b = x1.astype(bf16)
    # x2 = relu(hidden1(x1))
    x2 = _relu(jnp.dot(x1b, w_h1_ref[...], preferred_element_type=f32) + b_h1_ref[...])
    x2b = x2.astype(bf16)
    # x3 = relu(hidden2(x2))
    x3 = _relu(jnp.dot(x2b, w_h2_ref[...], preferred_element_type=f32) + b_h2_ref[...])
    x3b = x3.astype(bf16)
    # x4 = relu(latent(x3))
    x4 = _relu(jnp.dot(x3b, w_lat_ref[...], preferred_element_type=f32) + b_lat_ref[...])
    x4b = x4.astype(bf16)
    # out = relu(hidden3(cat(x4, x3)))  ->  x4 @ W3[:64] + x3 @ W3[64:]
    # TODO(synk): could fuse into one K=128 dot via an in-register lane concat;
    # kept as two split-K dots for guaranteed lowering (layer is ~3% of flops).
    h3 = _relu(jnp.dot(x4b, w_h3a_ref[...], preferred_element_type=f32)
               + jnp.dot(x3b, w_h3b_ref[...], preferred_element_type=f32)
               + b_h3_ref[...])
    h3b = h3.astype(bf16)
    # out = relu(hidden4(cat(out, x2)))
    h4 = _relu(jnp.dot(h3b, w_h4a_ref[...], preferred_element_type=f32)
               + jnp.dot(x2b, w_h4b_ref[...], preferred_element_type=f32)
               + b_h4_ref[...])
    h4b = h4.astype(bf16)
    # drop_out(p=0.0) identity; out = relu(output(cat(out, x1)))
    out = _relu(jnp.dot(h4b, w_out_a_ref[...], preferred_element_type=f32)
                + jnp.dot(x1b, w_out_b_ref[...], preferred_element_type=f32)
                + b_out_ref[...])

    o_ref[...] = out.astype(o_ref.dtype)


def init_params(key, input_size, output_size):
    """Deterministic parameter init. Weights stored as (in, out), bias (1, out)."""
    dims = {
        "input": (input_size, 1024),
        "hidden1": (1024, 256),
        "hidden2": (256, 64),
        "latent": (64, 64),
        "hidden3": (64 + 64, 256),
        "hidden4": (256 + 256, 1024),
        "output": (1024 + 1024, output_size),
    }
    params = {}
    for name, (fan_in, fan_out) in dims.items():
        key, kw, kb = jax.random.split(key, 3)
        bound = 1.0 / jnp.sqrt(float(fan_in))
        params[name + "_w"] = jax.random.uniform(
            kw, (fan_in, fan_out), jnp.float32, -bound, bound)
        params[name + "_b"] = jax.random.uniform(
            kb, (1, fan_out), jnp.float32, -bound, bound)
    return params


def encoder_decoder_forward(x, params, *, batch_tile=256):
    B, D_in = x.shape
    D_out = params["output_b"].shape[-1]

    bf16 = jnp.bfloat16
    f32 = jnp.float32

    # ---- lane-pad the narrow (64-wide) input / output feature dims to 128 ----
    d_in_p = _round_up(D_in, LANE)
    d_out_p = _round_up(D_out, LANE)

    x_p = jnp.pad(x, ((0, 0), (0, d_in_p - D_in))) if d_in_p != D_in else x
    w_in = jnp.pad(params["input_w"], ((0, d_in_p - D_in), (0, 0))) \
        if d_in_p != D_in else params["input_w"]

    # ---- pad batch up to a multiple of the batch tile (zero rows) ----
    bt = min(batch_tile, _round_up(B, 8))
    B_p = _round_up(B, bt)
    if B_p != B:
        x_p = jnp.pad(x_p, ((0, B_p - B), (0, 0)))

    # Cast the input once in the wrapper: it is cast to bf16 before the first
    # dot anyway, and this halves the per-tile input DMA traffic.
    x_p = x_p.astype(bf16)

    # Split each "concat" weight matrix into its two operand halves.
    w_h3 = params["hidden3_w"]
    w_h3a, w_h3b = w_h3[:64], w_h3[64:]
    w_h4 = params["hidden4_w"]
    w_h4a, w_h4b = w_h4[:256], w_h4[256:]
    w_out = params["output_w"]
    w_out_a, w_out_b = w_out[:1024], w_out[1024:]
    b_out = params["output_b"]
    if d_out_p != D_out:
        w_out_a = jnp.pad(w_out_a, ((0, 0), (0, d_out_p - D_out)))
        w_out_b = jnp.pad(w_out_b, ((0, 0), (0, d_out_p - D_out)))
        b_out = jnp.pad(b_out, ((0, 0), (0, d_out_p - D_out)))

    # Weights feed the MXU in bf16 (f32 accumulation); biases stay f32 since
    # the bias-add / ReLU epilogue runs on the VPU in f32.
    weights = [
        w_in.astype(bf16), params["input_b"].astype(f32),
        params["hidden1_w"].astype(bf16), params["hidden1_b"].astype(f32),
        params["hidden2_w"].astype(bf16), params["hidden2_b"].astype(f32),
        params["latent_w"].astype(bf16), params["latent_b"].astype(f32),
        w_h3a.astype(bf16), w_h3b.astype(bf16), params["hidden3_b"].astype(f32),
        w_h4a.astype(bf16), w_h4b.astype(bf16), params["hidden4_b"].astype(f32),
        w_out_a.astype(bf16), w_out_b.astype(bf16), b_out.astype(f32),
    ]

    # Every weight/bias is grid-invariant: full-array block, constant block
    # index (0, 0) -> Pallas keeps it resident and does not re-DMA per step.
    weight_specs = [pl.BlockSpec(w.shape, lambda i: (0, 0)) for w in weights]

    grid = (B_p // bt,)

    # Advisory cost estimate for the XLA scheduler around the custom call.
    macs_per_row = (
        d_in_p * 1024 + 1024 * 256 + 256 * 64 + 64 * 64
        + 64 * 256 + 64 * 256              # hidden3 split-K
        + 256 * 1024 + 256 * 1024          # hidden4 split-K
        + 1024 * d_out_p + 1024 * d_out_p  # output split-K
    )
    weight_bytes = sum(int(w.size) * w.dtype.itemsize for w in weights)
    cost = pl.CostEstimate(
        flops=2 * B_p * macs_per_row,
        transcendentals=0,
        bytes_accessed=weight_bytes + int(x_p.size) * 2 + B_p * d_out_p * 4,
    )

    out = pl.pallas_call(
        encoder_decoder_kernel,
        out_shape=jax.ShapeDtypeStruct((B_p, d_out_p), jnp.float32),
        grid_spec=pltpu.PrefetchScalarGridSpec(
            num_scalar_prefetch=0,
            grid=grid,
            in_specs=[pl.BlockSpec((bt, d_in_p), lambda i: (i, 0))]
                     + weight_specs,
            out_specs=pl.BlockSpec((bt, d_out_p), lambda i: (i, 0)),
        ),
        compiler_params=pltpu.CompilerParams(
            dimension_semantics=("parallel",),      # megacore-shard batch tiles
            vmem_limit_bytes=32 * 1024 * 1024,      # fits v7x's 64 MiB VMEM/TC
        ),
        cost_estimate=cost,
    )(x_p, *weights)

    # Strip the batch / lane padding.
    return out[:B, :D_out]


def reference_forward(x, params):
    """Pure-JAX f32 reference matching the torch module semantics (d=1 path)."""
    relu = _relu
    x1 = relu(x @ params["input_w"] + params["input_b"])
    x2 = relu(x1 @ params["hidden1_w"] + params["hidden1_b"])
    x3 = relu(x2 @ params["hidden2_w"] + params["hidden2_b"])
    x4 = relu(x3 @ params["latent_w"] + params["latent_b"])
    out = relu(jnp.concatenate([x4, x3], axis=1) @ params["hidden3_w"]
               + params["hidden3_b"])
    out = relu(jnp.concatenate([out, x2], axis=1) @ params["hidden4_w"]
               + params["hidden4_b"])
    out = relu(jnp.concatenate([out, x1], axis=1) @ params["output_w"]
               + params["output_b"])
    return out


if __name__ == "__main__":
    INPUT_SIZE = 64
    OUTPUT_SIZE = 64
    BATCH = 512        # grid = (2,) at batch_tile=256 -> both TCs used on v7x
    BATCH_TILE = 256

    key = jax.random.PRNGKey(0)
    kx, kp = jax.random.split(key)
    x = jax.random.normal(kx, (BATCH, INPUT_SIZE), jnp.float32)
    params = init_params(kp, INPUT_SIZE, OUTPUT_SIZE)

    y = jax.block_until_ready(
        encoder_decoder_forward(x, params, batch_tile=BATCH_TILE))
    y_ref = jax.block_until_ready(reference_forward(x, params))

    assert y.shape == (BATCH, OUTPUT_SIZE)
    # bf16 weights/activations (f32 accumulation) drift slightly vs the f32
    # reference, so use a loose scale-relative tolerance.
    err = float(jnp.max(jnp.abs(y - y_ref)))
    scale = float(jnp.max(jnp.abs(y_ref))) + 1e-6
    assert err / scale < 5e-2, f"mismatch vs reference: rel_err={err / scale:.3e}"

    print("KERNEL_OK")
</pallas_src>

<mosaic_0001>
module attributes {stable_mosaic.version = 11 : i64} {
  func.func @encoder_decoder_kernel(%arg0: i32, %arg1: memref<256x128xbf16, #tpu.memory_space<vmem>>, %arg2: memref<128x1024xbf16, #tpu.memory_space<vmem>>, %arg3: memref<1x1024xf32, #tpu.memory_space<vmem>>, %arg4: memref<1024x256xbf16, #tpu.memory_space<vmem>>, %arg5: memref<1x256xf32, #tpu.memory_space<vmem>>, %arg6: memref<256x64xbf16, #tpu.memory_space<vmem>>, %arg7: memref<1x64xf32, #tpu.memory_space<vmem>>, %arg8: memref<64x64xbf16, #tpu.memory_space<vmem>>, %arg9: memref<1x64xf32, #tpu.memory_space<vmem>>, %arg10: memref<64x256xbf16, #tpu.memory_space<vmem>>, %arg11: memref<64x256xbf16, #tpu.memory_space<vmem>>, %arg12: memref<1x256xf32, #tpu.memory_space<vmem>>, %arg13: memref<256x1024xbf16, #tpu.memory_space<vmem>>, %arg14: memref<256x1024xbf16, #tpu.memory_space<vmem>>, %arg15: memref<1x1024xf32, #tpu.memory_space<vmem>>, %arg16: memref<1024x128xbf16, #tpu.memory_space<vmem>>, %arg17: memref<1024x128xbf16, #tpu.memory_space<vmem>>, %arg18: memref<1x128xf32, #tpu.memory_space<vmem>>, %arg19: memref<256x128xf32, #tpu.memory_space<vmem>>) attributes {dimension_semantics = [#tpu.dimension_semantics<parallel>], iteration_bounds = array<i64: 2>, scalar_prefetch = 0 : i64, scratch_operands = 0 : i64, tpu.core_type = #tpu.core_type<tc>, window_params = [{transform_indices = @transform_0, window_bounds = array<i64: 256, 128>}, {pipeline_mode = #tpu.pipeline_mode<synchronous>, transform_indices = @transform_1, window_bounds = array<i64: 128, 1024>}, {pipeline_mode = #tpu.pipeline_mode<synchronous>, transform_indices = @transform_2, window_bounds = array<i64: 1, 1024>}, {pipeline_mode = #tpu.pipeline_mode<synchronous>, transform_indices = @transform_3, window_bounds = array<i64: 1024, 256>}, {pipeline_mode = #tpu.pipeline_mode<synchronous>, transform_indices = @transform_4, window_bounds = array<i64: 1, 256>}, {pipeline_mode = #tpu.pipeline_mode<synchronous>, transform_indices = @transform_5, window_bounds = array<i64: 256, 64>}, {pipeline_mode = #tpu.pipeline_mode<synchronous>, transform_indices = @transform_6, window_bounds = array<i64: 1, 64>}, {pipeline_mode = #tpu.pipeline_mode<synchronous>, transform_indices = @transform_7, window_bounds = array<i64: 64, 64>}, {pipeline_mode = #tpu.pipeline_mode<synchronous>, transform_indices = @transform_8, window_bounds = array<i64: 1, 64>}, {pipeline_mode = #tpu.pipeline_mode<synchronous>, transform_indices = @transform_9, window_bounds = array<i64: 64, 256>}, {pipeline_mode = #tpu.pipeline_mode<synchronous>, transform_indices = @transform_10, window_bounds = array<i64: 64, 256>}, {pipeline_mode = #tpu.pipeline_mode<synchronous>, transform_indices = @transform_11, window_bounds = array<i64: 1, 256>}, {pipeline_mode = #tpu.pipeline_mode<synchronous>, transform_indices = @transform_12, window_bounds = array<i64: 256, 1024>}, {pipeline_mode = #tpu.pipeline_mode<synchronous>, transform_indices = @transform_13, window_bounds = array<i64: 256, 1024>}, {pipeline_mode = #tpu.pipeline_mode<synchronous>, transform_indices = @transform_14, window_bounds = array<i64: 1, 1024>}, {pipeline_mode = #tpu.pipeline_mode<synchronous>, transform_indices = @transform_15, window_bounds = array<i64: 1024, 128>}, {pipeline_mode = #tpu.pipeline_mode<synchronous>, transform_indices = @transform_16, window_bounds = array<i64: 1024, 128>}, {pipeline_mode = #tpu.pipeline_mode<synchronous>, transform_indices = @transform_17, window_bounds = array<i64: 1, 128>}, {transform_indices = @transform_18, window_bounds = array<i64: 256, 128>}]} {
    %c0 = arith.constant 0 : index
    %c0_0 = arith.constant 0 : index
    %0 = vector.load %arg1[%c0, %c0_0] : memref<256x128xbf16, #tpu.memory_space<vmem>>, vector<256x128xbf16>
    %c0_1 = arith.constant 0 : index
    %c0_2 = arith.constant 0 : index
    %1 = vector.load %arg2[%c0_1, %c0_2] : memref<128x1024xbf16, #tpu.memory_space<vmem>>, vector<128x1024xbf16>
    %cst = arith.constant dense<0.000000e+00> : vector<256x1024xf32>
    %2 = tpu.matmul %0, %1, %cst {dimension_numbers = #tpu.dot_dimension_numbers<[1], [0], [0], [1], [0, 0, 1, 1], [], []>} : vector<256x128xbf16>, vector<128x1024xbf16>, vector<256x1024xf32> -> vector<256x1024xf32>
    %c0_3 = arith.constant 0 : index
    %c0_4 = arith.constant 0 : index
    %3 = vector.load %arg3[%c0_3, %c0_4] : memref<1x1024xf32, #tpu.memory_space<vmem>>, vector<1x1024xf32>
    %4 = vector.broadcast %3 : vector<1x1024xf32> to vector<256x1024xf32>
    %5 = arith.addf %2, %4 : vector<256x1024xf32>
    %cst_5 = arith.constant 0.000000e+00 : f32
    %6 = vector.broadcast %cst_5 : f32 to vector<256x1024xf32>
    %7 = arith.maximumf %5, %6 : vector<256x1024xf32>
    %8 = arith.truncf %7 : vector<256x1024xf32> to vector<256x1024xbf16>
    %c0_6 = arith.constant 0 : index
    %c0_7 = arith.constant 0 : index
    %9 = vector.load %arg4[%c0_6, %c0_7] : memref<1024x256xbf16, #tpu.memory_space<vmem>>, vector<1024x256xbf16>
    %cst_8 = arith.constant dense<0.000000e+00> : vector<256x256xf32>
    %10 = tpu.matmul %8, %9, %cst_8 {dimension_numbers = #tpu.dot_dimension_numbers<[1], [0], [0], [1], [0, 0, 1, 1], [], []>} : vector<256x1024xbf16>, vector<1024x256xbf16>, vector<256x256xf32> -> vector<256x256xf32>
    %c0_9 = arith.constant 0 : index
    %c0_10 = arith.constant 0 : index
    %11 = vector.load %arg5[%c0_9, %c0_10] : memref<1x256xf32, #tpu.memory_space<vmem>>, vector<1x256xf32>
    %12 = vector.broadcast %11 : vector<1x256xf32> to vector<256x256xf32>
    %13 = arith.addf %10, %12 : vector<256x256xf32>
    %cst_11 = arith.constant 0.000000e+00 : f32
    %14 = vector.broadcast %cst_11 : f32 to vector<256x256xf32>
    %15 = arith.maximumf %13, %14 : vector<256x256xf32>
    %16 = arith.truncf %15 : vector<256x256xf32> to vector<256x256xbf16>
    %c0_12 = arith.constant 0 : index
    %c0_13 = arith.constant 0 : index
    %17 = vector.load %arg6[%c0_12, %c0_13] : memref<256x64xbf16, #tpu.memory_space<vmem>>, vector<256x64xbf16>
    %cst_14 = arith.constant dense<0.000000e+00> : vector<256x64xf32>
    %18 = tpu.matmul %16, %17, %cst_14 {dimension_numbers = #tpu.dot_dimension_numbers<[1], [0], [0], [1], [0, 0, 1, 1], [], []>} : vector<256x256xbf16>, vector<256x64xbf16>, vector<256x64xf32> -> vector<256x64xf32>
    %c0_15 = arith.constant 0 : index
    %c0_16 = arith.constant 0 : index
    %19 = vector.load %arg7[%c0_15, %c0_16] : memref<1x64xf32, #tpu.memory_space<vmem>>, vector<1x64xf32>
    %20 = vector.broadcast %19 : vector<1x64xf32> to vector<256x64xf32>
    %21 = arith.addf %18, %20 : vector<256x64xf32>
    %cst_17 = arith.constant 0.000000e+00 : f32
    %22 = vector.broadcast %cst_17 : f32 to vector<256x64xf32>
    %23 = arith.maximumf %21, %22 : vector<256x64xf32>
    %24 = arith.truncf %23 : vector<256x64xf32> to vector<256x64xbf16>
    %c0_18 = arith.constant 0 : index
    %c0_19 = arith.constant 0 : index
    %25 = vector.load %arg8[%c0_18, %c0_19] : memref<64x64xbf16, #tpu.memory_space<vmem>>, vector<64x64xbf16>
    %cst_20 = arith.constant dense<0.000000e+00> : vector<256x64xf32>
    %26 = tpu.matmul %24, %25, %cst_20 {dimension_numbers = #tpu.dot_dimension_numbers<[1], [0], [0], [1], [0, 0, 1, 1], [], []>} : vector<256x64xbf16>, vector<64x64xbf16>, vector<256x64xf32> -> vector<256x64xf32>
    %c0_21 = arith.constant 0 : index
    %c0_22 = arith.constant 0 : index
    %27 = vector.load %arg9[%c0_21, %c0_22] : memref<1x64xf32, #tpu.memory_space<vmem>>, vector<1x64xf32>
    %28 = vector.broadcast %27 : vector<1x64xf32> to vector<256x64xf32>
    %29 = arith.addf %26, %28 : vector<256x64xf32>
    %cst_23 = arith.constant 0.000000e+00 : f32
    %30 = vector.broadcast %cst_23 : f32 to vector<256x64xf32>
    %31 = arith.maximumf %29, %30 : vector<256x64xf32>
    %32 = arith.truncf %31 : vector<256x64xf32> to vector<256x64xbf16>
    %c0_24 = arith.constant 0 : index
    %c0_25 = arith.constant 0 : index
    %33 = vector.load %arg10[%c0_24, %c0_25] : memref<64x256xbf16, #tpu.memory_space<vmem>>, vector<64x256xbf16>
    %cst_26 = arith.constant dense<0.000000e+00> : vector<256x256xf32>
    %34 = tpu.matmul %32, %33, %cst_26 {dimension_numbers = #tpu.dot_dimension_numbers<[1], [0], [0], [1], [0, 0, 1, 1], [], []>} : vector<256x64xbf16>, vector<64x256xbf16>, vector<256x256xf32> -> vector<256x256xf32>
    %c0_27 = arith.constant 0 : index
    %c0_28 = arith.constant 0 : index
    %35 = vector.load %arg11[%c0_27, %c0_28] : memref<64x256xbf16, #tpu.memory_space<vmem>>, vector<64x256xbf16>
    %cst_29 = arith.constant dense<0.000000e+00> : vector<256x256xf32>
    %36 = tpu.matmul %24, %35, %cst_29 {dimension_numbers = #tpu.dot_dimension_numbers<[1], [0], [0], [1], [0, 0, 1, 1], [], []>} : vector<256x64xbf16>, vector<64x256xbf16>, vector<256x256xf32> -> vector<256x256xf32>
    %37 = arith.addf %34, %36 : vector<256x256xf32>
    %c0_30 = arith.constant 0 : index
    %c0_31 = arith.constant 0 : index
    %38 = vector.load %arg12[%c0_30, %c0_31] : memref<1x256xf32, #tpu.memory_space<vmem>>, vector<1x256xf32>
    %39 = vector.broadcast %38 : vector<1x256xf32> to vector<256x256xf32>
    %40 = arith.addf %37, %39 : vector<256x256xf32>
    %cst_32 = arith.constant 0.000000e+00 : f32
    %41 = vector.broadcast %cst_32 : f32 to vector<256x256xf32>
    %42 = arith.maximumf %40, %41 : vector<256x256xf32>
    %43 = arith.truncf %42 : vector<256x256xf32> to vector<256x256xbf16>
    %c0_33 = arith.constant 0 : index
    %c0_34 = arith.constant 0 : index
    %44 = vector.load %arg13[%c0_33, %c0_34] : memref<256x1024xbf16, #tpu.memory_space<vmem>>, vector<256x1024xbf16>
    %cst_35 = arith.constant dense<0.000000e+00> : vector<256x1024xf32>
    %45 = tpu.matmul %43, %44, %cst_35 {dimension_numbers = #tpu.dot_dimension_numbers<[1], [0], [0], [1], [0, 0, 1, 1], [], []>} : vector<256x256xbf16>, vector<256x1024xbf16>, vector<256x1024xf32> -> vector<256x1024xf32>
    %c0_36 = arith.constant 0 : index
    %c0_37 = arith.constant 0 : index
    %46 = vector.load %arg14[%c0_36, %c0_37] : memref<256x1024xbf16, #tpu.memory_space<vmem>>, vector<256x1024xbf16>
    %cst_38 = arith.constant dense<0.000000e+00> : vector<256x1024xf32>
    %47 = tpu.matmul %16, %46, %cst_38 {dimension_numbers = #tpu.dot_dimension_numbers<[1], [0], [0], [1], [0, 0, 1, 1], [], []>} : vector<256x256xbf16>, vector<256x1024xbf16>, vector<256x1024xf32> -> vector<256x1024xf32>
    %48 = arith.addf %45, %47 : vector<256x1024xf32>
    %c0_39 = arith.constant 0 : index
    %c0_40 = arith.constant 0 : index
    %49 = vector.load %arg15[%c0_39, %c0_40] : memref<1x1024xf32, #tpu.memory_space<vmem>>, vector<1x1024xf32>
    %50 = vector.broadcast %49 : vector<1x1024xf32> to vector<256x1024xf32>
    %51 = arith.addf %48, %50 : vector<256x1024xf32>
    %cst_41 = arith.constant 0.000000e+00 : f32
    %52 = vector.broadcast %cst_41 : f32 to vector<256x1024xf32>
    %53 = arith.maximumf %51, %52 : vector<256x1024xf32>
    %54 = arith.truncf %53 : vector<256x1024xf32> to vector<256x1024xbf16>
    %c0_42 = arith.constant 0 : index
    %c0_43 = arith.constant 0 : index
    %55 = vector.load %arg16[%c0_42, %c0_43] : memref<1024x128xbf16, #tpu.memory_space<vmem>>, vector<1024x128xbf16>
    %cst_44 = arith.constant dense<0.000000e+00> : vector<256x128xf32>
    %56 = tpu.matmul %54, %55, %cst_44 {dimension_numbers = #tpu.dot_dimension_numbers<[1], [0], [0], [1], [0, 0, 1, 1], [], []>} : vector<256x1024xbf16>, vector<1024x128xbf16>, vector<256x128xf32> -> vector<256x128xf32>
    %c0_45 = arith.constant 0 : index
    %c0_46 = arith.constant 0 : index
    %57 = vector.load %arg17[%c0_45, %c0_46] : memref<1024x128xbf16, #tpu.memory_space<vmem>>, vector<1024x128xbf16>
    %cst_47 = arith.constant dense<0.000000e+00> : vector<256x128xf32>
    %58 = tpu.matmul %8, %57, %cst_47 {dimension_numbers = #tpu.dot_dimension_numbers<[1], [0], [0], [1], [0, 0, 1, 1], [], []>} : vector<256x1024xbf16>, vector<1024x128xbf16>, vector<256x128xf32> -> vector<256x128xf32>
    %59 = arith.addf %56, %58 : vector<256x128xf32>
    %c0_48 = arith.constant 0 : index
    %c0_49 = arith.constant 0 : index
    %60 = vector.load %arg18[%c0_48, %c0_49] : memref<1x128xf32, #tpu.memory_space<vmem>>, vector<1x128xf32>
    %61 = vector.broadcast %60 : vector<1x128xf32> to vector<256x128xf32>
    %62 = arith.addf %59, %61 : vector<256x128xf32>
    %cst_50 = arith.constant 0.000000e+00 : f32
    %63 = vector.broadcast %cst_50 : f32 to vector<256x128xf32>
    %64 = arith.maximumf %62, %63 : vector<256x128xf32>
    %c0_51 = arith.constant 0 : index
    %c0_52 = arith.constant 0 : index
    %65 = vector.load %arg19[%c0_51, %c0_52] : memref<256x128xf32, #tpu.memory_space<vmem>>, vector<256x128xf32>
    tpu.vector_store %arg19[%c0_51, %c0_52], %64 {strides = array<i32>} : memref<256x128xf32, #tpu.memory_space<vmem>>, vector<256x128xf32>,
    return
  }
  func.func @transform_0(%arg0: i32) -> (i32, i32) {
    %c0_i32 = arith.constant 0 : i32
    %c0_i32_0 = arith.constant 0 : i32
    return %arg0, %c0_i32 : i32, i32
  }
  func.func @transform_1(%arg0: i32) -> (i32, i32) {
    %c0_i32 = arith.constant 0 : i32
    %c0_i32_0 = arith.constant 0 : i32
    %c0_i32_1 = arith.constant 0 : i32
    return %c0_i32, %c0_i32_0 : i32, i32
  }
  func.func @transform_2(%arg0: i32) -> (i32, i32) {
    %c0_i32 = arith.constant 0 : i32
    %c0_i32_0 = arith.constant 0 : i32
    %c0_i32_1 = arith.constant 0 : i32
    return %c0_i32, %c0_i32_0 : i32, i32
  }
  func.func @transform_3(%arg0: i32) -> (i32, i32) {
    %c0_i32 = arith.constant 0 : i32
    %c0_i32_0 = arith.constant 0 : i32
    %c0_i32_1 = arith.constant 0 : i32
    return %c0_i32, %c0_i32_0 : i32, i32
  }
  func.func @transform_4(%arg0: i32) -> (i32, i32) {
    %c0_i32 = arith.constant 0 : i32
    %c0_i32_0 = arith.constant 0 : i32
    %c0_i32_1 = arith.constant 0 : i32
    return %c0_i32, %c0_i32_0 : i32, i32
  }
  func.func @transform_5(%arg0: i32) -> (i32, i32) {
    %c0_i32 = arith.constant 0 : i32
    %c0_i32_0 = arith.constant 0 : i32
    %c0_i32_1 = arith.constant 0 : i32
    return %c0_i32, %c0_i32_0 : i32, i32
  }
  func.func @transform_6(%arg0: i32) -> (i32, i32) {
    %c0_i32 = arith.constant 0 : i32
    %c0_i32_0 = arith.constant 0 : i32
    %c0_i32_1 = arith.constant 0 : i32
    return %c0_i32, %c0_i32_0 : i32, i32
  }
  func.func @transform_7(%arg0: i32) -> (i32, i32) {
    %c0_i32 = arith.constant 0 : i32
    %c0_i32_0 = arith.constant 0 : i32
    %c0_i32_1 = arith.constant 0 : i32
    return %c0_i32, %c0_i32_0 : i32, i32
  }
  func.func @transform_8(%arg0: i32) -> (i32, i32) {
    %c0_i32 = arith.constant 0 : i32
    %c0_i32_0 = arith.constant 0 : i32
    %c0_i32_1 = arith.constant 0 : i32
    return %c0_i32, %c0_i32_0 : i32, i32
  }
  func.func @transform_9(%arg0: i32) -> (i32, i32) {
    %c0_i32 = arith.constant 0 : i32
    %c0_i32_0 = arith.constant 0 : i32
    %c0_i32_1 = arith.constant 0 : i32
    return %c0_i32, %c0_i32_0 : i32, i32
  }
  func.func @transform_10(%arg0: i32) -> (i32, i32) {
    %c0_i32 = arith.constant 0 : i32
    %c0_i32_0 = arith.constant 0 : i32
    %c0_i32_1 = arith.constant 0 : i32
    return %c0_i32, %c0_i32_0 : i32, i32
  }
  func.func @transform_11(%arg0: i32) -> (i32, i32) {
    %c0_i32 = arith.constant 0 : i32
    %c0_i32_0 = arith.constant 0 : i32
    %c0_i32_1 = arith.constant 0 : i32
    return %c0_i32, %c0_i32_0 : i32, i32
  }
  func.func @transform_12(%arg0: i32) -> (i32, i32) {
    %c0_i32 = arith.constant 0 : i32
    %c0_i32_0 = arith.constant 0 : i32
    %c0_i32_1 = arith.constant 0 : i32
    return %c0_i32, %c0_i32_0 : i32, i32
  }
  func.func @transform_13(%arg0: i32) -> (i32, i32) {
    %c0_i32 = arith.constant 0 : i32
    %c0_i32_0 = arith.constant 0 : i32
    %c0_i32_1 = arith.constant 0 : i32
    return %c0_i32, %c0_i32_0 : i32, i32
  }
  func.func @transform_14(%arg0: i32) -> (i32, i32) {
    %c0_i32 = arith.constant 0 : i32
    %c0_i32_0 = arith.constant 0 : i32
    %c0_i32_1 = arith.constant 0 : i32
    return %c0_i32, %c0_i32_0 : i32, i32
  }
  func.func @transform_15(%arg0: i32) -> (i32, i32) {
    %c0_i32 = arith.constant 0 : i32
    %c0_i32_0 = arith.constant 0 : i32
    %c0_i32_1 = arith.constant 0 : i32
    return %c0_i32, %c0_i32_0 : i32, i32
  }
  func.func @transform_16(%arg0: i32) -> (i32, i32) {
    %c0_i32 = arith.constant 0 : i32
    %c0_i32_0 = arith.constant 0 : i32
    %c0_i32_1 = arith.constant 0 : i32
    return %c0_i32, %c0_i32_0 : i32, i32
  }
  func.func @transform_17(%arg0: i32) -> (i32, i32) {
    %c0_i32 = arith.constant 0 : i32
    %c0_i32_0 = arith.constant 0 : i32
    %c0_i32_1 = arith.constant 0 : i32
    return %c0_i32, %c0_i32_0 : i32, i32
  }
  func.func @transform_18(%arg0: i32) -> (i32, i32) {
    %c0_i32 = arith.constant 0 : i32
    %c0_i32_0 = arith.constant 0 : i32
    return %arg0, %c0_i32 : i32, i32
  }
}

</mosaic_0001>

<llo_original>
// kernel: tpu_custom_call.1
$region0: #{tpu_custom_call.1}
  #allocation0 [shape = 'u32[]', space=smem, size = 0x4, offset = 0x4, fixed_abs, tag = 'smem constant byte address 0x4 - core index']
  #allocation1 [shape = 'u32[144,128]{1,0:T(1,128)}', space=vmem, size = 0x12000, scoped, tag = 'internal scratch']
  %s0 = inlined_call_operand.hbm [shape: bf16[512,128], index: 0, kind: input, shape index: {}]
  %s1 = inlined_call_operand.hbm [shape: bf16[128,1024], index: 1, kind: input, shape index: {}]
  %s2 = inlined_call_operand.vmem [shape: f32[1,1024], index: 2, kind: input, shape index: {}]
  %s3 = inlined_call_operand.hbm [shape: bf16[1024,256], index: 3, kind: input, shape index: {}]
  %s4 = inlined_call_operand.vmem [shape: f32[1,256], index: 4, kind: input, shape index: {}]
  %s5 = inlined_call_operand.vmem [shape: bf16[256,64], index: 5, kind: input, shape index: {}]
  %s6 = inlined_call_operand.vmem [shape: f32[1,64], index: 6, kind: input, shape index: {}]
  %s7 = inlined_call_operand.vmem [shape: bf16[64,64], index: 7, kind: input, shape index: {}]
  %s8 = inlined_call_operand.vmem [shape: f32[1,64], index: 8, kind: input, shape index: {}]
  %s9 = inlined_call_operand.vmem [shape: bf16[64,256], index: 9, kind: input, shape index: {}]
  %s10 = inlined_call_operand.vmem [shape: bf16[64,256], index: 10, kind: input, shape index: {}]
  %s11 = inlined_call_operand.vmem [shape: f32[1,256], index: 11, kind: input, shape index: {}]
  %s12 = inlined_call_operand.hbm [shape: bf16[256,1024], index: 12, kind: input, shape index: {}]
  %s13 = inlined_call_operand.hbm [shape: bf16[256,1024], index: 13, kind: input, shape index: {}]
  %s14 = inlined_call_operand.vmem [shape: f32[1,1024], index: 14, kind: input, shape index: {}]
  %s15 = inlined_call_operand.hbm [shape: bf16[1024,128], index: 15, kind: input, shape index: {}]
  %s16 = inlined_call_operand.hbm [shape: bf16[1024,128], index: 16, kind: input, shape index: {}]
  %s17 = inlined_call_operand.vmem [shape: f32[1,128], index: 17, kind: input, shape index: {}]
  %s18 = inlined_call_operand.hbm [shape: f32[512,128], index: 18, kind: output, shape index: {}]
  %s19 = sld [smem:[#allocation0]]
  $region133: #{tpu_custom_call.1} parent=0
    _
  %s21 = ssub.s32 1, %s19
  %s22 = scalar_select 0, %s21, %s19
  $region1: #{tpu_custom_call.1} parent=0
    #allocation2 [shape = 'u8[131072]{0}', space=vmem, size = 0x20000, scoped, tag = 'input window, operand 0']
    #allocation3 [shape = 's32[2]{0}', space=sflag, size = 0x8, scoped, tag = 'scoped memory for tpu_custom_call.1']
    #allocation4 [shape = 's32[2]{0}', space=sflag, size = 0x8, scoped, tag = 'scoped memory for tpu_custom_call.1']
    #allocation5 [shape = 'u8[262144]{0}', space=vmem, size = 0x40000, scoped, tag = 'input window, operand 1, single buffered']
    #allocation6 [shape = 's32[1]{0}', space=sflag, size = 0x4, scoped, tag = 'scoped memory for tpu_custom_call.1']
    #allocation7 [shape = 'u8[524288]{0}', space=vmem, size = 0x80000, scoped, tag = 'input window, operand 3, single buffered']
    #allocation8 [shape = 'u8[524288]{0}', space=vmem, size = 0x80000, scoped, tag = 'input window, operand 12, single buffered']
    #allocation9 [shape = 's32[1]{0}', space=sflag, size = 0x4, scoped, tag = 'scoped memory for tpu_custom_call.1']
    #allocation10 [shape = 'u8[524288]{0}', space=vmem, size = 0x80000, scoped, tag = 'input window, operand 13, single buffered']
    #allocation11 [shape = 'u8[262144]{0}', space=vmem, size = 0x40000, scoped, tag = 'input window, operand 15, single buffered']
    #allocation12 [shape = 's32[1]{0}', space=sflag, size = 0x4, scoped, tag = 'scoped memory for tpu_custom_call.1']
    #allocation13 [shape = 'u8[262144]{0}', space=vmem, size = 0x40000, scoped, tag = 'input window, operand 16, single buffered']
    #allocation14 [shape = 'u8[262144]{0}', space=vmem, size = 0x40000, scoped, tag = 'output window, operand 0']
    %23 = vsyncpa [#allocation3], 0
    %s24 = scalar_lea.sflag [#allocation3], 1
    %25 = vsyncpa %s24, 0
    %26 = vsyncpa [#allocation6], 0
    %27 = vsyncpa [#allocation9], 0
    %28 = vsyncpa [#allocation12], 0
    %29 = vsyncpa [#allocation4], 0
    %s30 = scalar_lea.sflag [#allocation4], 1
    %31 = vsyncpa %s30, 0
    loop: start=0, step=1, limit=4
    $region2: #{tpu_custom_call.1} parent=1 // loop_pre_header
      _
    $region3: #{tpu_custom_call.1} parent=1 // loop_header
      %s33 = sphi 0, %s37
      %p34 = scmp.ge.s32.totalorder %s33, 4
      %s43 = sphi 0, %s45
      %s46 = sphi 0, %s43
      %s47 = sphi 0, %s46
      %s63 = sphi 0, %s47
      %s67 = sphi 0, %s67
      %s69 = sphi 0, %s67
      %s70 = sphi 0, %s69
      %s84 = sphi 0, %s70
      %s88 = sphi 0, %s88
      %s90 = sphi 0, %s88
      %s91 = sphi 0, %s90
      %s105 = sphi 0, %s91
      %s109 = sphi 0, %s109
      %s111 = sphi 0, %s109
      %s112 = sphi 0, %s111
      %s126 = sphi 0, %s112
      %s130 = sphi 0, %s130
      %s132 = sphi 0, %s130
      %s133 = sphi 0, %s132
      %s147 = sphi 0, %s133
      %s151 = sphi 0, %s151
      %s153 = sphi 0, %s151
      %s154 = sphi 0, %s153
      %s168 = sphi 0, %s154
      %s172 = sphi 0, %s172
      %s174 = sphi 0, %s172
      %s175 = sphi 0, %s174
      %s189 = sphi 0, %s175
      %s193 = sphi 0, %s193
      %s195 = sphi 0, %s193
      %s196 = sphi 0, %s195
      %s210 = sphi 0, %s196
      %s214 = sphi 0, %s214
      %s216 = sphi 0, %s214
      %s217 = sphi 0, %s216
      %s231 = sphi 0, %s217
      %s235 = sphi 0, %s235
      %s237 = sphi 0, %s235
      %s238 = sphi 0, %s237
      %s252 = sphi 0, %s238
      %s256 = sphi 0, %s256
      %s258 = sphi 0, %s256
      %s259 = sphi 0, %s258
      %s273 = sphi 0, %s259
      %s277 = sphi 0, %s277
      %s279 = sphi 0, %s277
      %s280 = sphi 0, %s279
      %s294 = sphi 0, %s280
      %s298 = sphi 0, %s298
      %s300 = sphi 0, %s298
      %s301 = sphi 0, %s300
      %s315 = sphi 0, %s301
      %s319 = sphi 0, %s319
      %s321 = sphi 0, %s319
      %s322 = sphi 0, %s321
      %s336 = sphi 0, %s322
      %s340 = sphi 0, %s340
      %s342 = sphi 0, %s340
      %s343 = sphi 0, %s342
      %s357 = sphi 0, %s343
      %s361 = sphi 0, %s361
      %s363 = sphi 0, %s361
      %s364 = sphi 0, %s363
      %s378 = sphi 0, %s364
      %s382 = sphi 0, %s382
      %s384 = sphi 0, %s382
      %s385 = sphi 0, %s384
      %s399 = sphi 0, %s385
      %s403 = sphi 0, %s403
      %s405 = sphi 0, %s403
      %s406 = sphi 0, %s405
      %s420 = sphi 0, %s406
      %s426 = sphi 0, %s428
      %s429 = sphi 0, %s426
      %s430 = sphi 0, %s429
      %s446 = sphi 0, %s430
    $region4: #{tpu_custom_call.1} parent=1 // loop_header_branch
      %36 = sbr.rel (%p34) target = $region8
    $region5: #{tpu_custom_call.1} parent=1 // loop_body
      %s38 = ssub.s32 %s33, 1
      %s39 = ssub.s32 %s33, 2
      %s40 = sadd.s32 %s33, 1
      %s41 = ssub.s32 %s33, %s40
      %p42 = scmp.eq.s32.totalorder %s41, 0
      %s44 = sadd.s32 %s43, 1
      %s45 = scalar_select %p42, %s43, %s44
      %p48 = pneg %p42
      %p49 = scmp.eq.s32.totalorder %s33, 1
      %p50 = por %p48, %p49
      %p51 = scmp.ne.s32.totalorder %s43, %s46
      %p52 = scmp.eq.s32.totalorder %s33, 0
      %p53 = por %p51, %p52
      %p54 = scmp.ne.s32.totalorder %s43, %s46
      %p55 = scmp.eq.s32.totalorder %s38, 1
      %p56 = por %p54, %p55
      %p57 = scmp.ne.s32.totalorder %s46, %s47
      %p58 = scmp.eq.s32.totalorder %s38, 0
      %p59 = por %p57, %p58
      %p60 = scmp.ne.s32.totalorder %s46, %s47
      %p61 = scmp.eq.s32.totalorder %s39, 1
      %p62 = por %p60, %p61
      %p64 = scmp.ne.s32.totalorder %s47, %s63
      %p65 = scmp.eq.s32.totalorder %s39, 0
      %p66 = por %p64, %p65
      %s68 = sadd.s32 %s67, 1
      %p71 = scmp.eq.s32.totalorder %s33, 1
      %p72 = scmp.ne.s32.totalorder %s67, %s69
      %p73 = scmp.eq.s32.totalorder %s33, 0
      %p74 = por %p72, %p73
      %p75 = scmp.ne.s32.totalorder %s67, %s69
      %p76 = scmp.eq.s32.totalorder %s38, 1
      %p77 = por %p75, %p76
      %p78 = scmp.ne.s32.totalorder %s69, %s70
      %p79 = scmp.eq.s32.totalorder %s38, 0
      %p80 = por %p78, %p79
      %p81 = scmp.ne.s32.totalorder %s69, %s70
      %p82 = scmp.eq.s32.totalorder %s39, 1
      %p83 = por %p81, %p82
      %p85 = scmp.ne.s32.totalorder %s70, %s84
      %p86 = scmp.eq.s32.totalorder %s39, 0
      %p87 = por %p85, %p86
      %s89 = sadd.s32 %s88, 1
      %p92 = scmp.eq.s32.totalorder %s33, 1
      %p93 = scmp.ne.s32.totalorder %s88, %s90
      %p94 = scmp.eq.s32.totalorder %s33, 0
      %p95 = por %p93, %p94
      %p96 = scmp.ne.s32.totalorder %s88, %s90
      %p97 = scmp.eq.s32.totalorder %s38, 1
      %p98 = por %p96, %p97
      %p99 = scmp.ne.s32.totalorder %s90, %s91
      %p100 = scmp.eq.s32.totalorder %s38, 0
      %p101 = por %p99, %p100
      %p102 = scmp.ne.s32.totalorder %s90, %s91
      %p103 = scmp.eq.s32.totalorder %s39, 1
      %p104 = por %p102, %p103
      %p106 = scmp.ne.s32.totalorder %s91, %s105
      %p107 = scmp.eq.s32.totalorder %s39, 0
      %p108 = por %p106, %p107
      %s110 = sadd.s32 %s109, 1
      %p113 = scmp.eq.s32.totalorder %s33, 1
      %p114 = scmp.ne.s32.totalorder %s109, %s111
      %p115 = scmp.eq.s32.totalorder %s33, 0
      %p116 = por %p114, %p115
      %p117 = scmp.ne.s32.totalorder %s109, %s111
      %p118 = scmp.eq.s32.totalorder %s38, 1
      %p119 = por %p117, %p118
      %p120 = scmp.ne.s32.totalorder %s111, %s112
      %p121 = scmp.eq.s32.totalorder %s38, 0
      %p122 = por %p120, %p121
      %p123 = scmp.ne.s32.totalorder %s111, %s112
      %p124 = scmp.eq.s32.totalorder %s39, 1
      %p125 = por %p123, %p124
      %p127 = scmp.ne.s32.totalorder %s112, %s126
      %p128 = scmp.eq.s32.totalorder %s39, 0
      %p129 = por %p127, %p128
      %s131 = sadd.s32 %s130, 1
      %p134 = scmp.eq.s32.totalorder %s33, 1
      %p135 = scmp.ne.s32.totalorder %s130, %s132
      %p136 = scmp.eq.s32.totalorder %s33, 0
      %p137 = por %p135, %p136
      %p138 = scmp.ne.s32.totalorder %s130, %s132
      %p139 = scmp.eq.s32.totalorder %s38, 1
      %p140 = por %p138, %p139
      %p141 = scmp.ne.s32.totalorder %s132, %s133
      %p142 = scmp.eq.s32.totalorder %s38, 0
      %p143 = por %p141, %p142
      %p144 = scmp.ne.s32.totalorder %s132, %s133
      %p145 = scmp.eq.s32.totalorder %s39, 1
      %p146 = por %p144, %p145
      %p148 = scmp.ne.s32.totalorder %s133, %s147
      %p149 = scmp.eq.s32.totalorder %s39, 0
      %p150 = por %p148, %p149
      %s152 = sadd.s32 %s151, 1
      %p155 = scmp.eq.s32.totalorder %s33, 1
      %p156 = scmp.ne.s32.totalorder %s151, %s153
      %p157 = scmp.eq.s32.totalorder %s33, 0
      %p158 = por %p156, %p157
      %p159 = scmp.ne.s32.totalorder %s151, %s153
      %p160 = scmp.eq.s32.totalorder %s38, 1
      %p161 = por %p159, %p160
      %p162 = scmp.ne.s32.totalorder %s153, %s154
      %p163 = scmp.eq.s32.totalorder %s38, 0
      %p164 = por %p162, %p163
      %p165 = scmp.ne.s32.totalorder %s153, %s154
      %p166 = scmp.eq.s32.totalorder %s39, 1
      %p167 = por %p165, %p166
      %p169 = scmp.ne.s32.totalorder %s154, %s168
      %p170 = scmp.eq.s32.totalorder %s39, 0
      %p171 = por %p169, %p170
      %s173 = sadd.s32 %s172, 1
      %p176 = scmp.eq.s32.totalorder %s33, 1
      %p177 = scmp.ne.s32.totalorder %s172, %s174
      %p178 = scmp.eq.s32.totalorder %s33, 0
      %p179 = por %p177, %p178
      %p180 = scmp.ne.s32.totalorder %s172, %s174
      %p181 = scmp.eq.s32.totalorder %s38, 1
      %p182 = por %p180, %p181
      %p183 = scmp.ne.s32.totalorder %s174, %s175
      %p184 = scmp.eq.s32.totalorder %s38, 0
      %p185 = por %p183, %p184
      %p186 = scmp.ne.s32.totalorder %s174, %s175
      %p187 = scmp.eq.s32.totalorder %s39, 1
      %p188 = por %p186, %p187
      %p190 = scmp.ne.s32.totalorder %s175, %s189
      %p191 = scmp.eq.s32.totalorder %s39, 0
      %p192 = por %p190, %p191
      %s194 = sadd.s32 %s193, 1
      %p197 = scmp.eq.s32.totalorder %s33, 1
      %p198 = scmp.ne.s32.totalorder %s193, %s195
      %p199 = scmp.eq.s32.totalorder %s33, 0
      %p200 = por %p198, %p199
      %p201 = scmp.ne.s32.totalorder %s193, %s195
      %p202 = scmp.eq.s32.totalorder %s38, 1
      %p203 = por %p201, %p202
      %p204 = scmp.ne.s32.totalorder %s195, %s196
      %p205 = scmp.eq.s32.totalorder %s38, 0
      %p206 = por %p204, %p205
      %p207 = scmp.ne.s32.totalorder %s195, %s196
      %p208 = scmp.eq.s32.totalorder %s39, 1
      %p209 = por %p207, %p208
      %p211 = scmp.ne.s32.totalorder %s196, %s210
      %p212 = scmp.eq.s32.totalorder %s39, 0
      %p213 = por %p211, %p212
      %s215 = sadd.s32 %s214, 1
      %p218 = scmp.eq.s32.totalorder %s33, 1
      %p219 = scmp.ne.s32.totalorder %s214, %s216
      %p220 = scmp.eq.s32.totalorder %s33, 0
      %p221 = por %p219, %p220
      %p222 = scmp.ne.s32.totalorder %s214, %s216
      %p223 = scmp.eq.s32.totalorder %s38, 1
      %p224 = por %p222, %p223
      %p225 = scmp.ne.s32.totalorder %s216, %s217
      %p226 = scmp.eq.s32.totalorder %s38, 0
      %p227 = por %p225, %p226
      %p228 = scmp.ne.s32.totalorder %s216, %s217
      %p229 = scmp.eq.s32.totalorder %s39, 1
      %p230 = por %p228, %p229
      %p232 = scmp.ne.s32.totalorder %s217, %s231
      %p233 = scmp.eq.s32.totalorder %s39, 0
      %p234 = por %p232, %p233
      %s236 = sadd.s32 %s235, 1
      %p239 = scmp.eq.s32.totalorder %s33, 1
      %p240 = scmp.ne.s32.totalorder %s235, %s237
      %p241 = scmp.eq.s32.totalorder %s33, 0
      %p242 = por %p240, %p241
      %p243 = scmp.ne.s32.totalorder %s235, %s237
      %p244 = scmp.eq.s32.totalorder %s38, 1
      %p245 = por %p243, %p244
      %p246 = scmp.ne.s32.totalorder %s237, %s238
      %p247 = scmp.eq.s32.totalorder %s38, 0
      %p248 = por %p246, %p247
      %p249 = scmp.ne.s32.totalorder %s237, %s238
      %p250 = scmp.eq.s32.totalorder %s39, 1
      %p251 = por %p249, %p250
      %p253 = scmp.ne.s32.totalorder %s238, %s252
      %p254 = scmp.eq.s32.totalorder %s39, 0
      %p255 = por %p253, %p254
      %s257 = sadd.s32 %s256, 1
      %p260 = scmp.eq.s32.totalorder %s33, 1
      %p261 = scmp.ne.s32.totalorder %s256, %s258
      %p262 = scmp.eq.s32.totalorder %s33, 0
      %p263 = por %p261, %p262
      %p264 = scmp.ne.s32.totalorder %s256, %s258
      %p265 = scmp.eq.s32.totalorder %s38, 1
      %p266 = por %p264, %p265
      %p267 = scmp.ne.s32.totalorder %s258, %s259
      %p268 = scmp.eq.s32.totalorder %s38, 0
      %p269 = por %p267, %p268
      %p270 = scmp.ne.s32.totalorder %s258, %s259
      %p271 = scmp.eq.s32.totalorder %s39, 1
      %p272 = por %p270, %p271
      %p274 = scmp.ne.s32.totalorder %s259, %s273
      %p275 = scmp.eq.s32.totalorder %s39, 0
      %p276 = por %p274, %p275
      %s278 = sadd.s32 %s277, 1
      %p281 = scmp.eq.s32.totalorder %s33, 1
      %p282 = scmp.ne.s32.totalorder %s277, %s279
      %p283 = scmp.eq.s32.totalorder %s33, 0
      %p284 = por %p282, %p283
      %p285 = scmp.ne.s32.totalorder %s277, %s279
      %p286 = scmp.eq.s32.totalorder %s38, 1
      %p287 = por %p285, %p286
      %p288 = scmp.ne.s32.totalorder %s279, %s280
      %p289 = scmp.eq.s32.totalorder %s38, 0
      %p290 = por %p288, %p289
      %p291 = scmp.ne.s32.totalorder %s279, %s280
      %p292 = scmp.eq.s32.totalorder %s39, 1
      %p293 = por %p291, %p292
      %p295 = scmp.ne.s32.totalorder %s280, %s294
      %p296 = scmp.eq.s32.totalorder %s39, 0
      %p297 = por %p295, %p296
      %s299 = sadd.s32 %s298, 1
      %p302 = scmp.eq.s32.totalorder %s33, 1
      %p303 = scmp.ne.s32.totalorder %s298, %s300
      %p304 = scmp.eq.s32.totalorder %s33, 0
      %p305 = por %p303, %p304
      %p306 = scmp.ne.s32.totalorder %s298, %s300
      %p307 = scmp.eq.s32.totalorder %s38, 1
      %p308 = por %p306, %p307
      %p309 = scmp.ne.s32.totalorder %s300, %s301
      %p310 = scmp.eq.s32.totalorder %s38, 0
      %p311 = por %p309, %p310
      %p312 = scmp.ne.s32.totalorder %s300, %s301
      %p313 = scmp.eq.s32.totalorder %s39, 1
      %p314 = por %p312, %p313
      %p316 = scmp.ne.s32.totalorder %s301, %s315
      %p317 = scmp.eq.s32.totalorder %s39, 0
      %p318 = por %p316, %p317
      %s320 = sadd.s32 %s319, 1
      %p323 = scmp.eq.s32.totalorder %s33, 1
      %p324 = scmp.ne.s32.totalorder %s319, %s321
      %p325 = scmp.eq.s32.totalorder %s33, 0
      %p326 = por %p324, %p325
      %p327 = scmp.ne.s32.totalorder %s319, %s321
      %p328 = scmp.eq.s32.totalorder %s38, 1
      %p329 = por %p327, %p328
      %p330 = scmp.ne.s32.totalorder %s321, %s322
      %p331 = scmp.eq.s32.totalorder %s38, 0
      %p332 = por %p330, %p331
      %p333 = scmp.ne.s32.totalorder %s321, %s322
      %p334 = scmp.eq.s32.totalorder %s39, 1
      %p335 = por %p333, %p334
      %p337 = scmp.ne.s32.totalorder %s322, %s336
      %p338 = scmp.eq.s32.totalorder %s39, 0
      %p339 = por %p337, %p338
      %s341 = sadd.s32 %s340, 1
      %p344 = scmp.eq.s32.totalorder %s33, 1
      %p345 = scmp.ne.s32.totalorder %s340, %s342
      %p346 = scmp.eq.s32.totalorder %s33, 0
      %p347 = por %p345, %p346
      %p348 = scmp.ne.s32.totalorder %s340, %s342
      %p349 = scmp.eq.s32.totalorder %s38, 1
      %p350 = por %p348, %p349
      %p351 = scmp.ne.s32.totalorder %s342, %s343
      %p352 = scmp.eq.s32.totalorder %s38, 0
      %p353 = por %p351, %p352
      %p354 = scmp.ne.s32.totalorder %s342, %s343
      %p355 = scmp.eq.s32.totalorder %s39, 1
      %p356 = por %p354, %p355
      %p358 = scmp.ne.s32.totalorder %s343, %s357
      %p359 = scmp.eq.s32.totalorder %s39, 0
      %p360 = por %p358, %p359
      %s362 = sadd.s32 %s361, 1
      %p365 = scmp.eq.s32.totalorder %s33, 1
      %p366 = scmp.ne.s32.totalorder %s361, %s363
      %p367 = scmp.eq.s32.totalorder %s33, 0
      %p368 = por %p366, %p367
      %p369 = scmp.ne.s32.totalorder %s361, %s363
      %p370 = scmp.eq.s32.totalorder %s38, 1
      %p371 = por %p369, %p370
      %p372 = scmp.ne.s32.totalorder %s363, %s364
      %p373 = scmp.eq.s32.totalorder %s38, 0
      %p374 = por %p372, %p373
      %p375 = scmp.ne.s32.totalorder %s363, %s364
      %p376 = scmp.eq.s32.totalorder %s39, 1
      %p377 = por %p375, %p376
      %p379 = scmp.ne.s32.totalorder %s364, %s378
      %p380 = scmp.eq.s32.totalorder %s39, 0
      %p381 = por %p379, %p380
      %s383 = sadd.s32 %s382, 1
      %p386 = scmp.eq.s32.totalorder %s33, 1
      %p387 = scmp.ne.s32.totalorder %s382, %s384
      %p388 = scmp.eq.s32.totalorder %s33, 0
      %p389 = por %p387, %p388
      %p390 = scmp.ne.s32.totalorder %s382, %s384
      %p391 = scmp.eq.s32.totalorder %s38, 1
      %p392 = por %p390, %p391
      %p393 = scmp.ne.s32.totalorder %s384, %s385
      %p394 = scmp.eq.s32.totalorder %s38, 0
      %p395 = por %p393, %p394
      %p396 = scmp.ne.s32.totalorder %s384, %s385
      %p397 = scmp.eq.s32.totalorder %s39, 1
      %p398 = por %p396, %p397
      %p400 = scmp.ne.s32.totalorder %s385, %s399
      %p401 = scmp.eq.s32.totalorder %s39, 0
      %p402 = por %p400, %p401
      %s404 = sadd.s32 %s403, 1
      %p407 = scmp.eq.s32.totalorder %s33, 1
      %p408 = scmp.ne.s32.totalorder %s403, %s405
      %p409 = scmp.eq.s32.totalorder %s33, 0
      %p410 = por %p408, %p409
      %p411 = scmp.ne.s32.totalorder %s403, %s405
      %p412 = scmp.eq.s32.totalorder %s38, 1
      %p413 = por %p411, %p412
      %p414 = scmp.ne.s32.totalorder %s405, %s406
      %p415 = scmp.eq.s32.totalorder %s38, 0
      %p416 = por %p414, %p415
      %p417 = scmp.ne.s32.totalorder %s405, %s406
      %p418 = scmp.eq.s32.totalorder %s39, 1
      %p419 = por %p417, %p418
      %p421 = scmp.ne.s32.totalorder %s406, %s420
      %p422 = scmp.eq.s32.totalorder %s39, 0
      %p423 = por %p421, %p422
      %s424 = ssub.s32 %s33, %s40
      %p425 = scmp.eq.s32.totalorder %s424, 0
      %s427 = sadd.s32 %s426, 1
      %s428 = scalar_select %p425, %s426, %s427
      %p431 = pneg %p425
      %p432 = scmp.eq.s32.totalorder %s33, 1
      %p433 = por %p431, %p432
      %p434 = scmp.ne.s32.totalorder %s426, %s429
      %p435 = scmp.eq.s32.totalorder %s33, 0
      %p436 = por %p434, %p435
      %p437 = scmp.ne.s32.totalorder %s426, %s429
      %p438 = scmp.eq.s32.totalorder %s38, 1
      %p439 = por %p437, %p438
      %p440 = scmp.ne.s32.totalorder %s429, %s430
      %p441 = scmp.eq.s32.totalorder %s38, 0
      %p442 = por %p440, %p441
      %p443 = scmp.ne.s32.totalorder %s429, %s430
      %p444 = scmp.eq.s32.totalorder %s39, 1
      %p445 = por %p443, %p444
      %p447 = scmp.ne.s32.totalorder %s430, %s446
      %p448 = scmp.eq.s32.totalorder %s39, 0
      %p449 = por %p447, %p448
      %p450 = scmp.le.s32.totalorder 1, %s33
      %p451 = scmp.lt.s32.totalorder %s33, 3
      %p452 = pnand %p450, %p451
      %p453 = pneg %p452
      // Predicated region
      $region9: #{tpu_custom_call.1} parent=5 // pred_check
        _
      $region10: #{tpu_custom_call.1} parent=5 // pred_check_branch
        %455 = sbr.rel (%p452) target = $region12
      $region11: #{tpu_custom_call.1} parent=5 // pred_region
        %s456 = ssub.s32 %s33, 1
        // Predicated region
        $region13: #{tpu_custom_call.1} parent=11 // pred_check
          %p457 = pneg %p80
        $region14: #{tpu_custom_call.1} parent=11 // pred_check_branch
          %459 = sbr.rel (%p457) target = $region16
        $region15: #{tpu_custom_call.1} parent=11 // pred_region
          %s461 = ssub.s32 8192, 8192
          %462 = vsyncadd [#allocation6], %s461
          %s463 = sshll.u32 [#allocation5], 4
          %s464 = int_to_ptr.vmem [resolvable:$true] %s463
          %469 = dma.hbm_to_vmem [thread:$0]  %s1, 8192, %s464, [#allocation6], 512, 512, 32
        $region16: #{tpu_custom_call.1} parent=11 // pred_fallthru
          _
        // Predicated region
        $region17: #{tpu_custom_call.1} parent=11 // pred_check
          %p470 = pneg %p101
        $region18: #{tpu_custom_call.1} parent=11 // pred_check_branch
          %472 = sbr.rel (%p470) target = $region20
        $region19: #{tpu_custom_call.1} parent=11 // pred_region
          _
        $region20: #{tpu_custom_call.1} parent=11 // pred_fallthru
          _
        // Predicated region
        $region21: #{tpu_custom_call.1} parent=11 // pred_check
          %p473 = pneg %p122
        $region22: #{tpu_custom_call.1} parent=11 // pred_check_branch
          %475 = sbr.rel (%p473) target = $region24
        $region23: #{tpu_custom_call.1} parent=11 // pred_region
          %s477 = ssub.s32 16384, 16384
          %478 = vsyncadd [#allocation6], %s477
          %s479 = sshll.u32 [#allocation7], 4
          %s480 = int_to_ptr.vmem [resolvable:$true] %s479
          %485 = dma.hbm_to_vmem [thread:$0]  %s3, 16384, %s480, [#allocation6], 128, 128, 8
        $region24: #{tpu_custom_call.1} parent=11 // pred_fallthru
          _
        // Predicated region
        $region25: #{tpu_custom_call.1} parent=11 // pred_check
          %p486 = pneg %p143
        $region26: #{tpu_custom_call.1} parent=11 // pred_check_branch
          %488 = sbr.rel (%p486) target = $region28
        $region27: #{tpu_custom_call.1} parent=11 // pred_region
          _
        $region28: #{tpu_custom_call.1} parent=11 // pred_fallthru
          _
        // Predicated region
        $region29: #{tpu_custom_call.1} parent=11 // pred_check
          %p489 = pneg %p164
        $region30: #{tpu_custom_call.1} parent=11 // pred_check_branch
          %491 = sbr.rel (%p489) target = $region32
        $region31: #{tpu_custom_call.1} parent=11 // pred_region
          _
        $region32: #{tpu_custom_call.1} parent=11 // pred_fallthru
          _
        // Predicated region
        $region33: #{tpu_custom_call.1} parent=11 // pred_check
          %p492 = pneg %p185
        $region34: #{tpu_custom_call.1} parent=11 // pred_check_branch
          %494 = sbr.rel (%p492) target = $region36
        $region35: #{tpu_custom_call.1} parent=11 // pred_region
          _
        $region36: #{tpu_custom_call.1} parent=11 // pred_fallthru
          _
        // Predicated region
        $region37: #{tpu_custom_call.1} parent=11 // pred_check
          %p495 = pneg %p206
        $region38: #{tpu_custom_call.1} parent=11 // pred_check_branch
          %497 = sbr.rel (%p495) target = $region40
        $region39: #{tpu_custom_call.1} parent=11 // pred_region
          _
        $region40: #{tpu_custom_call.1} parent=11 // pred_fallthru
          _
        // Predicated region
        $region41: #{tpu_custom_call.1} parent=11 // pred_check
          %p498 = pneg %p227
        $region42: #{tpu_custom_call.1} parent=11 // pred_check_branch
          %500 = sbr.rel (%p498) target = $region44
        $region43: #{tpu_custom_call.1} parent=11 // pred_region
          _
        $region44: #{tpu_custom_call.1} parent=11 // pred_fallthru
          _
        // Predicated region
        $region45: #{tpu_custom_call.1} parent=11 // pred_check
          %p501 = pneg %p248
        $region46: #{tpu_custom_call.1} parent=11 // pred_check_branch
          %503 = sbr.rel (%p501) target = $region48
        $region47: #{tpu_custom_call.1} parent=11 // pred_region
          _
        $region48: #{tpu_custom_call.1} parent=11 // pred_fallthru
          _
        // Predicated region
        $region49: #{tpu_custom_call.1} parent=11 // pred_check
          %p504 = pneg %p269
        $region50: #{tpu_custom_call.1} parent=11 // pred_check_branch
          %506 = sbr.rel (%p504) target = $region52
        $region51: #{tpu_custom_call.1} parent=11 // pred_region
          _
        $region52: #{tpu_custom_call.1} parent=11 // pred_fallthru
          _
        // Predicated region
        $region53: #{tpu_custom_call.1} parent=11 // pred_check
          %p507 = pneg %p290
        $region54: #{tpu_custom_call.1} parent=11 // pred_check_branch
          %509 = sbr.rel (%p507) target = $region56
        $region55: #{tpu_custom_call.1} parent=11 // pred_region
          _
        $region56: #{tpu_custom_call.1} parent=11 // pred_fallthru
          _
        // Predicated region
        $region57: #{tpu_custom_call.1} parent=11 // pred_check
          %p510 = pneg %p311
        $region58: #{tpu_custom_call.1} parent=11 // pred_check_branch
          %512 = sbr.rel (%p510) target = $region60
        $region59: #{tpu_custom_call.1} parent=11 // pred_region
          %s514 = ssub.s32 16384, 16384
          %515 = vsyncadd [#allocation9], %s514
          %s516 = sshll.u32 [#allocation8], 4
          %s517 = int_to_ptr.vmem [resolvable:$true] %s516
          %522 = dma.hbm_to_vmem [thread:$0]  %s12, 16384, %s517, [#allocation9], 512, 512, 32
        $region60: #{tpu_custom_call.1} parent=11 // pred_fallthru
          _
        // Predicated region
        $region61: #{tpu_custom_call.1} parent=11 // pred_check
          %p523 = pneg %p332
        $region62: #{tpu_custom_call.1} parent=11 // pred_check_branch
          %525 = sbr.rel (%p523) target = $region64
        $region63: #{tpu_custom_call.1} parent=11 // pred_region
          %s527 = ssub.s32 16384, 16384
          %528 = vsyncadd [#allocation9], %s527
          %s529 = sshll.u32 [#allocation10], 4
          %s530 = int_to_ptr.vmem [resolvable:$true] %s529
          %535 = dma.hbm_to_vmem [thread:$0]  %s13, 16384, %s530, [#allocation9], 512, 512, 32
        $region64: #{tpu_custom_call.1} parent=11 // pred_fallthru
          _
        // Predicated region
        $region65: #{tpu_custom_call.1} parent=11 // pred_check
          %p536 = pneg %p353
        $region66: #{tpu_custom_call.1} parent=11 // pred_check_branch
          %538 = sbr.rel (%p536) target = $region68
        $region67: #{tpu_custom_call.1} parent=11 // pred_region
          _
        $region68: #{tpu_custom_call.1} parent=11 // pred_fallthru
          _
        // Predicated region
        $region69: #{tpu_custom_call.1} parent=11 // pred_check
          %p539 = pneg %p374
        $region70: #{tpu_custom_call.1} parent=11 // pred_check_branch
          %541 = sbr.rel (%p539) target = $region72
        $region71: #{tpu_custom_call.1} parent=11 // pred_region
          %s543 = ssub.s32 8192, 8192
          %544 = vsyncadd [#allocation12], %s543
          %s545 = sshll.u32 [#allocation11], 4
          %s546 = int_to_ptr.vmem [resolvable:$true] %s545
          %551 = dma.hbm_to_vmem [thread:$0]  %s15, 8192, %s546, [#allocation12], 64, 64, 4
        $region72: #{tpu_custom_call.1} parent=11 // pred_fallthru
          _
        // Predicated region
        $region73: #{tpu_custom_call.1} parent=11 // pred_check
          %p552 = pneg %p395
        $region74: #{tpu_custom_call.1} parent=11 // pred_check_branch
          %554 = sbr.rel (%p552) target = $region76
        $region75: #{tpu_custom_call.1} parent=11 // pred_region
          %s556 = ssub.s32 8192, 8192
          %557 = vsyncadd [#allocation12], %s556
          %s558 = sshll.u32 [#allocation13], 4
          %s559 = int_to_ptr.vmem [resolvable:$true] %s558
          %564 = dma.hbm_to_vmem [thread:$0]  %s16, 8192, %s559, [#allocation12], 64, 64, 4
        $region76: #{tpu_custom_call.1} parent=11 // pred_fallthru
          _
        // Predicated region
        $region77: #{tpu_custom_call.1} parent=11 // pred_check
          %p565 = pneg %p416
        $region78: #{tpu_custom_call.1} parent=11 // pred_check_branch
          %567 = sbr.rel (%p565) target = $region80
        $region79: #{tpu_custom_call.1} parent=11 // pred_region
          _
        $region80: #{tpu_custom_call.1} parent=11 // pred_fallthru
          _
      $region12: #{tpu_custom_call.1} parent=5 // pred_fallthru
        _
      %p568 = scmp.lt.s32.totalorder %s33, 2
      // Predicated region
      $region81: #{tpu_custom_call.1} parent=5 // pred_check
        %p569 = pneg %p568
      $region82: #{tpu_custom_call.1} parent=5 // pred_check_branch
        %571 = sbr.rel (%p569) target = $region84
      $region83: #{tpu_custom_call.1} parent=5 // pred_region
        // Predicated region
        $region85: #{tpu_custom_call.1} parent=83 // pred_check
          %p572 = pneg %p53
        $region86: #{tpu_custom_call.1} parent=83 // pred_check_branch
          %574 = sbr.rel (%p572) target = $region88
        $region87: #{tpu_custom_call.1} parent=83 // pred_region
          %s575 = sand.u32 %s43, 1
          %s576 = scalar_lea.sflag [#allocation3], %s575
          %s577 = sand.u32 %s43, 1
          %s578 = smul.addr %s577, 128
          %s579 = scalar_lea.vmem [#allocation2], %s578
          %s580 = smul.u32 32, %s33
          %s582 = ssub.s32 2048, 2048
          %583 = vsyncadd %s576, %s582
          %s584 = smul.addr %s580, 64
          %s585 = scalar_lea.hbm %s0, %s584
          %s586 = sshll.u32 %s579, 4
          %s587 = int_to_ptr.vmem [resolvable:$true] %s586
          %592 = dma.hbm_to_vmem [thread:$0]  %s585, 2048, %s587, %s576, 64, 64, 4
        $region88: #{tpu_custom_call.1} parent=83 // pred_fallthru
          _
      $region84: #{tpu_custom_call.1} parent=5 // pred_fallthru
        _
      %p593 = scmp.le.s32.totalorder 1, %s33
      %p594 = scmp.lt.s32.totalorder %s33, 3
      %p595 = pnand %p593, %p594
      %p596 = pneg %p595
      // Predicated region
      $region89: #{tpu_custom_call.1} parent=5 // pred_check
        _
      $region90: #{tpu_custom_call.1} parent=5 // pred_check_branch
        %598 = sbr.rel (%p595) target = $region92
      $region91: #{tpu_custom_call.1} parent=5 // pred_region
        %s599 = ssub.s32 %s33, 1
        %s600 = sand.u32 %s46, 1
        %s601 = scalar_lea.sflag [#allocation3], %s600
        %s602 = sand.u32 %s46, 1
        %s603 = smul.addr %s602, 128
        %s604 = scalar_lea.vmem [#allocation2], %s603
        // Predicated region
        $region93: #{tpu_custom_call.1} parent=91 // pred_check
          %p605 = pneg %p59
        $region94: #{tpu_custom_call.1} parent=91 // pred_check_branch
          %607 = sbr.rel (%p605) target = $region96
        $region95: #{tpu_custom_call.1} parent=91 // pred_region
          %608 = dma.done %s601, 2048
        $region96: #{tpu_custom_call.1} parent=91 // pred_fallthru
          _
        // Predicated region
        $region97: #{tpu_custom_call.1} parent=91 // pred_check
          %p609 = pneg %p80
        $region98: #{tpu_custom_call.1} parent=91 // pred_check_branch
          %611 = sbr.rel (%p609) target = $region100
        $region99: #{tpu_custom_call.1} parent=91 // pred_region
          %612 = dma.done [#allocation6], 8192
        $region100: #{tpu_custom_call.1} parent=91 // pred_fallthru
          _
        // Predicated region
        $region101: #{tpu_custom_call.1} parent=91 // pred_check
          %p613 = pneg %p122
        $region102: #{tpu_custom_call.1} parent=91 // pred_check_branch
          %615 = sbr.rel (%p613) target = $region104
        $region103: #{tpu_custom_call.1} parent=91 // pred_region
          %616 = dma.done [#allocation6], 16384
        $region104: #{tpu_custom_call.1} parent=91 // pred_fallthru
          _
        // Predicated region
        $region105: #{tpu_custom_call.1} parent=91 // pred_check
          %p617 = pneg %p311
        $region106: #{tpu_custom_call.1} parent=91 // pred_check_branch
          %619 = sbr.rel (%p617) target = $region108
        $region107: #{tpu_custom_call.1} parent=91 // pred_region
          %620 = dma.done [#allocation9], 16384
        $region108: #{tpu_custom_call.1} parent=91 // pred_fallthru
          _
        // Predicated region
        $region109: #{tpu_custom_call.1} parent=91 // pred_check
          %p621 = pneg %p332
        $region110: #{tpu_custom_call.1} parent=91 // pred_check_branch
          %623 = sbr.rel (%p621) target = $region112
        $region111: #{tpu_custom_call.1} parent=91 // pred_region
          %624 = dma.done [#allocation9], 16384
        $region112: #{tpu_custom_call.1} parent=91 // pred_fallthru
          _
        // Predicated region
        $region113: #{tpu_custom_call.1} parent=91 // pred_check
          %p625 = pneg %p374
        $region114: #{tpu_custom_call.1} parent=91 // pred_check_branch
          %627 = sbr.rel (%p625) target = $region116
        $region115: #{tpu_custom_call.1} parent=91 // pred_region
          %628 = dma.done [#allocation12], 8192
        $region116: #{tpu_custom_call.1} parent=91 // pred_fallthru
          _
        // Predicated region
        $region117: #{tpu_custom_call.1} parent=91 // pred_check
          %p629 = pneg %p395
        $region118: #{tpu_custom_call.1} parent=91 // pred_check_branch
          %631 = sbr.rel (%p629) target = $region120
        $region119: #{tpu_custom_call.1} parent=91 // pred_region
          %632 = dma.done [#allocation12], 8192
        $region120: #{tpu_custom_call.1} parent=91 // pred_fallthru
          _
        %s633 = sand.u32 %s46, 1
        %s634 = scalar_lea.sflag [#allocation3], %s633
        %s635 = sand.u32 %s46, 1
        %s636 = smul.addr %s635, 128
        %s637 = scalar_lea.vmem [#allocation2], %s636
        %p638 = pneg %p59
        %p639 = pneg %p56
        %p640 = pneg %p80
        %p641 = pneg %p77
        %p642 = pneg %p101
        %p643 = pneg %p98
        %p644 = pneg %p122
        %p645 = pneg %p119
        %p646 = pneg %p143
        %p647 = pneg %p140
        %p648 = pneg %p164
        %p649 = pneg %p161
        %p650 = pneg %p185
        %p651 = pneg %p182
        %p652 = pneg %p206
        %p653 = pneg %p203
        %p654 = pneg %p227
        %p655 = pneg %p224
        %p656 = pneg %p248
        %p657 = pneg %p245
        %p658 = pneg %p269
        %p659 = pneg %p266
        %p660 = pneg %p290
        %p661 = pneg %p287
        %p662 = pneg %p311
        %p663 = pneg %p308
        %p664 = pneg %p332
        %p665 = pneg %p329
        %p666 = pneg %p353
        %p667 = pneg %p350
        %p668 = pneg %p374
        %p669 = pneg %p371
        %p670 = pneg %p395
        %p671 = pneg %p392
        %p672 = pneg %p416
        %p673 = pneg %p413
        %p674 = pneg %p442
        %p675 = pneg %p439
        %s676 = sand.u32 %s429, 1
        %s677 = scalar_lea.sflag [#allocation4], %s676
        %s678 = sand.u32 %s429, 1
        %s679 = smul.addr %s678, 256
        %s680 = scalar_lea.vmem [#allocation14], %s679
        %s681 = smul.u32 32, %s38
        %s682 = smul.u32 32, %s38
        %v684 = vld [vmem:[%s604] sm:$0xf]
        %v685 = vld [vmem:[%s604 + $0x4] sm:$0xf]
        %v686 = vld [vmem:[%s604 + $0x8] sm:$0xf]
        %v687 = vld [vmem:[%s604 + $0xc] sm:$0xf]
        %v688 = vld [vmem:[%s604 + $0x10] sm:$0xf]
        %v689 = vld [vmem:[%s604 + $0x14] sm:$0xf]
        %v690 = vld [vmem:[%s604 + $0x18] sm:$0xf]
        %v691 = vld [vmem:[%s604 + $0x1c] sm:$0xf]
        %v692 = vld [vmem:[%s604 + $0x20] sm:$0xf]
        %v693 = vld [vmem:[%s604 + $0x24] sm:$0xf]
        %v694 = vld [vmem:[%s604 + $0x28] sm:$0xf]
        %v695 = vld [vmem:[%s604 + $0x2c] sm:$0xf]
        %v696 = vld [vmem:[%s604 + $0x30] sm:$0xf]
        %v697 = vld [vmem:[%s604 + $0x34] sm:$0xf]
        %v698 = vld [vmem:[%s604 + $0x38] sm:$0xf]
        %v699 = vld [vmem:[%s604 + $0x3c] sm:$0xf]
        %v700 = vld [vmem:[%s604 + $0x40] sm:$0xf]
        %v701 = vld [vmem:[%s604 + $0x44] sm:$0xf]
        %v702 = vld [vmem:[%s604 + $0x48] sm:$0xf]
        %v703 = vld [vmem:[%s604 + $0x4c] sm:$0xf]
        %v704 = vld [vmem:[%s604 + $0x50] sm:$0xf]
        %v705 = vld [vmem:[%s604 + $0x54] sm:$0xf]
        %v706 = vld [vmem:[%s604 + $0x58] sm:$0xf]
        %v707 = vld [vmem:[%s604 + $0x5c] sm:$0xf]
        %v708 = vld [vmem:[%s604 + $0x60] sm:$0xf]
        %v709 = vld [vmem:[%s604 + $0x64] sm:$0xf]
        %v710 = vld [vmem:[%s604 + $0x68] sm:$0xf]
        %v711 = vld [vmem:[%s604 + $0x6c] sm:$0xf]
        %v712 = vld [vmem:[%s604 + $0x70] sm:$0xf]
        %v713 = vld [vmem:[%s604 + $0x74] sm:$0xf]
        %v714 = vld [vmem:[%s604 + $0x78] sm:$0xf]
        %v715 = vld [vmem:[%s604 + $0x7c] sm:$0xf]
        %v716 = vld [vmem:[#allocation5] sm:$0xff]
        %v717 = vld [vmem:[#allocation5 + $0x8] sm:$0xff]
        %v718 = vld [vmem:[#allocation5 + $0x10] sm:$0xff]
        %v719 = vld [vmem:[#allocation5 + $0x18] sm:$0xff]
        %v720 = vld [vmem:[#allocation5 + $0x20] sm:$0xff]
        %v721 = vld [vmem:[#allocation5 + $0x28] sm:$0xff]
        %v722 = vld [vmem:[#allocation5 + $0x30] sm:$0xff]
        %v723 = vld [vmem:[#allocation5 + $0x38] sm:$0xff]
        %v724 = vld [vmem:[#allocation5 + $0x40] sm:$0xff]
        %v725 = vld [vmem:[#allocation5 + $0x48] sm:$0xff]
        %v726 = vld [vmem:[#allocation5 + $0x50] sm:$0xff]
        %v727 = vld [vmem:[#allocation5 + $0x58] sm:$0xff]
        %v728 = vld [vmem:[#allocation5 + $0x60] sm:$0xff]
        %v729 = vld [vmem:[#allocation5 + $0x68] sm:$0xff]
        %v730 = vld [vmem:[#allocation5 + $0x70] sm:$0xff]
        %v731 = vld [vmem:[#allocation5 + $0x78] sm:$0xff]
        %v732 = vld [vmem:[#allocation5 + $0x80] sm:$0xff]
        %v733 = vld [vmem:[#allocation5 + $0x88] sm:$0xff]
        %v734 = vld [vmem:[#allocation5 + $0x90] sm:$0xff]
        %v735 = vld [vmem:[#allocation5 + $0x98] sm:$0xff]
        %v736 = vld [vmem:[#allocation5 + $0xa0] sm:$0xff]
        %v737 = vld [vmem:[#allocation5 + $0xa8] sm:$0xff]
        %v738 = vld [vmem:[#allocation5 + $0xb0] sm:$0xff]
        %v739 = vld [vmem:[#allocation5 + $0xb8] sm:$0xff]
        %v740 = vld [vmem:[#allocation5 + $0xc0] sm:$0xff]
        %v741 = vld [vmem:[#allocation5 + $0xc8] sm:$0xff]
        %v742 = vld [vmem:[#allocation5 + $0xd0] sm:$0xff]
        %v743 = vld [vmem:[#allocation5 + $0xd8] sm:$0xff]
        %v744 = vld [vmem:[#allocation5 + $0xe0] sm:$0xff]
        %v745 = vld [vmem:[#allocation5 + $0xe8] sm:$0xff]
        %v746 = vld [vmem:[#allocation5 + $0xf0] sm:$0xff]
        %v747 = vld [vmem:[#allocation5 + $0xf8] sm:$0xff]
        %v748 = vld [vmem:[#allocation5 + $0x100] sm:$0xff]
        %v749 = vld [vmem:[#allocation5 + $0x108] sm:$0xff]
        %v750 = vld [vmem:[#allocation5 + $0x110] sm:$0xff]
        %v751 = vld [vmem:[#allocation5 + $0x118] sm:$0xff]
        %v752 = vld [vmem:[#allocation5 + $0x120] sm:$0xff]
        %v753 = vld [vmem:[#allocation5 + $0x128] sm:$0xff]
        %v754 = vld [vmem:[#allocation5 + $0x130] sm:$0xff]
        %v755 = vld [vmem:[#allocation5 + $0x138] sm:$0xff]
        %v756 = vld [vmem:[#allocation5 + $0x140] sm:$0xff]
        %v757 = vld [vmem:[#allocation5 + $0x148] sm:$0xff]
        %v758 = vld [vmem:[#allocation5 + $0x150] sm:$0xff]
        %v759 = vld [vmem:[#allocation5 + $0x158] sm:$0xff]
        %v760 = vld [vmem:[#allocation5 + $0x160] sm:$0xff]
        %v761 = vld [vmem:[#allocation5 + $0x168] sm:$0xff]
        %v762 = vld [vmem:[#allocation5 + $0x170] sm:$0xff]
        %v763 = vld [vmem:[#allocation5 + $0x178] sm:$0xff]
        %v764 = vld [vmem:[#allocation5 + $0x180] sm:$0xff]
        %v765 = vld [vmem:[#allocation5 + $0x188] sm:$0xff]
        %v766 = vld [vmem:[#allocation5 + $0x190] sm:$0xff]
        %v767 = vld [vmem:[#allocation5 + $0x198] sm:$0xff]
        %v768 = vld [vmem:[#allocation5 + $0x1a0] sm:$0xff]
        %v769 = vld [vmem:[#allocation5 + $0x1a8] sm:$0xff]
        %v770 = vld [vmem:[#allocation5 + $0x1b0] sm:$0xff]
        %v771 = vld [vmem:[#allocation5 + $0x1b8] sm:$0xff]
        %v772 = vld [vmem:[#allocation5 + $0x1c0] sm:$0xff]
        %v773 = vld [vmem:[#allocation5 + $0x1c8] sm:$0xff]
        %v774 = vld [vmem:[#allocation5 + $0x1d0] sm:$0xff]
        %v775 = vld [vmem:[#allocation5 + $0x1d8] sm:$0xff]
        %v776 = vld [vmem:[#allocation5 + $0x1e0] sm:$0xff]
        %v777 = vld [vmem:[#allocation5 + $0x1e8] sm:$0xff]
        %v778 = vld [vmem:[#allocation5 + $0x1f0] sm:$0xff]
        %v779 = vld [vmem:[#allocation5 + $0x1f8] sm:$0xff]
        %v780 = vld [vmem:[%s2] sm:$0xff]
        %v782 = vlaneseq
        %v783 = vshrl.u32 %v782, 7
        %v784 = vsub.s32 0, %v783
        %v785 = vrot.slane %v780, %v784
        %v786 = vlaneseq
        %v787 = vshrl.u32 %v786, 7
        %v788 = vsub.s32 1, %v787
        %v789 = vrot.slane %v780, %v788
        %v790 = vlaneseq
        %v791 = vshrl.u32 %v790, 7
        %v792 = vsub.s32 2, %v791
        %v793 = vrot.slane %v780, %v792
        %v794 = vlaneseq
        %v795 = vshrl.u32 %v794, 7
        %v796 = vsub.s32 3, %v795
        %v797 = vrot.slane %v780, %v796
        %v798 = vlaneseq
        %v799 = vshrl.u32 %v798, 7
        %v800 = vsub.s32 4, %v799
        %v801 = vrot.slane %v780, %v800
        %v802 = vlaneseq
        %v803 = vshrl.u32 %v802, 7
        %v804 = vsub.s32 5, %v803
        %v805 = vrot.slane %v780, %v804
        %v806 = vlaneseq
        %v807 = vshrl.u32 %v806, 7
        %v808 = vsub.s32 6, %v807
        %v809 = vrot.slane %v780, %v808
        %v810 = vlaneseq
        %v811 = vshrl.u32 %v810, 7
        %v812 = vsub.s32 7, %v811
        %v813 = vrot.slane %v780, %v812
        %v854 = vunpack.c.l.b16 %v684
        %v855 = vunpack.c.l.b16 %v685
        %v856 = vunpack.c.l.b16 %v686
        %v857 = vunpack.c.l.b16 %v687
        %v858 = vunpack.c.l.b16 %v688
        %v859 = vunpack.c.l.b16 %v689
        %v860 = vunpack.c.l.b16 %v690
        %v861 = vunpack.c.l.b16 %v691
        %v862 = vunpack.c.l.b16 %v692
        %v863 = vunpack.c.l.b16 %v693
        %v864 = vunpack.c.l.b16 %v694
        %v865 = vunpack.c.l.b16 %v695
        %v866 = vunpack.c.l.b16 %v696
        %v867 = vunpack.c.l.b16 %v697
        %v868 = vunpack.c.l.b16 %v698
        %v869 = vunpack.c.l.b16 %v699
        %v870 = vunpack.c.l.b16 %v700
        %v871 = vunpack.c.l.b16 %v701
        %v872 = vunpack.c.l.b16 %v702
        %v873 = vunpack.c.l.b16 %v703
        %v874 = vunpack.c.l.b16 %v704
        %v875 = vunpack.c.l.b16 %v705
        %v876 = vunpack.c.l.b16 %v706
        %v877 = vunpack.c.l.b16 %v707
        %v878 = vunpack.c.l.b16 %v708
        %v879 = vunpack.c.l.b16 %v709
        %v880 = vunpack.c.l.b16 %v710
        %v881 = vunpack.c.l.b16 %v711
        %v882 = vunpack.c.l.b16 %v712
        %v883 = vunpack.c.l.b16 %v713
        %v884 = vunpack.c.l.b16 %v714
        %v885 = vunpack.c.l.b16 %v715
        %v886 = vpack.c.b16 %v855, %v854
        %v887 = vpack.c.b16 %v857, %v856
        %v888 = vpack.c.b16 %v859, %v858
        %v889 = vpack.c.b16 %v861, %v860
        %v890 = vpack.c.b16 %v863, %v862
        %v891 = vpack.c.b16 %v865, %v864
        %v892 = vpack.c.b16 %v867, %v866
        %v893 = vpack.c.b16 %v869, %v868
        %v894 = vpack.c.b16 %v871, %v870
        %v895 = vpack.c.b16 %v873, %v872
        %v896 = vpack.c.b16 %v875, %v874
        %v897 = vpack.c.b16 %v877, %v876
        %v898 = vpack.c.b16 %v879, %v878
        %v899 = vpack.c.b16 %v881, %v880
        %v900 = vpack.c.b16 %v883, %v882
        %v901 = vpack.c.b16 %v885, %v884
        %v982 = vunpack.c.l.b16 %v716
        %v983 = vunpack.c.h.b16 %v716
        %v984 = vunpack.c.l.b16 %v717
        %v985 = vunpack.c.h.b16 %v717
        %v986 = vunpack.c.l.b16 %v718
        %v987 = vunpack.c.h.b16 %v718
        %v988 = vunpack.c.l.b16 %v719
        %v989 = vunpack.c.h.b16 %v719
        %v990 = vunpack.c.l.b16 %v720
        %v991 = vunpack.c.h.b16 %v720
        %v992 = vunpack.c.l.b16 %v721
        %v993 = vunpack.c.h.b16 %v721
        %v994 = vunpack.c.l.b16 %v722
        %v995 = vunpack.c.h.b16 %v722
        %v996 = vunpack.c.l.b16 %v723
        %v997 = vunpack.c.h.b16 %v723
        %v998 = vunpack.c.l.b16 %v724
        %v999 = vunpack.c.h.b16 %v724
        %v1000 = vunpack.c.l.b16 %v725
        %v1001 = vunpack.c.h.b16 %v725
        %v1002 = vunpack.c.l.b16 %v726
        %v1003 = vunpack.c.h.b16 %v726
        %v1004 = vunpack.c.l.b16 %v727
        %v1005 = vunpack.c.h.b16 %v727
        %v1006 = vunpack.c.l.b16 %v728
        %v1007 = vunpack.c.h.b16 %v728
        %v1008 = vunpack.c.l.b16 %v729
        %v1009 = vunpack.c.h.b16 %v729
        %v1010 = vunpack.c.l.b16 %v730
        %v1011 = vunpack.c.h.b16 %v730
        %v1012 = vunpack.c.l.b16 %v731
        %v1013 = vunpack.c.h.b16 %v731
        %v1014 = vunpack.c.l.b16 %v732
        %v1015 = vunpack.c.h.b16 %v732
        %v1016 = vunpack.c.l.b16 %v733
        %v1017 = vunpack.c.h.b16 %v733
        %v1018 = vunpack.c.l.b16 %v734
        %v1019 = vunpack.c.h.b16 %v734
        %v1020 = vunpack.c.l.b16 %v735
        %v1021 = vunpack.c.h.b16 %v735
        %v1022 = vunpack.c.l.b16 %v736
        %v1023 = vunpack.c.h.b16 %v736
        %v1024 = vunpack.c.l.b16 %v737
        %v1025 = vunpack.c.h.b16 %v737
        %v1026 = vunpack.c.l.b16 %v738
        %v1027 = vunpack.c.h.b16 %v738
        %v1028 = vunpack.c.l.b16 %v739
        %v1029 = vunpack.c.h.b16 %v739
        %v1030 = vunpack.c.l.b16 %v740
        %v1031 = vunpack.c.h.b16 %v740
        %v1032 = vunpack.c.l.b16 %v741
        %v1033 = vunpack.c.h.b16 %v741
        %v1034 = vunpack.c.l.b16 %v742
        %v1035 = vunpack.c.h.b16 %v742
        %v1036 = vunpack.c.l.b16 %v743
        %v1037 = vunpack.c.h.b16 %v743
        %v1038 = vunpack.c.l.b16 %v744
        %v1039 = vunpack.c.h.b16 %v744
        %v1040 = vunpack.c.l.b16 %v745
        %v1041 = vunpack.c.h.b16 %v745
        %v1042 = vunpack.c.l.b16 %v746
        %v1043 = vunpack.c.h.b16 %v746
        %v1044 = vunpack.c.l.b16 %v747
        %v1045 = vunpack.c.h.b16 %v747
        %v1046 = vunpack.c.l.b16 %v748
        %v1047 = vunpack.c.h.b16 %v748
        %v1048 = vunpack.c.l.b16 %v749
        %v1049 = vunpack.c.h.b16 %v749
        %v1050 = vunpack.c.l.b16 %v750
        %v1051 = vunpack.c.h.b16 %v750
        %v1052 = vunpack.c.l.b16 %v751
        %v1053 = vunpack.c.h.b16 %v751
        %v1054 = vunpack.c.l.b16 %v752
        %v1055 = vunpack.c.h.b16 %v752
        %v1056 = vunpack.c.l.b16 %v753
        %v1057 = vunpack.c.h.b16 %v753
        %v1058 = vunpack.c.l.b16 %v754
        %v1059 = vunpack.c.h.b16 %v754
        %v1060 = vunpack.c.l.b16 %v755
        %v1061 = vunpack.c.h.b16 %v755
        %v1062 = vunpack.c.l.b16 %v756
        %v1063 = vunpack.c.h.b16 %v756
        %v1064 = vunpack.c.l.b16 %v757
        %v1065 = vunpack.c.h.b16 %v757
        %v1066 = vunpack.c.l.b16 %v758
        %v1067 = vunpack.c.h.b16 %v758
        %v1068 = vunpack.c.l.b16 %v759
        %v1069 = vunpack.c.h.b16 %v759
        %v1070 = vunpack.c.l.b16 %v760
        %v1071 = vunpack.c.h.b16 %v760
        %v1072 = vunpack.c.l.b16 %v761
        %v1073 = vunpack.c.h.b16 %v761
        %v1074 = vunpack.c.l.b16 %v762
        %v1075 = vunpack.c.h.b16 %v762
        %v1076 = vunpack.c.l.b16 %v763
        %v1077 = vunpack.c.h.b16 %v763
        %v1078 = vunpack.c.l.b16 %v764
        %v1079 = vunpack.c.h.b16 %v764
        %v1080 = vunpack.c.l.b16 %v765
        %v1081 = vunpack.c.h.b16 %v765
        %v1082 = vunpack.c.l.b16 %v766
        %v1083 = vunpack.c.h.b16 %v766
        %v1084 = vunpack.c.l.b16 %v767
        %v1085 = vunpack.c.h.b16 %v767
        %v1086 = vunpack.c.l.b16 %v768
        %v1087 = vunpack.c.h.b16 %v768
        %v1088 = vunpack.c.l.b16 %v769
        %v1089 = vunpack.c.h.b16 %v769
        %v1090 = vunpack.c.l.b16 %v770
        %v1091 = vunpack.c.h.b16 %v770
        %v1092 = vunpack.c.l.b16 %v771
        %v1093 = vunpack.c.h.b16 %v771
        %v1094 = vunpack.c.l.b16 %v772
        %v1095 = vunpack.c.h.b16 %v772
        %v1096 = vunpack.c.l.b16 %v773
        %v1097 = vunpack.c.h.b16 %v773
        %v1098 = vunpack.c.l.b16 %v774
        %v1099 = vunpack.c.h.b16 %v774
        %v1100 = vunpack.c.l.b16 %v775
        %v1101 = vunpack.c.h.b16 %v775
        %v1102 = vunpack.c.l.b16 %v776
        %v1103 = vunpack.c.h.b16 %v776
        %v1104 = vunpack.c.l.b16 %v777
        %v1105 = vunpack.c.h.b16 %v777
        %v1106 = vunpack.c.l.b16 %v778
        %v1107 = vunpack.c.h.b16 %v778
        %v1108 = vunpack.c.l.b16 %v779
        %v1109 = vunpack.c.h.b16 %v779
        %v1110 = vpack.c.b16 %v990, %v982
        %v1111 = vpack.c.b16 %v991, %v983
        %v1112 = vpack.c.b16 %v992, %v984
        %v1113 = vpack.c.b16 %v993, %v985
        %v1114 = vpack.c.b16 %v994, %v986
        %v1115 = vpack.c.b16 %v995, %v987
        %v1116 = vpack.c.b16 %v996, %v988
        %v1117 = vpack.c.b16 %v997, %v989
        %v1118 = vpack.c.b16 %v1006, %v998
        %v1119 = vpack.c.b16 %v1007, %v999
        %v1120 = vpack.c.b16 %v1008, %v1000
        %v1121 = vpack.c.b16 %v1009, %v1001
        %v1122 = vpack.c.b16 %v1010, %v1002
        %v1123 = vpack.c.b16 %v1011, %v1003
        %v1124 = vpack.c.b16 %v1012, %v1004
        %v1125 = vpack.c.b16 %v1013, %v1005
        %v1126 = vpack.c.b16 %v1022, %v1014
        %v1127 = vpack.c.b16 %v1023, %v1015
        %v1128 = vpack.c.b16 %v1024, %v1016
        %v1129 = vpack.c.b16 %v1025, %v1017
        %v1130 = vpack.c.b16 %v1026, %v1018
        %v1131 = vpack.c.b16 %v1027, %v1019
        %v1132 = vpack.c.b16 %v1028, %v1020
        %v1133 = vpack.c.b16 %v1029, %v1021
        %v1134 = vpack.c.b16 %v1038, %v1030
        %v1135 = vpack.c.b16 %v1039, %v1031
        %v1136 = vpack.c.b16 %v1040, %v1032
        %v1137 = vpack.c.b16 %v1041, %v1033
        %v1138 = vpack.c.b16 %v1042, %v1034
        %v1139 = vpack.c.b16 %v1043, %v1035
        %v1140 = vpack.c.b16 %v1044, %v1036
        %v1141 = vpack.c.b16 %v1045, %v1037
        %v1142 = vpack.c.b16 %v1054, %v1046
        %v1143 = vpack.c.b16 %v1055, %v1047
        %v1144 = vpack.c.b16 %v1056, %v1048
        %v1145 = vpack.c.b16 %v1057, %v1049
        %v1146 = vpack.c.b16 %v1058, %v1050
        %v1147 = vpack.c.b16 %v1059, %v1051
        %v1148 = vpack.c.b16 %v1060, %v1052
        %v1149 = vpack.c.b16 %v1061, %v1053
        %v1150 = vpack.c.b16 %v1070, %v1062
        %v1151 = vpack.c.b16 %v1071, %v1063
        %v1152 = vpack.c.b16 %v1072, %v1064
        %v1153 = vpack.c.b16 %v1073, %v1065
        %v1154 = vpack.c.b16 %v1074, %v1066
        %v1155 = vpack.c.b16 %v1075, %v1067
        %v1156 = vpack.c.b16 %v1076, %v1068
        %v1157 = vpack.c.b16 %v1077, %v1069
        %v1158 = vpack.c.b16 %v1086, %v1078
        %v1159 = vpack.c.b16 %v1087, %v1079
        %v1160 = vpack.c.b16 %v1088, %v1080
        %v1161 = vpack.c.b16 %v1089, %v1081
        %v1162 = vpack.c.b16 %v1090, %v1082
        %v1163 = vpack.c.b16 %v1091, %v1083
        %v1164 = vpack.c.b16 %v1092, %v1084
        %v1165 = vpack.c.b16 %v1093, %v1085
        %v1166 = vpack.c.b16 %v1102, %v1094
        %v1167 = vpack.c.b16 %v1103, %v1095
        %v1168 = vpack.c.b16 %v1104, %v1096
        %v1169 = vpack.c.b16 %v1105, %v1097
        %v1170 = vpack.c.b16 %v1106, %v1098
        %v1171 = vpack.c.b16 %v1107, %v1099
        %v1172 = vpack.c.b16 %v1108, %v1100
        %v1173 = vpack.c.b16 %v1109, %v1101
        %1238 = vmatprep.subr.bf16.mxu0 %v1111
        %1239 = vmatpush1.bf16.msra.mxu0 %v1110
        %1240 = vmatprep.subr.bf16.mxu0 %v1119
        %1241 = vmatpush1.bf16.msra.mxu0 %v1118
        %1242 = vmatprep.subr.bf16.mxu0 %v1127
        %1243 = vmatpush1.bf16.msra.mxu0 %v1126
        %1244 = vmatprep.subr.bf16.mxu0 %v1135
        %1245 = vmatpush1.bf16.msra.mxu0 %v1134
        %1246 = vmatprep.subr.bf16.mxu0 %v1143
        %1247 = vmatpush1.bf16.msra.mxu0 %v1142
        %1248 = vmatprep.subr.bf16.mxu0 %v1151
        %1249 = vmatpush1.bf16.msra.mxu0 %v1150
        %1250 = vmatprep.subr.bf16.mxu0 %v1159
        %1251 = vmatpush1.bf16.msra.mxu0 %v1158
        %1252 = vmatprep.subr.bf16.mxu0 %v1167
        %1253 = vmatpush1.bf16.msra.mxu0 %v1166
        %1254 = vmatprep.subr.bf16.mxu0 0
        %1255 = vmatpush1.bf16.msra.mxu0 0
        %1256 = vmatprep.subr.bf16.mxu0 0
        %1257 = vmatpush1.bf16.msra.mxu0 0
        %1258 = vmatprep.subr.bf16.mxu0 0
        %1259 = vmatpush1.bf16.msra.mxu0 0
        %1260 = vmatprep.subr.bf16.mxu0 0
        %1261 = vmatpush1.bf16.msra.mxu0 0
        %1262 = vmatprep.subr.bf16.mxu0 0
        %1263 = vmatpush1.bf16.msra.mxu0 0
        %1264 = vmatprep.subr.bf16.mxu0 0
        %1265 = vmatpush1.bf16.msra.mxu0 0
        %1266 = vmatprep.subr.bf16.mxu0 0
        %1267 = vmatpush1.bf16.msra.mxu0 0
        %1268 = vmatprep.subr.bf16.mxu0 0
        %1269 = vmatpush1.bf16.msra.mxu0 0
        %1270 = vmatprep.mubr.bf16.mxu0 0
        %1271 = vmatmul.mubr.bf16.gmra.mrb[0].mxu0 %v886
        %v1272 = vpop.f32.mrb[0].mxu0
        %v1273 = vadd.f32 %v785, %v1272
        %v1274 = vpop.f32.mrb[0].mxu0
        %v1275 = vadd.f32 %v789, %v1274
        %v1276 = vpop.f32.mrb[0].mxu0
        %v1277 = vadd.f32 %v785, %v1276
        %v1278 = vpop.f32.mrb[0].mxu0
        %v1279 = vadd.f32 %v789, %v1278
        %1280 = vmatprep.mubr.bf16.mxu0 0
        %1281 = vmatmul.mubr.bf16.gmra.mrb[0].mxu0 %v887
        %v1282 = vpop.f32.mrb[0].mxu0
        %v1283 = vadd.f32 %v785, %v1282
        %v1284 = vpop.f32.mrb[0].mxu0
        %v1285 = vadd.f32 %v789, %v1284
        %v1286 = vpop.f32.mrb[0].mxu0
        %v1287 = vadd.f32 %v785, %v1286
        %v1288 = vpop.f32.mrb[0].mxu0
        %v1289 = vadd.f32 %v789, %v1288
        %1290 = vmatprep.mubr.bf16.mxu0 0
        %1291 = vmatmul.mubr.bf16.gmra.mrb[0].mxu0 %v888
        %v1292 = vpop.f32.mrb[0].mxu0
        %v1293 = vadd.f32 %v785, %v1292
        %v1294 = vpop.f32.mrb[0].mxu0
        %v1295 = vadd.f32 %v789, %v1294
        %v1296 = vpop.f32.mrb[0].mxu0
        %v1297 = vadd.f32 %v785, %v1296
        %v1298 = vpop.f32.mrb[0].mxu0
        %v1299 = vadd.f32 %v789, %v1298
        %1300 = vmatprep.mubr.bf16.mxu0 0
        %1301 = vmatmul.mubr.bf16.gmra.mrb[0].mxu0 %v889
        %v1302 = vpop.f32.mrb[0].mxu0
        %v1303 = vadd.f32 %v785, %v1302
        %v1304 = vpop.f32.mrb[0].mxu0
        %v1305 = vadd.f32 %v789, %v1304
        %v1306 = vpop.f32.mrb[0].mxu0
        %v1307 = vadd.f32 %v785, %v1306
        %v1308 = vpop.f32.mrb[0].mxu0
        %v1309 = vadd.f32 %v789, %v1308
        %1310 = vmatprep.mubr.bf16.mxu0 0
        %1311 = vmatmul.mubr.bf16.gmra.mrb[0].mxu0 %v890
        %v1312 = vpop.f32.mrb[0].mxu0
        %v1313 = vadd.f32 %v785, %v1312
        %v1314 = vpop.f32.mrb[0].mxu0
        %v1315 = vadd.f32 %v789, %v1314
        %v1316 = vpop.f32.mrb[0].mxu0
        %v1317 = vadd.f32 %v785, %v1316
        %v1318 = vpop.f32.mrb[0].mxu0
        %v1319 = vadd.f32 %v789, %v1318
        %1320 = vmatprep.mubr.bf16.mxu0 0
        %1321 = vmatmul.mubr.bf16.gmra.mrb[0].mxu0 %v891
        %v1322 = vpop.f32.mrb[0].mxu0
        %v1323 = vadd.f32 %v785, %v1322
        %v1324 = vpop.f32.mrb[0].mxu0
        %v1325 = vadd.f32 %v789, %v1324
        %v1326 = vpop.f32.mrb[0].mxu0
        %v1327 = vadd.f32 %v785, %v1326
        %v1328 = vpop.f32.mrb[0].mxu0
        %v1329 = vadd.f32 %v789, %v1328
        %1330 = vmatprep.mubr.bf16.mxu0 0
        %1331 = vmatmul.mubr.bf16.gmra.mrb[0].mxu0 %v892
        %v1332 = vpop.f32.mrb[0].mxu0
        %v1333 = vadd.f32 %v785, %v1332
        %v1334 = vpop.f32.mrb[0].mxu0
        %v1335 = vadd.f32 %v789, %v1334
        %v1336 = vpop.f32.mrb[0].mxu0
        %v1337 = vadd.f32 %v785, %v1336
        %v1338 = vpop.f32.mrb[0].mxu0
        %v1339 = vadd.f32 %v789, %v1338
        %1340 = vmatprep.mubr.bf16.mxu0 0
        %1341 = vmatmul.mubr.bf16.gmra.mrb[0].mxu0 %v893
        %v1342 = vpop.f32.mrb[0].mxu0
        %v1343 = vadd.f32 %v785, %v1342
        %v1344 = vpop.f32.mrb[0].mxu0
        %v1345 = vadd.f32 %v789, %v1344
        %v1346 = vpop.f32.mrb[0].mxu0
        %v1347 = vadd.f32 %v785, %v1346
        %v1348 = vpop.f32.mrb[0].mxu0
        %v1349 = vadd.f32 %v789, %v1348
        %1350 = vmatprep.mubr.bf16.mxu0 0
        %1351 = vmatmul.mubr.bf16.gmra.mrb[0].mxu0 %v894
        %v1352 = vpop.f32.mrb[0].mxu0
        %v1353 = vadd.f32 %v785, %v1352
        %v1354 = vpop.f32.mrb[0].mxu0
        %v1355 = vadd.f32 %v789, %v1354
        %v1356 = vpop.f32.mrb[0].mxu0
        %v1357 = vadd.f32 %v785, %v1356
        %v1358 = vpop.f32.mrb[0].mxu0
        %v1359 = vadd.f32 %v789, %v1358
        %1360 = vmatprep.mubr.bf16.mxu0 0
        %1361 = vmatmul.mubr.bf16.gmra.mrb[0].mxu0 %v895
        %v1362 = vpop.f32.mrb[0].mxu0
        %v1363 = vadd.f32 %v785, %v1362
        %v1364 = vpop.f32.mrb[0].mxu0
        %v1365 = vadd.f32 %v789, %v1364
        %v1366 = vpop.f32.mrb[0].mxu0
        %v1367 = vadd.f32 %v785, %v1366
        %v1368 = vpop.f32.mrb[0].mxu0
        %v1369 = vadd.f32 %v789, %v1368
        %1370 = vmatprep.mubr.bf16.mxu0 0
        %1371 = vmatmul.mubr.bf16.gmra.mrb[0].mxu0 %v896
        %v1372 = vpop.f32.mrb[0].mxu0
        %v1373 = vadd.f32 %v785, %v1372
        %v1374 = vpop.f32.mrb[0].mxu0
        %v1375 = vadd.f32 %v789, %v1374
        %v1376 = vpop.f32.mrb[0].mxu0
        %v1377 = vadd.f32 %v785, %v1376
        %v1378 = vpop.f32.mrb[0].mxu0
        %v1379 = vadd.f32 %v789, %v1378
        %1380 = vmatprep.mubr.bf16.mxu0 0
        %1381 = vmatmul.mubr.bf16.gmra.mrb[0].mxu0 %v897
        %v1382 = vpop.f32.mrb[0].mxu0
        %v1383 = vadd.f32 %v785, %v1382
        %v1384 = vpop.f32.mrb[0].mxu0
        %v1385 = vadd.f32 %v789, %v1384
        %v1386 = vpop.f32.mrb[0].mxu0
        %v1387 = vadd.f32 %v785, %v1386
        %v1388 = vpop.f32.mrb[0].mxu0
        %v1389 = vadd.f32 %v789, %v1388
        %1390 = vmatprep.mubr.bf16.mxu0 0
        %1391 = vmatmul.mubr.bf16.gmra.mrb[0].mxu0 %v898
        %v1392 = vpop.f32.mrb[0].mxu0
        %v1393 = vadd.f32 %v785, %v1392
        %v1394 = vpop.f32.mrb[0].mxu0
        %v1395 = vadd.f32 %v789, %v1394
        %v1396 = vpop.f32.mrb[0].mxu0
        %v1397 = vadd.f32 %v785, %v1396
        %v1398 = vpop.f32.mrb[0].mxu0
        %v1399 = vadd.f32 %v789, %v1398
        %1400 = vmatprep.mubr.bf16.mxu0 0
        %1401 = vmatmul.mubr.bf16.gmra.mrb[0].mxu0 %v899
        %v1402 = vpop.f32.mrb[0].mxu0
        %v1403 = vadd.f32 %v785, %v1402
        %v1404 = vpop.f32.mrb[0].mxu0
        %v1405 = vadd.f32 %v789, %v1404
        %v1406 = vpop.f32.mrb[0].mxu0
        %v1407 = vadd.f32 %v785, %v1406
        %v1408 = vpop.f32.mrb[0].mxu0
        %v1409 = vadd.f32 %v789, %v1408
        %1410 = vmatprep.mubr.bf16.mxu0 0
        %1411 = vmatmul.mubr.bf16.gmra.mrb[0].mxu0 %v900
        %v1412 = vpop.f32.mrb[0].mxu0
        %v1413 = vadd.f32 %v785, %v1412
        %v1414 = vpop.f32.mrb[0].mxu0
        %v1415 = vadd.f32 %v789, %v1414
        %v1416 = vpop.f32.mrb[0].mxu0
        %v1417 = vadd.f32 %v785, %v1416
        %v1418 = vpop.f32.mrb[0].mxu0
        %v1419 = vadd.f32 %v789, %v1418
        %1420 = vmatprep.mubr.bf16.mxu0 0
        %1421 = vmatmul.mubr.bf16.gmra.mrb[0].mxu0 %v901
        %v1422 = vpop.f32.mrb[0].mxu0
        %v1423 = vadd.f32 %v785, %v1422
        %v1424 = vpop.f32.mrb[0].mxu0
        %v1425 = vadd.f32 %v789, %v1424
        %v1426 = vpop.f32.mrb[0].mxu0
        %v1427 = vadd.f32 %v785, %v1426
        %v1428 = vpop.f32.mrb[0].mxu0
        %v1429 = vadd.f32 %v789, %v1428
        %1430 = vdwg.mxu0
        %1431 = vmatprep.subr.bf16.mxu0 %v1113
        %1432 = vmatpush1.bf16.msra.mxu0 %v1112
        %1433 = vmatprep.subr.bf16.mxu0 %v1121
        %1434 = vmatpush1.bf16.msra.mxu0 %v1120
        %1435 = vmatprep.subr.bf16.mxu0 %v1129
        %1436 = vmatpush1.bf16.msra.mxu0 %v1128
        %1437 = vmatprep.subr.bf16.mxu0 %v1137
        %1438 = vmatpush1.bf16.msra.mxu0 %v1136
        %1439 = vmatprep.subr.bf16.mxu0 %v1145
        %1440 = vmatpush1.bf16.msra.mxu0 %v1144
        %1441 = vmatprep.subr.bf16.mxu0 %v1153
        %1442 = vmatpush1.bf16.msra.mxu0 %v1152
        %1443 = vmatprep.subr.bf16.mxu0 %v1161
        %1444 = vmatpush1.bf16.msra.mxu0 %v1160
        %1445 = vmatprep.subr.bf16.mxu0 %v1169
        %1446 = vmatpush1.bf16.msra.mxu0 %v1168
        %1447 = vmatprep.subr.bf16.mxu0 0
        %1448 = vmatpush1.bf16.msra.mxu0 0
        %1449 = vmatprep.subr.bf16.mxu0 0
        %1450 = vmatpush1.bf16.msra.mxu0 0
        %1451 = vmatprep.subr.bf16.mxu0 0
        %1452 = vmatpush1.bf16.msra.mxu0 0
        %1453 = vmatprep.subr.bf16.mxu0 0
        %1454 = vmatpush1.bf16.msra.mxu0 0
        %1455 = vmatprep.subr.bf16.mxu0 0
        %1456 = vmatpush1.bf16.msra.mxu0 0
        %1457 = vmatprep.subr.bf16.mxu0 0
        %1458 = vmatpush1.bf16.msra.mxu0 0
        %1459 = vmatprep.subr.bf16.mxu0 0
        %1460 = vmatpush1.bf16.msra.mxu0 0
        %1461 = vmatprep.subr.bf16.mxu0 0
        %1462 = vmatpush1.bf16.msra.mxu0 0
        %1463 = vmatprep.mubr.bf16.mxu0 0
        %1464 = vmatmul.mubr.bf16.gmra.mrb[0].mxu0 %v886
        %v1465 = vpop.f32.mrb[0].mxu0
        %v1466 = vadd.f32 %v793, %v1465
        %v1467 = vpop.f32.mrb[0].mxu0
        %v1468 = vadd.f32 %v797, %v1467
        %v1469 = vpop.f32.mrb[0].mxu0
        %v1470 = vadd.f32 %v793, %v1469
        %v1471 = vpop.f32.mrb[0].mxu0
        %v1472 = vadd.f32 %v797, %v1471
        %1473 = vmatprep.mubr.bf16.mxu0 0
        %1474 = vmatmul.mubr.bf16.gmra.mrb[0].mxu0 %v887
        %v1475 = vpop.f32.mrb[0].mxu0
        %v1476 = vadd.f32 %v793, %v1475
        %v1477 = vpop.f32.mrb[0].mxu0
        %v1478 = vadd.f32 %v797, %v1477
        %v1479 = vpop.f32.mrb[0].mxu0
        %v1480 = vadd.f32 %v793, %v1479
        %v1481 = vpop.f32.mrb[0].mxu0
        %v1482 = vadd.f32 %v797, %v1481
        %1483 = vmatprep.mubr.bf16.mxu0 0
        %1484 = vmatmul.mubr.bf16.gmra.mrb[0].mxu0 %v888
        %v1485 = vpop.f32.mrb[0].mxu0
        %v1486 = vadd.f32 %v793, %v1485
        %v1487 = vpop.f32.mrb[0].mxu0
        %v1488 = vadd.f32 %v797, %v1487
        %v1489 = vpop.f32.mrb[0].mxu0
        %v1490 = vadd.f32 %v793, %v1489
        %v1491 = vpop.f32.mrb[0].mxu0
        %v1492 = vadd.f32 %v797, %v1491
        %1493 = vmatprep.mubr.bf16.mxu0 0
        %1494 = vmatmul.mubr.bf16.gmra.mrb[0].mxu0 %v889
        %v1495 = vpop.f32.mrb[0].mxu0
        %v1496 = vadd.f32 %v793, %v1495
        %v1497 = vpop.f32.mrb[0].mxu0
        %v1498 = vadd.f32 %v797, %v1497
        %v1499 = vpop.f32.mrb[0].mxu0
        %v1500 = vadd.f32 %v793, %v1499
        %v1501 = vpop.f32.mrb[0].mxu0
        %v1502 = vadd.f32 %v797, %v1501
        %1503 = vmatprep.mubr.bf16.mxu0 0
        %1504 = vmatmul.mubr.bf16.gmra.mrb[0].mxu0 %v890
        %v1505 = vpop.f32.mrb[0].mxu0
        %v1506 = vadd.f32 %v793, %v1505
        %v1507 = vpop.f32.mrb[0].mxu0
        %v1508 = vadd.f32 %v797, %v1507
        %v1509 = vpop.f32.mrb[0].mxu0
        %v1510 = vadd.f32 %v793, %v1509
        %v1511 = vpop.f32.mrb[0].mxu0
        %v1512 = vadd.f32 %v797, %v1511
        %1513 = vmatprep.mubr.bf16.mxu0 0
        %1514 = vmatmul.mubr.bf16.gmra.mrb[0].mxu0 %v891
        %v1515 = vpop.f32.mrb[0].mxu0
        %v1516 = vadd.f32 %v793, %v1515
        %v1517 = vpop.f32.mrb[0].mxu0
        %v1518 = vadd.f32 %v797, %v1517
        %v1519 = vpop.f32.mrb[0].mxu0
        %v1520 = vadd.f32 %v793, %v1519
        %v1521 = vpop.f32.mrb[0].mxu0
        %v1522 = vadd.f32 %v797, %v1521
        %1523 = vmatprep.mubr.bf16.mxu0 0
        %1524 = vmatmul.mubr.bf16.gmra.mrb[0].mxu0 %v892
        %v1525 = vpop.f32.mrb[0].mxu0
        %v1526 = vadd.f32 %v793, %v1525
        %v1527 = vpop.f32.mrb[0].mxu0
        %v1528 = vadd.f32 %v797, %v1527
        %v1529 = vpop.f32.mrb[0].mxu0
        %v1530 = vadd.f32 %v793, %v1529
        %v1531 = vpop.f32.mrb[0].mxu0
        %v1532 = vadd.f32 %v797, %v1531
        %1533 = vmatprep.mubr.bf16.mxu0 0
        %1534 = vmatmul.mubr.bf16.gmra.mrb[0].mxu0 %v893
        %v1535 = vpop.f32.mrb[0].mxu0
        %v1536 = vadd.f32 %v793, %v1535
        %v1537 = vpop.f32.mrb[0].mxu0
        %v1538 = vadd.f32 %v797, %v1537
        %v1539 = vpop.f32.mrb[0].mxu0
        %v1540 = vadd.f32 %v793, %v1539
        %v1541 = vpop.f32.mrb[0].mxu0
        %v1542 = vadd.f32 %v797, %v1541
        %1543 = vmatprep.mubr.bf16.mxu0 0
        %1544 = vmatmul.mubr.bf16.gmra.mrb[0].mxu0 %v894
        %v1545 = vpop.f32.mrb[0].mxu0
        %v1546 = vadd.f32 %v793, %v1545
        %v1547 = vpop.f32.mrb[0].mxu0
        %v1548 = vadd.f32 %v797, %v1547
        %v1549 = vpop.f32.mrb[0].mxu0
        %v1550 = vadd.f32 %v793, %v1549
        %v1551 = vpop.f32.mrb[0].mxu0
        %v1552 = vadd.f32 %v797, %v1551
        %1553 = vmatprep.mubr.bf16.mxu0 0
        %1554 = vmatmul.mubr.bf16.gmra.mrb[0].mxu0 %v895
        %v1555 = vpop.f32.mrb[0].mxu0
        %v1556 = vadd.f32 %v793, %v1555
        %v1557 = vpop.f32.mrb[0].mxu0
        %v1558 = vadd.f32 %v797, %v1557
        %v1559 = vpop.f32.mrb[0].mxu0
        %v1560 = vadd.f32 %v793, %v1559
        %v1561 = vpop.f32.mrb[0].mxu0
        %v1562 = vadd.f32 %v797, %v1561
        %1563 = vmatprep.mubr.bf16.mxu0 0
        %1564 = vmatmul.mubr.bf16.gmra.mrb[0].mxu0 %v896
        %v1565 = vpop.f32.mrb[0].mxu0
        %v1566 = vadd.f32 %v793, %v1565
        %v1567 = vpop.f32.mrb[0].mxu0
        %v1568 = vadd.f32 %v797, %v1567
        %v1569 = vpop.f32.mrb[0].mxu0
        %v1570 = vadd.f32 %v793, %v1569
        %v1571 = vpop.f32.mrb[0].mxu0
        %v1572 = vadd.f32 %v797, %v1571
        %1573 = vmatprep.mubr.bf16.mxu0 0
        %1574 = vmatmul.mubr.bf16.gmra.mrb[0].mxu0 %v897
        %v1575 = vpop.f32.mrb[0].mxu0
        %v1576 = vadd.f32 %v793, %v1575
        %v1577 = vpop.f32.mrb[0].mxu0
        %v1578 = vadd.f32 %v797, %v1577
        %v1579 = vpop.f32.mrb[0].mxu0
        %v1580 = vadd.f32 %v793, %v1579
        %v1581 = vpop.f32.mrb[0].mxu0
        %v1582 = vadd.f32 %v797, %v1581
        %1583 = vmatprep.mubr.bf16.mxu0 0
        %1584 = vmatmul.mubr.bf16.gmra.mrb[0].mxu0 %v898
        %v1585 = vpop.f32.mrb[0].mxu0
        %v1586 = vadd.f32 %v793, %v1585
        %v1587 = vpop.f32.mrb[0].mxu0
        %v1588 = vadd.f32 %v797, %v1587
        %v1589 = vpop.f32.mrb[0].mxu0
        %v1590 = vadd.f32 %v793, %v1589
        %v1591 = vpop.f32.mrb[0].mxu0
        %v1592 = vadd.f32 %v797, %v1591
        %1593 = vmatprep.mubr.bf16.mxu0 0
        %1594 = vmatmul.mubr.bf16.gmra.mrb[0].mxu0 %v899
        %v1595 = vpop.f32.mrb[0].mxu0
        %v1596 = vadd.f32 %v793, %v1595
        %v1597 = vpop.f32.mrb[0].mxu0
        %v1598 = vadd.f32 %v797, %v1597
        %v1599 = vpop.f32.mrb[0].mxu0
        %v1600 = vadd.f32 %v793, %v1599
        %v1601 = vpop.f32.mrb[0].mxu0
        %v1602 = vadd.f32 %v797, %v1601
        %1603 = vmatprep.mubr.bf16.mxu0 0
        %1604 = vmatmul.mubr.bf16.gmra.mrb[0].mxu0 %v900
        %v1605 = vpop.f32.mrb[0].mxu0
        %v1606 = vadd.f32 %v793, %v1605
        %v1607 = vpop.f32.mrb[0].mxu0
        %v1608 = vadd.f32 %v797, %v1607
        %v1609 = vpop.f32.mrb[0].mxu0
        %v1610 = vadd.f32 %v793, %v1609
        %v1611 = vpop.f32.mrb[0].mxu0
        %v1612 = vadd.f32 %v797, %v1611
        %1613 = vmatprep.mubr.bf16.mxu0 0
        %1614 = vmatmul.mubr.bf16.gmra.mrb[0].mxu0 %v901
        %v1615 = vpop.f32.mrb[0].mxu0
        %v1616 = vadd.f32 %v793, %v1615
        %v1617 = vpop.f32.mrb[0].mxu0
        %v1618 = vadd.f32 %v797, %v1617
        %v1619 = vpop.f32.mrb[0].mxu0
        %v1620 = vadd.f32 %v793, %v1619
        %v1621 = vpop.f32.mrb[0].mxu0
        %v1622 = vadd.f32 %v797, %v1621
        %1623 = vdwg.mxu0
        %1624 = vmatprep.subr.bf16.mxu0 %v1115
        %1625 = vmatpush1.bf16.msra.mxu0 %v1114
        %1626 = vmatprep.subr.bf16.mxu0 %v1123
        %1627 = vmatpush1.bf16.msra.mxu0 %v1122
        %1628 = vmatprep.subr.bf16.mxu0 %v1131
        %1629 = vmatpush1.bf16.msra.mxu0 %v1130
        %1630 = vmatprep.subr.bf16.mxu0 %v1139
        %1631 = vmatpush1.bf16.msra.mxu0 %v1138
        %1632 = vmatprep.subr.bf16.mxu0 %v1147
        %1633 = vmatpush1.bf16.msra.mxu0 %v1146
        %1634 = vmatprep.subr.bf16.mxu0 %v1155
        %1635 = vmatpush1.bf16.msra.mxu0 %v1154
        %1636 = vmatprep.subr.bf16.mxu0 %v1163
        %1637 = vmatpush1.bf16.msra.mxu0 %v1162
        %1638 = vmatprep.subr.bf16.mxu0 %v1171
        %1639 = vmatpush1.bf16.msra.mxu0 %v1170
        %1640 = vmatprep.subr.bf16.mxu0 0
        %1641 = vmatpush1.bf16.msra.mxu0 0
        %1642 = vmatprep.subr.bf16.mxu0 0
        %1643 = vmatpush1.bf16.msra.mxu0 0
        %1644 = vmatprep.subr.bf16.mxu0 0
        %1645 = vmatpush1.bf16.msra.mxu0 0
        %1646 = vmatprep.subr.bf16.mxu0 0
        %1647 = vmatpush1.bf16.msra.mxu0 0
        %1648 = vmatprep.subr.bf16.mxu0 0
        %1649 = vmatpush1.bf16.msra.mxu0 0
        %1650 = vmatprep.subr.bf16.mxu0 0
        %1651 = vmatpush1.bf16.msra.mxu0 0
        %1652 = vmatprep.subr.bf16.mxu0 0
        %1653 = vmatpush1.bf16.msra.mxu0 0
        %1654 = vmatprep.subr.bf16.mxu0 0
        %1655 = vmatpush1.bf16.msra.mxu0 0
        %1656 = vmatprep.mubr.bf16.mxu0 0
        %1657 = vmatmul.mubr.bf16.gmra.mrb[0].mxu0 %v886
        %v1658 = vpop.f32.mrb[0].mxu0
        %v1659 = vadd.f32 %v801, %v1658
        %v1660 = vpop.f32.mrb[0].mxu0
        %v1661 = vadd.f32 %v805, %v1660
        %v1662 = vpop.f32.mrb[0].mxu0
        %v1663 = vadd.f32 %v801, %v1662
        %v1664 = vpop.f32.mrb[0].mxu0
        %v1665 = vadd.f32 %v805, %v1664
        %1666 = vmatprep.mubr.bf16.mxu0 0
        %1667 = vmatmul.mubr.bf16.gmra.mrb[0].mxu0 %v887
        %v1668 = vpop.f32.mrb[0].mxu0
        %v1669 = vadd.f32 %v801, %v1668
        %v1670 = vpop.f32.mrb[0].mxu0
        %v1671 = vadd.f32 %v805, %v1670
        %v1672 = vpop.f32.mrb[0].mxu0
        %v1673 = vadd.f32 %v801, %v1672
        %v1674 = vpop.f32.mrb[0].mxu0
        %v1675 = vadd.f32 %v805, %v1674
        %1676 = vmatprep.mubr.bf16.mxu0 0
        %1677 = vmatmul.mubr.bf16.gmra.mrb[0].mxu0 %v888
        %v1678 = vpop.f32.mrb[0].mxu0
        %v1679 = vadd.f32 %v801, %v1678
        %v1680 = vpop.f32.mrb[0].mxu0
        %v1681 = vadd.f32 %v805, %v1680
        %v1682 = vpop.f32.mrb[0].mxu0
        %v1683 = vadd.f32 %v801, %v1682
        %v1684 = vpop.f32.mrb[0].mxu0
        %v1685 = vadd.f32 %v805, %v1684
        %1686 = vmatprep.mubr.bf16.mxu0 0
        %1687 = vmatmul.mubr.bf16.gmra.mrb[0].mxu0 %v889
        %v1688 = vpop.f32.mrb[0].mxu0
        %v1689 = vadd.f32 %v801, %v1688
        %v1690 = vpop.f32.mrb[0].mxu0
        %v1691 = vadd.f32 %v805, %v1690
        %v1692 = vpop.f32.mrb[0].mxu0
        %v1693 = vadd.f32 %v801, %v1692
        %v1694 = vpop.f32.mrb[0].mxu0
        %v1695 = vadd.f32 %v805, %v1694
        %1696 = vmatprep.mubr.bf16.mxu0 0
        %1697 = vmatmul.mubr.bf16.gmra.mrb[0].mxu0 %v890
        %v1698 = vpop.f32.mrb[0].mxu0
        %v1699 = vadd.f32 %v801, %v1698
        %v1700 = vpop.f32.mrb[0].mxu0
        %v1701 = vadd.f32 %v805, %v1700
        %v1702 = vpop.f32.mrb[0].mxu0
        %v1703 = vadd.f32 %v801, %v1702
        %v1704 = vpop.f32.mrb[0].mxu0
        %v1705 = vadd.f32 %v805, %v1704
        %1706 = vmatprep.mubr.bf16.mxu0 0
        %1707 = vmatmul.mubr.bf16.gmra.mrb[0].mxu0 %v891
        %v1708 = vpop.f32.mrb[0].mxu0
        %v1709 = vadd.f32 %v801, %v1708
        %v1710 = vpop.f32.mrb[0].mxu0
        %v1711 = vadd.f32 %v805, %v1710
        %v1712 = vpop.f32.mrb[0].mxu0
        %v1713 = vadd.f32 %v801, %v1712
        %v1714 = vpop.f32.mrb[0].mxu0
        %v1715 = vadd.f32 %v805, %v1714
        %1716 = vmatprep.mubr.bf16.mxu0 0
        %1717 = vmatmul.mubr.bf16.gmra.mrb[0].mxu0 %v892
        %v1718 = vpop.f32.mrb[0].mxu0
        %v1719 = vadd.f32 %v801, %v1718
        %v1720 = vpop.f32.mrb[0].mxu0
        %v1721 = vadd.f32 %v805, %v1720
        %v1722 = vpop.f32.mrb[0].mxu0
        %v1723 = vadd.f32 %v801, %v1722
        %v1724 = vpop.f32.mrb[0].mxu0
        %v1725 = vadd.f32 %v805, %v1724
        %1726 = vmatprep.mubr.bf16.mxu0 0
        %1727 = vmatmul.mubr.bf16.gmra.mrb[0].mxu0 %v893
        %v1728 = vpop.f32.mrb[0].mxu0
        %v1729 = vadd.f32 %v801, %v1728
        %v1730 = vpop.f32.mrb[0].mxu0
        %v1731 = vadd.f32 %v805, %v1730
        %v1732 = vpop.f32.mrb[0].mxu0
        %v1733 = vadd.f32 %v801, %v1732
        %v1734 = vpop.f32.mrb[0].mxu0
        %v1735 = vadd.f32 %v805, %v1734
        %1736 = vmatprep.mubr.bf16.mxu0 0
        %1737 = vmatmul.mubr.bf16.gmra.mrb[0].mxu0 %v894
        %v1738 = vpop.f32.mrb[0].mxu0
        %v1739 = vadd.f32 %v801, %v1738
        %v1740 = vpop.f32.mrb[0].mxu0
        %v1741 = vadd.f32 %v805, %v1740
        %v1742 = vpop.f32.mrb[0].mxu0
        %v1743 = vadd.f32 %v801, %v1742
        %v1744 = vpop.f32.mrb[0].mxu0
        %v1745 = vadd.f32 %v805, %v1744
        %1746 = vmatprep.mubr.bf16.mxu0 0
        %1747 = vmatmul.mubr.bf16.gmra.mrb[0].mxu0 %v895
        %v1748 = vpop.f32.mrb[0].mxu0
        %v1749 = vadd.f32 %v801, %v1748
        %v1750 = vpop.f32.mrb[0].mxu0
        %v1751 = vadd.f32 %v805, %v1750
        %v1752 = vpop.f32.mrb[0].mxu0
        %v1753 = vadd.f32 %v801, %v1752
        %v1754 = vpop.f32.mrb[0].mxu0
        %v1755 = vadd.f32 %v805, %v1754
        %1756 = vmatprep.mubr.bf16.mxu0 0
        %1757 = vmatmul.mubr.bf16.gmra.mrb[0].mxu0 %v896
        %v1758 = vpop.f32.mrb[0].mxu0
        %v1759 = vadd.f32 %v801, %v1758
        %v1760 = vpop.f32.mrb[0].mxu0
        %v1761 = vadd.f32 %v805, %v1760
        %v1762 = vpop.f32.mrb[0].mxu0
        %v1763 = vadd.f32 %v801, %v1762
        %v1764 = vpop.f32.mrb[0].mxu0
        %v1765 = vadd.f32 %v805, %v1764
        %1766 = vmatprep.mubr.bf16.mxu0 0
        %1767 = vmatmul.mubr.bf16.gmra.mrb[0].mxu0 %v897
        %v1768 = vpop.f32.mrb[0].mxu0
        %v1769 = vadd.f32 %v801, %v1768
        %v1770 = vpop.f32.mrb[0].mxu0
        %v1771 = vadd.f32 %v805, %v1770
        %v1772 = vpop.f32.mrb[0].mxu0
        %v1773 = vadd.f32 %v801, %v1772
        %v1774 = vpop.f32.mrb[0].mxu0
        %v1775 = vadd.f32 %v805, %v1774
        %1776 = vmatprep.mubr.bf16.mxu0 0
        %1777 = vmatmul.mubr.bf16.gmra.mrb[0].mxu0 %v898
        %v1778 = vpop.f32.mrb[0].mxu0
        %v1779 = vadd.f32 %v801, %v1778
        %v1780 = vpop.f32.mrb[0].mxu0
        %v1781 = vadd.f32 %v805, %v1780
        %v1782 = vpop.f32.mrb[0].mxu0
        %v1783 = vadd.f32 %v801, %v1782
        %v1784 = vpop.f32.mrb[0].mxu0
        %v1785 = vadd.f32 %v805, %v1784
        %1786 = vmatprep.mubr.bf16.mxu0 0
        %1787 = vmatmul.mubr.bf16.gmra.mrb[0].mxu0 %v899
        %v1788 = vpop.f32.mrb[0].mxu0
        %v1789 = vadd.f32 %v801, %v1788
        %v1790 = vpop.f32.mrb[0].mxu0
        %v1791 = vadd.f32 %v805, %v1790
        %v1792 = vpop.f32.mrb[0].mxu0
        %v1793 = vadd.f32 %v801, %v1792
        %v1794 = vpop.f32.mrb[0].mxu0
        %v1795 = vadd.f32 %v805, %v1794
        %1796 = vmatprep.mubr.bf16.mxu0 0
        %1797 = vmatmul.mubr.bf16.gmra.mrb[0].mxu0 %v900
        %v1798 = vpop.f32.mrb[0].mxu0
        %v1799 = vadd.f32 %v801, %v1798
        %v1800 = vpop.f32.mrb[0].mxu0
        %v1801 = vadd.f32 %v805, %v1800
        %v1802 = vpop.f32.mrb[0].mxu0
        %v1803 = vadd.f32 %v801, %v1802
        %v1804 = vpop.f32.mrb[0].mxu0
        %v1805 = vadd.f32 %v805, %v1804
        %1806 = vmatprep.mubr.bf16.mxu0 0
        %1807 = vmatmul.mubr.bf16.gmra.mrb[0].mxu0 %v901
        %v1808 = vpop.f32.mrb[0].mxu0
        %v1809 = vadd.f32 %v801, %v1808
        %v1810 = vpop.f32.mrb[0].mxu0
        %v1811 = vadd.f32 %v805, %v1810
        %v1812 = vpop.f32.mrb[0].mxu0
        %v1813 = vadd.f32 %v801, %v1812
        %v1814 = vpop.f32.mrb[0].mxu0
        %v1815 = vadd.f32 %v805, %v1814
        %1816 = vdwg.mxu0
        %1817 = vmatprep.subr.bf16.mxu0 %v1117
        %1818 = vmatpush1.bf16.msra.mxu0 %v1116
        %1819 = vmatprep.subr.bf16.mxu0 %v1125
        %1820 = vmatpush1.bf16.msra.mxu0 %v1124
        %1821 = vmatprep.subr.bf16.mxu0 %v1133
        %1822 = vmatpush1.bf16.msra.mxu0 %v1132
        %1823 = vmatprep.subr.bf16.mxu0 %v1141
        %1824 = vmatpush1.bf16.msra.mxu0 %v1140
        %1825 = vmatprep.subr.bf16.mxu0 %v1149
        %1826 = vmatpush1.bf16.msra.mxu0 %v1148
        %1827 = vmatprep.subr.bf16.mxu0 %v1157
        %1828 = vmatpush1.bf16.msra.mxu0 %v1156
        %1829 = vmatprep.subr.bf16.mxu0 %v1165
        %1830 = vmatpush1.bf16.msra.mxu0 %v1164
        %1831 = vmatprep.subr.bf16.mxu0 %v1173
        %1832 = vmatpush1.bf16.msra.mxu0 %v1172
        %1833 = vmatprep.subr.bf16.mxu0 0
        %1834 = vmatpush1.bf16.msra.mxu0 0
        %1835 = vmatprep.subr.bf16.mxu0 0
        %1836 = vmatpush1.bf16.msra.mxu0 0
        %1837 = vmatprep.subr.bf16.mxu0 0
        %1838 = vmatpush1.bf16.msra.mxu0 0
        %1839 = vmatprep.subr.bf16.mxu0 0
        %1840 = vmatpush1.bf16.msra.mxu0 0
        %1841 = vmatprep.subr.bf16.mxu0 0
        %1842 = vmatpush1.bf16.msra.mxu0 0
        %1843 = vmatprep.subr.bf16.mxu0 0
        %1844 = vmatpush1.bf16.msra.mxu0 0
        %1845 = vmatprep.subr.bf16.mxu0 0
        %1846 = vmatpush1.bf16.msra.mxu0 0
        %1847 = vmatprep.subr.bf16.mxu0 0
        %1848 = vmatpush1.bf16.msra.mxu0 0
        %1849 = vmatprep.mubr.bf16.mxu0 0
        %1850 = vmatmul.mubr.bf16.gmra.mrb[0].mxu0 %v886
        %v1851 = vpop.f32.mrb[0].mxu0
        %v1852 = vadd.f32 %v809, %v1851
        %v1853 = vpop.f32.mrb[0].mxu0
        %v1854 = vadd.f32 %v813, %v1853
        %v1855 = vpop.f32.mrb[0].mxu0
        %v1856 = vadd.f32 %v809, %v1855
        %v1857 = vpop.f32.mrb[0].mxu0
        %v1858 = vadd.f32 %v813, %v1857
        %1859 = vmatprep.mubr.bf16.mxu0 0
        %1860 = vmatmul.mubr.bf16.gmra.mrb[0].mxu0 %v887
        %v1861 = vpop.f32.mrb[0].mxu0
        %v1862 = vadd.f32 %v809, %v1861
        %v1863 = vpop.f32.mrb[0].mxu0
        %v1864 = vadd.f32 %v813, %v1863
        %v1865 = vpop.f32.mrb[0].mxu0
        %v1866 = vadd.f32 %v809, %v1865
        %v1867 = vpop.f32.mrb[0].mxu0
        %v1868 = vadd.f32 %v813, %v1867
        %1869 = vmatprep.mubr.bf16.mxu0 0
        %1870 = vmatmul.mubr.bf16.gmra.mrb[0].mxu0 %v888
        %v1871 = vpop.f32.mrb[0].mxu0
        %v1872 = vadd.f32 %v809, %v1871
        %v1873 = vpop.f32.mrb[0].mxu0
        %v1874 = vadd.f32 %v813, %v1873
        %v1875 = vpop.f32.mrb[0].mxu0
        %v1876 = vadd.f32 %v809, %v1875
        %v1877 = vpop.f32.mrb[0].mxu0
        %v1878 = vadd.f32 %v813, %v1877
        %1879 = vmatprep.mubr.bf16.mxu0 0
        %1880 = vmatmul.mubr.bf16.gmra.mrb[0].mxu0 %v889
        %v1881 = vpop.f32.mrb[0].mxu0
        %v1882 = vadd.f32 %v809, %v1881
        %v1883 = vpop.f32.mrb[0].mxu0
        %v1884 = vadd.f32 %v813, %v1883
        %v1885 = vpop.f32.mrb[0].mxu0
        %v1886 = vadd.f32 %v809, %v1885
        %v1887 = vpop.f32.mrb[0].mxu0
        %v1888 = vadd.f32 %v813, %v1887
        %1889 = vmatprep.mubr.bf16.mxu0 0
        %1890 = vmatmul.mubr.bf16.gmra.mrb[0].mxu0 %v890
        %v1891 = vpop.f32.mrb[0].mxu0
        %v1892 = vadd.f32 %v809, %v1891
        %v1893 = vpop.f32.mrb[0].mxu0
        %v1894 = vadd.f32 %v813, %v1893
        %v1895 = vpop.f32.mrb[0].mxu0
        %v1896 = vadd.f32 %v809, %v1895
        %v1897 = vpop.f32.mrb[0].mxu0
        %v1898 = vadd.f32 %v813, %v1897
        %1899 = vmatprep.mubr.bf16.mxu0 0
        %1900 = vmatmul.mubr.bf16.gmra.mrb[0].mxu0 %v891
        %v1901 = vpop.f32.mrb[0].mxu0
        %v1902 = vadd.f32 %v809, %v1901
        %v1903 = vpop.f32.mrb[0].mxu0
        %v1904 = vadd.f32 %v813, %v1903
        %v1905 = vpop.f32.mrb[0].mxu0
        %v1906 = vadd.f32 %v809, %v1905
        %v1907 = vpop.f32.mrb[0].mxu0
        %v1908 = vadd.f32 %v813, %v1907
        %1909 = vmatprep.mubr.bf16.mxu0 0
        %1910 = vmatmul.mubr.bf16.gmra.mrb[0].mxu0 %v892
        %v1911 = vpop.f32.mrb[0].mxu0
        %v1912 = vadd.f32 %v809, %v1911
        %v1913 = vpop.f32.mrb[0].mxu0
        %v1914 = vadd.f32 %v813, %v1913
        %v1915 = vpop.f32.mrb[0].mxu0
        %v1916 = vadd.f32 %v809, %v1915
        %v1917 = vpop.f32.mrb[0].mxu0
        %v1918 = vadd.f32 %v813, %v1917
        %1919 = vmatprep.mubr.bf16.mxu0 0
        %1920 = vmatmul.mubr.bf16.gmra.mrb[0].mxu0 %v893
        %v1921 = vpop.f32.mrb[0].mxu0
        %v1922 = vadd.f32 %v809, %v1921
        %v1923 = vpop.f32.mrb[0].mxu0
        %v1924 = vadd.f32 %v813, %v1923
        %v1925 = vpop.f32.mrb[0].mxu0
        %v1926 = vadd.f32 %v809, %v1925
        %v1927 = vpop.f32.mrb[0].mxu0
        %v1928 = vadd.f32 %v813, %v1927
        %1929 = vmatprep.mubr.bf16.mxu0 0
        %1930 = vmatmul.mubr.bf16.gmra.mrb[0].mxu0 %v894
        %v1931 = vpop.f32.mrb[0].mxu0
        %v1932 = vadd.f32 %v809, %v1931
        %v1933 = vpop.f32.mrb[0].mxu0
        %v1934 = vadd.f32 %v813, %v1933
        %v1935 = vpop.f32.mrb[0].mxu0
        %v1936 = vadd.f32 %v809, %v1935
        %v1937 = vpop.f32.mrb[0].mxu0
        %v1938 = vadd.f32 %v813, %v1937
        %1939 = vmatprep.mubr.bf16.mxu0 0
        %1940 = vmatmul.mubr.bf16.gmra.mrb[0].mxu0 %v895
        %v1941 = vpop.f32.mrb[0].mxu0
        %v1942 = vadd.f32 %v809, %v1941
        %v1943 = vpop.f32.mrb[0].mxu0
        %v1944 = vadd.f32 %v813, %v1943
        %v1945 = vpop.f32.mrb[0].mxu0
        %v1946 = vadd.f32 %v809, %v1945
        %v1947 = vpop.f32.mrb[0].mxu0
        %v1948 = vadd.f32 %v813, %v1947
        %1949 = vmatprep.mubr.bf16.mxu0 0
        %1950 = vmatmul.mubr.bf16.gmra.mrb[0].mxu0 %v896
        %v1951 = vpop.f32.mrb[0].mxu0
        %v1952 = vadd.f32 %v809, %v1951
        %v1953 = vpop.f32.mrb[0].mxu0
        %v1954 = vadd.f32 %v813, %v1953
        %v1955 = vpop.f32.mrb[0].mxu0
        %v1956 = vadd.f32 %v809, %v1955
        %v1957 = vpop.f32.mrb[0].mxu0
        %v1958 = vadd.f32 %v813, %v1957
        %1959 = vmatprep.mubr.bf16.mxu0 0
        %1960 = vmatmul.mubr.bf16.gmra.mrb[0].mxu0 %v897
        %v1961 = vpop.f32.mrb[0].mxu0
        %v1962 = vadd.f32 %v809, %v1961
        %v1963 = vpop.f32.mrb[0].mxu0
        %v1964 = vadd.f32 %v813, %v1963
        %v1965 = vpop.f32.mrb[0].mxu0
        %v1966 = vadd.f32 %v809, %v1965
        %v1967 = vpop.f32.mrb[0].mxu0
        %v1968 = vadd.f32 %v813, %v1967
        %1969 = vmatprep.mubr.bf16.mxu0 0
        %1970 = vmatmul.mubr.bf16.gmra.mrb[0].mxu0 %v898
        %v1971 = vpop.f32.mrb[0].mxu0
        %v1972 = vadd.f32 %v809, %v1971
        %v1973 = vpop.f32.mrb[0].mxu0
        %v1974 = vadd.f32 %v813, %v1973
        %v1975 = vpop.f32.mrb[0].mxu0
        %v1976 = vadd.f32 %v809, %v1975
        %v1977 = vpop.f32.mrb[0].mxu0
        %v1978 = vadd.f32 %v813, %v1977
        %1979 = vmatprep.mubr.bf16.mxu0 0
        %1980 = vmatmul.mubr.bf16.gmra.mrb[0].mxu0 %v899
        %v1981 = vpop.f32.mrb[0].mxu0
        %v1982 = vadd.f32 %v809, %v1981
        %v1983 = vpop.f32.mrb[0].mxu0
        %v1984 = vadd.f32 %v813, %v1983
        %v1985 = vpop.f32.mrb[0].mxu0
        %v1986 = vadd.f32 %v809, %v1985
        %v1987 = vpop.f32.mrb[0].mxu0
        %v1988 = vadd.f32 %v813, %v1987
        %1989 = vmatprep.mubr.bf16.mxu0 0
        %1990 = vmatmul.mubr.bf16.gmra.mrb[0].mxu0 %v900
        %v1991 = vpop.f32.mrb[0].mxu0
        %v1992 = vadd.f32 %v809, %v1991
        %v1993 = vpop.f32.mrb[0].mxu0
        %v1994 = vadd.f32 %v813, %v1993
        %v1995 = vpop.f32.mrb[0].mxu0
        %v1996 = vadd.f32 %v809, %v1995
        %v1997 = vpop.f32.mrb[0].mxu0
        %v1998 = vadd.f32 %v813, %v1997
        %1999 = vmatprep.mubr.bf16.mxu0 0
        %2000 = vmatmul.mubr.bf16.gmra.mrb[0].mxu0 %v901
        %v2001 = vpop.f32.mrb[0].mxu0
        %v2002 = vadd.f32 %v809, %v2001
        %v2003 = vpop.f32.mrb[0].mxu0
        %v2004 = vadd.f32 %v813, %v2003
        %v2005 = vpop.f32.mrb[0].mxu0
        %v2006 = vadd.f32 %v809, %v2005
        %v2007 = vpop.f32.mrb[0].mxu0
        %v2008 = vadd.f32 %v813, %v2007
        %2009 = vdwg.mxu0
        %v2010 = vmax.f32 %v1273, 0.0
        %v2011 = vmax.f32 %v1275, 0.0
        %v2012 = vmax.f32 %v1466, 0.0
        %v2013 = vmax.f32 %v1468, 0.0
        %v2014 = vmax.f32 %v1659, 0.0
        %v2015 = vmax.f32 %v1661, 0.0
        %v2016 = vmax.f32 %v1852, 0.0
        %v2017 = vmax.f32 %v1854, 0.0
        %v2018 = vmax.f32 %v1277, 0.0
        %v2019 = vmax.f32 %v1279, 0.0
        %v2020 = vmax.f32 %v1470, 0.0
        %v2021 = vmax.f32 %v1472, 0.0
        %v2022 = vmax.f32 %v1663, 0.0
        %v2023 = vmax.f32 %v1665, 0.0
        %v2024 = vmax.f32 %v1856, 0.0
        %v2025 = vmax.f32 %v1858, 0.0
        %v2026 = vmax.f32 %v1283, 0.0
        %v2027 = vmax.f32 %v1285, 0.0
        %v2028 = vmax.f32 %v1476, 0.0
        %v2029 = vmax.f32 %v1478, 0.0
        %v2030 = vmax.f32 %v1669, 0.0
        %v2031 = vmax.f32 %v1671, 0.0
        %v2032 = vmax.f32 %v1862, 0.0
        %v2033 = vmax.f32 %v1864, 0.0
        %v2034 = vmax.f32 %v1287, 0.0
        %v2035 = vmax.f32 %v1289, 0.0
        %v2036 = vmax.f32 %v1480, 0.0
        %v2037 = vmax.f32 %v1482, 0.0
        %v2038 = vmax.f32 %v1673, 0.0
        %v2039 = vmax.f32 %v1675, 0.0
        %v2040 = vmax.f32 %v1866, 0.0
        %v2041 = vmax.f32 %v1868, 0.0
        %v2042 = vmax.f32 %v1293, 0.0
        %v2043 = vmax.f32 %v1295, 0.0
        %v2044 = vmax.f32 %v1486, 0.0
        %v2045 = vmax.f32 %v1488, 0.0
        %v2046 = vmax.f32 %v1679, 0.0
        %v2047 = vmax.f32 %v1681, 0.0
        %v2048 = vmax.f32 %v1872, 0.0
        %v2049 = vmax.f32 %v1874, 0.0
        %v2050 = vmax.f32 %v1297, 0.0
        %v2051 = vmax.f32 %v1299, 0.0
        %v2052 = vmax.f32 %v1490, 0.0
        %v2053 = vmax.f32 %v1492, 0.0
        %v2054 = vmax.f32 %v1683, 0.0
        %v2055 = vmax.f32 %v1685, 0.0
        %v2056 = vmax.f32 %v1876, 0.0
        %v2057 = vmax.f32 %v1878, 0.0
        %v2058 = vmax.f32 %v1303, 0.0
        %v2059 = vmax.f32 %v1305, 0.0
        %v2060 = vmax.f32 %v1496, 0.0
        %v2061 = vmax.f32 %v1498, 0.0
        %v2062 = vmax.f32 %v1689, 0.0
        %v2063 = vmax.f32 %v1691, 0.0
        %v2064 = vmax.f32 %v1882, 0.0
        %v2065 = vmax.f32 %v1884, 0.0
        %v2066 = vmax.f32 %v1307, 0.0
        %v2067 = vmax.f32 %v1309, 0.0
        %v2068 = vmax.f32 %v1500, 0.0
        %v2069 = vmax.f32 %v1502, 0.0
        %v2070 = vmax.f32 %v1693, 0.0
        %v2071 = vmax.f32 %v1695, 0.0
        %v2072 = vmax.f32 %v1886, 0.0
        %v2073 = vmax.f32 %v1888, 0.0
        %v2074 = vmax.f32 %v1313, 0.0
        %v2075 = vmax.f32 %v1315, 0.0
        %v2076 = vmax.f32 %v1506, 0.0
        %v2077 = vmax.f32 %v1508, 0.0
        %v2078 = vmax.f32 %v1699, 0.0
        %v2079 = vmax.f32 %v1701, 0.0
        %v2080 = vmax.f32 %v1892, 0.0
        %v2081 = vmax.f32 %v1894, 0.0
        %v2082 = vmax.f32 %v1317, 0.0
        %v2083 = vmax.f32 %v1319, 0.0
        %v2084 = vmax.f32 %v1510, 0.0
        %v2085 = vmax.f32 %v1512, 0.0
        %v2086 = vmax.f32 %v1703, 0.0
        %v2087 = vmax.f32 %v1705, 0.0
        %v2088 = vmax.f32 %v1896, 0.0
        %v2089 = vmax.f32 %v1898, 0.0
        %v2090 = vmax.f32 %v1323, 0.0
        %v2091 = vmax.f32 %v1325, 0.0
        %v2092 = vmax.f32 %v1516, 0.0
        %v2093 = vmax.f32 %v1518, 0.0
        %v2094 = vmax.f32 %v1709, 0.0
        %v2095 = vmax.f32 %v1711, 0.0
        %v2096 = vmax.f32 %v1902, 0.0
        %v2097 = vmax.f32 %v1904, 0.0
        %v2098 = vmax.f32 %v1327, 0.0
        %v2099 = vmax.f32 %v1329, 0.0
        %v2100 = vmax.f32 %v1520, 0.0
        %v2101 = vmax.f32 %v1522, 0.0
        %v2102 = vmax.f32 %v1713, 0.0
        %v2103 = vmax.f32 %v1715, 0.0
        %v2104 = vmax.f32 %v1906, 0.0
        %v2105 = vmax.f32 %v1908, 0.0
        %v2106 = vmax.f32 %v1333, 0.0
        %v2107 = vmax.f32 %v1335, 0.0
        %v2108 = vmax.f32 %v1526, 0.0
        %v2109 = vmax.f32 %v1528, 0.0
        %v2110 = vmax.f32 %v1719, 0.0
        %v2111 = vmax.f32 %v1721, 0.0
        %v2112 = vmax.f32 %v1912, 0.0
        %v2113 = vmax.f32 %v1914, 0.0
        %v2114 = vmax.f32 %v1337, 0.0
        %v2115 = vmax.f32 %v1339, 0.0
        %v2116 = vmax.f32 %v1530, 0.0
        %v2117 = vmax.f32 %v1532, 0.0
        %v2118 = vmax.f32 %v1723, 0.0
        %v2119 = vmax.f32 %v1725, 0.0
        %v2120 = vmax.f32 %v1916, 0.0
        %v2121 = vmax.f32 %v1918, 0.0
        %v2122 = vmax.f32 %v1343, 0.0
        %v2123 = vmax.f32 %v1345, 0.0
        %v2124 = vmax.f32 %v1536, 0.0
        %v2125 = vmax.f32 %v1538, 0.0
        %v2126 = vmax.f32 %v1729, 0.0
        %v2127 = vmax.f32 %v1731, 0.0
        %v2128 = vmax.f32 %v1922, 0.0
        %v2129 = vmax.f32 %v1924, 0.0
        %v2130 = vmax.f32 %v1347, 0.0
        %v2131 = vmax.f32 %v1349, 0.0
        %v2132 = vmax.f32 %v1540, 0.0
        %v2133 = vmax.f32 %v1542, 0.0
        %v2134 = vmax.f32 %v1733, 0.0
        %v2135 = vmax.f32 %v1735, 0.0
        %v2136 = vmax.f32 %v1926, 0.0
        %v2137 = vmax.f32 %v1928, 0.0
        %v2138 = vmax.f32 %v1353, 0.0
        %v2139 = vmax.f32 %v1355, 0.0
        %v2140 = vmax.f32 %v1546, 0.0
        %v2141 = vmax.f32 %v1548, 0.0
        %v2142 = vmax.f32 %v1739, 0.0
        %v2143 = vmax.f32 %v1741, 0.0
        %v2144 = vmax.f32 %v1932, 0.0
        %v2145 = vmax.f32 %v1934, 0.0
        %v2146 = vmax.f32 %v1357, 0.0
        %v2147 = vmax.f32 %v1359, 0.0
        %v2148 = vmax.f32 %v1550, 0.0
        %v2149 = vmax.f32 %v1552, 0.0
        %v2150 = vmax.f32 %v1743, 0.0
        %v2151 = vmax.f32 %v1745, 0.0
        %v2152 = vmax.f32 %v1936, 0.0
        %v2153 = vmax.f32 %v1938, 0.0
        %v2154 = vmax.f32 %v1363, 0.0
        %v2155 = vmax.f32 %v1365, 0.0
        %v2156 = vmax.f32 %v1556, 0.0
        %v2157 = vmax.f32 %v1558, 0.0
        %v2158 = vmax.f32 %v1749, 0.0
        %v2159 = vmax.f32 %v1751, 0.0
        %v2160 = vmax.f32 %v1942, 0.0
        %v2161 = vmax.f32 %v1944, 0.0
        %v2162 = vmax.f32 %v1367, 0.0
        %v2163 = vmax.f32 %v1369, 0.0
        %v2164 = vmax.f32 %v1560, 0.0
        %v2165 = vmax.f32 %v1562, 0.0
        %v2166 = vmax.f32 %v1753, 0.0
        %v2167 = vmax.f32 %v1755, 0.0
        %v2168 = vmax.f32 %v1946, 0.0
        %v2169 = vmax.f32 %v1948, 0.0
        %v2170 = vmax.f32 %v1373, 0.0
        %v2171 = vmax.f32 %v1375, 0.0
        %v2172 = vmax.f32 %v1566, 0.0
        %v2173 = vmax.f32 %v1568, 0.0
        %v2174 = vmax.f32 %v1759, 0.0
        %v2175 = vmax.f32 %v1761, 0.0
        %v2176 = vmax.f32 %v1952, 0.0
        %v2177 = vmax.f32 %v1954, 0.0
        %v2178 = vmax.f32 %v1377, 0.0
        %v2179 = vmax.f32 %v1379, 0.0
        %v2180 = vmax.f32 %v1570, 0.0
        %v2181 = vmax.f32 %v1572, 0.0
        %v2182 = vmax.f32 %v1763, 0.0
        %v2183 = vmax.f32 %v1765, 0.0
        %v2184 = vmax.f32 %v1956, 0.0
        %v2185 = vmax.f32 %v1958, 0.0
        %v2186 = vmax.f32 %v1383, 0.0
        %v2187 = vmax.f32 %v1385, 0.0
        %v2188 = vmax.f32 %v1576, 0.0
        %v2189 = vmax.f32 %v1578, 0.0
        %v2190 = vmax.f32 %v1769, 0.0
        %v2191 = vmax.f32 %v1771, 0.0
        %v2192 = vmax.f32 %v1962, 0.0
        %v2193 = vmax.f32 %v1964, 0.0
        %v2194 = vmax.f32 %v1387, 0.0
        %v2195 = vmax.f32 %v1389, 0.0
        %v2196 = vmax.f32 %v1580, 0.0
        %v2197 = vmax.f32 %v1582, 0.0
        %v2198 = vmax.f32 %v1773, 0.0
        %v2199 = vmax.f32 %v1775, 0.0
        %v2200 = vmax.f32 %v1966, 0.0
        %v2201 = vmax.f32 %v1968, 0.0
        %v2202 = vmax.f32 %v1393, 0.0
        %v2203 = vmax.f32 %v1395, 0.0
        %v2204 = vmax.f32 %v1586, 0.0
        %v2205 = vmax.f32 %v1588, 0.0
        %v2206 = vmax.f32 %v1779, 0.0
        %v2207 = vmax.f32 %v1781, 0.0
        %v2208 = vmax.f32 %v1972, 0.0
        %v2209 = vmax.f32 %v1974, 0.0
        %v2210 = vmax.f32 %v1397, 0.0
        %v2211 = vmax.f32 %v1399, 0.0
        %v2212 = vmax.f32 %v1590, 0.0
        %v2213 = vmax.f32 %v1592, 0.0
        %v2214 = vmax.f32 %v1783, 0.0
        %v2215 = vmax.f32 %v1785, 0.0
        %v2216 = vmax.f32 %v1976, 0.0
        %v2217 = vmax.f32 %v1978, 0.0
        %v2218 = vmax.f32 %v1403, 0.0
        %v2219 = vmax.f32 %v1405, 0.0
        %v2220 = vmax.f32 %v1596, 0.0
        %v2221 = vmax.f32 %v1598, 0.0
        %v2222 = vmax.f32 %v1789, 0.0
        %v2223 = vmax.f32 %v1791, 0.0
        %v2224 = vmax.f32 %v1982, 0.0
        %v2225 = vmax.f32 %v1984, 0.0
        %v2226 = vmax.f32 %v1407, 0.0
        %v2227 = vmax.f32 %v1409, 0.0
        %v2228 = vmax.f32 %v1600, 0.0
        %v2229 = vmax.f32 %v1602, 0.0
        %v2230 = vmax.f32 %v1793, 0.0
        %v2231 = vmax.f32 %v1795, 0.0
        %v2232 = vmax.f32 %v1986, 0.0
        %v2233 = vmax.f32 %v1988, 0.0
        %v2234 = vmax.f32 %v1413, 0.0
        %v2235 = vmax.f32 %v1415, 0.0
        %v2236 = vmax.f32 %v1606, 0.0
        %v2237 = vmax.f32 %v1608, 0.0
        %v2238 = vmax.f32 %v1799, 0.0
        %v2239 = vmax.f32 %v1801, 0.0
        %v2240 = vmax.f32 %v1992, 0.0
        %v2241 = vmax.f32 %v1994, 0.0
        %v2242 = vmax.f32 %v1417, 0.0
        %v2243 = vmax.f32 %v1419, 0.0
        %v2244 = vmax.f32 %v1610, 0.0
        %v2245 = vmax.f32 %v1612, 0.0
        %v2246 = vmax.f32 %v1803, 0.0
        %v2247 = vmax.f32 %v1805, 0.0
        %v2248 = vmax.f32 %v1996, 0.0
        %v2249 = vmax.f32 %v1998, 0.0
        %v2250 = vmax.f32 %v1423, 0.0
        %v2251 = vmax.f32 %v1425, 0.0
        %v2252 = vmax.f32 %v1616, 0.0
        %v2253 = vmax.f32 %v1618, 0.0
        %v2254 = vmax.f32 %v1809, 0.0
        %v2255 = vmax.f32 %v1811, 0.0
        %v2256 = vmax.f32 %v2002, 0.0
        %v2257 = vmax.f32 %v2004, 0.0
        %v2258 = vmax.f32 %v1427, 0.0
        %v2259 = vmax.f32 %v1429, 0.0
        %v2260 = vmax.f32 %v1620, 0.0
        %v2261 = vmax.f32 %v1622, 0.0
        %v2262 = vmax.f32 %v1813, 0.0
        %v2263 = vmax.f32 %v1815, 0.0
        %v2264 = vmax.f32 %v2006, 0.0
        %v2265 = vmax.f32 %v2008, 0.0
        %v2266 = vpack.c.bf16 %v2018, %v2010
        %v2267 = vpack.c.bf16 %v2019, %v2011
        %v2268 = vpack.c.bf16 %v2020, %v2012
        %v2269 = vpack.c.bf16 %v2021, %v2013
        %v2270 = vpack.c.bf16 %v2022, %v2014
        %v2271 = vpack.c.bf16 %v2023, %v2015
        %v2272 = vpack.c.bf16 %v2024, %v2016
        %v2273 = vpack.c.bf16 %v2025, %v2017
        %v2274 = vpack.c.bf16 %v2034, %v2026
        %v2275 = vpack.c.bf16 %v2035, %v2027
        %v2276 = vpack.c.bf16 %v2036, %v2028
        %v2277 = vpack.c.bf16 %v2037, %v2029
        %v2278 = vpack.c.bf16 %v2038, %v2030
        %v2279 = vpack.c.bf16 %v2039, %v2031
        %v2280 = vpack.c.bf16 %v2040, %v2032
        %v2281 = vpack.c.bf16 %v2041, %v2033
        %v2282 = vpack.c.bf16 %v2050, %v2042
        %v2283 = vpack.c.bf16 %v2051, %v2043
        %v2284 = vpack.c.bf16 %v2052, %v2044
        %v2285 = vpack.c.bf16 %v2053, %v2045
        %v2286 = vpack.c.bf16 %v2054, %v2046
        %v2287 = vpack.c.bf16 %v2055, %v2047
        %v2288 = vpack.c.bf16 %v2056, %v2048
        %v2289 = vpack.c.bf16 %v2057, %v2049
        %v2290 = vpack.c.bf16 %v2066, %v2058
        %v2291 = vpack.c.bf16 %v2067, %v2059
        %v2292 = vpack.c.bf16 %v2068, %v2060
        %v2293 = vpack.c.bf16 %v2069, %v2061
        %v2294 = vpack.c.bf16 %v2070, %v2062
        %v2295 = vpack.c.bf16 %v2071, %v2063
        %v2296 = vpack.c.bf16 %v2072, %v2064
        %v2297 = vpack.c.bf16 %v2073, %v2065
        %v2298 = vpack.c.bf16 %v2082, %v2074
        %v2299 = vpack.c.bf16 %v2083, %v2075
        %v2300 = vpack.c.bf16 %v2084, %v2076
        %v2301 = vpack.c.bf16 %v2085, %v2077
        %v2302 = vpack.c.bf16 %v2086, %v2078
        %v2303 = vpack.c.bf16 %v2087, %v2079
        %v2304 = vpack.c.bf16 %v2088, %v2080
        %v2305 = vpack.c.bf16 %v2089, %v2081
        %v2306 = vpack.c.bf16 %v2098, %v2090
        %v2307 = vpack.c.bf16 %v2099, %v2091
        %v2308 = vpack.c.bf16 %v2100, %v2092
        %v2309 = vpack.c.bf16 %v2101, %v2093
        %v2310 = vpack.c.bf16 %v2102, %v2094
        %v2311 = vpack.c.bf16 %v2103, %v2095
        %v2312 = vpack.c.bf16 %v2104, %v2096
        %v2313 = vpack.c.bf16 %v2105, %v2097
        %v2314 = vpack.c.bf16 %v2114, %v2106
        %v2315 = vpack.c.bf16 %v2115, %v2107
        %v2316 = vpack.c.bf16 %v2116, %v2108
        %v2317 = vpack.c.bf16 %v2117, %v2109
        %v2318 = vpack.c.bf16 %v2118, %v2110
        %v2319 = vpack.c.bf16 %v2119, %v2111
        %v2320 = vpack.c.bf16 %v2120, %v2112
        %v2321 = vpack.c.bf16 %v2121, %v2113
        %v2322 = vpack.c.bf16 %v2130, %v2122
        %v2323 = vpack.c.bf16 %v2131, %v2123
        %v2324 = vpack.c.bf16 %v2132, %v2124
        %v2325 = vpack.c.bf16 %v2133, %v2125
        %v2326 = vpack.c.bf16 %v2134, %v2126
        %v2327 = vpack.c.bf16 %v2135, %v2127
        %v2328 = vpack.c.bf16 %v2136, %v2128
        %v2329 = vpack.c.bf16 %v2137, %v2129
        %v2330 = vpack.c.bf16 %v2146, %v2138
        %v2331 = vpack.c.bf16 %v2147, %v2139
        %v2332 = vpack.c.bf16 %v2148, %v2140
        %v2333 = vpack.c.bf16 %v2149, %v2141
        %v2334 = vpack.c.bf16 %v2150, %v2142
        %v2335 = vpack.c.bf16 %v2151, %v2143
        %v2336 = vpack.c.bf16 %v2152, %v2144
        %v2337 = vpack.c.bf16 %v2153, %v2145
        %v2338 = vpack.c.bf16 %v2162, %v2154
        %v2339 = vpack.c.bf16 %v2163, %v2155
        %v2340 = vpack.c.bf16 %v2164, %v2156
        %v2341 = vpack.c.bf16 %v2165, %v2157
        %v2342 = vpack.c.bf16 %v2166, %v2158
        %v2343 = vpack.c.bf16 %v2167, %v2159
        %v2344 = vpack.c.bf16 %v2168, %v2160
        %v2345 = vpack.c.bf16 %v2169, %v2161
        %v2346 = vpack.c.bf16 %v2178, %v2170
        %v2347 = vpack.c.bf16 %v2179, %v2171
        %v2348 = vpack.c.bf16 %v2180, %v2172
        %v2349 = vpack.c.bf16 %v2181, %v2173
        %v2350 = vpack.c.bf16 %v2182, %v2174
        %v2351 = vpack.c.bf16 %v2183, %v2175
        %v2352 = vpack.c.bf16 %v2184, %v2176
        %v2353 = vpack.c.bf16 %v2185, %v2177
        %v2354 = vpack.c.bf16 %v2194, %v2186
        %v2355 = vpack.c.bf16 %v2195, %v2187
        %v2356 = vpack.c.bf16 %v2196, %v2188
        %v2357 = vpack.c.bf16 %v2197, %v2189
        %v2358 = vpack.c.bf16 %v2198, %v2190
        %v2359 = vpack.c.bf16 %v2199, %v2191
        %v2360 = vpack.c.bf16 %v2200, %v2192
        %v2361 = vpack.c.bf16 %v2201, %v2193
        %v2362 = vpack.c.bf16 %v2210, %v2202
        %v2363 = vpack.c.bf16 %v2211, %v2203
        %v2364 = vpack.c.bf16 %v2212, %v2204
        %v2365 = vpack.c.bf16 %v2213, %v2205
        %v2366 = vpack.c.bf16 %v2214, %v2206
        %v2367 = vpack.c.bf16 %v2215, %v2207
        %v2368 = vpack.c.bf16 %v2216, %v2208
        %v2369 = vpack.c.bf16 %v2217, %v2209
        %v2370 = vpack.c.bf16 %v2226, %v2218
        %v2371 = vpack.c.bf16 %v2227, %v2219
        %v2372 = vpack.c.bf16 %v2228, %v2220
        %v2373 = vpack.c.bf16 %v2229, %v2221
        %v2374 = vpack.c.bf16 %v2230, %v2222
        %v2375 = vpack.c.bf16 %v2231, %v2223
        %v2376 = vpack.c.bf16 %v2232, %v2224
        %v2377 = vpack.c.bf16 %v2233, %v2225
        %v2378 = vpack.c.bf16 %v2242, %v2234
        %v2379 = vpack.c.bf16 %v2243, %v2235
        %v2380 = vpack.c.bf16 %v2244, %v2236
        %v2381 = vpack.c.bf16 %v2245, %v2237
        %v2382 = vpack.c.bf16 %v2246, %v2238
        %v2383 = vpack.c.bf16 %v2247, %v2239
        %v2384 = vpack.c.bf16 %v2248, %v2240
        %v2385 = vpack.c.bf16 %v2249, %v2241
        %v2386 = vpack.c.bf16 %v2258, %v2250
        %v2387 = vpack.c.bf16 %v2259, %v2251
        %v2388 = vpack.c.bf16 %v2260, %v2252
        %v2389 = vpack.c.bf16 %v2261, %v2253
        %v2390 = vpack.c.bf16 %v2262, %v2254
        %v2391 = vpack.c.bf16 %v2263, %v2255
        %v2392 = vpack.c.bf16 %v2264, %v2256
        %v2393 = vpack.c.bf16 %v2265, %v2257
        %v2394 = vld [vmem:[#allocation7] sm:$0xff]
        %v2395 = vld [vmem:[#allocation7 + $0x8] sm:$0xff]
        %v2396 = vld [vmem:[#allocation7 + $0x10] sm:$0xff]
        %v2397 = vld [vmem:[#allocation7 + $0x18] sm:$0xff]
        %v2398 = vld [vmem:[#allocation7 + $0x20] sm:$0xff]
        %v2399 = vld [vmem:[#allocation7 + $0x28] sm:$0xff]
        %v2400 = vld [vmem:[#allocation7 + $0x30] sm:$0xff]
        %v2401 = vld [vmem:[#allocation7 + $0x38] sm:$0xff]
        %v2402 = vld [vmem:[#allocation7 + $0x40] sm:$0xff]
        %v2403 = vld [vmem:[#allocation7 + $0x48] sm:$0xff]
        %v2404 = vld [vmem:[#allocation7 + $0x50] sm:$0xff]
        %v2405 = vld [vmem:[#allocation7 + $0x58] sm:$0xff]
        %v2406 = vld [vmem:[#allocation7 + $0x60] sm:$0xff]
        %v2407 = vld [vmem:[#allocation7 + $0x68] sm:$0xff]
        %v2408 = vld [vmem:[#allocation7 + $0x70] sm:$0xff]
        %v2409 = vld [vmem:[#allocation7 + $0x78] sm:$0xff]
        %v2410 = vld [vmem:[#allocation7 + $0x80] sm:$0xff]
        %v2411 = vld [vmem:[#allocation7 + $0x88] sm:$0xff]
        %v2412 = vld [vmem:[#allocation7 + $0x90] sm:$0xff]
        %v2413 = vld [vmem:[#allocation7 + $0x98] sm:$0xff]
        %v2414 = vld [vmem:[#allocation7 + $0xa0] sm:$0xff]
        %v2415 = vld [vmem:[#allocation7 + $0xa8] sm:$0xff]
        %v2416 = vld [vmem:[#allocation7 + $0xb0] sm:$0xff]
        %v2417 = vld [vmem:[#allocation7 + $0xb8] sm:$0xff]
        %v2418 = vld [vmem:[#allocation7 + $0xc0] sm:$0xff]
        %v2419 = vld [vmem:[#allocation7 + $0xc8] sm:$0xff]
        %v2420 = vld [vmem:[#allocation7 + $0xd0] sm:$0xff]
        %v2421 = vld [vmem:[#allocation7 + $0xd8] sm:$0xff]
        %v2422 = vld [vmem:[#allocation7 + $0xe0] sm:$0xff]
        %v2423 = vld [vmem:[#allocation7 + $0xe8] sm:$0xff]
        %v2424 = vld [vmem:[#allocation7 + $0xf0] sm:$0xff]
        %v2425 = vld [vmem:[#allocation7 + $0xf8] sm:$0xff]
        %v2426 = vld [vmem:[#allocation7 + $0x100] sm:$0xff]
        %v2427 = vld [vmem:[#allocation7 + $0x108] sm:$0xff]
        %v2428 = vld [vmem:[#allocation7 + $0x110] sm:$0xff]
        %v2429 = vld [vmem:[#allocation7 + $0x118] sm:$0xff]
        %v2430 = vld [vmem:[#allocation7 + $0x120] sm:$0xff]
        %v2431 = vld [vmem:[#allocation7 + $0x128] sm:$0xff]
        %v2432 = vld [vmem:[#allocation7 + $0x130] sm:$0xff]
        %v2433 = vld [vmem:[#allocation7 + $0x138] sm:$0xff]
        %v2434 = vld [vmem:[#allocation7 + $0x140] sm:$0xff]
        %v2435 = vld [vmem:[#allocation7 + $0x148] sm:$0xff]
        %v2436 = vld [vmem:[#allocation7 + $0x150] sm:$0xff]
        %v2437 = vld [vmem:[#allocation7 + $0x158] sm:$0xff]
        %v2438 = vld [vmem:[#allocation7 + $0x160] sm:$0xff]
        %v2439 = vld [vmem:[#allocation7 + $0x168] sm:$0xff]
        %v2440 = vld [vmem:[#allocation7 + $0x170] sm:$0xff]
        %v2441 = vld [vmem:[#allocation7 + $0x178] sm:$0xff]
        %v2442 = vld [vmem:[#allocation7 + $0x180] sm:$0xff]
        %v2443 = vld [vmem:[#allocation7 + $0x188] sm:$0xff]
        %v2444 = vld [vmem:[#allocation7 + $0x190] sm:$0xff]
        %v2445 = vld [vmem:[#allocation7 + $0x198] sm:$0xff]
        %v2446 = vld [vmem:[#allocation7 + $0x1a0] sm:$0xff]
        %v2447 = vld [vmem:[#allocation7 + $0x1a8] sm:$0xff]
        %v2448 = vld [vmem:[#allocation7 + $0x1b0] sm:$0xff]
        %v2449 = vld [vmem:[#allocation7 + $0x1b8] sm:$0xff]
        %v2450 = vld [vmem:[#allocation7 + $0x1c0] sm:$0xff]
        %v2451 = vld [vmem:[#allocation7 + $0x1c8] sm:$0xff]
        %v2452 = vld [vmem:[#allocation7 + $0x1d0] sm:$0xff]
        %v2453 = vld [vmem:[#allocation7 + $0x1d8] sm:$0xff]
        %v2454 = vld [vmem:[#allocation7 + $0x1e0] sm:$0xff]
        %v2455 = vld [vmem:[#allocation7 + $0x1e8] sm:$0xff]
        %v2456 = vld [vmem:[#allocation7 + $0x1f0] sm:$0xff]
        %v2457 = vld [vmem:[#allocation7 + $0x1f8] sm:$0xff]
        %v2458 = vld [vmem:[#allocation7 + $0x200] sm:$0xff]
        %v2459 = vld [vmem:[#allocation7 + $0x208] sm:$0xff]
        %v2460 = vld [vmem:[#allocation7 + $0x210] sm:$0xff]
        %v2461 = vld [vmem:[#allocation7 + $0x218] sm:$0xff]
        %v2462 = vld [vmem:[#allocation7 + $0x220] sm:$0xff]
        %v2463 = vld [vmem:[#allocation7 + $0x228] sm:$0xff]
        %v2464 = vld [vmem:[#allocation7 + $0x230] sm:$0xff]
        %v2465 = vld [vmem:[#allocation7 + $0x238] sm:$0xff]
        %v2466 = vld [vmem:[#allocation7 + $0x240] sm:$0xff]
        %v2467 = vld [vmem:[#allocation7 + $0x248] sm:$0xff]
        %v2468 = vld [vmem:[#allocation7 + $0x250] sm:$0xff]
        %v2469 = vld [vmem:[#allocation7 + $0x258] sm:$0xff]
        %v2470 = vld [vmem:[#allocation7 + $0x260] sm:$0xff]
        %v2471 = vld [vmem:[#allocation7 + $0x268] sm:$0xff]
        %v2472 = vld [vmem:[#allocation7 + $0x270] sm:$0xff]
        %v2473 = vld [vmem:[#allocation7 + $0x278] sm:$0xff]
        %v2474 = vld [vmem:[#allocation7 + $0x280] sm:$0xff]
        %v2475 = vld [vmem:[#allocation7 + $0x288] sm:$0xff]
        %v2476 = vld [vmem:[#allocation7 + $0x290] sm:$0xff]
        %v2477 = vld [vmem:[#allocation7 + $0x298] sm:$0xff]
        %v2478 = vld [vmem:[#allocation7 + $0x2a0] sm:$0xff]
        %v2479 = vld [vmem:[#allocation7 + $0x2a8] sm:$0xff]
        %v2480 = vld [vmem:[#allocation7 + $0x2b0] sm:$0xff]
        %v2481 = vld [vmem:[#allocation7 + $0x2b8] sm:$0xff]
        %v2482 = vld [vmem:[#allocation7 + $0x2c0] sm:$0xff]
        %v2483 = vld [vmem:[#allocation7 + $0x2c8] sm:$0xff]
        %v2484 = vld [vmem:[#allocation7 + $0x2d0] sm:$0xff]
        %v2485 = vld [vmem:[#allocation7 + $0x2d8] sm:$0xff]
        %v2486 = vld [vmem:[#allocation7 + $0x2e0] sm:$0xff]
        %v2487 = vld [vmem:[#allocation7 + $0x2e8] sm:$0xff]
        %v2488 = vld [vmem:[#allocation7 + $0x2f0] sm:$0xff]
        %v2489 = vld [vmem:[#allocation7 + $0x2f8] sm:$0xff]
        %v2490 = vld [vmem:[#allocation7 + $0x300] sm:$0xff]
        %v2491 = vld [vmem:[#allocation7 + $0x308] sm:$0xff]
        %v2492 = vld [vmem:[#allocation7 + $0x310] sm:$0xff]
        %v2493 = vld [vmem:[#allocation7 + $0x318] sm:$0xff]
        %v2494 = vld [vmem:[#allocation7 + $0x320] sm:$0xff]
        %v2495 = vld [vmem:[#allocation7 + $0x328] sm:$0xff]
        %v2496 = vld [vmem:[#allocation7 + $0x330] sm:$0xff]
        %v2497 = vld [vmem:[#allocation7 + $0x338] sm:$0xff]
        %v2498 = vld [vmem:[#allocation7 + $0x340] sm:$0xff]
        %v2499 = vld [vmem:[#allocation7 + $0x348] sm:$0xff]
        %v2500 = vld [vmem:[#allocation7 + $0x350] sm:$0xff]
        %v2501 = vld [vmem:[#allocation7 + $0x358] sm:$0xff]
        %v2502 = vld [vmem:[#allocation7 + $0x360] sm:$0xff]
        %v2503 = vld [vmem:[#allocation7 + $0x368] sm:$0xff]
        %v2504 = vld [vmem:[#allocation7 + $0x370] sm:$0xff]
        %v2505 = vld [vmem:[#allocation7 + $0x378] sm:$0xff]
        %v2506 = vld [vmem:[#allocation7 + $0x380] sm:$0xff]
        %v2507 = vld [vmem:[#allocation7 + $0x388] sm:$0xff]
        %v2508 = vld [vmem:[#allocation7 + $0x390] sm:$0xff]
        %v2509 = vld [vmem:[#allocation7 + $0x398] sm:$0xff]
        %v2510 = vld [vmem:[#allocation7 + $0x3a0] sm:$0xff]
        %v2511 = vld [vmem:[#allocation7 + $0x3a8] sm:$0xff]
        %v2512 = vld [vmem:[#allocation7 + $0x3b0] sm:$0xff]
        %v2513 = vld [vmem:[#allocation7 + $0x3b8] sm:$0xff]
        %v2514 = vld [vmem:[#allocation7 + $0x3c0] sm:$0xff]
        %v2515 = vld [vmem:[#allocation7 + $0x3c8] sm:$0xff]
        %v2516 = vld [vmem:[#allocation7 + $0x3d0] sm:$0xff]
        %v2517 = vld [vmem:[#allocation7 + $0x3d8] sm:$0xff]
        %v2518 = vld [vmem:[#allocation7 + $0x3e0] sm:$0xff]
        %v2519 = vld [vmem:[#allocation7 + $0x3e8] sm:$0xff]
        %v2520 = vld [vmem:[#allocation7 + $0x3f0] sm:$0xff]
        %v2521 = vld [vmem:[#allocation7 + $0x3f8] sm:$0xff]
        %v2522 = vld [vmem:[%s4] sm:$0x3]
        %v2524 = vlaneseq
        %v2525 = vshrl.u32 %v2524, 7
        %v2526 = vsub.s32 0, %v2525
        %v2527 = vrot.slane %v2522, %v2526
        %v2528 = vlaneseq
        %v2529 = vshrl.u32 %v2528, 7
        %v2530 = vsub.s32 1, %v2529
        %v2531 = vrot.slane %v2522, %v2530
        %v2662 = vunpack.c.l.b16 %v2394
        %v2663 = vunpack.c.h.b16 %v2394
        %v2664 = vunpack.c.l.b16 %v2395
        %v2665 = vunpack.c.h.b16 %v2395
        %v2666 = vunpack.c.l.b16 %v2396
        %v2667 = vunpack.c.h.b16 %v2396
        %v2668 = vunpack.c.l.b16 %v2397
        %v2669 = vunpack.c.h.b16 %v2397
        %v2670 = vunpack.c.l.b16 %v2398
        %v2671 = vunpack.c.h.b16 %v2398
        %v2672 = vunpack.c.l.b16 %v2399
        %v2673 = vunpack.c.h.b16 %v2399
        %v2674 = vunpack.c.l.b16 %v2400
        %v2675 = vunpack.c.h.b16 %v2400
        %v2676 = vunpack.c.l.b16 %v2401
        %v2677 = vunpack.c.h.b16 %v2401
        %v2678 = vunpack.c.l.b16 %v2402
        %v2679 = vunpack.c.h.b16 %v2402
        %v2680 = vunpack.c.l.b16 %v2403
        %v2681 = vunpack.c.h.b16 %v2403
        %v2682 = vunpack.c.l.b16 %v2404
        %v2683 = vunpack.c.h.b16 %v2404
        %v2684 = vunpack.c.l.b16 %v2405
        %v2685 = vunpack.c.h.b16 %v2405
        %v2686 = vunpack.c.l.b16 %v2406
        %v2687 = vunpack.c.h.b16 %v2406
        %v2688 = vunpack.c.l.b16 %v2407
        %v2689 = vunpack.c.h.b16 %v2407
        %v2690 = vunpack.c.l.b16 %v2408
        %v2691 = vunpack.c.h.b16 %v2408
        %v2692 = vunpack.c.l.b16 %v2409
        %v2693 = vunpack.c.h.b16 %v2409
        %v2694 = vunpack.c.l.b16 %v2410
        %v2695 = vunpack.c.h.b16 %v2410
        %v2696 = vunpack.c.l.b16 %v2411
        %v2697 = vunpack.c.h.b16 %v2411
        %v2698 = vunpack.c.l.b16 %v2412
        %v2699 = vunpack.c.h.b16 %v2412
        %v2700 = vunpack.c.l.b16 %v2413
        %v2701 = vunpack.c.h.b16 %v2413
        %v2702 = vunpack.c.l.b16 %v2414
        %v2703 = vunpack.c.h.b16 %v2414
        %v2704 = vunpack.c.l.b16 %v2415
        %v2705 = vunpack.c.h.b16 %v2415
        %v2706 = vunpack.c.l.b16 %v2416
        %v2707 = vunpack.c.h.b16 %v2416
        %v2708 = vunpack.c.l.b16 %v2417
        %v2709 = vunpack.c.h.b16 %v2417
        %v2710 = vunpack.c.l.b16 %v2418
        %v2711 = vunpack.c.h.b16 %v2418
        %v2712 = vunpack.c.l.b16 %v2419
        %v2713 = vunpack.c.h.b16 %v2419
        %v2714 = vunpack.c.l.b16 %v2420
        %v2715 = vunpack.c.h.b16 %v2420
        %v2716 = vunpack.c.l.b16 %v2421
        %v2717 = vunpack.c.h.b16 %v2421
        %v2718 = vunpack.c.l.b16 %v2422
        %v2719 = vunpack.c.h.b16 %v2422
        %v2720 = vunpack.c.l.b16 %v2423
        %v2721 = vunpack.c.h.b16 %v2423
        %v2722 = vunpack.c.l.b16 %v2424
        %v2723 = vunpack.c.h.b16 %v2424
        %v2724 = vunpack.c.l.b16 %v2425
        %v2725 = vunpack.c.h.b16 %v2425
        %v2726 = vunpack.c.l.b16 %v2426
        %v2727 = vunpack.c.h.b16 %v2426
        %v2728 = vunpack.c.l.b16 %v2427
        %v2729 = vunpack.c.h.b16 %v2427
        %v2730 = vunpack.c.l.b16 %v2428
        %v2731 = vunpack.c.h.b16 %v2428
        %v2732 = vunpack.c.l.b16 %v2429
        %v2733 = vunpack.c.h.b16 %v2429
        %v2734 = vunpack.c.l.b16 %v2430
        %v2735 = vunpack.c.h.b16 %v2430
        %v2736 = vunpack.c.l.b16 %v2431
        %v2737 = vunpack.c.h.b16 %v2431
        %v2738 = vunpack.c.l.b16 %v2432
        %v2739 = vunpack.c.h.b16 %v2432
        %v2740 = vunpack.c.l.b16 %v2433
        %v2741 = vunpack.c.h.b16 %v2433
        %v2742 = vunpack.c.l.b16 %v2434
        %v2743 = vunpack.c.h.b16 %v2434
        %v2744 = vunpack.c.l.b16 %v2435
        %v2745 = vunpack.c.h.b16 %v2435
        %v2746 = vunpack.c.l.b16 %v2436
        %v2747 = vunpack.c.h.b16 %v2436
        %v2748 = vunpack.c.l.b16 %v2437
        %v2749 = vunpack.c.h.b16 %v2437
        %v2750 = vunpack.c.l.b16 %v2438
        %v2751 = vunpack.c.h.b16 %v2438
        %v2752 = vunpack.c.l.b16 %v2439
        %v2753 = vunpack.c.h.b16 %v2439
        %v2754 = vunpack.c.l.b16 %v2440
        %v2755 = vunpack.c.h.b16 %v2440
        %v2756 = vunpack.c.l.b16 %v2441
        %v2757 = vunpack.c.h.b16 %v2441
        %v2758 = vunpack.c.l.b16 %v2442
        %v2759 = vunpack.c.h.b16 %v2442
        %v2760 = vunpack.c.l.b16 %v2443
        %v2761 = vunpack.c.h.b16 %v2443
        %v2762 = vunpack.c.l.b16 %v2444
        %v2763 = vunpack.c.h.b16 %v2444
        %v2764 = vunpack.c.l.b16 %v2445
        %v2765 = vunpack.c.h.b16 %v2445
        %v2766 = vunpack.c.l.b16 %v2446
        %v2767 = vunpack.c.h.b16 %v2446
        %v2768 = vunpack.c.l.b16 %v2447
        %v2769 = vunpack.c.h.b16 %v2447
        %v2770 = vunpack.c.l.b16 %v2448
        %v2771 = vunpack.c.h.b16 %v2448
        %v2772 = vunpack.c.l.b16 %v2449
        %v2773 = vunpack.c.h.b16 %v2449
        %v2774 = vunpack.c.l.b16 %v2450
        %v2775 = vunpack.c.h.b16 %v2450
        %v2776 = vunpack.c.l.b16 %v2451
        %v2777 = vunpack.c.h.b16 %v2451
        %v2778 = vunpack.c.l.b16 %v2452
        %v2779 = vunpack.c.h.b16 %v2452
        %v2780 = vunpack.c.l.b16 %v2453
        %v2781 = vunpack.c.h.b16 %v2453
        %v2782 = vunpack.c.l.b16 %v2454
        %v2783 = vunpack.c.h.b16 %v2454
        %v2784 = vunpack.c.l.b16 %v2455
        %v2785 = vunpack.c.h.b16 %v2455
        %v2786 = vunpack.c.l.b16 %v2456
        %v2787 = vunpack.c.h.b16 %v2456
        %v2788 = vunpack.c.l.b16 %v2457
        %v2789 = vunpack.c.h.b16 %v2457
        %v2790 = vunpack.c.l.b16 %v2458
        %v2791 = vunpack.c.h.b16 %v2458
        %v2792 = vunpack.c.l.b16 %v2459
        %v2793 = vunpack.c.h.b16 %v2459
        %v2794 = vunpack.c.l.b16 %v2460
        %v2795 = vunpack.c.h.b16 %v2460
        %v2796 = vunpack.c.l.b16 %v2461
        %v2797 = vunpack.c.h.b16 %v2461
        %v2798 = vunpack.c.l.b16 %v2462
        %v2799 = vunpack.c.h.b16 %v2462
        %v2800 = vunpack.c.l.b16 %v2463
        %v2801 = vunpack.c.h.b16 %v2463
        %v2802 = vunpack.c.l.b16 %v2464
        %v2803 = vunpack.c.h.b16 %v2464
        %v2804 = vunpack.c.l.b16 %v2465
        %v2805 = vunpack.c.h.b16 %v2465
        %v2806 = vunpack.c.l.b16 %v2466
        %v2807 = vunpack.c.h.b16 %v2466
        %v2808 = vunpack.c.l.b16 %v2467
        %v2809 = vunpack.c.h.b16 %v2467
        %v2810 = vunpack.c.l.b16 %v2468
        %v2811 = vunpack.c.h.b16 %v2468
        %v2812 = vunpack.c.l.b16 %v2469
        %v2813 = vunpack.c.h.b16 %v2469
        %v2814 = vunpack.c.l.b16 %v2470
        %v2815 = vunpack.c.h.b16 %v2470
        %v2816 = vunpack.c.l.b16 %v2471
        %v2817 = vunpack.c.h.b16 %v2471
        %v2818 = vunpack.c.l.b16 %v2472
        %v2819 = vunpack.c.h.b16 %v2472
        %v2820 = vunpack.c.l.b16 %v2473
        %v2821 = vunpack.c.h.b16 %v2473
        %v2822 = vunpack.c.l.b16 %v2474
        %v2823 = vunpack.c.h.b16 %v2474
        %v2824 = vunpack.c.l.b16 %v2475
        %v2825 = vunpack.c.h.b16 %v2475
        %v2826 = vunpack.c.l.b16 %v2476
        %v2827 = vunpack.c.h.b16 %v2476
        %v2828 = vunpack.c.l.b16 %v2477
        %v2829 = vunpack.c.h.b16 %v2477
        %v2830 = vunpack.c.l.b16 %v2478
        %v2831 = vunpack.c.h.b16 %v2478
        %v2832 = vunpack.c.l.b16 %v2479
        %v2833 = vunpack.c.h.b16 %v2479
        %v2834 = vunpack.c.l.b16 %v2480
        %v2835 = vunpack.c.h.b16 %v2480
        %v2836 = vunpack.c.l.b16 %v2481
        %v2837 = vunpack.c.h.b16 %v2481
        %v2838 = vunpack.c.l.b16 %v2482
        %v2839 = vunpack.c.h.b16 %v2482
        %v2840 = vunpack.c.l.b16 %v2483
        %v2841 = vunpack.c.h.b16 %v2483
        %v2842 = vunpack.c.l.b16 %v2484
        %v2843 = vunpack.c.h.b16 %v2484
        %v2844 = vunpack.c.l.b16 %v2485
        %v2845 = vunpack.c.h.b16 %v2485
        %v2846 = vunpack.c.l.b16 %v2486
        %v2847 = vunpack.c.h.b16 %v2486
        %v2848 = vunpack.c.l.b16 %v2487
        %v2849 = vunpack.c.h.b16 %v2487
        %v2850 = vunpack.c.l.b16 %v2488
        %v2851 = vunpack.c.h.b16 %v2488
        %v2852 = vunpack.c.l.b16 %v2489
        %v2853 = vunpack.c.h.b16 %v2489
        %v2854 = vunpack.c.l.b16 %v2490
        %v2855 = vunpack.c.h.b16 %v2490
        %v2856 = vunpack.c.l.b16 %v2491
        %v2857 = vunpack.c.h.b16 %v2491
        %v2858 = vunpack.c.l.b16 %v2492
        %v2859 = vunpack.c.h.b16 %v2492
        %v2860 = vunpack.c.l.b16 %v2493
        %v2861 = vunpack.c.h.b16 %v2493
        %v2862 = vunpack.c.l.b16 %v2494
        %v2863 = vunpack.c.h.b16 %v2494
        %v2864 = vunpack.c.l.b16 %v2495
        %v2865 = vunpack.c.h.b16 %v2495
        %v2866 = vunpack.c.l.b16 %v2496
        %v2867 = vunpack.c.h.b16 %v2496
        %v2868 = vunpack.c.l.b16 %v2497
        %v2869 = vunpack.c.h.b16 %v2497
        %v2870 = vunpack.c.l.b16 %v2498
        %v2871 = vunpack.c.h.b16 %v2498
        %v2872 = vunpack.c.l.b16 %v2499
        %v2873 = vunpack.c.h.b16 %v2499
        %v2874 = vunpack.c.l.b16 %v2500
        %v2875 = vunpack.c.h.b16 %v2500
        %v2876 = vunpack.c.l.b16 %v2501
        %v2877 = vunpack.c.h.b16 %v2501
        %v2878 = vunpack.c.l.b16 %v2502
        %v2879 = vunpack.c.h.b16 %v2502
        %v2880 = vunpack.c.l.b16 %v2503
        %v2881 = vunpack.c.h.b16 %v2503
        %v2882 = vunpack.c.l.b16 %v2504
        %v2883 = vunpack.c.h.b16 %v2504
        %v2884 = vunpack.c.l.b16 %v2505
        %v2885 = vunpack.c.h.b16 %v2505
        %v2886 = vunpack.c.l.b16 %v2506
        %v2887 = vunpack.c.h.b16 %v2506
        %v2888 = vunpack.c.l.b16 %v2507
        %v2889 = vunpack.c.h.b16 %v2507
        %v2890 = vunpack.c.l.b16 %v2508
        %v2891 = vunpack.c.h.b16 %v2508
        %v2892 = vunpack.c.l.b16 %v2509
        %v2893 = vunpack.c.h.b16 %v2509
        %v2894 = vunpack.c.l.b16 %v2510
        %v2895 = vunpack.c.h.b16 %v2510
        %v2896 = vunpack.c.l.b16 %v2511
        %v2897 = vunpack.c.h.b16 %v2511
        %v2898 = vunpack.c.l.b16 %v2512
        %v2899 = vunpack.c.h.b16 %v2512
        %v2900 = vunpack.c.l.b16 %v2513
        %v2901 = vunpack.c.h.b16 %v2513
        %v2902 = vunpack.c.l.b16 %v2514
        %v2903 = vunpack.c.h.b16 %v2514
        %v2904 = vunpack.c.l.b16 %v2515
        %v2905 = vunpack.c.h.b16 %v2515
        %v2906 = vunpack.c.l.b16 %v2516
        %v2907 = vunpack.c.h.b16 %v2516
        %v2908 = vunpack.c.l.b16 %v2517
        %v2909 = vunpack.c.h.b16 %v2517
        %v2910 = vunpack.c.l.b16 %v2518
        %v2911 = vunpack.c.h.b16 %v2518
        %v2912 = vunpack.c.l.b16 %v2519
        %v2913 = vunpack.c.h.b16 %v2519
        %v2914 = vunpack.c.l.b16 %v2520
        %v2915 = vunpack.c.h.b16 %v2520
        %v2916 = vunpack.c.l.b16 %v2521
        %v2917 = vunpack.c.h.b16 %v2521
        %v2918 = vpack.c.b16 %v2664, %v2662
        %v2919 = vpack.c.b16 %v2665, %v2663
        %v2920 = vpack.c.b16 %v2668, %v2666
        %v2921 = vpack.c.b16 %v2669, %v2667
        %v2922 = vpack.c.b16 %v2672, %v2670
        %v2923 = vpack.c.b16 %v2673, %v2671
        %v2924 = vpack.c.b16 %v2676, %v2674
        %v2925 = vpack.c.b16 %v2677, %v2675
        %v2926 = vpack.c.b16 %v2680, %v2678
        %v2927 = vpack.c.b16 %v2681, %v2679
        %v2928 = vpack.c.b16 %v2684, %v2682
        %v2929 = vpack.c.b16 %v2685, %v2683
        %v2930 = vpack.c.b16 %v2688, %v2686
        %v2931 = vpack.c.b16 %v2689, %v2687
        %v2932 = vpack.c.b16 %v2692, %v2690
        %v2933 = vpack.c.b16 %v2693, %v2691
        %v2934 = vpack.c.b16 %v2696, %v2694
        %v2935 = vpack.c.b16 %v2697, %v2695
        %v2936 = vpack.c.b16 %v2700, %v2698
        %v2937 = vpack.c.b16 %v2701, %v2699
        %v2938 = vpack.c.b16 %v2704, %v2702
        %v2939 = vpack.c.b16 %v2705, %v2703
        %v2940 = vpack.c.b16 %v2708, %v2706
        %v2941 = vpack.c.b16 %v2709, %v2707
        %v2942 = vpack.c.b16 %v2712, %v2710
        %v2943 = vpack.c.b16 %v2713, %v2711
        %v2944 = vpack.c.b16 %v2716, %v2714
        %v2945 = vpack.c.b16 %v2717, %v2715
        %v2946 = vpack.c.b16 %v2720, %v2718
        %v2947 = vpack.c.b16 %v2721, %v2719
        %v2948 = vpack.c.b16 %v2724, %v2722
        %v2949 = vpack.c.b16 %v2725, %v2723
        %v2950 = vpack.c.b16 %v2728, %v2726
        %v2951 = vpack.c.b16 %v2729, %v2727
        %v2952 = vpack.c.b16 %v2732, %v2730
        %v2953 = vpack.c.b16 %v2733, %v2731
        %v2954 = vpack.c.b16 %v2736, %v2734
        %v2955 = vpack.c.b16 %v2737, %v2735
        %v2956 = vpack.c.b16 %v2740, %v2738
        %v2957 = vpack.c.b16 %v2741, %v2739
        %v2958 = vpack.c.b16 %v2744, %v2742
        %v2959 = vpack.c.b16 %v2745, %v2743
        %v2960 = vpack.c.b16 %v2748, %v2746
        %v2961 = vpack.c.b16 %v2749, %v2747
        %v2962 = vpack.c.b16 %v2752, %v2750
        %v2963 = vpack.c.b16 %v2753, %v2751
        %v2964 = vpack.c.b16 %v2756, %v2754
        %v2965 = vpack.c.b16 %v2757, %v2755
        %v2966 = vpack.c.b16 %v2760, %v2758
        %v2967 = vpack.c.b16 %v2761, %v2759
        %v2968 = vpack.c.b16 %v2764, %v2762
        %v2969 = vpack.c.b16 %v2765, %v2763
        %v2970 = vpack.c.b16 %v2768, %v2766
        %v2971 = vpack.c.b16 %v2769, %v2767
        %v2972 = vpack.c.b16 %v2772, %v2770
        %v2973 = vpack.c.b16 %v2773, %v2771
        %v2974 = vpack.c.b16 %v2776, %v2774
        %v2975 = vpack.c.b16 %v2777, %v2775
        %v2976 = vpack.c.b16 %v2780, %v2778
        %v2977 = vpack.c.b16 %v2781, %v2779
        %v2978 = vpack.c.b16 %v2784, %v2782
        %v2979 = vpack.c.b16 %v2785, %v2783
        %v2980 = vpack.c.b16 %v2788, %v2786
        %v2981 = vpack.c.b16 %v2789, %v2787
        %v2982 = vpack.c.b16 %v2792, %v2790
        %v2983 = vpack.c.b16 %v2793, %v2791
        %v2984 = vpack.c.b16 %v2796, %v2794
        %v2985 = vpack.c.b16 %v2797, %v2795
        %v2986 = vpack.c.b16 %v2800, %v2798
        %v2987 = vpack.c.b16 %v2801, %v2799
        %v2988 = vpack.c.b16 %v2804, %v2802
        %v2989 = vpack.c.b16 %v2805, %v2803
        %v2990 = vpack.c.b16 %v2808, %v2806
        %v2991 = vpack.c.b16 %v2809, %v2807
        %v2992 = vpack.c.b16 %v2812, %v2810
        %v2993 = vpack.c.b16 %v2813, %v2811
        %v2994 = vpack.c.b16 %v2816, %v2814
        %v2995 = vpack.c.b16 %v2817, %v2815
        %v2996 = vpack.c.b16 %v2820, %v2818
        %v2997 = vpack.c.b16 %v2821, %v2819
        %v2998 = vpack.c.b16 %v2824, %v2822
        %v2999 = vpack.c.b16 %v2825, %v2823
        %v3000 = vpack.c.b16 %v2828, %v2826
        %v3001 = vpack.c.b16 %v2829, %v2827
        %v3002 = vpack.c.b16 %v2832, %v2830
        %v3003 = vpack.c.b16 %v2833, %v2831
        %v3004 = vpack.c.b16 %v2836, %v2834
        %v3005 = vpack.c.b16 %v2837, %v2835
        %v3006 = vpack.c.b16 %v2840, %v2838
        %v3007 = vpack.c.b16 %v2841, %v2839
        %v3008 = vpack.c.b16 %v2844, %v2842
        %v3009 = vpack.c.b16 %v2845, %v2843
        %v3010 = vpack.c.b16 %v2848, %v2846
        %v3011 = vpack.c.b16 %v2849, %v2847
        %v3012 = vpack.c.b16 %v2852, %v2850
        %v3013 = vpack.c.b16 %v2853, %v2851
        %v3014 = vpack.c.b16 %v2856, %v2854
        %v3015 = vpack.c.b16 %v2857, %v2855
        %v3016 = vpack.c.b16 %v2860, %v2858
        %v3017 = vpack.c.b16 %v2861, %v2859
        %v3018 = vpack.c.b16 %v2864, %v2862
        %v3019 = vpack.c.b16 %v2865, %v2863
        %v3020 = vpack.c.b16 %v2868, %v2866
        %v3021 = vpack.c.b16 %v2869, %v2867
        %v3022 = vpack.c.b16 %v2872, %v2870
        %v3023 = vpack.c.b16 %v2873, %v2871
        %v3024 = vpack.c.b16 %v2876, %v2874
        %v3025 = vpack.c.b16 %v2877, %v2875
        %v3026 = vpack.c.b16 %v2880, %v2878
        %v3027 = vpack.c.b16 %v2881, %v2879
        %v3028 = vpack.c.b16 %v2884, %v2882
        %v3029 = vpack.c.b16 %v2885, %v2883
        %v3030 = vpack.c.b16 %v2888, %v2886
        %v3031 = vpack.c.b16 %v2889, %v2887
        %v3032 = vpack.c.b16 %v2892, %v2890
        %v3033 = vpack.c.b16 %v2893, %v2891
        %v3034 = vpack.c.b16 %v2896, %v2894
        %v3035 = vpack.c.b16 %v2897, %v2895
        %v3036 = vpack.c.b16 %v2900, %v2898
        %v3037 = vpack.c.b16 %v2901, %v2899
        %v3038 = vpack.c.b16 %v2904, %v2902
        %v3039 = vpack.c.b16 %v2905, %v2903
        %v3040 = vpack.c.b16 %v2908, %v2906
        %v3041 = vpack.c.b16 %v2909, %v2907
        %v3042 = vpack.c.b16 %v2912, %v2910
        %v3043 = vpack.c.b16 %v2913, %v2911
        %v3044 = vpack.c.b16 %v2916, %v2914
        %v3045 = vpack.c.b16 %v2917, %v2915
        %3174 = vmatprep.subr.bf16.mxu0 %v2919
        %3175 = vmatpush1.bf16.msra.mxu0 %v2918
        %3176 = vmatprep.subr.bf16.mxu0 %v2921
        %3177 = vmatpush1.bf16.msra.mxu0 %v2920
        %3178 = vmatprep.subr.bf16.mxu0 %v2923
        %3179 = vmatpush1.bf16.msra.mxu0 %v2922
        %3180 = vmatprep.subr.bf16.mxu0 %v2925
        %3181 = vmatpush1.bf16.msra.mxu0 %v2924
        %3182 = vmatprep.subr.bf16.mxu0 %v2927
        %3183 = vmatpush1.bf16.msra.mxu0 %v2926
        %3184 = vmatprep.subr.bf16.mxu0 %v2929
        %3185 = vmatpush1.bf16.msra.mxu0 %v2928
        %3186 = vmatprep.subr.bf16.mxu0 %v2931
        %3187 = vmatpush1.bf16.msra.mxu0 %v2930
        %3188 = vmatprep.subr.bf16.mxu0 %v2933
        %3189 = vmatpush1.bf16.msra.mxu0 %v2932
        %3190 = vmatprep.subr.bf16.mxu0 %v2935
        %3191 = vmatpush1.bf16.msra.mxu0 %v2934
        %3192 = vmatprep.subr.bf16.mxu0 %v2937
        %3193 = vmatpush1.bf16.msra.mxu0 %v2936
        %3194 = vmatprep.subr.bf16.mxu0 %v2939
        %3195 = vmatpush1.bf16.msra.mxu0 %v2938
        %3196 = vmatprep.subr.bf16.mxu0 %v2941
        %3197 = vmatpush1.bf16.msra.mxu0 %v2940
        %3198 = vmatprep.subr.bf16.mxu0 %v2943
        %3199 = vmatpush1.bf16.msra.mxu0 %v2942
        %3200 = vmatprep.subr.bf16.mxu0 %v2945
        %3201 = vmatpush1.bf16.msra.mxu0 %v2944
        %3202 = vmatprep.subr.bf16.mxu0 %v2947
        %3203 = vmatpush1.bf16.msra.mxu0 %v2946
        %3204 = vmatprep.subr.bf16.mxu0 %v2949
        %3205 = vmatpush1.bf16.msra.mxu0 %v2948
        %3206 = vmatprep.mubr.bf16.mxu0 %v2267
        %3207 = vmatmul.mubr.bf16.gmra.mrb[0].mxu0 %v2266
        %v3208 = vpop.f32.mrb[0].mxu0
        %v3209 = vadd.f32 %v2527, %v3208
        %v3210 = vpop.f32.mrb[0].mxu0
        %v3211 = vadd.f32 %v2531, %v3210
        %v3212 = vpop.f32.mrb[0].mxu0
        %v3213 = vadd.f32 %v2527, %v3212
        %v3214 = vpop.f32.mrb[0].mxu0
        %v3215 = vadd.f32 %v2531, %v3214
        %3216 = vmatprep.mubr.bf16.mxu0 %v2275
        %3217 = vmatmul.mubr.bf16.gmra.mrb[0].mxu0 %v2274
        %v3218 = vpop.f32.mrb[0].mxu0
        %v3219 = vadd.f32 %v2527, %v3218
        %v3220 = vpop.f32.mrb[0].mxu0
        %v3221 = vadd.f32 %v2531, %v3220
        %v3222 = vpop.f32.mrb[0].mxu0
        %v3223 = vadd.f32 %v2527, %v3222
        %v3224 = vpop.f32.mrb[0].mxu0
        %v3225 = vadd.f32 %v2531, %v3224
        %3226 = vmatprep.mubr.bf16.mxu0 %v2283
        %3227 = vmatmul.mubr.bf16.gmra.mrb[0].mxu0 %v2282
        %v3228 = vpop.f32.mrb[0].mxu0
        %v3229 = vadd.f32 %v2527, %v3228
        %v3230 = vpop.f32.mrb[0].mxu0
        %v3231 = vadd.f32 %v2531, %v3230
        %v3232 = vpop.f32.mrb[0].mxu0
        %v3233 = vadd.f32 %v2527, %v3232
        %v3234 = vpop.f32.mrb[0].mxu0
        %v3235 = vadd.f32 %v2531, %v3234
        %3236 = vmatprep.mubr.bf16.mxu0 %v2291
        %3237 = vmatmul.mubr.bf16.gmra.mrb[0].mxu0 %v2290
        %v3238 = vpop.f32.mrb[0].mxu0
        %v3239 = vadd.f32 %v2527, %v3238
        %v3240 = vpop.f32.mrb[0].mxu0
        %v3241 = vadd.f32 %v2531, %v3240
        %v3242 = vpop.f32.mrb[0].mxu0
        %v3243 = vadd.f32 %v2527, %v3242
        %v3244 = vpop.f32.mrb[0].mxu0
        %v3245 = vadd.f32 %v2531, %v3244
        %3246 = vmatprep.mubr.bf16.mxu0 %v2299
        %3247 = vmatmul.mubr.bf16.gmra.mrb[0].mxu0 %v2298
        %v3248 = vpop.f32.mrb[0].mxu0
        %v3249 = vadd.f32 %v2527, %v3248
        %v3250 = vpop.f32.mrb[0].mxu0
        %v3251 = vadd.f32 %v2531, %v3250
        %v3252 = vpop.f32.mrb[0].mxu0
        %v3253 = vadd.f32 %v2527, %v3252
        %v3254 = vpop.f32.mrb[0].mxu0
        %v3255 = vadd.f32 %v2531, %v3254
        %3256 = vmatprep.mubr.bf16.mxu0 %v2307
        %3257 = vmatmul.mubr.bf16.gmra.mrb[0].mxu0 %v2306
        %v3258 = vpop.f32.mrb[0].mxu0
        %v3259 = vadd.f32 %v2527, %v3258
        %v3260 = vpop.f32.mrb[0].mxu0
        %v3261 = vadd.f32 %v2531, %v3260
        %v3262 = vpop.f32.mrb[0].mxu0
        %v3263 = vadd.f32 %v2527, %v3262
        %v3264 = vpop.f32.mrb[0].mxu0
        %v3265 = vadd.f32 %v2531, %v3264
        %3266 = vmatprep.mubr.bf16.mxu0 %v2315
        %3267 = vmatmul.mubr.bf16.gmra.mrb[0].mxu0 %v2314
        %v3268 = vpop.f32.mrb[0].mxu0
        %v3269 = vadd.f32 %v2527, %v3268
        %v3270 = vpop.f32.mrb[0].mxu0
        %v3271 = vadd.f32 %v2531, %v3270
        %v3272 = vpop.f32.mrb[0].mxu0
        %v3273 = vadd.f32 %v2527, %v3272
        %v3274 = vpop.f32.mrb[0].mxu0
        %v3275 = vadd.f32 %v2531, %v3274
        %3276 = vmatprep.mubr.bf16.mxu0 %v2323
        %3277 = vmatmul.mubr.bf16.gmra.mrb[0].mxu0 %v2322
        %v3278 = vpop.f32.mrb[0].mxu0
        %v3279 = vadd.f32 %v2527, %v3278
        %v3280 = vpop.f32.mrb[0].mxu0
        %v3281 = vadd.f32 %v2531, %v3280
        %v3282 = vpop.f32.mrb[0].mxu0
        %v3283 = vadd.f32 %v2527, %v3282
        %v3284 = vpop.f32.mrb[0].mxu0
        %v3285 = vadd.f32 %v2531, %v3284
        %3286 = vmatprep.mubr.bf16.mxu0 %v2331
        %3287 = vmatmul.mubr.bf16.gmra.mrb[0].mxu0 %v2330
        %v3288 = vpop.f32.mrb[0].mxu0
        %v3289 = vadd.f32 %v2527, %v3288
        %v3290 = vpop.f32.mrb[0].mxu0
        %v3291 = vadd.f32 %v2531, %v3290
        %v3292 = vpop.f32.mrb[0].mxu0
        %v3293 = vadd.f32 %v2527, %v3292
        %v3294 = vpop.f32.mrb[0].mxu0
        %v3295 = vadd.f32 %v2531, %v3294
        %3296 = vmatprep.mubr.bf16.mxu0 %v2339
        %3297 = vmatmul.mubr.bf16.gmra.mrb[0].mxu0 %v2338
        %v3298 = vpop.f32.mrb[0].mxu0
        %v3299 = vadd.f32 %v2527, %v3298
        %v3300 = vpop.f32.mrb[0].mxu0
        %v3301 = vadd.f32 %v2531, %v3300
        %v3302 = vpop.f32.mrb[0].mxu0
        %v3303 = vadd.f32 %v2527, %v3302
        %v3304 = vpop.f32.mrb[0].mxu0
        %v3305 = vadd.f32 %v2531, %v3304
        %3306 = vmatprep.mubr.bf16.mxu0 %v2347
        %3307 = vmatmul.mubr.bf16.gmra.mrb[0].mxu0 %v2346
        %v3308 = vpop.f32.mrb[0].mxu0
        %v3309 = vadd.f32 %v2527, %v3308
        %v3310 = vpop.f32.mrb[0].mxu0
        %v3311 = vadd.f32 %v2531, %v3310
        %v3312 = vpop.f32.mrb[0].mxu0
        %v3313 = vadd.f32 %v2527, %v3312
        %v3314 = vpop.f32.mrb[0].mxu0
        %v3315 = vadd.f32 %v2531, %v3314
        %3316 = vmatprep.mubr.bf16.mxu0 %v2355
        %3317 = vmatmul.mubr.bf16.gmra.mrb[0].mxu0 %v2354
        %v3318 = vpop.f32.mrb[0].mxu0
        %v3319 = vadd.f32 %v2527, %v3318
        %v3320 = vpop.f32.mrb[0].mxu0
        %v3321 = vadd.f32 %v2531, %v3320
        %v3322 = vpop.f32.mrb[0].mxu0
        %v3323 = vadd.f32 %v2527, %v3322
        %v3324 = vpop.f32.mrb[0].mxu0
        %v3325 = vadd.f32 %v2531, %v3324
        %3326 = vmatprep.mubr.bf16.mxu0 %v2363
        %3327 = vmatmul.mubr.bf16.gmra.mrb[0].mxu0 %v2362
        %v3328 = vpop.f32.mrb[0].mxu0
        %v3329 = vadd.f32 %v2527, %v3328
        %v3330 = vpop.f32.mrb[0].mxu0
        %v3331 = vadd.f32 %v2531, %v3330
        %v3332 = vpop.f32.mrb[0].mxu0
        %v3333 = vadd.f32 %v2527, %v3332
        %v3334 = vpop.f32.mrb[0].mxu0
        %v3335 = vadd.f32 %v2531, %v3334
        %3336 = vmatprep.mubr.bf16.mxu0 %v2371
        %3337 = vmatmul.mubr.bf16.gmra.mrb[0].mxu0 %v2370
        %v3338 = vpop.f32.mrb[0].mxu0
        %v3339 = vadd.f32 %v2527, %v3338
        %v3340 = vpop.f32.mrb[0].mxu0
        %v3341 = vadd.f32 %v2531, %v3340
        %v3342 = vpop.f32.mrb[0].mxu0
        %v3343 = vadd.f32 %v2527, %v3342
        %v3344 = vpop.f32.mrb[0].mxu0
        %v3345 = vadd.f32 %v2531, %v3344
        %3346 = vmatprep.mubr.bf16.mxu0 %v2379
        %3347 = vmatmul.mubr.bf16.gmra.mrb[0].mxu0 %v2378
        %v3348 = vpop.f32.mrb[0].mxu0
        %v3349 = vadd.f32 %v2527, %v3348
        %v3350 = vpop.f32.mrb[0].mxu0
        %v3351 = vadd.f32 %v2531, %v3350
        %v3352 = vpop.f32.mrb[0].mxu0
        %v3353 = vadd.f32 %v2527, %v3352
        %v3354 = vpop.f32.mrb[0].mxu0
        %v3355 = vadd.f32 %v2531, %v3354
        %3356 = vmatprep.mubr.bf16.mxu0 %v2387
        %3357 = vmatmul.mubr.bf16.gmra.mrb[0].mxu0 %v2386
        %v3358 = vpop.f32.mrb[0].mxu0
        %v3359 = vadd.f32 %v2527, %v3358
        %v3360 = vpop.f32.mrb[0].mxu0
        %v3361 = vadd.f32 %v2531, %v3360
        %v3362 = vpop.f32.mrb[0].mxu0
        %v3363 = vadd.f32 %v2527, %v3362
        %v3364 = vpop.f32.mrb[0].mxu0
        %v3365 = vadd.f32 %v2531, %v3364
        %3366 = vdwg.mxu0
        %3367 = vmatprep.subr.bf16.mxu0 %v2951
        %3368 = vmatpush1.bf16.msra.mxu0 %v2950
        %3369 = vmatprep.subr.bf16.mxu0 %v2953
        %3370 = vmatpush1.bf16.msra.mxu0 %v2952
        %3371 = vmatprep.subr.bf16.mxu0 %v2955
        %3372 = vmatpush1.bf16.msra.mxu0 %v2954
        %3373 = vmatprep.subr.bf16.mxu0 %v2957
        %3374 = vmatpush1.bf16.msra.mxu0 %v2956
        %3375 = vmatprep.subr.bf16.mxu0 %v2959
        %3376 = vmatpush1.bf16.msra.mxu0 %v2958
        %3377 = vmatprep.subr.bf16.mxu0 %v2961
        %3378 = vmatpush1.bf16.msra.mxu0 %v2960
        %3379 = vmatprep.subr.bf16.mxu0 %v2963
        %3380 = vmatpush1.bf16.msra.mxu0 %v2962
        %3381 = vmatprep.subr.bf16.mxu0 %v2965
        %3382 = vmatpush1.bf16.msra.mxu0 %v2964
        %3383 = vmatprep.subr.bf16.mxu0 %v2967
        %3384 = vmatpush1.bf16.msra.mxu0 %v2966
        %3385 = vmatprep.subr.bf16.mxu0 %v2969
        %3386 = vmatpush1.bf16.msra.mxu0 %v2968
        %3387 = vmatprep.subr.bf16.mxu0 %v2971
        %3388 = vmatpush1.bf16.msra.mxu0 %v2970
        %3389 = vmatprep.subr.bf16.mxu0 %v2973
        %3390 = vmatpush1.bf16.msra.mxu0 %v2972
        %3391 = vmatprep.subr.bf16.mxu0 %v2975
        %3392 = vmatpush1.bf16.msra.mxu0 %v2974
        %3393 = vmatprep.subr.bf16.mxu0 %v2977
        %3394 = vmatpush1.bf16.msra.mxu0 %v2976
        %3395 = vmatprep.subr.bf16.mxu0 %v2979
        %3396 = vmatpush1.bf16.msra.mxu0 %v2978
        %3397 = vmatprep.subr.bf16.mxu0 %v2981
        %3398 = vmatpush1.bf16.msra.mxu0 %v2980
        %3399 = vmatprep.mubr.bf16.mxu0 %v2269
        %3400 = vmatmul.mubr.bf16.gmra.mrb[0].mxu0 %v2268
        %v3401 = vpop.f32.mrb[0].mxu0
        %v3402 = vadd.f32 %v3209, %v3401
        %v3403 = vpop.f32.mrb[0].mxu0
        %v3404 = vadd.f32 %v3211, %v3403
        %v3405 = vpop.f32.mrb[0].mxu0
        %v3406 = vadd.f32 %v3213, %v3405
        %v3407 = vpop.f32.mrb[0].mxu0
        %v3408 = vadd.f32 %v3215, %v3407
        %3409 = vmatprep.mubr.bf16.mxu0 %v2277
        %3410 = vmatmul.mubr.bf16.gmra.mrb[0].mxu0 %v2276
        %v3411 = vpop.f32.mrb[0].mxu0
        %v3412 = vadd.f32 %v3219, %v3411
        %v3413 = vpop.f32.mrb[0].mxu0
        %v3414 = vadd.f32 %v3221, %v3413
        %v3415 = vpop.f32.mrb[0].mxu0
        %v3416 = vadd.f32 %v3223, %v3415
        %v3417 = vpop.f32.mrb[0].mxu0
        %v3418 = vadd.f32 %v3225, %v3417
        %3419 = vmatprep.mubr.bf16.mxu0 %v2285
        %3420 = vmatmul.mubr.bf16.gmra.mrb[0].mxu0 %v2284
        %v3421 = vpop.f32.mrb[0].mxu0
        %v3422 = vadd.f32 %v3229, %v3421
        %v3423 = vpop.f32.mrb[0].mxu0
        %v3424 = vadd.f32 %v3231, %v3423
        %v3425 = vpop.f32.mrb[0].mxu0
        %v3426 = vadd.f32 %v3233, %v3425
        %v3427 = vpop.f32.mrb[0].mxu0
        %v3428 = vadd.f32 %v3235, %v3427
        %3429 = vmatprep.mubr.bf16.mxu0 %v2293
        %3430 = vmatmul.mubr.bf16.gmra.mrb[0].mxu0 %v2292
        %v3431 = vpop.f32.mrb[0].mxu0
        %v3432 = vadd.f32 %v3239, %v3431
        %v3433 = vpop.f32.mrb[0].mxu0
        %v3434 = vadd.f32 %v3241, %v3433
        %v3435 = vpop.f32.mrb[0].mxu0
        %v3436 = vadd.f32 %v3243, %v3435
        %v3437 = vpop.f32.mrb[0].mxu0
        %v3438 = vadd.f32 %v3245, %v3437
        %3439 = vmatprep.mubr.bf16.mxu0 %v2301
        %3440 = vmatmul.mubr.bf16.gmra.mrb[0].mxu0 %v2300
        %v3441 = vpop.f32.mrb[0].mxu0
        %v3442 = vadd.f32 %v3249, %v3441
        %v3443 = vpop.f32.mrb[0].mxu0
        %v3444 = vadd.f32 %v3251, %v3443
        %v3445 = vpop.f32.mrb[0].mxu0
        %v3446 = vadd.f32 %v3253, %v3445
        %v3447 = vpop.f32.mrb[0].mxu0
        %v3448 = vadd.f32 %v3255, %v3447
        %3449 = vmatprep.mubr.bf16.mxu0 %v2309
        %3450 = vmatmul.mubr.bf16.gmra.mrb[0].mxu0 %v2308
        %v3451 = vpop.f32.mrb[0].mxu0
        %v3452 = vadd.f32 %v3259, %v3451
        %v3453 = vpop.f32.mrb[0].mxu0
        %v3454 = vadd.f32 %v3261, %v3453
        %v3455 = vpop.f32.mrb[0].mxu0
        %v3456 = vadd.f32 %v3263, %v3455
        %v3457 = vpop.f32.mrb[0].mxu0
        %v3458 = vadd.f32 %v3265, %v3457
        %3459 = vmatprep.mubr.bf16.mxu0 %v2317
        %3460 = vmatmul.mubr.bf16.gmra.mrb[0].mxu0 %v2316
        %v3461 = vpop.f32.mrb[0].mxu0
        %v3462 = vadd.f32 %v3269, %v3461
        %v3463 = vpop.f32.mrb[0].mxu0
        %v3464 = vadd.f32 %v3271, %v3463
        %v3465 = vpop.f32.mrb[0].mxu0
        %v3466 = vadd.f32 %v3273, %v3465
        %v3467 = vpop.f32.mrb[0].mxu0
        %v3468 = vadd.f32 %v3275, %v3467
        %3469 = vmatprep.mubr.bf16.mxu0 %v2325
        %3470 = vmatmul.mubr.bf16.gmra.mrb[0].mxu0 %v2324
        %v3471 = vpop.f32.mrb[0].mxu0
        %v3472 = vadd.f32 %v3279, %v3471
        %v3473 = vpop.f32.mrb[0].mxu0
        %v3474 = vadd.f32 %v3281, %v3473
        %v3475 = vpop.f32.mrb[0].mxu0
        %v3476 = vadd.f32 %v3283, %v3475
        %v3477 = vpop.f32.mrb[0].mxu0
        %v3478 = vadd.f32 %v3285, %v3477
        %3479 = vmatprep.mubr.bf16.mxu0 %v2333
        %3480 = vmatmul.mubr.bf16.gmra.mrb[0].mxu0 %v2332
        %v3481 = vpop.f32.mrb[0].mxu0
        %v3482 = vadd.f32 %v3289, %v3481
        %v3483 = vpop.f32.mrb[0].mxu0
        %v3484 = vadd.f32 %v3291, %v3483
        %v3485 = vpop.f32.mrb[0].mxu0
        %v3486 = vadd.f32 %v3293, %v3485
        %v3487 = vpop.f32.mrb[0].mxu0
        %v3488 = vadd.f32 %v3295, %v3487
        %3489 = vmatprep.mubr.bf16.mxu0 %v2341
        %3490 = vmatmul.mubr.bf16.gmra.mrb[0].mxu0 %v2340
        %v3491 = vpop.f32.mrb[0].mxu0
        %v3492 = vadd.f32 %v3299, %v3491
        %v3493 = vpop.f32.mrb[0].mxu0
        %v3494 = vadd.f32 %v3301, %v3493
        %v3495 = vpop.f32.mrb[0].mxu0
        %v3496 = vadd.f32 %v3303, %v3495
        %v3497 = vpop.f32.mrb[0].mxu0
        %v3498 = vadd.f32 %v3305, %v3497
        %3499 = vmatprep.mubr.bf16.mxu0 %v2349
        %3500 = vmatmul.mubr.bf16.gmra.mrb[0].mxu0 %v2348
        %v3501 = vpop.f32.mrb[0].mxu0
        %v3502 = vadd.f32 %v3309, %v3501
        %v3503 = vpop.f32.mrb[0].mxu0
        %v3504 = vadd.f32 %v3311, %v3503
        %v3505 = vpop.f32.mrb[0].mxu0
        %v3506 = vadd.f32 %v3313, %v3505
        %v3507 = vpop.f32.mrb[0].mxu0
        %v3508 = vadd.f32 %v3315, %v3507
        %3509 = vmatprep.mubr.bf16.mxu0 %v2357
        %3510 = vmatmul.mubr.bf16.gmra.mrb[0].mxu0 %v2356
        %v3511 = vpop.f32.mrb[0].mxu0
        %v3512 = vadd.f32 %v3319, %v3511
        %v3513 = vpop.f32.mrb[0].mxu0
        %v3514 = vadd.f32 %v3321, %v3513
        %v3515 = vpop.f32.mrb[0].mxu0
        %v3516 = vadd.f32 %v3323, %v3515
        %v3517 = vpop.f32.mrb[0].mxu0
        %v3518 = vadd.f32 %v3325, %v3517
        %3519 = vmatprep.mubr.bf16.mxu0 %v2365
        %3520 = vmatmul.mubr.bf16.gmra.mrb[0].mxu0 %v2364
        %v3521 = vpop.f32.mrb[0].mxu0
        %v3522 = vadd.f32 %v3329, %v3521
        %v3523 = vpop.f32.mrb[0].mxu0
        %v3524 = vadd.f32 %v3331, %v3523
        %v3525 = vpop.f32.mrb[0].mxu0
        %v3526 = vadd.f32 %v3333, %v3525
        %v3527 = vpop.f32.mrb[0].mxu0
        %v3528 = vadd.f32 %v3335, %v3527
        %3529 = vmatprep.mubr.bf16.mxu0 %v2373
        %3530 = vmatmul.mubr.bf16.gmra.mrb[0].mxu0 %v2372
        %v3531 = vpop.f32.mrb[0].mxu0
        %v3532 = vadd.f32 %v3339, %v3531
        %v3533 = vpop.f32.mrb[0].mxu0
        %v3534 = vadd.f32 %v3341, %v3533
        %v3535 = vpop.f32.mrb[0].mxu0
        %v3536 = vadd.f32 %v3343, %v3535
        %v3537 = vpop.f32.mrb[0].mxu0
        %v3538 = vadd.f32 %v3345, %v3537
        %3539 = vmatprep.mubr.bf16.mxu0 %v2381
        %3540 = vmatmul.mubr.bf16.gmra.mrb[0].mxu0 %v2380
        %v3541 = vpop.f32.mrb[0].mxu0
        %v3542 = vadd.f32 %v3349, %v3541
        %v3543 = vpop.f32.mrb[0].mxu0
        %v3544 = vadd.f32 %v3351, %v3543
        %v3545 = vpop.f32.mrb[0].mxu0
        %v3546 = vadd.f32 %v3353, %v3545
        %v3547 = vpop.f32.mrb[0].mxu0
        %v3548 = vadd.f32 %v3355, %v3547
        %3549 = vmatprep.mubr.bf16.mxu0 %v2389
        %3550 = vmatmul.mubr.bf16.gmra.mrb[0].mxu0 %v2388
        %v3551 = vpop.f32.mrb[0].mxu0
        %v3552 = vadd.f32 %v3359, %v3551
        %v3553 = vpop.f32.mrb[0].mxu0
        %v3554 = vadd.f32 %v3361, %v3553
        %v3555 = vpop.f32.mrb[0].mxu0
        %v3556 = vadd.f32 %v3363, %v3555
        %v3557 = vpop.f32.mrb[0].mxu0
        %v3558 = vadd.f32 %v3365, %v3557
        %3559 = vdwg.mxu0
        %3560 = vmatprep.subr.bf16.mxu0 %v2983
        %3561 = vmatpush1.bf16.msra.mxu0 %v2982
        %3562 = vmatprep.subr.bf16.mxu0 %v2985
        %3563 = vmatpush1.bf16.msra.mxu0 %v2984
        %3564 = vmatprep.subr.bf16.mxu0 %v2987
        %3565 = vmatpush1.bf16.msra.mxu0 %v2986
        %3566 = vmatprep.subr.bf16.mxu0 %v2989
        %3567 = vmatpush1.bf16.msra.mxu0 %v2988
        %3568 = vmatprep.subr.bf16.mxu0 %v2991
        %3569 = vmatpush1.bf16.msra.mxu0 %v2990
        %3570 = vmatprep.subr.bf16.mxu0 %v2993
        %3571 = vmatpush1.bf16.msra.mxu0 %v2992
        %3572 = vmatprep.subr.bf16.mxu0 %v2995
        %3573 = vmatpush1.bf16.msra.mxu0 %v2994
        %3574 = vmatprep.subr.bf16.mxu0 %v2997
        %3575 = vmatpush1.bf16.msra.mxu0 %v2996
        %3576 = vmatprep.subr.bf16.mxu0 %v2999
        %3577 = vmatpush1.bf16.msra.mxu0 %v2998
        %3578 = vmatprep.subr.bf16.mxu0 %v3001
        %3579 = vmatpush1.bf16.msra.mxu0 %v3000
        %3580 = vmatprep.subr.bf16.mxu0 %v3003
        %3581 = vmatpush1.bf16.msra.mxu0 %v3002
        %3582 = vmatprep.subr.bf16.mxu0 %v3005
        %3583 = vmatpush1.bf16.msra.mxu0 %v3004
        %3584 = vmatprep.subr.bf16.mxu0 %v3007
        %3585 = vmatpush1.bf16.msra.mxu0 %v3006
        %3586 = vmatprep.subr.bf16.mxu0 %v3009
        %3587 = vmatpush1.bf16.msra.mxu0 %v3008
        %3588 = vmatprep.subr.bf16.mxu0 %v3011
        %3589 = vmatpush1.bf16.msra.mxu0 %v3010
        %3590 = vmatprep.subr.bf16.mxu0 %v3013
        %3591 = vmatpush1.bf16.msra.mxu0 %v3012
        %3592 = vmatprep.mubr.bf16.mxu0 %v2271
        %3593 = vmatmul.mubr.bf16.gmra.mrb[0].mxu0 %v2270
        %v3594 = vpop.f32.mrb[0].mxu0
        %v3595 = vadd.f32 %v3402, %v3594
        %v3596 = vpop.f32.mrb[0].mxu0
        %v3597 = vadd.f32 %v3404, %v3596
        %v3598 = vpop.f32.mrb[0].mxu0
        %v3599 = vadd.f32 %v3406, %v3598
        %v3600 = vpop.f32.mrb[0].mxu0
        %v3601 = vadd.f32 %v3408, %v3600
        %3602 = vmatprep.mubr.bf16.mxu0 %v2279
        %3603 = vmatmul.mubr.bf16.gmra.mrb[0].mxu0 %v2278
        %v3604 = vpop.f32.mrb[0].mxu0
        %v3605 = vadd.f32 %v3412, %v3604
        %v3606 = vpop.f32.mrb[0].mxu0
        %v3607 = vadd.f32 %v3414, %v3606
        %v3608 = vpop.f32.mrb[0].mxu0
        %v3609 = vadd.f32 %v3416, %v3608
        %v3610 = vpop.f32.mrb[0].mxu0
        %v3611 = vadd.f32 %v3418, %v3610
        %3612 = vmatprep.mubr.bf16.mxu0 %v2287
        %3613 = vmatmul.mubr.bf16.gmra.mrb[0].mxu0 %v2286
        %v3614 = vpop.f32.mrb[0].mxu0
        %v3615 = vadd.f32 %v3422, %v3614
        %v3616 = vpop.f32.mrb[0].mxu0
        %v3617 = vadd.f32 %v3424, %v3616
        %v3618 = vpop.f32.mrb[0].mxu0
        %v3619 = vadd.f32 %v3426, %v3618
        %v3620 = vpop.f32.mrb[0].mxu0
        %v3621 = vadd.f32 %v3428, %v3620
        %3622 = vmatprep.mubr.bf16.mxu0 %v2295
        %3623 = vmatmul.mubr.bf16.gmra.mrb[0].mxu0 %v2294
        %v3624 = vpop.f32.mrb[0].mxu0
        %v3625 = vadd.f32 %v3432, %v3624
        %v3626 = vpop.f32.mrb[0].mxu0
        %v3627 = vadd.f32 %v3434, %v3626
        %v3628 = vpop.f32.mrb[0].mxu0
        %v3629 = vadd.f32 %v3436, %v3628
        %v3630 = vpop.f32.mrb[0].mxu0
        %v3631 = vadd.f32 %v3438, %v3630
        %3632 = vmatprep.mubr.bf16.mxu0 %v2303
        %3633 = vmatmul.mubr.bf16.gmra.mrb[0].mxu0 %v2302
        %v3634 = vpop.f32.mrb[0].mxu0
        %v3635 = vadd.f32 %v3442, %v3634
        %v3636 = vpop.f32.mrb[0].mxu0
        %v3637 = vadd.f32 %v3444, %v3636
        %v3638 = vpop.f32.mrb[0].mxu0
        %v3639 = vadd.f32 %v3446, %v3638
        %v3640 = vpop.f32.mrb[0].mxu0
        %v3641 = vadd.f32 %v3448, %v3640
        %3642 = vmatprep.mubr.bf16.mxu0 %v2311
        %3643 = vmatmul.mubr.bf16.gmra.mrb[0].mxu0 %v2310
        %v3644 = vpop.f32.mrb[0].mxu0
        %v3645 = vadd.f32 %v3452, %v3644
        %v3646 = vpop.f32.mrb[0].mxu0
        %v3647 = vadd.f32 %v3454, %v3646
        %v3648 = vpop.f32.mrb[0].mxu0
        %v3649 = vadd.f32 %v3456, %v3648
        %v3650 = vpop.f32.mrb[0].mxu0
        %v3651 = vadd.f32 %v3458, %v3650
        %3652 = vmatprep.mubr.bf16.mxu0 %v2319
        %3653 = vmatmul.mubr.bf16.gmra.mrb[0].mxu0 %v2318
        %v3654 = vpop.f32.mrb[0].mxu0
        %v3655 = vadd.f32 %v3462, %v3654
        %v3656 = vpop.f32.mrb[0].mxu0
        %v3657 = vadd.f32 %v3464, %v3656
        %v3658 = vpop.f32.mrb[0].mxu0
        %v3659 = vadd.f32 %v3466, %v3658
        %v3660 = vpop.f32.mrb[0].mxu0
        %v3661 = vadd.f32 %v3468, %v3660
        %3662 = vmatprep.mubr.bf16.mxu0 %v2327
        %3663 = vmatmul.mubr.bf16.gmra.mrb[0].mxu0 %v2326
        %v3664 = vpop.f32.mrb[0].mxu0
        %v3665 = vadd.f32 %v3472, %v3664
        %v3666 = vpop.f32.mrb[0].mxu0
        %v3667 = vadd.f32 %v3474, %v3666
        %v3668 = vpop.f32.mrb[0].mxu0
        %v3669 = vadd.f32 %v3476, %v3668
        %v3670 = vpop.f32.mrb[0].mxu0
        %v3671 = vadd.f32 %v3478, %v3670
        %3672 = vmatprep.mubr.bf16.mxu0 %v2335
        %3673 = vmatmul.mubr.bf16.gmra.mrb[0].mxu0 %v2334
        %v3674 = vpop.f32.mrb[0].mxu0
        %v3675 = vadd.f32 %v3482, %v3674
        %v3676 = vpop.f32.mrb[0].mxu0
        %v3677 = vadd.f32 %v3484, %v3676
        %v3678 = vpop.f32.mrb[0].mxu0
        %v3679 = vadd.f32 %v3486, %v3678
        %v3680 = vpop.f32.mrb[0].mxu0
        %v3681 = vadd.f32 %v3488, %v3680
        %3682 = vmatprep.mubr.bf16.mxu0 %v2343
        %3683 = vmatmul.mubr.bf16.gmra.mrb[0].mxu0 %v2342
        %v3684 = vpop.f32.mrb[0].mxu0
        %v3685 = vadd.f32 %v3492, %v3684
        %v3686 = vpop.f32.mrb[0].mxu0
        %v3687 = vadd.f32 %v3494, %v3686
        %v3688 = vpop.f32.mrb[0].mxu0
        %v3689 = vadd.f32 %v3496, %v3688
        %v3690 = vpop.f32.mrb[0].mxu0
        %v3691 = vadd.f32 %v3498, %v3690
        %3692 = vmatprep.mubr.bf16.mxu0 %v2351
        %3693 = vmatmul.mubr.bf16.gmra.mrb[0].mxu0 %v2350
        %v3694 = vpop.f32.mrb[0].mxu0
        %v3695 = vadd.f32 %v3502, %v3694
        %v3696 = vpop.f32.mrb[0].mxu0
        %v3697 = vadd.f32 %v3504, %v3696
        %v3698 = vpop.f32.mrb[0].mxu0
        %v3699 = vadd.f32 %v3506, %v3698
        %v3700 = vpop.f32.mrb[0].mxu0
        %v3701 = vadd.f32 %v3508, %v3700
        %3702 = vmatprep.mubr.bf16.mxu0 %v2359
        %3703 = vmatmul.mubr.bf16.gmra.mrb[0].mxu0 %v2358
        %v3704 = vpop.f32.mrb[0].mxu0
        %v3705 = vadd.f32 %v3512, %v3704
        %v3706 = vpop.f32.mrb[0].mxu0
        %v3707 = vadd.f32 %v3514, %v3706
        %v3708 = vpop.f32.mrb[0].mxu0
        %v3709 = vadd.f32 %v3516, %v3708
        %v3710 = vpop.f32.mrb[0].mxu0
        %v3711 = vadd.f32 %v3518, %v3710
        %3712 = vmatprep.mubr.bf16.mxu0 %v2367
        %3713 = vmatmul.mubr.bf16.gmra.mrb[0].mxu0 %v2366
        %v3714 = vpop.f32.mrb[0].mxu0
        %v3715 = vadd.f32 %v3522, %v3714
        %v3716 = vpop.f32.mrb[0].mxu0
        %v3717 = vadd.f32 %v3524, %v3716
        %v3718 = vpop.f32.mrb[0].mxu0
        %v3719 = vadd.f32 %v3526, %v3718
        %v3720 = vpop.f32.mrb[0].mxu0
        %v3721 = vadd.f32 %v3528, %v3720
        %3722 = vmatprep.mubr.bf16.mxu0 %v2375
        %3723 = vmatmul.mubr.bf16.gmra.mrb[0].mxu0 %v2374
        %v3724 = vpop.f32.mrb[0].mxu0
        %v3725 = vadd.f32 %v3532, %v3724
        %v3726 = vpop.f32.mrb[0].mxu0
        %v3727 = vadd.f32 %v3534, %v3726
        %v3728 = vpop.f32.mrb[0].mxu0
        %v3729 = vadd.f32 %v3536, %v3728
        %v3730 = vpop.f32.mrb[0].mxu0
        %v3731 = vadd.f32 %v3538, %v3730
        %3732 = vmatprep.mubr.bf16.mxu0 %v2383
        %3733 = vmatmul.mubr.bf16.gmra.mrb[0].mxu0 %v2382
        %v3734 = vpop.f32.mrb[0].mxu0
        %v3735 = vadd.f32 %v3542, %v3734
        %v3736 = vpop.f32.mrb[0].mxu0
        %v3737 = vadd.f32 %v3544, %v3736
        %v3738 = vpop.f32.mrb[0].mxu0
        %v3739 = vadd.f32 %v3546, %v3738
        %v3740 = vpop.f32.mrb[0].mxu0
        %v3741 = vadd.f32 %v3548, %v3740
        %3742 = vmatprep.mubr.bf16.mxu0 %v2391
        %3743 = vmatmul.mubr.bf16.gmra.mrb[0].mxu0 %v2390
        %v3744 = vpop.f32.mrb[0].mxu0
        %v3745 = vadd.f32 %v3552, %v3744
        %v3746 = vpop.f32.mrb[0].mxu0
        %v3747 = vadd.f32 %v3554, %v3746
        %v3748 = vpop.f32.mrb[0].mxu0
        %v3749 = vadd.f32 %v3556, %v3748
        %v3750 = vpop.f32.mrb[0].mxu0
        %v3751 = vadd.f32 %v3558, %v3750
        %3752 = vdwg.mxu0
        %3753 = vmatprep.subr.bf16.mxu0 %v3015
        %3754 = vmatpush1.bf16.msra.mxu0 %v3014
        %3755 = vmatprep.subr.bf16.mxu0 %v3017
        %3756 = vmatpush1.bf16.msra.mxu0 %v3016
        %3757 = vmatprep.subr.bf16.mxu0 %v3019
        %3758 = vmatpush1.bf16.msra.mxu0 %v3018
        %3759 = vmatprep.subr.bf16.mxu0 %v3021
        %3760 = vmatpush1.bf16.msra.mxu0 %v3020
        %3761 = vmatprep.subr.bf16.mxu0 %v3023
        %3762 = vmatpush1.bf16.msra.mxu0 %v3022
        %3763 = vmatprep.subr.bf16.mxu0 %v3025
        %3764 = vmatpush1.bf16.msra.mxu0 %v3024
        %3765 = vmatprep.subr.bf16.mxu0 %v3027
        %3766 = vmatpush1.bf16.msra.mxu0 %v3026
        %3767 = vmatprep.subr.bf16.mxu0 %v3029
        %3768 = vmatpush1.bf16.msra.mxu0 %v3028
        %3769 = vmatprep.subr.bf16.mxu0 %v3031
        %3770 = vmatpush1.bf16.msra.mxu0 %v3030
        %3771 = vmatprep.subr.bf16.mxu0 %v3033
        %3772 = vmatpush1.bf16.msra.mxu0 %v3032
        %3773 = vmatprep.subr.bf16.mxu0 %v3035
        %3774 = vmatpush1.bf16.msra.mxu0 %v3034
        %3775 = vmatprep.subr.bf16.mxu0 %v3037
        %3776 = vmatpush1.bf16.msra.mxu0 %v3036
        %3777 = vmatprep.subr.bf16.mxu0 %v3039
        %3778 = vmatpush1.bf16.msra.mxu0 %v3038
        %3779 = vmatprep.subr.bf16.mxu0 %v3041
        %3780 = vmatpush1.bf16.msra.mxu0 %v3040
        %3781 = vmatprep.subr.bf16.mxu0 %v3043
        %3782 = vmatpush1.bf16.msra.mxu0 %v3042
        %3783 = vmatprep.subr.bf16.mxu0 %v3045
        %3784 = vmatpush1.bf16.msra.mxu0 %v3044
        %3785 = vmatprep.mubr.bf16.mxu0 %v2273
        %3786 = vmatmul.mubr.bf16.gmra.mrb[0].mxu0 %v2272
        %v3787 = vpop.f32.mrb[0].mxu0
        %v3788 = vadd.f32 %v3595, %v3787
        %v3789 = vpop.f32.mrb[0].mxu0
        %v3790 = vadd.f32 %v3597, %v3789
        %v3791 = vpop.f32.mrb[0].mxu0
        %v3792 = vadd.f32 %v3599, %v3791
        %v3793 = vpop.f32.mrb[0].mxu0
        %v3794 = vadd.f32 %v3601, %v3793
        %3795 = vmatprep.mubr.bf16.mxu0 %v2281
        %3796 = vmatmul.mubr.bf16.gmra.mrb[0].mxu0 %v2280
        %v3797 = vpop.f32.mrb[0].mxu0
        %v3798 = vadd.f32 %v3605, %v3797
        %v3799 = vpop.f32.mrb[0].mxu0
        %v3800 = vadd.f32 %v3607, %v3799
        %v3801 = vpop.f32.mrb[0].mxu0
        %v3802 = vadd.f32 %v3609, %v3801
        %v3803 = vpop.f32.mrb[0].mxu0
        %v3804 = vadd.f32 %v3611, %v3803
        %3805 = vmatprep.mubr.bf16.mxu0 %v2289
        %3806 = vmatmul.mubr.bf16.gmra.mrb[0].mxu0 %v2288
        %v3807 = vpop.f32.mrb[0].mxu0
        %v3808 = vadd.f32 %v3615, %v3807
        %v3809 = vpop.f32.mrb[0].mxu0
        %v3810 = vadd.f32 %v3617, %v3809
        %v3811 = vpop.f32.mrb[0].mxu0
        %v3812 = vadd.f32 %v3619, %v3811
        %v3813 = vpop.f32.mrb[0].mxu0
        %v3814 = vadd.f32 %v3621, %v3813
        %3815 = vmatprep.mubr.bf16.mxu0 %v2297
        %3816 = vmatmul.mubr.bf16.gmra.mrb[0].mxu0 %v2296
        %v3817 = vpop.f32.mrb[0].mxu0
        %v3818 = vadd.f32 %v3625, %v3817
        %v3819 = vpop.f32.mrb[0].mxu0
        %v3820 = vadd.f32 %v3627, %v3819
        %v3821 = vpop.f32.mrb[0].mxu0
        %v3822 = vadd.f32 %v3629, %v3821
        %v3823 = vpop.f32.mrb[0].mxu0
        %v3824 = vadd.f32 %v3631, %v3823
        %3825 = vmatprep.mubr.bf16.mxu0 %v2305
        %3826 = vmatmul.mubr.bf16.gmra.mrb[0].mxu0 %v2304
        %v3827 = vpop.f32.mrb[0].mxu0
        %v3828 = vadd.f32 %v3635, %v3827
        %v3829 = vpop.f32.mrb[0].mxu0
        %v3830 = vadd.f32 %v3637, %v3829
        %v3831 = vpop.f32.mrb[0].mxu0
        %v3832 = vadd.f32 %v3639, %v3831
        %v3833 = vpop.f32.mrb[0].mxu0
        %v3834 = vadd.f32 %v3641, %v3833
        %3835 = vmatprep.mubr.bf16.mxu0 %v2313
        %3836 = vmatmul.mubr.bf16.gmra.mrb[0].mxu0 %v2312
        %v3837 = vpop.f32.mrb[0].mxu0
        %v3838 = vadd.f32 %v3645, %v3837
        %v3839 = vpop.f32.mrb[0].mxu0
        %v3840 = vadd.f32 %v3647, %v3839
        %v3841 = vpop.f32.mrb[0].mxu0
        %v3842 = vadd.f32 %v3649, %v3841
        %v3843 = vpop.f32.mrb[0].mxu0
        %v3844 = vadd.f32 %v3651, %v3843
        %3845 = vmatprep.mubr.bf16.mxu0 %v2321
        %3846 = vmatmul.mubr.bf16.gmra.mrb[0].mxu0 %v2320
        %v3847 = vpop.f32.mrb[0].mxu0
        %v3848 = vadd.f32 %v3655, %v3847
        %v3849 = vpop.f32.mrb[0].mxu0
        %v3850 = vadd.f32 %v3657, %v3849
        %v3851 = vpop.f32.mrb[0].mxu0
        %v3852 = vadd.f32 %v3659, %v3851
        %v3853 = vpop.f32.mrb[0].mxu0
        %v3854 = vadd.f32 %v3661, %v3853
        %3855 = vmatprep.mubr.bf16.mxu0 %v2329
        %3856 = vmatmul.mubr.bf16.gmra.mrb[0].mxu0 %v2328
        %v3857 = vpop.f32.mrb[0].mxu0
        %v3858 = vadd.f32 %v3665, %v3857
        %v3859 = vpop.f32.mrb[0].mxu0
        %v3860 = vadd.f32 %v3667, %v3859
        %v3861 = vpop.f32.mrb[0].mxu0
        %v3862 = vadd.f32 %v3669, %v3861
        %v3863 = vpop.f32.mrb[0].mxu0
        %v3864 = vadd.f32 %v3671, %v3863
        %3865 = vmatprep.mubr.bf16.mxu0 %v2337
        %3866 = vmatmul.mubr.bf16.gmra.mrb[0].mxu0 %v2336
        %v3867 = vpop.f32.mrb[0].mxu0
        %v3868 = vadd.f32 %v3675, %v3867
        %v3869 = vpop.f32.mrb[0].mxu0
        %v3870 = vadd.f32 %v3677, %v3869
        %v3871 = vpop.f32.mrb[0].mxu0
        %v3872 = vadd.f32 %v3679, %v3871
        %v3873 = vpop.f32.mrb[0].mxu0
        %v3874 = vadd.f32 %v3681, %v3873
        %3875 = vmatprep.mubr.bf16.mxu0 %v2345
        %3876 = vmatmul.mubr.bf16.gmra.mrb[0].mxu0 %v2344
        %v3877 = vpop.f32.mrb[0].mxu0
        %v3878 = vadd.f32 %v3685, %v3877
        %v3879 = vpop.f32.mrb[0].mxu0
        %v3880 = vadd.f32 %v3687, %v3879
        %v3881 = vpop.f32.mrb[0].mxu0
        %v3882 = vadd.f32 %v3689, %v3881
        %v3883 = vpop.f32.mrb[0].mxu0
        %v3884 = vadd.f32 %v3691, %v3883
        %3885 = vmatprep.mubr.bf16.mxu0 %v2353
        %3886 = vmatmul.mubr.bf16.gmra.mrb[0].mxu0 %v2352
        %v3887 = vpop.f32.mrb[0].mxu0
        %v3888 = vadd.f32 %v3695, %v3887
        %v3889 = vpop.f32.mrb[0].mxu0
        %v3890 = vadd.f32 %v3697, %v3889
        %v3891 = vpop.f32.mrb[0].mxu0
        %v3892 = vadd.f32 %v3699, %v3891
        %v3893 = vpop.f32.mrb[0].mxu0
        %v3894 = vadd.f32 %v3701, %v3893
        %3895 = vmatprep.mubr.bf16.mxu0 %v2361
        %3896 = vmatmul.mubr.bf16.gmra.mrb[0].mxu0 %v2360
        %v3897 = vpop.f32.mrb[0].mxu0
        %v3898 = vadd.f32 %v3705, %v3897
        %v3899 = vpop.f32.mrb[0].mxu0
        %v3900 = vadd.f32 %v3707, %v3899
        %v3901 = vpop.f32.mrb[0].mxu0
        %v3902 = vadd.f32 %v3709, %v3901
        %v3903 = vpop.f32.mrb[0].mxu0
        %v3904 = vadd.f32 %v3711, %v3903
        %3905 = vmatprep.mubr.bf16.mxu0 %v2369
        %3906 = vmatmul.mubr.bf16.gmra.mrb[0].mxu0 %v2368
        %v3907 = vpop.f32.mrb[0].mxu0
        %v3908 = vadd.f32 %v3715, %v3907
        %v3909 = vpop.f32.mrb[0].mxu0
        %v3910 = vadd.f32 %v3717, %v3909
        %v3911 = vpop.f32.mrb[0].mxu0
        %v3912 = vadd.f32 %v3719, %v3911
        %v3913 = vpop.f32.mrb[0].mxu0
        %v3914 = vadd.f32 %v3721, %v3913
        %3915 = vmatprep.mubr.bf16.mxu0 %v2377
        %3916 = vmatmul.mubr.bf16.gmra.mrb[0].mxu0 %v2376
        %v3917 = vpop.f32.mrb[0].mxu0
        %v3918 = vadd.f32 %v3725, %v3917
        %v3919 = vpop.f32.mrb[0].mxu0
        %v3920 = vadd.f32 %v3727, %v3919
        %v3921 = vpop.f32.mrb[0].mxu0
        %v3922 = vadd.f32 %v3729, %v3921
        %v3923 = vpop.f32.mrb[0].mxu0
        %v3924 = vadd.f32 %v3731, %v3923
        %3925 = vmatprep.mubr.bf16.mxu0 %v2385
        %3926 = vmatmul.mubr.bf16.gmra.mrb[0].mxu0 %v2384
        %v3927 = vpop.f32.mrb[0].mxu0
        %v3928 = vadd.f32 %v3735, %v3927
        %v3929 = vpop.f32.mrb[0].mxu0
        %v3930 = vadd.f32 %v3737, %v3929
        %v3931 = vpop.f32.mrb[0].mxu0
        %v3932 = vadd.f32 %v3739, %v3931
        %v3933 = vpop.f32.mrb[0].mxu0
        %v3934 = vadd.f32 %v3741, %v3933
        %3935 = vmatprep.mubr.bf16.mxu0 %v2393
        %3936 = vmatmul.mubr.bf16.gmra.mrb[0].mxu0 %v2392
        %v3937 = vpop.f32.mrb[0].mxu0
        %v3938 = vadd.f32 %v3745, %v3937
        %v3939 = vpop.f32.mrb[0].mxu0
        %v3940 = vadd.f32 %v3747, %v3939
        %v3941 = vpop.f32.mrb[0].mxu0
        %v3942 = vadd.f32 %v3749, %v3941
        %v3943 = vpop.f32.mrb[0].mxu0
        %v3944 = vadd.f32 %v3751, %v3943
        %3945 = vdwg.mxu0
        %v3946 = vmax.f32 %v3788, 0.0
        %v3947 = vmax.f32 %v3790, 0.0
        %v3948 = vmax.f32 %v3792, 0.0
        %v3949 = vmax.f32 %v3794, 0.0
        %v3950 = vmax.f32 %v3798, 0.0
        %v3951 = vmax.f32 %v3800, 0.0
        %v3952 = vmax.f32 %v3802, 0.0
        %v3953 = vmax.f32 %v3804, 0.0
        %v3954 = vmax.f32 %v3808, 0.0
        %v3955 = vmax.f32 %v3810, 0.0
        %v3956 = vmax.f32 %v3812, 0.0
        %v3957 = vmax.f32 %v3814, 0.0
        %v3958 = vmax.f32 %v3818, 0.0
        %v3959 = vmax.f32 %v3820, 0.0
        %v3960 = vmax.f32 %v3822, 0.0
        %v3961 = vmax.f32 %v3824, 0.0
        %v3962 = vmax.f32 %v3828, 0.0
        %v3963 = vmax.f32 %v3830, 0.0
        %v3964 = vmax.f32 %v3832, 0.0
        %v3965 = vmax.f32 %v3834, 0.0
        %v3966 = vmax.f32 %v3838, 0.0
        %v3967 = vmax.f32 %v3840, 0.0
        %v3968 = vmax.f32 %v3842, 0.0
        %v3969 = vmax.f32 %v3844, 0.0
        %v3970 = vmax.f32 %v3848, 0.0
        %v3971 = vmax.f32 %v3850, 0.0
        %v3972 = vmax.f32 %v3852, 0.0
        %v3973 = vmax.f32 %v3854, 0.0
        %v3974 = vmax.f32 %v3858, 0.0
        %v3975 = vmax.f32 %v3860, 0.0
        %v3976 = vmax.f32 %v3862, 0.0
        %v3977 = vmax.f32 %v3864, 0.0
        %v3978 = vmax.f32 %v3868, 0.0
        %v3979 = vmax.f32 %v3870, 0.0
        %v3980 = vmax.f32 %v3872, 0.0
        %v3981 = vmax.f32 %v3874, 0.0
        %v3982 = vmax.f32 %v3878, 0.0
        %v3983 = vmax.f32 %v3880, 0.0
        %v3984 = vmax.f32 %v3882, 0.0
        %v3985 = vmax.f32 %v3884, 0.0
        %v3986 = vmax.f32 %v3888, 0.0
        %v3987 = vmax.f32 %v3890, 0.0
        %v3988 = vmax.f32 %v3892, 0.0
        %v3989 = vmax.f32 %v3894, 0.0
        %v3990 = vmax.f32 %v3898, 0.0
        %v3991 = vmax.f32 %v3900, 0.0
        %v3992 = vmax.f32 %v3902, 0.0
        %v3993 = vmax.f32 %v3904, 0.0
        %v3994 = vmax.f32 %v3908, 0.0
        %v3995 = vmax.f32 %v3910, 0.0
        %v3996 = vmax.f32 %v3912, 0.0
        %v3997 = vmax.f32 %v3914, 0.0
        %v3998 = vmax.f32 %v3918, 0.0
        %v3999 = vmax.f32 %v3920, 0.0
        %v4000 = vmax.f32 %v3922, 0.0
        %v4001 = vmax.f32 %v3924, 0.0
        %v4002 = vmax.f32 %v3928, 0.0
        %v4003 = vmax.f32 %v3930, 0.0
        %v4004 = vmax.f32 %v3932, 0.0
        %v4005 = vmax.f32 %v3934, 0.0
        %v4006 = vmax.f32 %v3938, 0.0
        %v4007 = vmax.f32 %v3940, 0.0
        %v4008 = vmax.f32 %v3942, 0.0
        %v4009 = vmax.f32 %v3944, 0.0
        %v4010 = vpack.c.bf16 %v3948, %v3946
        %v4011 = vpack.c.bf16 %v3949, %v3947
        %v4012 = vpack.c.bf16 %v3952, %v3950
        %v4013 = vpack.c.bf16 %v3953, %v3951
        %v4014 = vpack.c.bf16 %v3956, %v3954
        %v4015 = vpack.c.bf16 %v3957, %v3955
        %v4016 = vpack.c.bf16 %v3960, %v3958
        %v4017 = vpack.c.bf16 %v3961, %v3959
        %v4018 = vpack.c.bf16 %v3964, %v3962
        %v4019 = vpack.c.bf16 %v3965, %v3963
        %v4020 = vpack.c.bf16 %v3968, %v3966
        %v4021 = vpack.c.bf16 %v3969, %v3967
        %v4022 = vpack.c.bf16 %v3972, %v3970
        %v4023 = vpack.c.bf16 %v3973, %v3971
        %v4024 = vpack.c.bf16 %v3976, %v3974
        %v4025 = vpack.c.bf16 %v3977, %v3975
        %v4026 = vpack.c.bf16 %v3980, %v3978
        %v4027 = vpack.c.bf16 %v3981, %v3979
        %v4028 = vpack.c.bf16 %v3984, %v3982
        %v4029 = vpack.c.bf16 %v3985, %v3983
        %v4030 = vpack.c.bf16 %v3988, %v3986
        %v4031 = vpack.c.bf16 %v3989, %v3987
        %v4032 = vpack.c.bf16 %v3992, %v3990
        %v4033 = vpack.c.bf16 %v3993, %v3991
        %v4034 = vpack.c.bf16 %v3996, %v3994
        %v4035 = vpack.c.bf16 %v3997, %v3995
        %v4036 = vpack.c.bf16 %v4000, %v3998
        %v4037 = vpack.c.bf16 %v4001, %v3999
        %v4038 = vpack.c.bf16 %v4004, %v4002
        %v4039 = vpack.c.bf16 %v4005, %v4003
        %v4040 = vpack.c.bf16 %v4008, %v4006
        %v4041 = vpack.c.bf16 %v4009, %v4007
        %v4042 = vld [vmem:[%s5] sm:$0xf]
        %v4043 = vld [vmem:[%s5 + $0x4] sm:$0xf]
        %v4044 = vld [vmem:[%s5 + $0x8] sm:$0xf]
        %v4045 = vld [vmem:[%s5 + $0xc] sm:$0xf]
        %v4046 = vld [vmem:[%s5 + $0x10] sm:$0xf]
        %v4047 = vld [vmem:[%s5 + $0x14] sm:$0xf]
        %v4048 = vld [vmem:[%s5 + $0x18] sm:$0xf]
        %v4049 = vld [vmem:[%s5 + $0x1c] sm:$0xf]
        %v4050 = vld [vmem:[%s5 + $0x20] sm:$0xf]
        %v4051 = vld [vmem:[%s5 + $0x24] sm:$0xf]
        %v4052 = vld [vmem:[%s5 + $0x28] sm:$0xf]
        %v4053 = vld [vmem:[%s5 + $0x2c] sm:$0xf]
        %v4054 = vld [vmem:[%s5 + $0x30] sm:$0xf]
        %v4055 = vld [vmem:[%s5 + $0x34] sm:$0xf]
        %v4056 = vld [vmem:[%s5 + $0x38] sm:$0xf]
        %v4057 = vld [vmem:[%s5 + $0x3c] sm:$0xf]
        %v4058 = vld [vmem:[%s5 + $0x40] sm:$0xf]
        %v4059 = vld [vmem:[%s5 + $0x44] sm:$0xf]
        %v4060 = vld [vmem:[%s5 + $0x48] sm:$0xf]
        %v4061 = vld [vmem:[%s5 + $0x4c] sm:$0xf]
        %v4062 = vld [vmem:[%s5 + $0x50] sm:$0xf]
        %v4063 = vld [vmem:[%s5 + $0x54] sm:$0xf]
        %v4064 = vld [vmem:[%s5 + $0x58] sm:$0xf]
        %v4065 = vld [vmem:[%s5 + $0x5c] sm:$0xf]
        %v4066 = vld [vmem:[%s5 + $0x60] sm:$0xf]
        %v4067 = vld [vmem:[%s5 + $0x64] sm:$0xf]
        %v4068 = vld [vmem:[%s5 + $0x68] sm:$0xf]
        %v4069 = vld [vmem:[%s5 + $0x6c] sm:$0xf]
        %v4070 = vld [vmem:[%s5 + $0x70] sm:$0xf]
        %v4071 = vld [vmem:[%s5 + $0x74] sm:$0xf]
        %v4072 = vld [vmem:[%s5 + $0x78] sm:$0xf]
        %v4073 = vld [vmem:[%s5 + $0x7c] sm:$0xf]
        %v4074 = vld [vmem:[%s6] sm:$0x1]
        %v4076 = vlaneseq
        %v4077 = vshrl.u32 %v4076, 7
        %v4078 = vsub.s32 0, %v4077
        %v4079 = vrot.slane %v4074, %v4078
        %v4113 = vunpack.c.l.b16 %v4042
        %v4114 = vunpack.c.l.b16 %v4043
        %v4115 = vunpack.c.l.b16 %v4044
        %v4116 = vunpack.c.l.b16 %v4045
        %v4117 = vunpack.c.l.b16 %v4046
        %v4118 = vunpack.c.l.b16 %v4047
        %v4119 = vunpack.c.l.b16 %v4048
        %v4120 = vunpack.c.l.b16 %v4049
        %v4121 = vunpack.c.l.b16 %v4050
        %v4122 = vunpack.c.l.b16 %v4051
        %v4123 = vunpack.c.l.b16 %v4052
        %v4124 = vunpack.c.l.b16 %v4053
        %v4125 = vunpack.c.l.b16 %v4054
        %v4126 = vunpack.c.l.b16 %v4055
        %v4127 = vunpack.c.l.b16 %v4056
        %v4128 = vunpack.c.l.b16 %v4057
        %v4129 = vunpack.c.l.b16 %v4058
        %v4130 = vunpack.c.l.b16 %v4059
        %v4131 = vunpack.c.l.b16 %v4060
        %v4132 = vunpack.c.l.b16 %v4061
        %v4133 = vunpack.c.l.b16 %v4062
        %v4134 = vunpack.c.l.b16 %v4063
        %v4135 = vunpack.c.l.b16 %v4064
        %v4136 = vunpack.c.l.b16 %v4065
        %v4137 = vunpack.c.l.b16 %v4066
        %v4138 = vunpack.c.l.b16 %v4067
        %v4139 = vunpack.c.l.b16 %v4068
        %v4140 = vunpack.c.l.b16 %v4069
        %v4141 = vunpack.c.l.b16 %v4070
        %v4142 = vunpack.c.l.b16 %v4071
        %v4143 = vunpack.c.l.b16 %v4072
        %v4144 = vunpack.c.l.b16 %v4073
        %v4145 = vpack.c.b16 %v4114, %v4113
        %v4146 = vpack.c.b16 %v4116, %v4115
        %v4147 = vpack.c.b16 %v4118, %v4117
        %v4148 = vpack.c.b16 %v4120, %v4119
        %v4149 = vpack.c.b16 %v4122, %v4121
        %v4150 = vpack.c.b16 %v4124, %v4123
        %v4151 = vpack.c.b16 %v4126, %v4125
        %v4152 = vpack.c.b16 %v4128, %v4127
        %v4153 = vpack.c.b16 %v4130, %v4129
        %v4154 = vpack.c.b16 %v4132, %v4131
        %v4155 = vpack.c.b16 %v4134, %v4133
        %v4156 = vpack.c.b16 %v4136, %v4135
        %v4157 = vpack.c.b16 %v4138, %v4137
        %v4158 = vpack.c.b16 %v4140, %v4139
        %v4159 = vpack.c.b16 %v4142, %v4141
        %v4160 = vpack.c.b16 %v4144, %v4143
        %4177 = vmatprep.subr.bf16.mxu0 0
        %4178 = vmatpush1.bf16.msra.mxu0 %v4145
        %4179 = vmatprep.subr.bf16.mxu0 0
        %4180 = vmatpush1.bf16.msra.mxu0 %v4146
        %4181 = vmatprep.subr.bf16.mxu0 0
        %4182 = vmatpush1.bf16.msra.mxu0 %v4147
        %4183 = vmatprep.subr.bf16.mxu0 0
        %4184 = vmatpush1.bf16.msra.mxu0 %v4148
        %4185 = vmatprep.subr.bf16.mxu0 0
        %4186 = vmatpush1.bf16.msra.mxu0 %v4149
        %4187 = vmatprep.subr.bf16.mxu0 0
        %4188 = vmatpush1.bf16.msra.mxu0 %v4150
        %4189 = vmatprep.subr.bf16.mxu0 0
        %4190 = vmatpush1.bf16.msra.mxu0 %v4151
        %4191 = vmatprep.subr.bf16.mxu0 0
        %4192 = vmatpush1.bf16.msra.mxu0 %v4152
        %4193 = vmatprep.subr.bf16.mxu0 0
        %4194 = vmatpush1.bf16.msra.mxu0 %v4153
        %4195 = vmatprep.subr.bf16.mxu0 0
        %4196 = vmatpush1.bf16.msra.mxu0 %v4154
        %4197 = vmatprep.subr.bf16.mxu0 0
        %4198 = vmatpush1.bf16.msra.mxu0 %v4155
        %4199 = vmatprep.subr.bf16.mxu0 0
        %4200 = vmatpush1.bf16.msra.mxu0 %v4156
        %4201 = vmatprep.subr.bf16.mxu0 0
        %4202 = vmatpush1.bf16.msra.mxu0 %v4157
        %4203 = vmatprep.subr.bf16.mxu0 0
        %4204 = vmatpush1.bf16.msra.mxu0 %v4158
        %4205 = vmatprep.subr.bf16.mxu0 0
        %4206 = vmatpush1.bf16.msra.mxu0 %v4159
        %4207 = vmatprep.subr.bf16.mxu0 0
        %4208 = vmatpush1.bf16.msra.mxu0 %v4160
        %4209 = vmatprep.mubr.bf16.mxu0 %v4011
        %4210 = vmatmul.mubr.bf16.gmra.mrb[0].mxu0 %v4010
        %v4211 = vpop.f32.mrb[0].mxu0
        %v4212 = vadd.f32 %v4079, %v4211
        %v4213 = vpop.f32.mrb[0].mxu0
        %v4214 = vpop.f32.mrb[0].mxu0
        %v4215 = vadd.f32 %v4079, %v4214
        %v4216 = vpop.f32.mrb[0].mxu0
        %4217 = vmatprep.mubr.bf16.mxu0 %v4013
        %4218 = vmatmul.mubr.bf16.gmra.mrb[0].mxu0 %v4012
        %v4219 = vpop.f32.mrb[0].mxu0
        %v4220 = vadd.f32 %v4079, %v4219
        %v4221 = vpop.f32.mrb[0].mxu0
        %v4222 = vpop.f32.mrb[0].mxu0
        %v4223 = vadd.f32 %v4079, %v4222
        %v4224 = vpop.f32.mrb[0].mxu0
        %4225 = vmatprep.mubr.bf16.mxu0 %v4015
        %4226 = vmatmul.mubr.bf16.gmra.mrb[0].mxu0 %v4014
        %v4227 = vpop.f32.mrb[0].mxu0
        %v4228 = vadd.f32 %v4079, %v4227
        %v4229 = vpop.f32.mrb[0].mxu0
        %v4230 = vpop.f32.mrb[0].mxu0
        %v4231 = vadd.f32 %v4079, %v4230
        %v4232 = vpop.f32.mrb[0].mxu0
        %4233 = vmatprep.mubr.bf16.mxu0 %v4017
        %4234 = vmatmul.mubr.bf16.gmra.mrb[0].mxu0 %v4016
        %v4235 = vpop.f32.mrb[0].mxu0
        %v4236 = vadd.f32 %v4079, %v4235
        %v4237 = vpop.f32.mrb[0].mxu0
        %v4238 = vpop.f32.mrb[0].mxu0
        %v4239 = vadd.f32 %v4079, %v4238
        %v4240 = vpop.f32.mrb[0].mxu0
        %4241 = vmatprep.mubr.bf16.mxu0 %v4019
        %4242 = vmatmul.mubr.bf16.gmra.mrb[0].mxu0 %v4018
        %v4243 = vpop.f32.mrb[0].mxu0
        %v4244 = vadd.f32 %v4079, %v4243
        %v4245 = vpop.f32.mrb[0].mxu0
        %v4246 = vpop.f32.mrb[0].mxu0
        %v4247 = vadd.f32 %v4079, %v4246
        %v4248 = vpop.f32.mrb[0].mxu0
        %4249 = vmatprep.mubr.bf16.mxu0 %v4021
        %4250 = vmatmul.mubr.bf16.gmra.mrb[0].mxu0 %v4020
        %v4251 = vpop.f32.mrb[0].mxu0
        %v4252 = vadd.f32 %v4079, %v4251
        %v4253 = vpop.f32.mrb[0].mxu0
        %v4254 = vpop.f32.mrb[0].mxu0
        %v4255 = vadd.f32 %v4079, %v4254
        %v4256 = vpop.f32.mrb[0].mxu0
        %4257 = vmatprep.mubr.bf16.mxu0 %v4023
        %4258 = vmatmul.mubr.bf16.gmra.mrb[0].mxu0 %v4022
        %v4259 = vpop.f32.mrb[0].mxu0
        %v4260 = vadd.f32 %v4079, %v4259
        %v4261 = vpop.f32.mrb[0].mxu0
        %v4262 = vpop.f32.mrb[0].mxu0
        %v4263 = vadd.f32 %v4079, %v4262
        %v4264 = vpop.f32.mrb[0].mxu0
        %4265 = vmatprep.mubr.bf16.mxu0 %v4025
        %4266 = vmatmul.mubr.bf16.gmra.mrb[0].mxu0 %v4024
        %v4267 = vpop.f32.mrb[0].mxu0
        %v4268 = vadd.f32 %v4079, %v4267
        %v4269 = vpop.f32.mrb[0].mxu0
        %v4270 = vpop.f32.mrb[0].mxu0
        %v4271 = vadd.f32 %v4079, %v4270
        %v4272 = vpop.f32.mrb[0].mxu0
        %4273 = vmatprep.mubr.bf16.mxu0 %v4027
        %4274 = vmatmul.mubr.bf16.gmra.mrb[0].mxu0 %v4026
        %v4275 = vpop.f32.mrb[0].mxu0
        %v4276 = vadd.f32 %v4079, %v4275
        %v4277 = vpop.f32.mrb[0].mxu0
        %v4278 = vpop.f32.mrb[0].mxu0
        %v4279 = vadd.f32 %v4079, %v4278
        %v4280 = vpop.f32.mrb[0].mxu0
        %4281 = vmatprep.mubr.bf16.mxu0 %v4029
        %4282 = vmatmul.mubr.bf16.gmra.mrb[0].mxu0 %v4028
        %v4283 = vpop.f32.mrb[0].mxu0
        %v4284 = vadd.f32 %v4079, %v4283
        %v4285 = vpop.f32.mrb[0].mxu0
        %v4286 = vpop.f32.mrb[0].mxu0
        %v4287 = vadd.f32 %v4079, %v4286
        %v4288 = vpop.f32.mrb[0].mxu0
        %4289 = vmatprep.mubr.bf16.mxu0 %v4031
        %4290 = vmatmul.mubr.bf16.gmra.mrb[0].mxu0 %v4030
        %v4291 = vpop.f32.mrb[0].mxu0
        %v4292 = vadd.f32 %v4079, %v4291
        %v4293 = vpop.f32.mrb[0].mxu0
        %v4294 = vpop.f32.mrb[0].mxu0
        %v4295 = vadd.f32 %v4079, %v4294
        %v4296 = vpop.f32.mrb[0].mxu0
        %4297 = vmatprep.mubr.bf16.mxu0 %v4033
        %4298 = vmatmul.mubr.bf16.gmra.mrb[0].mxu0 %v4032
        %v4299 = vpop.f32.mrb[0].mxu0
        %v4300 = vadd.f32 %v4079, %v4299
        %v4301 = vpop.f32.mrb[0].mxu0
        %v4302 = vpop.f32.mrb[0].mxu0
        %v4303 = vadd.f32 %v4079, %v4302
        %v4304 = vpop.f32.mrb[0].mxu0
        %4305 = vmatprep.mubr.bf16.mxu0 %v4035
        %4306 = vmatmul.mubr.bf16.gmra.mrb[0].mxu0 %v4034
        %v4307 = vpop.f32.mrb[0].mxu0
        %v4308 = vadd.f32 %v4079, %v4307
        %v4309 = vpop.f32.mrb[0].mxu0
        %v4310 = vpop.f32.mrb[0].mxu0
        %v4311 = vadd.f32 %v4079, %v4310
        %v4312 = vpop.f32.mrb[0].mxu0
        %4313 = vmatprep.mubr.bf16.mxu0 %v4037
        %4314 = vmatmul.mubr.bf16.gmra.mrb[0].mxu0 %v4036
        %v4315 = vpop.f32.mrb[0].mxu0
        %v4316 = vadd.f32 %v4079, %v4315
        %v4317 = vpop.f32.mrb[0].mxu0
        %v4318 = vpop.f32.mrb[0].mxu0
        %v4319 = vadd.f32 %v4079, %v4318
        %v4320 = vpop.f32.mrb[0].mxu0
        %4321 = vmatprep.mubr.bf16.mxu0 %v4039
        %4322 = vmatmul.mubr.bf16.gmra.mrb[0].mxu0 %v4038
        %v4323 = vpop.f32.mrb[0].mxu0
        %v4324 = vadd.f32 %v4079, %v4323
        %v4325 = vpop.f32.mrb[0].mxu0
        %v4326 = vpop.f32.mrb[0].mxu0
        %v4327 = vadd.f32 %v4079, %v4326
        %v4328 = vpop.f32.mrb[0].mxu0
        %4329 = vmatprep.mubr.bf16.mxu0 %v4041
        %4330 = vmatmul.mubr.bf16.gmra.mrb[0].mxu0 %v4040
        %v4331 = vpop.f32.mrb[0].mxu0
        %v4332 = vadd.f32 %v4079, %v4331
        %v4333 = vpop.f32.mrb[0].mxu0
        %v4334 = vpop.f32.mrb[0].mxu0
        %v4335 = vadd.f32 %v4079, %v4334
        %v4336 = vpop.f32.mrb[0].mxu0
        %4337 = vdwg.mxu0
        %v4338 = vmax.f32 %v4212, 0.0
        %v4339 = vmax.f32 %v4215, 0.0
        %v4340 = vmax.f32 %v4220, 0.0
        %v4341 = vmax.f32 %v4223, 0.0
        %v4342 = vmax.f32 %v4228, 0.0
        %v4343 = vmax.f32 %v4231, 0.0
        %v4344 = vmax.f32 %v4236, 0.0
        %v4345 = vmax.f32 %v4239, 0.0
        %v4346 = vmax.f32 %v4244, 0.0
        %v4347 = vmax.f32 %v4247, 0.0
        %v4348 = vmax.f32 %v4252, 0.0
        %v4349 = vmax.f32 %v4255, 0.0
        %v4350 = vmax.f32 %v4260, 0.0
        %v4351 = vmax.f32 %v4263, 0.0
        %v4352 = vmax.f32 %v4268, 0.0
        %v4353 = vmax.f32 %v4271, 0.0
        %v4354 = vmax.f32 %v4276, 0.0
        %v4355 = vmax.f32 %v4279, 0.0
        %v4356 = vmax.f32 %v4284, 0.0
        %v4357 = vmax.f32 %v4287, 0.0
        %v4358 = vmax.f32 %v4292, 0.0
        %v4359 = vmax.f32 %v4295, 0.0
        %v4360 = vmax.f32 %v4300, 0.0
        %v4361 = vmax.f32 %v4303, 0.0
        %v4362 = vmax.f32 %v4308, 0.0
        %v4363 = vmax.f32 %v4311, 0.0
        %v4364 = vmax.f32 %v4316, 0.0
        %v4365 = vmax.f32 %v4319, 0.0
        %v4366 = vmax.f32 %v4324, 0.0
        %v4367 = vmax.f32 %v4327, 0.0
        %v4368 = vmax.f32 %v4332, 0.0
        %v4369 = vmax.f32 %v4335, 0.0
        %v4370 = vpack.c.bf16 %v4339, %v4338
        %v4371 = vpack.c.bf16 %v4341, %v4340
        %v4372 = vpack.c.bf16 %v4343, %v4342
        %v4373 = vpack.c.bf16 %v4345, %v4344
        %v4374 = vpack.c.bf16 %v4347, %v4346
        %v4375 = vpack.c.bf16 %v4349, %v4348
        %v4376 = vpack.c.bf16 %v4351, %v4350
        %v4377 = vpack.c.bf16 %v4353, %v4352
        %v4378 = vpack.c.bf16 %v4355, %v4354
        %v4379 = vpack.c.bf16 %v4357, %v4356
        %v4380 = vpack.c.bf16 %v4359, %v4358
        %v4381 = vpack.c.bf16 %v4361, %v4360
        %v4382 = vpack.c.bf16 %v4363, %v4362
        %v4383 = vpack.c.bf16 %v4365, %v4364
        %v4384 = vpack.c.bf16 %v4367, %v4366
        %v4385 = vpack.c.bf16 %v4369, %v4368
        %v4386 = vld [vmem:[%s7] sm:$0xf]
        %v4387 = vld [vmem:[%s7 + $0x4] sm:$0xf]
        %v4388 = vld [vmem:[%s7 + $0x8] sm:$0xf]
        %v4389 = vld [vmem:[%s7 + $0xc] sm:$0xf]
        %v4390 = vld [vmem:[%s7 + $0x10] sm:$0xf]
        %v4391 = vld [vmem:[%s7 + $0x14] sm:$0xf]
        %v4392 = vld [vmem:[%s7 + $0x18] sm:$0xf]
        %v4393 = vld [vmem:[%s7 + $0x1c] sm:$0xf]
        %v4394 = vld [vmem:[%s8] sm:$0x1]
        %v4396 = vlaneseq
        %v4397 = vshrl.u32 %v4396, 7
        %v4398 = vsub.s32 0, %v4397
        %v4399 = vrot.slane %v4394, %v4398
        %v4409 = vunpack.c.l.b16 %v4386
        %v4410 = vunpack.c.l.b16 %v4387
        %v4411 = vunpack.c.l.b16 %v4388
        %v4412 = vunpack.c.l.b16 %v4389
        %v4413 = vunpack.c.l.b16 %v4390
        %v4414 = vunpack.c.l.b16 %v4391
        %v4415 = vunpack.c.l.b16 %v4392
        %v4416 = vunpack.c.l.b16 %v4393
        %v4417 = vpack.c.b16 %v4410, %v4409
        %v4418 = vpack.c.b16 %v4412, %v4411
        %v4419 = vpack.c.b16 %v4414, %v4413
        %v4420 = vpack.c.b16 %v4416, %v4415
        %vm4425 = vcmask 523264
        %v4427 = vsel %vm4425, %v4370, 0
        %v4430 = vsel %vm4425, %v4371, 0
        %v4433 = vsel %vm4425, %v4372, 0
        %v4436 = vsel %vm4425, %v4373, 0
        %v4439 = vsel %vm4425, %v4374, 0
        %v4442 = vsel %vm4425, %v4375, 0
        %v4445 = vsel %vm4425, %v4376, 0
        %v4448 = vsel %vm4425, %v4377, 0
        %v4451 = vsel %vm4425, %v4378, 0
        %v4454 = vsel %vm4425, %v4379, 0
        %v4457 = vsel %vm4425, %v4380, 0
        %v4460 = vsel %vm4425, %v4381, 0
        %v4463 = vsel %vm4425, %v4382, 0
        %v4466 = vsel %vm4425, %v4383, 0
        %v4469 = vsel %vm4425, %v4384, 0
        %v4472 = vsel %vm4425, %v4385, 0
        %4474 = vmatprep.subr.bf16.mxu0 0
        %4475 = vmatpush1.bf16.msra.mxu0 %v4417
        %4476 = vmatprep.subr.bf16.mxu0 0
        %4477 = vmatpush1.bf16.msra.mxu0 %v4418
        %4478 = vmatprep.subr.bf16.mxu0 0
        %4479 = vmatpush1.bf16.msra.mxu0 %v4419
        %4480 = vmatprep.subr.bf16.mxu0 0
        %4481 = vmatpush1.bf16.msra.mxu0 %v4420
        %4482 = vmatprep.subr.bf16.mxu0 0
        %4483 = vmatpush1.bf16.msra.mxu0 0
        %4484 = vmatprep.subr.bf16.mxu0 0
        %4485 = vmatpush1.bf16.msra.mxu0 0
        %4486 = vmatprep.subr.bf16.mxu0 0
        %4487 = vmatpush1.bf16.msra.mxu0 0
        %4488 = vmatprep.subr.bf16.mxu0 0
        %4489 = vmatpush1.bf16.msra.mxu0 0
        %4490 = vmatprep.subr.bf16.mxu0 0
        %4491 = vmatpush1.bf16.msra.mxu0 0
        %4492 = vmatprep.subr.bf16.mxu0 0
        %4493 = vmatpush1.bf16.msra.mxu0 0
        %4494 = vmatprep.subr.bf16.mxu0 0
        %4495 = vmatpush1.bf16.msra.mxu0 0
        %4496 = vmatprep.subr.bf16.mxu0 0
        %4497 = vmatpush1.bf16.msra.mxu0 0
        %4498 = vmatprep.subr.bf16.mxu0 0
        %4499 = vmatpush1.bf16.msra.mxu0 0
        %4500 = vmatprep.subr.bf16.mxu0 0
        %4501 = vmatpush1.bf16.msra.mxu0 0
        %4502 = vmatprep.subr.bf16.mxu0 0
        %4503 = vmatpush1.bf16.msra.mxu0 0
        %4504 = vmatprep.subr.bf16.mxu0 0
        %4505 = vmatpush1.bf16.msra.mxu0 0
        %4506 = vmatprep.mubr.bf16.mxu0 0
        %4507 = vmatmul.mubr.bf16.gmra.mrb[0].mxu0 %v4427
        %v4508 = vpop.f32.mrb[0].mxu0
        %v4509 = vadd.f32 %v4399, %v4508
        %v4510 = vpop.f32.mrb[0].mxu0
        %v4511 = vpop.f32.mrb[0].mxu0
        %v4512 = vadd.f32 %v4399, %v4511
        %v4513 = vpop.f32.mrb[0].mxu0
        %4514 = vmatprep.mubr.bf16.mxu0 0
        %4515 = vmatmul.mubr.bf16.gmra.mrb[0].mxu0 %v4430
        %v4516 = vpop.f32.mrb[0].mxu0
        %v4517 = vadd.f32 %v4399, %v4516
        %v4518 = vpop.f32.mrb[0].mxu0
        %v4519 = vpop.f32.mrb[0].mxu0
        %v4520 = vadd.f32 %v4399, %v4519
        %v4521 = vpop.f32.mrb[0].mxu0
        %4522 = vmatprep.mubr.bf16.mxu0 0
        %4523 = vmatmul.mubr.bf16.gmra.mrb[0].mxu0 %v4433
        %v4524 = vpop.f32.mrb[0].mxu0
        %v4525 = vadd.f32 %v4399, %v4524
        %v4526 = vpop.f32.mrb[0].mxu0
        %v4527 = vpop.f32.mrb[0].mxu0
        %v4528 = vadd.f32 %v4399, %v4527
        %v4529 = vpop.f32.mrb[0].mxu0
        %4530 = vmatprep.mubr.bf16.mxu0 0
        %4531 = vmatmul.mubr.bf16.gmra.mrb[0].mxu0 %v4436
        %v4532 = vpop.f32.mrb[0].mxu0
        %v4533 = vadd.f32 %v4399, %v4532
        %v4534 = vpop.f32.mrb[0].mxu0
        %v4535 = vpop.f32.mrb[0].mxu0
        %v4536 = vadd.f32 %v4399, %v4535
        %v4537 = vpop.f32.mrb[0].mxu0
        %4538 = vmatprep.mubr.bf16.mxu0 0
        %4539 = vmatmul.mubr.bf16.gmra.mrb[0].mxu0 %v4439
        %v4540 = vpop.f32.mrb[0].mxu0
        %v4541 = vadd.f32 %v4399, %v4540
        %v4542 = vpop.f32.mrb[0].mxu0
        %v4543 = vpop.f32.mrb[0].mxu0
        %v4544 = vadd.f32 %v4399, %v4543
        %v4545 = vpop.f32.mrb[0].mxu0
        %4546 = vmatprep.mubr.bf16.mxu0 0
        %4547 = vmatmul.mubr.bf16.gmra.mrb[0].mxu0 %v4442
        %v4548 = vpop.f32.mrb[0].mxu0
        %v4549 = vadd.f32 %v4399, %v4548
        %v4550 = vpop.f32.mrb[0].mxu0
        %v4551 = vpop.f32.mrb[0].mxu0
        %v4552 = vadd.f32 %v4399, %v4551
        %v4553 = vpop.f32.mrb[0].mxu0
        %4554 = vmatprep.mubr.bf16.mxu0 0
        %4555 = vmatmul.mubr.bf16.gmra.mrb[0].mxu0 %v4445
        %v4556 = vpop.f32.mrb[0].mxu0
        %v4557 = vadd.f32 %v4399, %v4556
        %v4558 = vpop.f32.mrb[0].mxu0
        %v4559 = vpop.f32.mrb[0].mxu0
        %v4560 = vadd.f32 %v4399, %v4559
        %v4561 = vpop.f32.mrb[0].mxu0
        %4562 = vmatprep.mubr.bf16.mxu0 0
        %4563 = vmatmul.mubr.bf16.gmra.mrb[0].mxu0 %v4448
        %v4564 = vpop.f32.mrb[0].mxu0
        %v4565 = vadd.f32 %v4399, %v4564
        %v4566 = vpop.f32.mrb[0].mxu0
        %v4567 = vpop.f32.mrb[0].mxu0
        %v4568 = vadd.f32 %v4399, %v4567
        %v4569 = vpop.f32.mrb[0].mxu0
        %4570 = vmatprep.mubr.bf16.mxu0 0
        %4571 = vmatmul.mubr.bf16.gmra.mrb[0].mxu0 %v4451
        %v4572 = vpop.f32.mrb[0].mxu0
        %v4573 = vadd.f32 %v4399, %v4572
        %v4574 = vpop.f32.mrb[0].mxu0
        %v4575 = vpop.f32.mrb[0].mxu0
        %v4576 = vadd.f32 %v4399, %v4575
        %v4577 = vpop.f32.mrb[0].mxu0
        %4578 = vmatprep.mubr.bf16.mxu0 0
        %4579 = vmatmul.mubr.bf16.gmra.mrb[0].mxu0 %v4454
        %v4580 = vpop.f32.mrb[0].mxu0
        %v4581 = vadd.f32 %v4399, %v4580
        %v4582 = vpop.f32.mrb[0].mxu0
        %v4583 = vpop.f32.mrb[0].mxu0
        %v4584 = vadd.f32 %v4399, %v4583
        %v4585 = vpop.f32.mrb[0].mxu0
        %4586 = vmatprep.mubr.bf16.mxu0 0
        %4587 = vmatmul.mubr.bf16.gmra.mrb[0].mxu0 %v4457
        %v4588 = vpop.f32.mrb[0].mxu0
        %v4589 = vadd.f32 %v4399, %v4588
        %v4590 = vpop.f32.mrb[0].mxu0
        %v4591 = vpop.f32.mrb[0].mxu0
        %v4592 = vadd.f32 %v4399, %v4591
        %v4593 = vpop.f32.mrb[0].mxu0
        %4594 = vmatprep.mubr.bf16.mxu0 0
        %4595 = vmatmul.mubr.bf16.gmra.mrb[0].mxu0 %v4460
        %v4596 = vpop.f32.mrb[0].mxu0
        %v4597 = vadd.f32 %v4399, %v4596
        %v4598 = vpop.f32.mrb[0].mxu0
        %v4599 = vpop.f32.mrb[0].mxu0
        %v4600 = vadd.f32 %v4399, %v4599
        %v4601 = vpop.f32.mrb[0].mxu0
        %4602 = vmatprep.mubr.bf16.mxu0 0
        %4603 = vmatmul.mubr.bf16.gmra.mrb[0].mxu0 %v4463
        %v4604 = vpop.f32.mrb[0].mxu0
        %v4605 = vadd.f32 %v4399, %v4604
        %v4606 = vpop.f32.mrb[0].mxu0
        %v4607 = vpop.f32.mrb[0].mxu0
        %v4608 = vadd.f32 %v4399, %v4607
        %v4609 = vpop.f32.mrb[0].mxu0
        %4610 = vmatprep.mubr.bf16.mxu0 0
        %4611 = vmatmul.mubr.bf16.gmra.mrb[0].mxu0 %v4466
        %v4612 = vpop.f32.mrb[0].mxu0
        %v4613 = vadd.f32 %v4399, %v4612
        %v4614 = vpop.f32.mrb[0].mxu0
        %v4615 = vpop.f32.mrb[0].mxu0
        %v4616 = vadd.f32 %v4399, %v4615
        %v4617 = vpop.f32.mrb[0].mxu0
        %4618 = vmatprep.mubr.bf16.mxu0 0
        %4619 = vmatmul.mubr.bf16.gmra.mrb[0].mxu0 %v4469
        %v4620 = vpop.f32.mrb[0].mxu0
        %v4621 = vadd.f32 %v4399, %v4620
        %v4622 = vpop.f32.mrb[0].mxu0
        %v4623 = vpop.f32.mrb[0].mxu0
        %v4624 = vadd.f32 %v4399, %v4623
        %v4625 = vpop.f32.mrb[0].mxu0
        %4626 = vmatprep.mubr.bf16.mxu0 0
        %4627 = vmatmul.mubr.bf16.gmra.mrb[0].mxu0 %v4472
        %v4628 = vpop.f32.mrb[0].mxu0
        %v4629 = vadd.f32 %v4399, %v4628
        %v4630 = vpop.f32.mrb[0].mxu0
        %v4631 = vpop.f32.mrb[0].mxu0
        %v4632 = vadd.f32 %v4399, %v4631
        %v4633 = vpop.f32.mrb[0].mxu0
        %4634 = vdwg.mxu0
        %v4635 = vmax.f32 %v4509, 0.0
        %v4636 = vmax.f32 %v4512, 0.0
        %v4637 = vmax.f32 %v4517, 0.0
        %v4638 = vmax.f32 %v4520, 0.0
        %v4639 = vmax.f32 %v4525, 0.0
        %v4640 = vmax.f32 %v4528, 0.0
        %v4641 = vmax.f32 %v4533, 0.0
        %v4642 = vmax.f32 %v4536, 0.0
        %v4643 = vmax.f32 %v4541, 0.0
        %v4644 = vmax.f32 %v4544, 0.0
        %v4645 = vmax.f32 %v4549, 0.0
        %v4646 = vmax.f32 %v4552, 0.0
        %v4647 = vmax.f32 %v4557, 0.0
        %v4648 = vmax.f32 %v4560, 0.0
        %v4649 = vmax.f32 %v4565, 0.0
        %v4650 = vmax.f32 %v4568, 0.0
        %v4651 = vmax.f32 %v4573, 0.0
        %v4652 = vmax.f32 %v4576, 0.0
        %v4653 = vmax.f32 %v4581, 0.0
        %v4654 = vmax.f32 %v4584, 0.0
        %v4655 = vmax.f32 %v4589, 0.0
        %v4656 = vmax.f32 %v4592, 0.0
        %v4657 = vmax.f32 %v4597, 0.0
        %v4658 = vmax.f32 %v4600, 0.0
        %v4659 = vmax.f32 %v4605, 0.0
        %v4660 = vmax.f32 %v4608, 0.0
        %v4661 = vmax.f32 %v4613, 0.0
        %v4662 = vmax.f32 %v4616, 0.0
        %v4663 = vmax.f32 %v4621, 0.0
        %v4664 = vmax.f32 %v4624, 0.0
        %v4665 = vmax.f32 %v4629, 0.0
        %v4666 = vmax.f32 %v4632, 0.0
        %v4667 = vpack.c.bf16 %v4636, %v4635
        %v4668 = vpack.c.bf16 %v4638, %v4637
        %v4669 = vpack.c.bf16 %v4640, %v4639
        %v4670 = vpack.c.bf16 %v4642, %v4641
        %v4671 = vpack.c.bf16 %v4644, %v4643
        %v4672 = vpack.c.bf16 %v4646, %v4645
        %v4673 = vpack.c.bf16 %v4648, %v4647
        %v4674 = vpack.c.bf16 %v4650, %v4649
        %v4675 = vpack.c.bf16 %v4652, %v4651
        %v4676 = vpack.c.bf16 %v4654, %v4653
        %v4677 = vpack.c.bf16 %v4656, %v4655
        %v4678 = vpack.c.bf16 %v4658, %v4657
        %v4679 = vpack.c.bf16 %v4660, %v4659
        %v4680 = vpack.c.bf16 %v4662, %v4661
        %v4681 = vpack.c.bf16 %v4664, %v4663
        %v4682 = vpack.c.bf16 %v4666, %v4665
        %v4683 = vld [vmem:[%s9] sm:$0xff]
        %v4684 = vld [vmem:[%s9 + $0x8] sm:$0xff]
        %v4685 = vld [vmem:[%s9 + $0x10] sm:$0xff]
        %v4686 = vld [vmem:[%s9 + $0x18] sm:$0xff]
        %v4687 = vld [vmem:[%s9 + $0x20] sm:$0xff]
        %v4688 = vld [vmem:[%s9 + $0x28] sm:$0xff]
        %v4689 = vld [vmem:[%s9 + $0x30] sm:$0xff]
        %v4690 = vld [vmem:[%s9 + $0x38] sm:$0xff]
        %v4691 = vld [vmem:[%s10] sm:$0xff]
        %v4692 = vld [vmem:[%s10 + $0x8] sm:$0xff]
        %v4693 = vld [vmem:[%s10 + $0x10] sm:$0xff]
        %v4694 = vld [vmem:[%s10 + $0x18] sm:$0xff]
        %v4695 = vld [vmem:[%s10 + $0x20] sm:$0xff]
        %v4696 = vld [vmem:[%s10 + $0x28] sm:$0xff]
        %v4697 = vld [vmem:[%s10 + $0x30] sm:$0xff]
        %v4698 = vld [vmem:[%s10 + $0x38] sm:$0xff]
        %v4707 = vunpack.c.l.b16 %v4691
        %v4708 = vunpack.c.h.b16 %v4691
        %v4709 = vunpack.c.l.b16 %v4692
        %v4710 = vunpack.c.h.b16 %v4692
        %v4711 = vunpack.c.l.b16 %v4693
        %v4712 = vunpack.c.h.b16 %v4693
        %v4713 = vunpack.c.l.b16 %v4694
        %v4714 = vunpack.c.h.b16 %v4694
        %v4715 = vunpack.c.l.b16 %v4695
        %v4716 = vunpack.c.h.b16 %v4695
        %v4717 = vunpack.c.l.b16 %v4696
        %v4718 = vunpack.c.h.b16 %v4696
        %v4719 = vunpack.c.l.b16 %v4697
        %v4720 = vunpack.c.h.b16 %v4697
        %v4721 = vunpack.c.l.b16 %v4698
        %v4722 = vunpack.c.h.b16 %v4698
        %v4723 = vpack.c.b16 %v4709, %v4707
        %v4724 = vpack.c.b16 %v4710, %v4708
        %v4725 = vpack.c.b16 %v4713, %v4711
        %v4726 = vpack.c.b16 %v4714, %v4712
        %v4727 = vpack.c.b16 %v4717, %v4715
        %v4728 = vpack.c.b16 %v4718, %v4716
        %v4729 = vpack.c.b16 %v4721, %v4719
        %v4730 = vpack.c.b16 %v4722, %v4720
        %4739 = vmatprep.subr.bf16.mxu0 %v4724
        %4740 = vmatpush1.bf16.msra.mxu0 %v4723
        %4741 = vmatprep.subr.bf16.mxu0 %v4726
        %4742 = vmatpush1.bf16.msra.mxu0 %v4725
        %4743 = vmatprep.subr.bf16.mxu0 %v4728
        %4744 = vmatpush1.bf16.msra.mxu0 %v4727
        %4745 = vmatprep.subr.bf16.mxu0 %v4730
        %4746 = vmatpush1.bf16.msra.mxu0 %v4729
        %4747 = vmatprep.subr.bf16.mxu0 0
        %4748 = vmatpush1.bf16.msra.mxu0 0
        %4749 = vmatprep.subr.bf16.mxu0 0
        %4750 = vmatpush1.bf16.msra.mxu0 0
        %4751 = vmatprep.subr.bf16.mxu0 0
        %4752 = vmatpush1.bf16.msra.mxu0 0
        %4753 = vmatprep.subr.bf16.mxu0 0
        %4754 = vmatpush1.bf16.msra.mxu0 0
        %4755 = vmatprep.subr.bf16.mxu0 0
        %4756 = vmatpush1.bf16.msra.mxu0 0
        %4757 = vmatprep.subr.bf16.mxu0 0
        %4758 = vmatpush1.bf16.msra.mxu0 0
        %4759 = vmatprep.subr.bf16.mxu0 0
        %4760 = vmatpush1.bf16.msra.mxu0 0
        %4761 = vmatprep.subr.bf16.mxu0 0
        %4762 = vmatpush1.bf16.msra.mxu0 0
        %4763 = vmatprep.subr.bf16.mxu0 0
        %4764 = vmatpush1.bf16.msra.mxu0 0
        %4765 = vmatprep.subr.bf16.mxu0 0
        %4766 = vmatpush1.bf16.msra.mxu0 0
        %4767 = vmatprep.subr.bf16.mxu0 0
        %4768 = vmatpush1.bf16.msra.mxu0 0
        %4769 = vmatprep.subr.bf16.mxu0 0
        %4770 = vmatpush1.bf16.msra.mxu0 0
        %4771 = vmatprep.mubr.bf16.mxu0 0
        %4772 = vmatmul.mubr.bf16.gmra.mrb[0].mxu0 %v4427
        %v4773 = vpop.f32.mrb[0].mxu0
        %v4774 = vadd.f32 0.0, %v4773
        %v4775 = vpop.f32.mrb[0].mxu0
        %v4776 = vadd.f32 0.0, %v4775
        %v4777 = vpop.f32.mrb[0].mxu0
        %v4778 = vadd.f32 0.0, %v4777
        %v4779 = vpop.f32.mrb[0].mxu0
        %v4780 = vadd.f32 0.0, %v4779
        %4781 = vmatprep.mubr.bf16.mxu0 0
        %4782 = vmatmul.mubr.bf16.gmra.mrb[0].mxu0 %v4430
        %v4783 = vpop.f32.mrb[0].mxu0
        %v4784 = vadd.f32 0.0, %v4783
        %v4785 = vpop.f32.mrb[0].mxu0
        %v4786 = vadd.f32 0.0, %v4785
        %v4787 = vpop.f32.mrb[0].mxu0
        %v4788 = vadd.f32 0.0, %v4787
        %v4789 = vpop.f32.mrb[0].mxu0
        %v4790 = vadd.f32 0.0, %v4789
        %4791 = vmatprep.mubr.bf16.mxu0 0
        %4792 = vmatmul.mubr.bf16.gmra.mrb[0].mxu0 %v4433
        %v4793 = vpop.f32.mrb[0].mxu0
        %v4794 = vadd.f32 0.0, %v4793
        %v4795 = vpop.f32.mrb[0].mxu0
        %v4796 = vadd.f32 0.0, %v4795
        %v4797 = vpop.f32.mrb[0].mxu0
        %v4798 = vadd.f32 0.0, %v4797
        %v4799 = vpop.f32.mrb[0].mxu0
        %v4800 = vadd.f32 0.0, %v4799
        %4801 = vmatprep.mubr.bf16.mxu0 0
        %4802 = vmatmul.mubr.bf16.gmra.mrb[0].mxu0 %v4436
        %v4803 = vpop.f32.mrb[0].mxu0
        %v4804 = vadd.f32 0.0, %v4803
        %v4805 = vpop.f32.mrb[0].mxu0
        %v4806 = vadd.f32 0.0, %v4805
        %v4807 = vpop.f32.mrb[0].mxu0
        %v4808 = vadd.f32 0.0, %v4807
        %v4809 = vpop.f32.mrb[0].mxu0
        %v4810 = vadd.f32 0.0, %v4809
        %4811 = vmatprep.mubr.bf16.mxu0 0
        %4812 = vmatmul.mubr.bf16.gmra.mrb[0].mxu0 %v4439
        %v4813 = vpop.f32.mrb[0].mxu0
        %v4814 = vadd.f32 0.0, %v4813
        %v4815 = vpop.f32.mrb[0].mxu0
        %v4816 = vadd.f32 0.0, %v4815
        %v4817 = vpop.f32.mrb[0].mxu0
        %v4818 = vadd.f32 0.0, %v4817
        %v4819 = vpop.f32.mrb[0].mxu0
        %v4820 = vadd.f32 0.0, %v4819
        %4821 = vmatprep.mubr.bf16.mxu0 0
        %4822 = vmatmul.mubr.bf16.gmra.mrb[0].mxu0 %v4442
        %v4823 = vpop.f32.mrb[0].mxu0
        %v4824 = vadd.f32 0.0, %v4823
        %v4825 = vpop.f32.mrb[0].mxu0
        %v4826 = vadd.f32 0.0, %v4825
        %v4827 = vpop.f32.mrb[0].mxu0
        %v4828 = vadd.f32 0.0, %v4827
        %v4829 = vpop.f32.mrb[0].mxu0
        %v4830 = vadd.f32 0.0, %v4829
        %4831 = vmatprep.mubr.bf16.mxu0 0
        %4832 = vmatmul.mubr.bf16.gmra.mrb[0].mxu0 %v4445
        %v4833 = vpop.f32.mrb[0].mxu0
        %v4834 = vadd.f32 0.0, %v4833
        %v4835 = vpop.f32.mrb[0].mxu0
        %v4836 = vadd.f32 0.0, %v4835
        %v4837 = vpop.f32.mrb[0].mxu0
        %v4838 = vadd.f32 0.0, %v4837
        %v4839 = vpop.f32.mrb[0].mxu0
        %v4840 = vadd.f32 0.0, %v4839
        %4841 = vmatprep.mubr.bf16.mxu0 0
        %4842 = vmatmul.mubr.bf16.gmra.mrb[0].mxu0 %v4448
        %v4843 = vpop.f32.mrb[0].mxu0
        %v4844 = vadd.f32 0.0, %v4843
        %v4845 = vpop.f32.mrb[0].mxu0
        %v4846 = vadd.f32 0.0, %v4845
        %v4847 = vpop.f32.mrb[0].mxu0
        %v4848 = vadd.f32 0.0, %v4847
        %v4849 = vpop.f32.mrb[0].mxu0
        %v4850 = vadd.f32 0.0, %v4849
        %4851 = vmatprep.mubr.bf16.mxu0 0
        %4852 = vmatmul.mubr.bf16.gmra.mrb[0].mxu0 %v4451
        %v4853 = vpop.f32.mrb[0].mxu0
        %v4854 = vadd.f32 0.0, %v4853
        %v4855 = vpop.f32.mrb[0].mxu0
        %v4856 = vadd.f32 0.0, %v4855
        %v4857 = vpop.f32.mrb[0].mxu0
        %v4858 = vadd.f32 0.0, %v4857
        %v4859 = vpop.f32.mrb[0].mxu0
        %v4860 = vadd.f32 0.0, %v4859
        %4861 = vmatprep.mubr.bf16.mxu0 0
        %4862 = vmatmul.mubr.bf16.gmra.mrb[0].mxu0 %v4454
        %v4863 = vpop.f32.mrb[0].mxu0
        %v4864 = vadd.f32 0.0, %v4863
        %v4865 = vpop.f32.mrb[0].mxu0
        %v4866 = vadd.f32 0.0, %v4865
        %v4867 = vpop.f32.mrb[0].mxu0
        %v4868 = vadd.f32 0.0, %v4867
        %v4869 = vpop.f32.mrb[0].mxu0
        %v4870 = vadd.f32 0.0, %v4869
        %4871 = vmatprep.mubr.bf16.mxu0 0
        %4872 = vmatmul.mubr.bf16.gmra.mrb[0].mxu0 %v4457
        %v4873 = vpop.f32.mrb[0].mxu0
        %v4874 = vadd.f32 0.0, %v4873
        %v4875 = vpop.f32.mrb[0].mxu0
        %v4876 = vadd.f32 0.0, %v4875
        %v4877 = vpop.f32.mrb[0].mxu0
        %v4878 = vadd.f32 0.0, %v4877
        %v4879 = vpop.f32.mrb[0].mxu0
        %v4880 = vadd.f32 0.0, %v4879
        %4881 = vmatprep.mubr.bf16.mxu0 0
        %4882 = vmatmul.mubr.bf16.gmra.mrb[0].mxu0 %v4460
        %v4883 = vpop.f32.mrb[0].mxu0
        %v4884 = vadd.f32 0.0, %v4883
        %v4885 = vpop.f32.mrb[0].mxu0
        %v4886 = vadd.f32 0.0, %v4885
        %v4887 = vpop.f32.mrb[0].mxu0
        %v4888 = vadd.f32 0.0, %v4887
        %v4889 = vpop.f32.mrb[0].mxu0
        %v4890 = vadd.f32 0.0, %v4889
        %4891 = vmatprep.mubr.bf16.mxu0 0
        %4892 = vmatmul.mubr.bf16.gmra.mrb[0].mxu0 %v4463
        %v4893 = vpop.f32.mrb[0].mxu0
        %v4894 = vadd.f32 0.0, %v4893
        %v4895 = vpop.f32.mrb[0].mxu0
        %v4896 = vadd.f32 0.0, %v4895
        %v4897 = vpop.f32.mrb[0].mxu0
        %v4898 = vadd.f32 0.0, %v4897
        %v4899 = vpop.f32.mrb[0].mxu0
        %v4900 = vadd.f32 0.0, %v4899
        %4901 = vmatprep.mubr.bf16.mxu0 0
        %4902 = vmatmul.mubr.bf16.gmra.mrb[0].mxu0 %v4466
        %v4903 = vpop.f32.mrb[0].mxu0
        %v4904 = vadd.f32 0.0, %v4903
        %v4905 = vpop.f32.mrb[0].mxu0
        %v4906 = vadd.f32 0.0, %v4905
        %v4907 = vpop.f32.mrb[0].mxu0
        %v4908 = vadd.f32 0.0, %v4907
        %v4909 = vpop.f32.mrb[0].mxu0
        %v4910 = vadd.f32 0.0, %v4909
        %4911 = vmatprep.mubr.bf16.mxu0 0
        %4912 = vmatmul.mubr.bf16.gmra.mrb[0].mxu0 %v4469
        %v4913 = vpop.f32.mrb[0].mxu0
        %v4914 = vadd.f32 0.0, %v4913
        %v4915 = vpop.f32.mrb[0].mxu0
        %v4916 = vadd.f32 0.0, %v4915
        %v4917 = vpop.f32.mrb[0].mxu0
        %v4918 = vadd.f32 0.0, %v4917
        %v4919 = vpop.f32.mrb[0].mxu0
        %v4920 = vadd.f32 0.0, %v4919
        %4921 = vmatprep.mubr.bf16.mxu0 0
        %4922 = vmatmul.mubr.bf16.gmra.mrb[0].mxu0 %v4472
        %v4923 = vpop.f32.mrb[0].mxu0
        %v4924 = vadd.f32 0.0, %v4923
        %v4925 = vpop.f32.mrb[0].mxu0
        %v4926 = vadd.f32 0.0, %v4925
        %v4927 = vpop.f32.mrb[0].mxu0
        %v4928 = vadd.f32 0.0, %v4927
        %v4929 = vpop.f32.mrb[0].mxu0
        %v4930 = vadd.f32 0.0, %v4929
        %4931 = vdwg.mxu0
        %v4940 = vunpack.c.l.b16 %v4683
        %v4941 = vunpack.c.h.b16 %v4683
        %v4942 = vunpack.c.l.b16 %v4684
        %v4943 = vunpack.c.h.b16 %v4684
        %v4944 = vunpack.c.l.b16 %v4685
        %v4945 = vunpack.c.h.b16 %v4685
        %v4946 = vunpack.c.l.b16 %v4686
        %v4947 = vunpack.c.h.b16 %v4686
        %v4948 = vunpack.c.l.b16 %v4687
        %v4949 = vunpack.c.h.b16 %v4687
        %v4950 = vunpack.c.l.b16 %v4688
        %v4951 = vunpack.c.h.b16 %v4688
        %v4952 = vunpack.c.l.b16 %v4689
        %v4953 = vunpack.c.h.b16 %v4689
        %v4954 = vunpack.c.l.b16 %v4690
        %v4955 = vunpack.c.h.b16 %v4690
        %v4956 = vpack.c.b16 %v4942, %v4940
        %v4957 = vpack.c.b16 %v4943, %v4941
        %v4958 = vpack.c.b16 %v4946, %v4944
        %v4959 = vpack.c.b16 %v4947, %v4945
        %v4960 = vpack.c.b16 %v4950, %v4948
        %v4961 = vpack.c.b16 %v4951, %v4949
        %v4962 = vpack.c.b16 %v4954, %v4952
        %v4963 = vpack.c.b16 %v4955, %v4953
        %v4973 = vsel %vm4425, %v4667, 0
        %v4976 = vsel %vm4425, %v4668, 0
        %v4979 = vsel %vm4425, %v4669, 0
        %v4982 = vsel %vm4425, %v4670, 0
        %v4985 = vsel %vm4425, %v4671, 0
        %v4988 = vsel %vm4425, %v4672, 0
        %v4991 = vsel %vm4425, %v4673, 0
        %v4994 = vsel %vm4425, %v4674, 0
        %v4997 = vsel %vm4425, %v4675, 0
        %v5000 = vsel %vm4425, %v4676, 0
        %v5003 = vsel %vm4425, %v4677, 0
        %v5006 = vsel %vm4425, %v4678, 0
        %v5009 = vsel %vm4425, %v4679, 0
        %v5012 = vsel %vm4425, %v4680, 0
        %v5015 = vsel %vm4425, %v4681, 0
        %v5018 = vsel %vm4425, %v4682, 0
        %5020 = vmatprep.subr.bf16.mxu0 %v4957
        %5021 = vmatpush1.bf16.msra.mxu0 %v4956
        %5022 = vmatprep.subr.bf16.mxu0 %v4959
        %5023 = vmatpush1.bf16.msra.mxu0 %v4958
        %5024 = vmatprep.subr.bf16.mxu0 %v4961
        %5025 = vmatpush1.bf16.msra.mxu0 %v4960
        %5026 = vmatprep.subr.bf16.mxu0 %v4963
        %5027 = vmatpush1.bf16.msra.mxu0 %v4962
        %5028 = vmatprep.subr.bf16.mxu0 0
        %5029 = vmatpush1.bf16.msra.mxu0 0
        %5030 = vmatprep.subr.bf16.mxu0 0
        %5031 = vmatpush1.bf16.msra.mxu0 0
        %5032 = vmatprep.subr.bf16.mxu0 0
        %5033 = vmatpush1.bf16.msra.mxu0 0
        %5034 = vmatprep.subr.bf16.mxu0 0
        %5035 = vmatpush1.bf16.msra.mxu0 0
        %5036 = vmatprep.subr.bf16.mxu0 0
        %5037 = vmatpush1.bf16.msra.mxu0 0
        %5038 = vmatprep.subr.bf16.mxu0 0
        %5039 = vmatpush1.bf16.msra.mxu0 0
        %5040 = vmatprep.subr.bf16.mxu0 0
        %5041 = vmatpush1.bf16.msra.mxu0 0
        %5042 = vmatprep.subr.bf16.mxu0 0
        %5043 = vmatpush1.bf16.msra.mxu0 0
        %5044 = vmatprep.subr.bf16.mxu0 0
        %5045 = vmatpush1.bf16.msra.mxu0 0
        %5046 = vmatprep.subr.bf16.mxu0 0
        %5047 = vmatpush1.bf16.msra.mxu0 0
        %5048 = vmatprep.subr.bf16.mxu0 0
        %5049 = vmatpush1.bf16.msra.mxu0 0
        %5050 = vmatprep.subr.bf16.mxu0 0
        %5051 = vmatpush1.bf16.msra.mxu0 0
        %5052 = vmatprep.mubr.bf16.mxu0 0
        %5053 = vmatmul.mubr.bf16.gmra.mrb[0].mxu0 %v4973
        %v5054 = vpop.f32.mrb[0].mxu0
        %v5055 = vadd.f32 %v4774, %v5054
        %v5056 = vpop.f32.mrb[0].mxu0
        %v5057 = vadd.f32 %v4776, %v5056
        %v5058 = vpop.f32.mrb[0].mxu0
        %v5059 = vadd.f32 %v4778, %v5058
        %v5060 = vpop.f32.mrb[0].mxu0
        %v5061 = vadd.f32 %v4780, %v5060
        %5062 = vmatprep.mubr.bf16.mxu0 0
        %5063 = vmatmul.mubr.bf16.gmra.mrb[0].mxu0 %v4976
        %v5064 = vpop.f32.mrb[0].mxu0
        %v5065 = vadd.f32 %v4784, %v5064
        %v5066 = vpop.f32.mrb[0].mxu0
        %v5067 = vadd.f32 %v4786, %v5066
        %v5068 = vpop.f32.mrb[0].mxu0
        %v5069 = vadd.f32 %v4788, %v5068
        %v5070 = vpop.f32.mrb[0].mxu0
        %v5071 = vadd.f32 %v4790, %v5070
        %5072 = vmatprep.mubr.bf16.mxu0 0
        %5073 = vmatmul.mubr.bf16.gmra.mrb[0].mxu0 %v4979
        %v5074 = vpop.f32.mrb[0].mxu0
        %v5075 = vadd.f32 %v4794, %v5074
        %v5076 = vpop.f32.mrb[0].mxu0
        %v5077 = vadd.f32 %v4796, %v5076
        %v5078 = vpop.f32.mrb[0].mxu0
        %v5079 = vadd.f32 %v4798, %v5078
        %v5080 = vpop.f32.mrb[0].mxu0
        %v5081 = vadd.f32 %v4800, %v5080
        %5082 = vmatprep.mubr.bf16.mxu0 0
        %5083 = vmatmul.mubr.bf16.gmra.mrb[0].mxu0 %v4982
        %v5084 = vpop.f32.mrb[0].mxu0
        %v5085 = vadd.f32 %v4804, %v5084
        %v5086 = vpop.f32.mrb[0].mxu0
        %v5087 = vadd.f32 %v4806, %v5086
        %v5088 = vpop.f32.mrb[0].mxu0
        %v5089 = vadd.f32 %v4808, %v5088
        %v5090 = vpop.f32.mrb[0].mxu0
        %v5091 = vadd.f32 %v4810, %v5090
        %5092 = vmatprep.mubr.bf16.mxu0 0
        %5093 = vmatmul.mubr.bf16.gmra.mrb[0].mxu0 %v4985
        %v5094 = vpop.f32.mrb[0].mxu0
        %v5095 = vadd.f32 %v4814, %v5094
        %v5096 = vpop.f32.mrb[0].mxu0
        %v5097 = vadd.f32 %v4816, %v5096
        %v5098 = vpop.f32.mrb[0].mxu0
        %v5099 = vadd.f32 %v4818, %v5098
        %v5100 = vpop.f32.mrb[0].mxu0
        %v5101 = vadd.f32 %v4820, %v5100
        %5102 = vmatprep.mubr.bf16.mxu0 0
        %5103 = vmatmul.mubr.bf16.gmra.mrb[0].mxu0 %v4988
        %v5104 = vpop.f32.mrb[0].mxu0
        %v5105 = vadd.f32 %v4824, %v5104
        %v5106 = vpop.f32.mrb[0].mxu0
        %v5107 = vadd.f32 %v4826, %v5106
        %v5108 = vpop.f32.mrb[0].mxu0
        %v5109 = vadd.f32 %v4828, %v5108
        %v5110 = vpop.f32.mrb[0].mxu0
        %v5111 = vadd.f32 %v4830, %v5110
        %5112 = vmatprep.mubr.bf16.mxu0 0
        %5113 = vmatmul.mubr.bf16.gmra.mrb[0].mxu0 %v4991
        %v5114 = vpop.f32.mrb[0].mxu0
        %v5115 = vadd.f32 %v4834, %v5114
        %v5116 = vpop.f32.mrb[0].mxu0
        %v5117 = vadd.f32 %v4836, %v5116
        %v5118 = vpop.f32.mrb[0].mxu0
        %v5119 = vadd.f32 %v4838, %v5118
        %v5120 = vpop.f32.mrb[0].mxu0
        %v5121 = vadd.f32 %v4840, %v5120
        %5122 = vmatprep.mubr.bf16.mxu0 0
        %5123 = vmatmul.mubr.bf16.gmra.mrb[0].mxu0 %v4994
        %v5124 = vpop.f32.mrb[0].mxu0
        %v5125 = vadd.f32 %v4844, %v5124
        %v5126 = vpop.f32.mrb[0].mxu0
        %v5127 = vadd.f32 %v4846, %v5126
        %v5128 = vpop.f32.mrb[0].mxu0
        %v5129 = vadd.f32 %v4848, %v5128
        %v5130 = vpop.f32.mrb[0].mxu0
        %v5131 = vadd.f32 %v4850, %v5130
        %5132 = vmatprep.mubr.bf16.mxu0 0
        %5133 = vmatmul.mubr.bf16.gmra.mrb[0].mxu0 %v4997
        %v5134 = vpop.f32.mrb[0].mxu0
        %v5135 = vadd.f32 %v4854, %v5134
        %v5136 = vpop.f32.mrb[0].mxu0
        %v5137 = vadd.f32 %v4856, %v5136
        %v5138 = vpop.f32.mrb[0].mxu0
        %v5139 = vadd.f32 %v4858, %v5138
        %v5140 = vpop.f32.mrb[0].mxu0
        %v5141 = vadd.f32 %v4860, %v5140
        %5142 = vmatprep.mubr.bf16.mxu0 0
        %5143 = vmatmul.mubr.bf16.gmra.mrb[0].mxu0 %v5000
        %v5144 = vpop.f32.mrb[0].mxu0
        %v5145 = vadd.f32 %v4864, %v5144
        %v5146 = vpop.f32.mrb[0].mxu0
        %v5147 = vadd.f32 %v4866, %v5146
        %v5148 = vpop.f32.mrb[0].mxu0
        %v5149 = vadd.f32 %v4868, %v5148
        %v5150 = vpop.f32.mrb[0].mxu0
        %v5151 = vadd.f32 %v4870, %v5150
        %5152 = vmatprep.mubr.bf16.mxu0 0
        %5153 = vmatmul.mubr.bf16.gmra.mrb[0].mxu0 %v5003
        %v5154 = vpop.f32.mrb[0].mxu0
        %v5155 = vadd.f32 %v4874, %v5154
        %v5156 = vpop.f32.mrb[0].mxu0
        %v5157 = vadd.f32 %v4876, %v5156
        %v5158 = vpop.f32.mrb[0].mxu0
        %v5159 = vadd.f32 %v4878, %v5158
        %v5160 = vpop.f32.mrb[0].mxu0
        %v5161 = vadd.f32 %v4880, %v5160
        %5162 = vmatprep.mubr.bf16.mxu0 0
        %5163 = vmatmul.mubr.bf16.gmra.mrb[0].mxu0 %v5006
        %v5164 = vpop.f32.mrb[0].mxu0
        %v5165 = vadd.f32 %v4884, %v5164
        %v5166 = vpop.f32.mrb[0].mxu0
        %v5167 = vadd.f32 %v4886, %v5166
        %v5168 = vpop.f32.mrb[0].mxu0
        %v5169 = vadd.f32 %v4888, %v5168
        %v5170 = vpop.f32.mrb[0].mxu0
        %v5171 = vadd.f32 %v4890, %v5170
        %5172 = vmatprep.mubr.bf16.mxu0 0
        %5173 = vmatmul.mubr.bf16.gmra.mrb[0].mxu0 %v5009
        %v5174 = vpop.f32.mrb[0].mxu0
        %v5175 = vadd.f32 %v4894, %v5174
        %v5176 = vpop.f32.mrb[0].mxu0
        %v5177 = vadd.f32 %v4896, %v5176
        %v5178 = vpop.f32.mrb[0].mxu0
        %v5179 = vadd.f32 %v4898, %v5178
        %v5180 = vpop.f32.mrb[0].mxu0
        %v5181 = vadd.f32 %v4900, %v5180
        %5182 = vmatprep.mubr.bf16.mxu0 0
        %5183 = vmatmul.mubr.bf16.gmra.mrb[0].mxu0 %v5012
        %v5184 = vpop.f32.mrb[0].mxu0
        %v5185 = vadd.f32 %v4904, %v5184
        %v5186 = vpop.f32.mrb[0].mxu0
        %v5187 = vadd.f32 %v4906, %v5186
        %v5188 = vpop.f32.mrb[0].mxu0
        %v5189 = vadd.f32 %v4908, %v5188
        %v5190 = vpop.f32.mrb[0].mxu0
        %v5191 = vadd.f32 %v4910, %v5190
        %5192 = vmatprep.mubr.bf16.mxu0 0
        %5193 = vmatmul.mubr.bf16.gmra.mrb[0].mxu0 %v5015
        %v5194 = vpop.f32.mrb[0].mxu0
        %v5195 = vadd.f32 %v4914, %v5194
        %v5196 = vpop.f32.mrb[0].mxu0
        %v5197 = vadd.f32 %v4916, %v5196
        %v5198 = vpop.f32.mrb[0].mxu0
        %v5199 = vadd.f32 %v4918, %v5198
        %v5200 = vpop.f32.mrb[0].mxu0
        %v5201 = vadd.f32 %v4920, %v5200
        %5202 = vmatprep.mubr.bf16.mxu0 0
        %5203 = vmatmul.mubr.bf16.gmra.mrb[0].mxu0 %v5018
        %v5204 = vpop.f32.mrb[0].mxu0
        %v5205 = vadd.f32 %v4924, %v5204
        %v5206 = vpop.f32.mrb[0].mxu0
        %v5207 = vadd.f32 %v4926, %v5206
        %v5208 = vpop.f32.mrb[0].mxu0
        %v5209 = vadd.f32 %v4928, %v5208
        %v5210 = vpop.f32.mrb[0].mxu0
        %v5211 = vadd.f32 %v4930, %v5210
        %5212 = vdwg.mxu0
        %v5213 = vld [vmem:[%s11] sm:$0x3]
        %v5215 = vlaneseq
        %v5216 = vshrl.u32 %v5215, 7
        %v5217 = vsub.s32 0, %v5216
        %v5218 = vrot.slane %v5213, %v5217
        %v5219 = vlaneseq
        %v5220 = vshrl.u32 %v5219, 7
        %v5221 = vsub.s32 1, %v5220
        %v5222 = vrot.slane %v5213, %v5221
        %v5225 = vadd.f32 %v5055, %v5218
        %v5226 = vadd.f32 %v5057, %v5222
        %v5227 = vadd.f32 %v5059, %v5218
        %v5228 = vadd.f32 %v5061, %v5222
        %v5229 = vadd.f32 %v5065, %v5218
        %v5230 = vadd.f32 %v5067, %v5222
        %v5231 = vadd.f32 %v5069, %v5218
        %v5232 = vadd.f32 %v5071, %v5222
        %v5233 = vadd.f32 %v5075, %v5218
        %v5234 = vadd.f32 %v5077, %v5222
        %v5235 = vadd.f32 %v5079, %v5218
        %v5236 = vadd.f32 %v5081, %v5222
        %v5237 = vadd.f32 %v5085, %v5218
        %v5238 = vadd.f32 %v5087, %v5222
        %v5239 = vadd.f32 %v5089, %v5218
        %v5240 = vadd.f32 %v5091, %v5222
        %v5241 = vadd.f32 %v5095, %v5218
        %v5242 = vadd.f32 %v5097, %v5222
        %v5243 = vadd.f32 %v5099, %v5218
        %v5244 = vadd.f32 %v5101, %v5222
        %v5245 = vadd.f32 %v5105, %v5218
        %v5246 = vadd.f32 %v5107, %v5222
        %v5247 = vadd.f32 %v5109, %v5218
        %v5248 = vadd.f32 %v5111, %v5222
        %v5249 = vadd.f32 %v5115, %v5218
        %v5250 = vadd.f32 %v5117, %v5222
        %v5251 = vadd.f32 %v5119, %v5218
        %v5252 = vadd.f32 %v5121, %v5222
        %v5253 = vadd.f32 %v5125, %v5218
        %v5254 = vadd.f32 %v5127, %v5222
        %v5255 = vadd.f32 %v5129, %v5218
        %v5256 = vadd.f32 %v5131, %v5222
        %v5257 = vadd.f32 %v5135, %v5218
        %v5258 = vadd.f32 %v5137, %v5222
        %v5259 = vadd.f32 %v5139, %v5218
        %v5260 = vadd.f32 %v5141, %v5222
        %v5261 = vadd.f32 %v5145, %v5218
        %v5262 = vadd.f32 %v5147, %v5222
        %v5263 = vadd.f32 %v5149, %v5218
        %v5264 = vadd.f32 %v5151, %v5222
        %v5265 = vadd.f32 %v5155, %v5218
        %v5266 = vadd.f32 %v5157, %v5222
        %v5267 = vadd.f32 %v5159, %v5218
        %v5268 = vadd.f32 %v5161, %v5222
        %v5269 = vadd.f32 %v5165, %v5218
        %v5270 = vadd.f32 %v5167, %v5222
        %v5271 = vadd.f32 %v5169, %v5218
        %v5272 = vadd.f32 %v5171, %v5222
        %v5273 = vadd.f32 %v5175, %v5218
        %v5274 = vadd.f32 %v5177, %v5222
        %v5275 = vadd.f32 %v5179, %v5218
        %v5276 = vadd.f32 %v5181, %v5222
        %v5277 = vadd.f32 %v5185, %v5218
        %v5278 = vadd.f32 %v5187, %v5222
        %v5279 = vadd.f32 %v5189, %v5218
        %v5280 = vadd.f32 %v5191, %v5222
        %v5281 = vadd.f32 %v5195, %v5218
        %v5282 = vadd.f32 %v5197, %v5222
        %v5283 = vadd.f32 %v5199, %v5218
        %v5284 = vadd.f32 %v5201, %v5222
        %v5285 = vadd.f32 %v5205, %v5218
        %v5286 = vadd.f32 %v5207, %v5222
        %v5287 = vadd.f32 %v5209, %v5218
        %v5288 = vadd.f32 %v5211, %v5222
        %v5289 = vmax.f32 %v5225, 0.0
        %v5290 = vmax.f32 %v5226, 0.0
        %v5291 = vmax.f32 %v5227, 0.0
        %v5292 = vmax.f32 %v5228, 0.0
        %v5293 = vmax.f32 %v5229, 0.0
        %v5294 = vmax.f32 %v5230, 0.0
        %v5295 = vmax.f32 %v5231, 0.0
        %v5296 = vmax.f32 %v5232, 0.0
        %v5297 = vmax.f32 %v5233, 0.0
        %v5298 = vmax.f32 %v5234, 0.0
        %v5299 = vmax.f32 %v5235, 0.0
        %v5300 = vmax.f32 %v5236, 0.0
        %v5301 = vmax.f32 %v5237, 0.0
        %v5302 = vmax.f32 %v5238, 0.0
        %v5303 = vmax.f32 %v5239, 0.0
        %v5304 = vmax.f32 %v5240, 0.0
        %v5305 = vmax.f32 %v5241, 0.0
        %v5306 = vmax.f32 %v5242, 0.0
        %v5307 = vmax.f32 %v5243, 0.0
        %v5308 = vmax.f32 %v5244, 0.0
        %v5309 = vmax.f32 %v5245, 0.0
        %v5310 = vmax.f32 %v5246, 0.0
        %v5311 = vmax.f32 %v5247, 0.0
        %v5312 = vmax.f32 %v5248, 0.0
        %v5313 = vmax.f32 %v5249, 0.0
        %v5314 = vmax.f32 %v5250, 0.0
        %v5315 = vmax.f32 %v5251, 0.0
        %v5316 = vmax.f32 %v5252, 0.0
        %v5317 = vmax.f32 %v5253, 0.0
        %v5318 = vmax.f32 %v5254, 0.0
        %v5319 = vmax.f32 %v5255, 0.0
        %v5320 = vmax.f32 %v5256, 0.0
        %v5321 = vmax.f32 %v5257, 0.0
        %v5322 = vmax.f32 %v5258, 0.0
        %v5323 = vmax.f32 %v5259, 0.0
        %v5324 = vmax.f32 %v5260, 0.0
        %v5325 = vmax.f32 %v5261, 0.0
        %v5326 = vmax.f32 %v5262, 0.0
        %v5327 = vmax.f32 %v5263, 0.0
        %v5328 = vmax.f32 %v5264, 0.0
        %v5329 = vmax.f32 %v5265, 0.0
        %v5330 = vmax.f32 %v5266, 0.0
        %v5331 = vmax.f32 %v5267, 0.0
        %v5332 = vmax.f32 %v5268, 0.0
        %v5333 = vmax.f32 %v5269, 0.0
        %v5334 = vmax.f32 %v5270, 0.0
        %v5335 = vmax.f32 %v5271, 0.0
        %v5336 = vmax.f32 %v5272, 0.0
        %v5337 = vmax.f32 %v5273, 0.0
        %v5338 = vmax.f32 %v5274, 0.0
        %v5339 = vmax.f32 %v5275, 0.0
        %v5340 = vmax.f32 %v5276, 0.0
        %v5341 = vmax.f32 %v5277, 0.0
        %v5342 = vmax.f32 %v5278, 0.0
        %v5343 = vmax.f32 %v5279, 0.0
        %v5344 = vmax.f32 %v5280, 0.0
        %v5345 = vmax.f32 %v5281, 0.0
        %v5346 = vmax.f32 %v5282, 0.0
        %v5347 = vmax.f32 %v5283, 0.0
        %v5348 = vmax.f32 %v5284, 0.0
        %v5349 = vmax.f32 %v5285, 0.0
        %v5350 = vmax.f32 %v5286, 0.0
        %v5351 = vmax.f32 %v5287, 0.0
        %v5352 = vmax.f32 %v5288, 0.0
        %v5353 = vpack.c.bf16 %v5291, %v5289
        %v5354 = vpack.c.bf16 %v5292, %v5290
        %v5355 = vpack.c.bf16 %v5295, %v5293
        %v5356 = vpack.c.bf16 %v5296, %v5294
        %v5357 = vpack.c.bf16 %v5299, %v5297
        %v5358 = vpack.c.bf16 %v5300, %v5298
        %v5359 = vpack.c.bf16 %v5303, %v5301
        %v5360 = vpack.c.bf16 %v5304, %v5302
        %v5361 = vpack.c.bf16 %v5307, %v5305
        %v5362 = vpack.c.bf16 %v5308, %v5306
        %v5363 = vpack.c.bf16 %v5311, %v5309
        %v5364 = vpack.c.bf16 %v5312, %v5310
        %v5365 = vpack.c.bf16 %v5315, %v5313
        %v5366 = vpack.c.bf16 %v5316, %v5314
        %v5367 = vpack.c.bf16 %v5319, %v5317
        %v5368 = vpack.c.bf16 %v5320, %v5318
        %v5369 = vpack.c.bf16 %v5323, %v5321
        %v5370 = vpack.c.bf16 %v5324, %v5322
        %v5371 = vpack.c.bf16 %v5327, %v5325
        %v5372 = vpack.c.bf16 %v5328, %v5326
        %v5373 = vpack.c.bf16 %v5331, %v5329
        %v5374 = vpack.c.bf16 %v5332, %v5330
        %v5375 = vpack.c.bf16 %v5335, %v5333
        %v5376 = vpack.c.bf16 %v5336, %v5334
        %v5377 = vpack.c.bf16 %v5339, %v5337
        %v5378 = vpack.c.bf16 %v5340, %v5338
        %v5379 = vpack.c.bf16 %v5343, %v5341
        %v5380 = vpack.c.bf16 %v5344, %v5342
        %v5381 = vpack.c.bf16 %v5347, %v5345
        %v5382 = vpack.c.bf16 %v5348, %v5346
        %v5383 = vpack.c.bf16 %v5351, %v5349
        %v5384 = vpack.c.bf16 %v5352, %v5350
        %v5385 = vld [vmem:[#allocation8] sm:$0xff]
        %v5386 = vld [vmem:[#allocation8 + $0x8] sm:$0xff]
        %v5387 = vld [vmem:[#allocation8 + $0x10] sm:$0xff]
        %v5388 = vld [vmem:[#allocation8 + $0x18] sm:$0xff]
        %v5389 = vld [vmem:[#allocation8 + $0x20] sm:$0xff]
        %v5390 = vld [vmem:[#allocation8 + $0x28] sm:$0xff]
        %v5391 = vld [vmem:[#allocation8 + $0x30] sm:$0xff]
        %v5392 = vld [vmem:[#allocation8 + $0x38] sm:$0xff]
        %v5393 = vld [vmem:[#allocation8 + $0x40] sm:$0xff]
        %v5394 = vld [vmem:[#allocation8 + $0x48] sm:$0xff]
        %v5395 = vld [vmem:[#allocation8 + $0x50] sm:$0xff]
        %v5396 = vld [vmem:[#allocation8 + $0x58] sm:$0xff]
        %v5397 = vld [vmem:[#allocation8 + $0x60] sm:$0xff]
        %v5398 = vld [vmem:[#allocation8 + $0x68] sm:$0xff]
        %v5399 = vld [vmem:[#allocation8 + $0x70] sm:$0xff]
        %v5400 = vld [vmem:[#allocation8 + $0x78] sm:$0xff]
        %v5401 = vld [vmem:[#allocation8 + $0x80] sm:$0xff]
        %v5402 = vld [vmem:[#allocation8 + $0x88] sm:$0xff]
        %v5403 = vld [vmem:[#allocation8 + $0x90] sm:$0xff]
        %v5404 = vld [vmem:[#allocation8 + $0x98] sm:$0xff]
        %v5405 = vld [vmem:[#allocation8 + $0xa0] sm:$0xff]
        %v5406 = vld [vmem:[#allocation8 + $0xa8] sm:$0xff]
        %v5407 = vld [vmem:[#allocation8 + $0xb0] sm:$0xff]
        %v5408 = vld [vmem:[#allocation8 + $0xb8] sm:$0xff]
        %v5409 = vld [vmem:[#allocation8 + $0xc0] sm:$0xff]
        %v5410 = vld [vmem:[#allocation8 + $0xc8] sm:$0xff]
        %v5411 = vld [vmem:[#allocation8 + $0xd0] sm:$0xff]
        %v5412 = vld [vmem:[#allocation8 + $0xd8] sm:$0xff]
        %v5413 = vld [vmem:[#allocation8 + $0xe0] sm:$0xff]
        %v5414 = vld [vmem:[#allocation8 + $0xe8] sm:$0xff]
        %v5415 = vld [vmem:[#allocation8 + $0xf0] sm:$0xff]
        %v5416 = vld [vmem:[#allocation8 + $0xf8] sm:$0xff]
        %v5417 = vld [vmem:[#allocation8 + $0x100] sm:$0xff]
        %v5418 = vld [vmem:[#allocation8 + $0x108] sm:$0xff]
        %v5419 = vld [vmem:[#allocation8 + $0x110] sm:$0xff]
        %v5420 = vld [vmem:[#allocation8 + $0x118] sm:$0xff]
        %v5421 = vld [vmem:[#allocation8 + $0x120] sm:$0xff]
        %v5422 = vld [vmem:[#allocation8 + $0x128] sm:$0xff]
        %v5423 = vld [vmem:[#allocation8 + $0x130] sm:$0xff]
        %v5424 = vld [vmem:[#allocation8 + $0x138] sm:$0xff]
        %v5425 = vld [vmem:[#allocation8 + $0x140] sm:$0xff]
        %v5426 = vld [vmem:[#allocation8 + $0x148] sm:$0xff]
        %v5427 = vld [vmem:[#allocation8 + $0x150] sm:$0xff]
        %v5428 = vld [vmem:[#allocation8 + $0x158] sm:$0xff]
        %v5429 = vld [vmem:[#allocation8 + $0x160] sm:$0xff]
        %v5430 = vld [vmem:[#allocation8 + $0x168] sm:$0xff]
        %v5431 = vld [vmem:[#allocation8 + $0x170] sm:$0xff]
        %v5432 = vld [vmem:[#allocation8 + $0x178] sm:$0xff]
        %v5433 = vld [vmem:[#allocation8 + $0x180] sm:$0xff]
        %v5434 = vld [vmem:[#allocation8 + $0x188] sm:$0xff]
        %v5435 = vld [vmem:[#allocation8 + $0x190] sm:$0xff]
        %v5436 = vld [vmem:[#allocation8 + $0x198] sm:$0xff]
        %v5437 = vld [vmem:[#allocation8 + $0x1a0] sm:$0xff]
        %v5438 = vld [vmem:[#allocation8 + $0x1a8] sm:$0xff]
        %v5439 = vld [vmem:[#allocation8 + $0x1b0] sm:$0xff]
        %v5440 = vld [vmem:[#allocation8 + $0x1b8] sm:$0xff]
        %v5441 = vld [vmem:[#allocation8 + $0x1c0] sm:$0xff]
        %v5442 = vld [vmem:[#allocation8 + $0x1c8] sm:$0xff]
        %v5443 = vld [vmem:[#allocation8 + $0x1d0] sm:$0xff]
        %v5444 = vld [vmem:[#allocation8 + $0x1d8] sm:$0xff]
        %v5445 = vld [vmem:[#allocation8 + $0x1e0] sm:$0xff]
        %v5446 = vld [vmem:[#allocation8 + $0x1e8] sm:$0xff]
        %v5447 = vld [vmem:[#allocation8 + $0x1f0] sm:$0xff]
        %v5448 = vld [vmem:[#allocation8 + $0x1f8] sm:$0xff]
        %v5449 = vld [vmem:[#allocation8 + $0x200] sm:$0xff]
        %v5450 = vld [vmem:[#allocation8 + $0x208] sm:$0xff]
        %v5451 = vld [vmem:[#allocation8 + $0x210] sm:$0xff]
        %v5452 = vld [vmem:[#allocation8 + $0x218] sm:$0xff]
        %v5453 = vld [vmem:[#allocation8 + $0x220] sm:$0xff]
        %v5454 = vld [vmem:[#allocation8 + $0x228] sm:$0xff]
        %v5455 = vld [vmem:[#allocation8 + $0x230] sm:$0xff]
        %v5456 = vld [vmem:[#allocation8 + $0x238] sm:$0xff]
        %v5457 = vld [vmem:[#allocation8 + $0x240] sm:$0xff]
        %v5458 = vld [vmem:[#allocation8 + $0x248] sm:$0xff]
        %v5459 = vld [vmem:[#allocation8 + $0x250] sm:$0xff]
        %v5460 = vld [vmem:[#allocation8 + $0x258] sm:$0xff]
        %v5461 = vld [vmem:[#allocation8 + $0x260] sm:$0xff]
        %v5462 = vld [vmem:[#allocation8 + $0x268] sm:$0xff]
        %v5463 = vld [vmem:[#allocation8 + $0x270] sm:$0xff]
        %v5464 = vld [vmem:[#allocation8 + $0x278] sm:$0xff]
        %v5465 = vld [vmem:[#allocation8 + $0x280] sm:$0xff]
        %v5466 = vld [vmem:[#allocation8 + $0x288] sm:$0xff]
        %v5467 = vld [vmem:[#allocation8 + $0x290] sm:$0xff]
        %v5468 = vld [vmem:[#allocation8 + $0x298] sm:$0xff]
        %v5469 = vld [vmem:[#allocation8 + $0x2a0] sm:$0xff]
        %v5470 = vld [vmem:[#allocation8 + $0x2a8] sm:$0xff]
        %v5471 = vld [vmem:[#allocation8 + $0x2b0] sm:$0xff]
        %v5472 = vld [vmem:[#allocation8 + $0x2b8] sm:$0xff]
        %v5473 = vld [vmem:[#allocation8 + $0x2c0] sm:$0xff]
        %v5474 = vld [vmem:[#allocation8 + $0x2c8] sm:$0xff]
        %v5475 = vld [vmem:[#allocation8 + $0x2d0] sm:$0xff]
        %v5476 = vld [vmem:[#allocation8 + $0x2d8] sm:$0xff]
        %v5477 = vld [vmem:[#allocation8 + $0x2e0] sm:$0xff]
        %v5478 = vld [vmem:[#allocation8 + $0x2e8] sm:$0xff]
        %v5479 = vld [vmem:[#allocation8 + $0x2f0] sm:$0xff]
        %v5480 = vld [vmem:[#allocation8 + $0x2f8] sm:$0xff]
        %v5481 = vld [vmem:[#allocation8 + $0x300] sm:$0xff]
        %v5482 = vld [vmem:[#allocation8 + $0x308] sm:$0xff]
        %v5483 = vld [vmem:[#allocation8 + $0x310] sm:$0xff]
        %v5484 = vld [vmem:[#allocation8 + $0x318] sm:$0xff]
        %v5485 = vld [vmem:[#allocation8 + $0x320] sm:$0xff]
        %v5486 = vld [vmem:[#allocation8 + $0x328] sm:$0xff]
        %v5487 = vld [vmem:[#allocation8 + $0x330] sm:$0xff]
        %v5488 = vld [vmem:[#allocation8 + $0x338] sm:$0xff]
        %v5489 = vld [vmem:[#allocation8 + $0x340] sm:$0xff]
        %v5490 = vld [vmem:[#allocation8 + $0x348] sm:$0xff]
        %v5491 = vld [vmem:[#allocation8 + $0x350] sm:$0xff]
        %v5492 = vld [vmem:[#allocation8 + $0x358] sm:$0xff]
        %v5493 = vld [vmem:[#allocation8 + $0x360] sm:$0xff]
        %v5494 = vld [vmem:[#allocation8 + $0x368] sm:$0xff]
        %v5495 = vld [vmem:[#allocation8 + $0x370] sm:$0xff]
        %v5496 = vld [vmem:[#allocation8 + $0x378] sm:$0xff]
        %v5497 = vld [vmem:[#allocation8 + $0x380] sm:$0xff]
        %v5498 = vld [vmem:[#allocation8 + $0x388] sm:$0xff]
        %v5499 = vld [vmem:[#allocation8 + $0x390] sm:$0xff]
        %v5500 = vld [vmem:[#allocation8 + $0x398] sm:$0xff]
        %v5501 = vld [vmem:[#allocation8 + $0x3a0] sm:$0xff]
        %v5502 = vld [vmem:[#allocation8 + $0x3a8] sm:$0xff]
        %v5503 = vld [vmem:[#allocation8 + $0x3b0] sm:$0xff]
        %v5504 = vld [vmem:[#allocation8 + $0x3b8] sm:$0xff]
        %v5505 = vld [vmem:[#allocation8 + $0x3c0] sm:$0xff]
        %v5506 = vld [vmem:[#allocation8 + $0x3c8] sm:$0xff]
        %v5507 = vld [vmem:[#allocation8 + $0x3d0] sm:$0xff]
        %v5508 = vld [vmem:[#allocation8 + $0x3d8] sm:$0xff]
        %v5509 = vld [vmem:[#allocation8 + $0x3e0] sm:$0xff]
        %v5510 = vld [vmem:[#allocation8 + $0x3e8] sm:$0xff]
        %v5511 = vld [vmem:[#allocation8 + $0x3f0] sm:$0xff]
        %v5512 = vld [vmem:[#allocation8 + $0x3f8] sm:$0xff]
        %v5513 = vld [vmem:[#allocation10] sm:$0xff]
        %v5514 = vld [vmem:[#allocation10 + $0x8] sm:$0xff]
        %v5515 = vld [vmem:[#allocation10 + $0x10] sm:$0xff]
        %v5516 = vld [vmem:[#allocation10 + $0x18] sm:$0xff]
        %v5517 = vld [vmem:[#allocation10 + $0x20] sm:$0xff]
        %v5518 = vld [vmem:[#allocation10 + $0x28] sm:$0xff]
        %v5519 = vld [vmem:[#allocation10 + $0x30] sm:$0xff]
        %v5520 = vld [vmem:[#allocation10 + $0x38] sm:$0xff]
        %v5521 = vld [vmem:[#allocation10 + $0x40] sm:$0xff]
        %v5522 = vld [vmem:[#allocation10 + $0x48] sm:$0xff]
        %v5523 = vld [vmem:[#allocation10 + $0x50] sm:$0xff]
        %v5524 = vld [vmem:[#allocation10 + $0x58] sm:$0xff]
        %v5525 = vld [vmem:[#allocation10 + $0x60] sm:$0xff]
        %v5526 = vld [vmem:[#allocation10 + $0x68] sm:$0xff]
        %v5527 = vld [vmem:[#allocation10 + $0x70] sm:$0xff]
        %v5528 = vld [vmem:[#allocation10 + $0x78] sm:$0xff]
        %v5529 = vld [vmem:[#allocation10 + $0x80] sm:$0xff]
        %v5530 = vld [vmem:[#allocation10 + $0x88] sm:$0xff]
        %v5531 = vld [vmem:[#allocation10 + $0x90] sm:$0xff]
        %v5532 = vld [vmem:[#allocation10 + $0x98] sm:$0xff]
        %v5533 = vld [vmem:[#allocation10 + $0xa0] sm:$0xff]
        %v5534 = vld [vmem:[#allocation10 + $0xa8] sm:$0xff]
        %v5535 = vld [vmem:[#allocation10 + $0xb0] sm:$0xff]
        %v5536 = vld [vmem:[#allocation10 + $0xb8] sm:$0xff]
        %v5537 = vld [vmem:[#allocation10 + $0xc0] sm:$0xff]
        %v5538 = vld [vmem:[#allocation10 + $0xc8] sm:$0xff]
        %v5539 = vld [vmem:[#allocation10 + $0xd0] sm:$0xff]
        %v5540 = vld [vmem:[#allocation10 + $0xd8] sm:$0xff]
        %v5541 = vld [vmem:[#allocation10 + $0xe0] sm:$0xff]
        %v5542 = vld [vmem:[#allocation10 + $0xe8] sm:$0xff]
        %v5543 = vld [vmem:[#allocation10 + $0xf0] sm:$0xff]
        %v5544 = vld [vmem:[#allocation10 + $0xf8] sm:$0xff]
        %v5545 = vld [vmem:[#allocation10 + $0x100] sm:$0xff]
        %v5546 = vld [vmem:[#allocation10 + $0x108] sm:$0xff]
        %v5547 = vld [vmem:[#allocation10 + $0x110] sm:$0xff]
        %v5548 = vld [vmem:[#allocation10 + $0x118] sm:$0xff]
        %v5549 = vld [vmem:[#allocation10 + $0x120] sm:$0xff]
        %v5550 = vld [vmem:[#allocation10 + $0x128] sm:$0xff]
        %v5551 = vld [vmem:[#allocation10 + $0x130] sm:$0xff]
        %v5552 = vld [vmem:[#allocation10 + $0x138] sm:$0xff]
        %v5553 = vld [vmem:[#allocation10 + $0x140] sm:$0xff]
        %v5554 = vld [vmem:[#allocation10 + $0x148] sm:$0xff]
        %v5555 = vld [vmem:[#allocation10 + $0x150] sm:$0xff]
        %v5556 = vld [vmem:[#allocation10 + $0x158] sm:$0xff]
        %v5557 = vld [vmem:[#allocation10 + $0x160] sm:$0xff]
        %v5558 = vld [vmem:[#allocation10 + $0x168] sm:$0xff]
        %v5559 = vld [vmem:[#allocation10 + $0x170] sm:$0xff]
        %v5560 = vld [vmem:[#allocation10 + $0x178] sm:$0xff]
        %v5561 = vld [vmem:[#allocation10 + $0x180] sm:$0xff]
        %v5562 = vld [vmem:[#allocation10 + $0x188] sm:$0xff]
        %v5563 = vld [vmem:[#allocation10 + $0x190] sm:$0xff]
        %v5564 = vld [vmem:[#allocation10 + $0x198] sm:$0xff]
        %v5565 = vld [vmem:[#allocation10 + $0x1a0] sm:$0xff]
        %v5566 = vld [vmem:[#allocation10 + $0x1a8] sm:$0xff]
        %v5567 = vld [vmem:[#allocation10 + $0x1b0] sm:$0xff]
        %v5568 = vld [vmem:[#allocation10 + $0x1b8] sm:$0xff]
        %v5569 = vld [vmem:[#allocation10 + $0x1c0] sm:$0xff]
        %v5570 = vld [vmem:[#allocation10 + $0x1c8] sm:$0xff]
        %v5571 = vld [vmem:[#allocation10 + $0x1d0] sm:$0xff]
        %v5572 = vld [vmem:[#allocation10 + $0x1d8] sm:$0xff]
        %v5573 = vld [vmem:[#allocation10 + $0x1e0] sm:$0xff]
        %v5574 = vld [vmem:[#allocation10 + $0x1e8] sm:$0xff]
        %v5575 = vld [vmem:[#allocation10 + $0x1f0] sm:$0xff]
        %v5576 = vld [vmem:[#allocation10 + $0x1f8] sm:$0xff]
        %v5577 = vld [vmem:[#allocation10 + $0x200] sm:$0xff]
        %v5578 = vld [vmem:[#allocation10 + $0x208] sm:$0xff]
        %v5579 = vld [vmem:[#allocation10 + $0x210] sm:$0xff]
        %v5580 = vld [vmem:[#allocation10 + $0x218] sm:$0xff]
        %v5581 = vld [vmem:[#allocation10 + $0x220] sm:$0xff]
        %v5582 = vld [vmem:[#allocation10 + $0x228] sm:$0xff]
        %v5583 = vld [vmem:[#allocation10 + $0x230] sm:$0xff]
        %v5584 = vld [vmem:[#allocation10 + $0x238] sm:$0xff]
        %v5585 = vld [vmem:[#allocation10 + $0x240] sm:$0xff]
        %v5586 = vld [vmem:[#allocation10 + $0x248] sm:$0xff]
        %v5587 = vld [vmem:[#allocation10 + $0x250] sm:$0xff]
        %v5588 = vld [vmem:[#allocation10 + $0x258] sm:$0xff]
        %v5589 = vld [vmem:[#allocation10 + $0x260] sm:$0xff]
        %v5590 = vld [vmem:[#allocation10 + $0x268] sm:$0xff]
        %v5591 = vld [vmem:[#allocation10 + $0x270] sm:$0xff]
        %v5592 = vld [vmem:[#allocation10 + $0x278] sm:$0xff]
        %v5593 = vld [vmem:[#allocation10 + $0x280] sm:$0xff]
        %v5594 = vld [vmem:[#allocation10 + $0x288] sm:$0xff]
        %v5595 = vld [vmem:[#allocation10 + $0x290] sm:$0xff]
        %v5596 = vld [vmem:[#allocation10 + $0x298] sm:$0xff]
        %v5597 = vld [vmem:[#allocation10 + $0x2a0] sm:$0xff]
        %v5598 = vld [vmem:[#allocation10 + $0x2a8] sm:$0xff]
        %v5599 = vld [vmem:[#allocation10 + $0x2b0] sm:$0xff]
        %v5600 = vld [vmem:[#allocation10 + $0x2b8] sm:$0xff]
        %v5601 = vld [vmem:[#allocation10 + $0x2c0] sm:$0xff]
        %v5602 = vld [vmem:[#allocation10 + $0x2c8] sm:$0xff]
        %v5603 = vld [vmem:[#allocation10 + $0x2d0] sm:$0xff]
        %v5604 = vld [vmem:[#allocation10 + $0x2d8] sm:$0xff]
        %v5605 = vld [vmem:[#allocation10 + $0x2e0] sm:$0xff]
        %v5606 = vld [vmem:[#allocation10 + $0x2e8] sm:$0xff]
        %v5607 = vld [vmem:[#allocation10 + $0x2f0] sm:$0xff]
        %v5608 = vld [vmem:[#allocation10 + $0x2f8] sm:$0xff]
        %v5609 = vld [vmem:[#allocation10 + $0x300] sm:$0xff]
        %v5610 = vld [vmem:[#allocation10 + $0x308] sm:$0xff]
        %v5611 = vld [vmem:[#allocation10 + $0x310] sm:$0xff]
        %v5612 = vld [vmem:[#allocation10 + $0x318] sm:$0xff]
        %v5613 = vld [vmem:[#allocation10 + $0x320] sm:$0xff]
        %v5614 = vld [vmem:[#allocation10 + $0x328] sm:$0xff]
        %v5615 = vld [vmem:[#allocation10 + $0x330] sm:$0xff]
        %v5616 = vld [vmem:[#allocation10 + $0x338] sm:$0xff]
        %v5617 = vld [vmem:[#allocation10 + $0x340] sm:$0xff]
        %v5618 = vld [vmem:[#allocation10 + $0x348] sm:$0xff]
        %v5619 = vld [vmem:[#allocation10 + $0x350] sm:$0xff]
        %v5620 = vld [vmem:[#allocation10 + $0x358] sm:$0xff]
        %v5621 = vld [vmem:[#allocation10 + $0x360] sm:$0xff]
        %v5622 = vld [vmem:[#allocation10 + $0x368] sm:$0xff]
        %v5623 = vld [vmem:[#allocation10 + $0x370] sm:$0xff]
        %v5624 = vld [vmem:[#allocation10 + $0x378] sm:$0xff]
        %v5625 = vld [vmem:[#allocation10 + $0x380] sm:$0xff]
        %v5626 = vld [vmem:[#allocation10 + $0x388] sm:$0xff]
        %v5627 = vld [vmem:[#allocation10 + $0x390] sm:$0xff]
        %v5628 = vld [vmem:[#allocation10 + $0x398] sm:$0xff]
        %v5629 = vld [vmem:[#allocation10 + $0x3a0] sm:$0xff]
        %v5630 = vld [vmem:[#allocation10 + $0x3a8] sm:$0xff]
        %v5631 = vld [vmem:[#allocation10 + $0x3b0] sm:$0xff]
        %v5632 = vld [vmem:[#allocation10 + $0x3b8] sm:$0xff]
        %v5633 = vld [vmem:[#allocation10 + $0x3c0] sm:$0xff]
        %v5634 = vld [vmem:[#allocation10 + $0x3c8] sm:$0xff]
        %v5635 = vld [vmem:[#allocation10 + $0x3d0] sm:$0xff]
        %v5636 = vld [vmem:[#allocation10 + $0x3d8] sm:$0xff]
        %v5637 = vld [vmem:[#allocation10 + $0x3e0] sm:$0xff]
        %v5638 = vld [vmem:[#allocation10 + $0x3e8] sm:$0xff]
        %v5639 = vld [vmem:[#allocation10 + $0x3f0] sm:$0xff]
        %v5640 = vld [vmem:[#allocation10 + $0x3f8] sm:$0xff]
        %v5769 = vunpack.c.l.b16 %v5513
        %v5770 = vunpack.c.h.b16 %v5513
        %v5771 = vunpack.c.l.b16 %v5514
        %v5772 = vunpack.c.h.b16 %v5514
        %v5773 = vunpack.c.l.b16 %v5515
        %v5774 = vunpack.c.h.b16 %v5515
        %v5775 = vunpack.c.l.b16 %v5516
        %v5776 = vunpack.c.h.b16 %v5516
        %v5777 = vunpack.c.l.b16 %v5517
        %v5778 = vunpack.c.h.b16 %v5517
        %v5779 = vunpack.c.l.b16 %v5518
        %v5780 = vunpack.c.h.b16 %v5518
        %v5781 = vunpack.c.l.b16 %v5519
        %v5782 = vunpack.c.h.b16 %v5519
        %v5783 = vunpack.c.l.b16 %v5520
        %v5784 = vunpack.c.h.b16 %v5520
        %v5785 = vunpack.c.l.b16 %v5521
        %v5786 = vunpack.c.h.b16 %v5521
        %v5787 = vunpack.c.l.b16 %v5522
        %v5788 = vunpack.c.h.b16 %v5522
        %v5789 = vunpack.c.l.b16 %v5523
        %v5790 = vunpack.c.h.b16 %v5523
        %v5791 = vunpack.c.l.b16 %v5524
        %v5792 = vunpack.c.h.b16 %v5524
        %v5793 = vunpack.c.l.b16 %v5525
        %v5794 = vunpack.c.h.b16 %v5525
        %v5795 = vunpack.c.l.b16 %v5526
        %v5796 = vunpack.c.h.b16 %v5526
        %v5797 = vunpack.c.l.b16 %v5527
        %v5798 = vunpack.c.h.b16 %v5527
        %v5799 = vunpack.c.l.b16 %v5528
        %v5800 = vunpack.c.h.b16 %v5528
        %v5801 = vunpack.c.l.b16 %v5529
        %v5802 = vunpack.c.h.b16 %v5529
        %v5803 = vunpack.c.l.b16 %v5530
        %v5804 = vunpack.c.h.b16 %v5530
        %v5805 = vunpack.c.l.b16 %v5531
        %v5806 = vunpack.c.h.b16 %v5531
        %v5807 = vunpack.c.l.b16 %v5532
        %v5808 = vunpack.c.h.b16 %v5532
        %v5809 = vunpack.c.l.b16 %v5533
        %v5810 = vunpack.c.h.b16 %v5533
        %v5811 = vunpack.c.l.b16 %v5534
        %v5812 = vunpack.c.h.b16 %v5534
        %v5813 = vunpack.c.l.b16 %v5535
        %v5814 = vunpack.c.h.b16 %v5535
        %v5815 = vunpack.c.l.b16 %v5536
        %v5816 = vunpack.c.h.b16 %v5536
        %v5817 = vunpack.c.l.b16 %v5537
        %v5818 = vunpack.c.h.b16 %v5537
        %v5819 = vunpack.c.l.b16 %v5538
        %v5820 = vunpack.c.h.b16 %v5538
        %v5821 = vunpack.c.l.b16 %v5539
        %v5822 = vunpack.c.h.b16 %v5539
        %v5823 = vunpack.c.l.b16 %v5540
        %v5824 = vunpack.c.h.b16 %v5540
        %v5825 = vunpack.c.l.b16 %v5541
        %v5826 = vunpack.c.h.b16 %v5541
        %v5827 = vunpack.c.l.b16 %v5542
        %v5828 = vunpack.c.h.b16 %v5542
        %v5829 = vunpack.c.l.b16 %v5543
        %v5830 = vunpack.c.h.b16 %v5543
        %v5831 = vunpack.c.l.b16 %v5544
        %v5832 = vunpack.c.h.b16 %v5544
        %v5833 = vunpack.c.l.b16 %v5545
        %v5834 = vunpack.c.h.b16 %v5545
        %v5835 = vunpack.c.l.b16 %v5546
        %v5836 = vunpack.c.h.b16 %v5546
        %v5837 = vunpack.c.l.b16 %v5547
        %v5838 = vunpack.c.h.b16 %v5547
        %v5839 = vunpack.c.l.b16 %v5548
        %v5840 = vunpack.c.h.b16 %v5548
        %v5841 = vunpack.c.l.b16 %v5549
        %v5842 = vunpack.c.h.b16 %v5549
        %v5843 = vunpack.c.l.b16 %v5550
        %v5844 = vunpack.c.h.b16 %v5550
        %v5845 = vunpack.c.l.b16 %v5551
        %v5846 = vunpack.c.h.b16 %v5551
        %v5847 = vunpack.c.l.b16 %v5552
        %v5848 = vunpack.c.h.b16 %v5552
        %v5849 = vunpack.c.l.b16 %v5553
        %v5850 = vunpack.c.h.b16 %v5553
        %v5851 = vunpack.c.l.b16 %v5554
        %v5852 = vunpack.c.h.b16 %v5554
        %v5853 = vunpack.c.l.b16 %v5555
        %v5854 = vunpack.c.h.b16 %v5555
        %v5855 = vunpack.c.l.b16 %v5556
        %v5856 = vunpack.c.h.b16 %v5556
        %v5857 = vunpack.c.l.b16 %v5557
        %v5858 = vunpack.c.h.b16 %v5557
        %v5859 = vunpack.c.l.b16 %v5558
        %v5860 = vunpack.c.h.b16 %v5558
        %v5861 = vunpack.c.l.b16 %v5559
        %v5862 = vunpack.c.h.b16 %v5559
        %v5863 = vunpack.c.l.b16 %v5560
        %v5864 = vunpack.c.h.b16 %v5560
        %v5865 = vunpack.c.l.b16 %v5561
        %v5866 = vunpack.c.h.b16 %v5561
        %v5867 = vunpack.c.l.b16 %v5562
        %v5868 = vunpack.c.h.b16 %v5562
        %v5869 = vunpack.c.l.b16 %v5563
        %v5870 = vunpack.c.h.b16 %v5563
        %v5871 = vunpack.c.l.b16 %v5564
        %v5872 = vunpack.c.h.b16 %v5564
        %v5873 = vunpack.c.l.b16 %v5565
        %v5874 = vunpack.c.h.b16 %v5565
        %v5875 = vunpack.c.l.b16 %v5566
        %v5876 = vunpack.c.h.b16 %v5566
        %v5877 = vunpack.c.l.b16 %v5567
        %v5878 = vunpack.c.h.b16 %v5567
        %v5879 = vunpack.c.l.b16 %v5568
        %v5880 = vunpack.c.h.b16 %v5568
        %v5881 = vunpack.c.l.b16 %v5569
        %v5882 = vunpack.c.h.b16 %v5569
        %v5883 = vunpack.c.l.b16 %v5570
        %v5884 = vunpack.c.h.b16 %v5570
        %v5885 = vunpack.c.l.b16 %v5571
        %v5886 = vunpack.c.h.b16 %v5571
        %v5887 = vunpack.c.l.b16 %v5572
        %v5888 = vunpack.c.h.b16 %v5572
        %v5889 = vunpack.c.l.b16 %v5573
        %v5890 = vunpack.c.h.b16 %v5573
        %v5891 = vunpack.c.l.b16 %v5574
        %v5892 = vunpack.c.h.b16 %v5574
        %v5893 = vunpack.c.l.b16 %v5575
        %v5894 = vunpack.c.h.b16 %v5575
        %v5895 = vunpack.c.l.b16 %v5576
        %v5896 = vunpack.c.h.b16 %v5576
        %v5897 = vunpack.c.l.b16 %v5577
        %v5898 = vunpack.c.h.b16 %v5577
        %v5899 = vunpack.c.l.b16 %v5578
        %v5900 = vunpack.c.h.b16 %v5578
        %v5901 = vunpack.c.l.b16 %v5579
        %v5902 = vunpack.c.h.b16 %v5579
        %v5903 = vunpack.c.l.b16 %v5580
        %v5904 = vunpack.c.h.b16 %v5580
        %v5905 = vunpack.c.l.b16 %v5581
        %v5906 = vunpack.c.h.b16 %v5581
        %v5907 = vunpack.c.l.b16 %v5582
        %v5908 = vunpack.c.h.b16 %v5582
        %v5909 = vunpack.c.l.b16 %v5583
        %v5910 = vunpack.c.h.b16 %v5583
        %v5911 = vunpack.c.l.b16 %v5584
        %v5912 = vunpack.c.h.b16 %v5584
        %v5913 = vunpack.c.l.b16 %v5585
        %v5914 = vunpack.c.h.b16 %v5585
        %v5915 = vunpack.c.l.b16 %v5586
        %v5916 = vunpack.c.h.b16 %v5586
        %v5917 = vunpack.c.l.b16 %v5587
        %v5918 = vunpack.c.h.b16 %v5587
        %v5919 = vunpack.c.l.b16 %v5588
        %v5920 = vunpack.c.h.b16 %v5588
        %v5921 = vunpack.c.l.b16 %v5589
        %v5922 = vunpack.c.h.b16 %v5589
        %v5923 = vunpack.c.l.b16 %v5590
        %v5924 = vunpack.c.h.b16 %v5590
        %v5925 = vunpack.c.l.b16 %v5591
        %v5926 = vunpack.c.h.b16 %v5591
        %v5927 = vunpack.c.l.b16 %v5592
        %v5928 = vunpack.c.h.b16 %v5592
        %v5929 = vunpack.c.l.b16 %v5593
        %v5930 = vunpack.c.h.b16 %v5593
        %v5931 = vunpack.c.l.b16 %v5594
        %v5932 = vunpack.c.h.b16 %v5594
        %v5933 = vunpack.c.l.b16 %v5595
        %v5934 = vunpack.c.h.b16 %v5595
        %v5935 = vunpack.c.l.b16 %v5596
        %v5936 = vunpack.c.h.b16 %v5596
        %v5937 = vunpack.c.l.b16 %v5597
        %v5938 = vunpack.c.h.b16 %v5597
        %v5939 = vunpack.c.l.b16 %v5598
        %v5940 = vunpack.c.h.b16 %v5598
        %v5941 = vunpack.c.l.b16 %v5599
        %v5942 = vunpack.c.h.b16 %v5599
        %v5943 = vunpack.c.l.b16 %v5600
        %v5944 = vunpack.c.h.b16 %v5600
        %v5945 = vunpack.c.l.b16 %v5601
        %v5946 = vunpack.c.h.b16 %v5601
        %v5947 = vunpack.c.l.b16 %v5602
        %v5948 = vunpack.c.h.b16 %v5602
        %v5949 = vunpack.c.l.b16 %v5603
        %v5950 = vunpack.c.h.b16 %v5603
        %v5951 = vunpack.c.l.b16 %v5604
        %v5952 = vunpack.c.h.b16 %v5604
        %v5953 = vunpack.c.l.b16 %v5605
        %v5954 = vunpack.c.h.b16 %v5605
        %v5955 = vunpack.c.l.b16 %v5606
        %v5956 = vunpack.c.h.b16 %v5606
        %v5957 = vunpack.c.l.b16 %v5607
        %v5958 = vunpack.c.h.b16 %v5607
        %v5959 = vunpack.c.l.b16 %v5608
        %v5960 = vunpack.c.h.b16 %v5608
        %v5961 = vunpack.c.l.b16 %v5609
        %v5962 = vunpack.c.h.b16 %v5609
        %v5963 = vunpack.c.l.b16 %v5610
        %v5964 = vunpack.c.h.b16 %v5610
        %v5965 = vunpack.c.l.b16 %v5611
        %v5966 = vunpack.c.h.b16 %v5611
        %v5967 = vunpack.c.l.b16 %v5612
        %v5968 = vunpack.c.h.b16 %v5612
        %v5969 = vunpack.c.l.b16 %v5613
        %v5970 = vunpack.c.h.b16 %v5613
        %v5971 = vunpack.c.l.b16 %v5614
        %v5972 = vunpack.c.h.b16 %v5614
        %v5973 = vunpack.c.l.b16 %v5615
        %v5974 = vunpack.c.h.b16 %v5615
        %v5975 = vunpack.c.l.b16 %v5616
        %v5976 = vunpack.c.h.b16 %v5616
        %v5977 = vunpack.c.l.b16 %v5617
        %v5978 = vunpack.c.h.b16 %v5617
        %v5979 = vunpack.c.l.b16 %v5618
        %v5980 = vunpack.c.h.b16 %v5618
        %v5981 = vunpack.c.l.b16 %v5619
        %v5982 = vunpack.c.h.b16 %v5619
        %v5983 = vunpack.c.l.b16 %v5620
        %v5984 = vunpack.c.h.b16 %v5620
        %v5985 = vunpack.c.l.b16 %v5621
        %v5986 = vunpack.c.h.b16 %v5621
        %v5987 = vunpack.c.l.b16 %v5622
        %v5988 = vunpack.c.h.b16 %v5622
        %v5989 = vunpack.c.l.b16 %v5623
        %v5990 = vunpack.c.h.b16 %v5623
        %v5991 = vunpack.c.l.b16 %v5624
        %v5992 = vunpack.c.h.b16 %v5624
        %v5993 = vunpack.c.l.b16 %v5625
        %v5994 = vunpack.c.h.b16 %v5625
        %v5995 = vunpack.c.l.b16 %v5626
        %v5996 = vunpack.c.h.b16 %v5626
        %v5997 = vunpack.c.l.b16 %v5627
        %v5998 = vunpack.c.h.b16 %v5627
        %v5999 = vunpack.c.l.b16 %v5628
        %v6000 = vunpack.c.h.b16 %v5628
        %v6001 = vunpack.c.l.b16 %v5629
        %v6002 = vunpack.c.h.b16 %v5629
        %v6003 = vunpack.c.l.b16 %v5630
        %v6004 = vunpack.c.h.b16 %v5630
        %v6005 = vunpack.c.l.b16 %v5631
        %v6006 = vunpack.c.h.b16 %v5631
        %v6007 = vunpack.c.l.b16 %v5632
        %v6008 = vunpack.c.h.b16 %v5632
        %v6009 = vunpack.c.l.b16 %v5633
        %v6010 = vunpack.c.h.b16 %v5633
        %v6011 = vunpack.c.l.b16 %v5634
        %v6012 = vunpack.c.h.b16 %v5634
        %v6013 = vunpack.c.l.b16 %v5635
        %v6014 = vunpack.c.h.b16 %v5635
        %v6015 = vunpack.c.l.b16 %v5636
        %v6016 = vunpack.c.h.b16 %v5636
        %v6017 = vunpack.c.l.b16 %v5637
        %v6018 = vunpack.c.h.b16 %v5637
        %v6019 = vunpack.c.l.b16 %v5638
        %v6020 = vunpack.c.h.b16 %v5638
        %v6021 = vunpack.c.l.b16 %v5639
        %v6022 = vunpack.c.h.b16 %v5639
        %v6023 = vunpack.c.l.b16 %v5640
        %v6024 = vunpack.c.h.b16 %v5640
        %v6025 = vpack.c.b16 %v5777, %v5769
        %v6026 = vpack.c.b16 %v5778, %v5770
        %v6027 = vpack.c.b16 %v5779, %v5771
        %v6028 = vpack.c.b16 %v5780, %v5772
        %v6029 = vpack.c.b16 %v5781, %v5773
        %v6030 = vpack.c.b16 %v5782, %v5774
        %v6031 = vpack.c.b16 %v5783, %v5775
        %v6032 = vpack.c.b16 %v5784, %v5776
        %v6033 = vpack.c.b16 %v5793, %v5785
        %v6034 = vpack.c.b16 %v5794, %v5786
        %v6035 = vpack.c.b16 %v5795, %v5787
        %v6036 = vpack.c.b16 %v5796, %v5788
        %v6037 = vpack.c.b16 %v5797, %v5789
        %v6038 = vpack.c.b16 %v5798, %v5790
        %v6039 = vpack.c.b16 %v5799, %v5791
        %v6040 = vpack.c.b16 %v5800, %v5792
        %v6041 = vpack.c.b16 %v5809, %v5801
        %v6042 = vpack.c.b16 %v5810, %v5802
        %v6043 = vpack.c.b16 %v5811, %v5803
        %v6044 = vpack.c.b16 %v5812, %v5804
        %v6045 = vpack.c.b16 %v5813, %v5805
        %v6046 = vpack.c.b16 %v5814, %v5806
        %v6047 = vpack.c.b16 %v5815, %v5807
        %v6048 = vpack.c.b16 %v5816, %v5808
        %v6049 = vpack.c.b16 %v5825, %v5817
        %v6050 = vpack.c.b16 %v5826, %v5818
        %v6051 = vpack.c.b16 %v5827, %v5819
        %v6052 = vpack.c.b16 %v5828, %v5820
        %v6053 = vpack.c.b16 %v5829, %v5821
        %v6054 = vpack.c.b16 %v5830, %v5822
        %v6055 = vpack.c.b16 %v5831, %v5823
        %v6056 = vpack.c.b16 %v5832, %v5824
        %v6057 = vpack.c.b16 %v5841, %v5833
        %v6058 = vpack.c.b16 %v5842, %v5834
        %v6059 = vpack.c.b16 %v5843, %v5835
        %v6060 = vpack.c.b16 %v5844, %v5836
        %v6061 = vpack.c.b16 %v5845, %v5837
        %v6062 = vpack.c.b16 %v5846, %v5838
        %v6063 = vpack.c.b16 %v5847, %v5839
        %v6064 = vpack.c.b16 %v5848, %v5840
        %v6065 = vpack.c.b16 %v5857, %v5849
        %v6066 = vpack.c.b16 %v5858, %v5850
        %v6067 = vpack.c.b16 %v5859, %v5851
        %v6068 = vpack.c.b16 %v5860, %v5852
        %v6069 = vpack.c.b16 %v5861, %v5853
        %v6070 = vpack.c.b16 %v5862, %v5854
        %v6071 = vpack.c.b16 %v5863, %v5855
        %v6072 = vpack.c.b16 %v5864, %v5856
        %v6073 = vpack.c.b16 %v5873, %v5865
        %v6074 = vpack.c.b16 %v5874, %v5866
        %v6075 = vpack.c.b16 %v5875, %v5867
        %v6076 = vpack.c.b16 %v5876, %v5868
        %v6077 = vpack.c.b16 %v5877, %v5869
        %v6078 = vpack.c.b16 %v5878, %v5870
        %v6079 = vpack.c.b16 %v5879, %v5871
        %v6080 = vpack.c.b16 %v5880, %v5872
        %v6081 = vpack.c.b16 %v5889, %v5881
        %v6082 = vpack.c.b16 %v5890, %v5882
        %v6083 = vpack.c.b16 %v5891, %v5883
        %v6084 = vpack.c.b16 %v5892, %v5884
        %v6085 = vpack.c.b16 %v5893, %v5885
        %v6086 = vpack.c.b16 %v5894, %v5886
        %v6087 = vpack.c.b16 %v5895, %v5887
        %v6088 = vpack.c.b16 %v5896, %v5888
        %v6089 = vpack.c.b16 %v5905, %v5897
        %v6090 = vpack.c.b16 %v5906, %v5898
        %v6091 = vpack.c.b16 %v5907, %v5899
        %v6092 = vpack.c.b16 %v5908, %v5900
        %v6093 = vpack.c.b16 %v5909, %v5901
        %v6094 = vpack.c.b16 %v5910, %v5902
        %v6095 = vpack.c.b16 %v5911, %v5903
        %v6096 = vpack.c.b16 %v5912, %v5904
        %v6097 = vpack.c.b16 %v5921, %v5913
        %v6098 = vpack.c.b16 %v5922, %v5914
        %v6099 = vpack.c.b16 %v5923, %v5915
        %v6100 = vpack.c.b16 %v5924, %v5916
        %v6101 = vpack.c.b16 %v5925, %v5917
        %v6102 = vpack.c.b16 %v5926, %v5918
        %v6103 = vpack.c.b16 %v5927, %v5919
        %v6104 = vpack.c.b16 %v5928, %v5920
        %v6105 = vpack.c.b16 %v5937, %v5929
        %v6106 = vpack.c.b16 %v5938, %v5930
        %v6107 = vpack.c.b16 %v5939, %v5931
        %v6108 = vpack.c.b16 %v5940, %v5932
        %v6109 = vpack.c.b16 %v5941, %v5933
        %v6110 = vpack.c.b16 %v5942, %v5934
        %v6111 = vpack.c.b16 %v5943, %v5935
        %v6112 = vpack.c.b16 %v5944, %v5936
        %v6113 = vpack.c.b16 %v5953, %v5945
        %v6114 = vpack.c.b16 %v5954, %v5946
        %v6115 = vpack.c.b16 %v5955, %v5947
        %v6116 = vpack.c.b16 %v5956, %v5948
        %v6117 = vpack.c.b16 %v5957, %v5949
        %v6118 = vpack.c.b16 %v5958, %v5950
        %v6119 = vpack.c.b16 %v5959, %v5951
        %v6120 = vpack.c.b16 %v5960, %v5952
        %v6121 = vpack.c.b16 %v5969, %v5961
        %v6122 = vpack.c.b16 %v5970, %v5962
        %v6123 = vpack.c.b16 %v5971, %v5963
        %v6124 = vpack.c.b16 %v5972, %v5964
        %v6125 = vpack.c.b16 %v5973, %v5965
        %v6126 = vpack.c.b16 %v5974, %v5966
        %v6127 = vpack.c.b16 %v5975, %v5967
        %v6128 = vpack.c.b16 %v5976, %v5968
        %v6129 = vpack.c.b16 %v5985, %v5977
        %v6130 = vpack.c.b16 %v5986, %v5978
        %v6131 = vpack.c.b16 %v5987, %v5979
        %v6132 = vpack.c.b16 %v5988, %v5980
        %v6133 = vpack.c.b16 %v5989, %v5981
        %v6134 = vpack.c.b16 %v5990, %v5982
        %v6135 = vpack.c.b16 %v5991, %v5983
        %v6136 = vpack.c.b16 %v5992, %v5984
        %v6137 = vpack.c.b16 %v6001, %v5993
        %v6138 = vpack.c.b16 %v6002, %v5994
        %v6139 = vpack.c.b16 %v6003, %v5995
        %v6140 = vpack.c.b16 %v6004, %v5996
        %v6141 = vpack.c.b16 %v6005, %v5997
        %v6142 = vpack.c.b16 %v6006, %v5998
        %v6143 = vpack.c.b16 %v6007, %v5999
        %v6144 = vpack.c.b16 %v6008, %v6000
        %v6145 = vpack.c.b16 %v6017, %v6009
        %v6146 = vpack.c.b16 %v6018, %v6010
        %v6147 = vpack.c.b16 %v6019, %v6011
        %v6148 = vpack.c.b16 %v6020, %v6012
        %v6149 = vpack.c.b16 %v6021, %v6013
        %v6150 = vpack.c.b16 %v6022, %v6014
        %v6151 = vpack.c.b16 %v6023, %v6015
        %v6152 = vpack.c.b16 %v6024, %v6016
        %6281 = vmatprep.subr.bf16.mxu0 %v6026
        %6282 = vmatpush1.bf16.msra.mxu0 %v6025
        %6283 = vmatprep.subr.bf16.mxu0 %v6034
        %6284 = vmatpush1.bf16.msra.mxu0 %v6033
        %6285 = vmatprep.subr.bf16.mxu0 %v6042
        %6286 = vmatpush1.bf16.msra.mxu0 %v6041
        %6287 = vmatprep.subr.bf16.mxu0 %v6050
        %6288 = vmatpush1.bf16.msra.mxu0 %v6049
        %6289 = vmatprep.subr.bf16.mxu0 %v6058
        %6290 = vmatpush1.bf16.msra.mxu0 %v6057
        %6291 = vmatprep.subr.bf16.mxu0 %v6066
        %6292 = vmatpush1.bf16.msra.mxu0 %v6065
        %6293 = vmatprep.subr.bf16.mxu0 %v6074
        %6294 = vmatpush1.bf16.msra.mxu0 %v6073
        %6295 = vmatprep.subr.bf16.mxu0 %v6082
        %6296 = vmatpush1.bf16.msra.mxu0 %v6081
        %6297 = vmatprep.subr.bf16.mxu0 %v6090
        %6298 = vmatpush1.bf16.msra.mxu0 %v6089
        %6299 = vmatprep.subr.bf16.mxu0 %v6098
        %6300 = vmatpush1.bf16.msra.mxu0 %v6097
        %6301 = vmatprep.subr.bf16.mxu0 %v6106
        %6302 = vmatpush1.bf16.msra.mxu0 %v6105
        %6303 = vmatprep.subr.bf16.mxu0 %v6114
        %6304 = vmatpush1.bf16.msra.mxu0 %v6113
        %6305 = vmatprep.subr.bf16.mxu0 %v6122
        %6306 = vmatpush1.bf16.msra.mxu0 %v6121
        %6307 = vmatprep.subr.bf16.mxu0 %v6130
        %6308 = vmatpush1.bf16.msra.mxu0 %v6129
        %6309 = vmatprep.subr.bf16.mxu0 %v6138
        %6310 = vmatpush1.bf16.msra.mxu0 %v6137
        %6311 = vmatprep.subr.bf16.mxu0 %v6146
        %6312 = vmatpush1.bf16.msra.mxu0 %v6145
        %6313 = vmatprep.mubr.bf16.mxu0 %v4011
        %6314 = vmatmul.mubr.bf16.gmra.mrb[0].mxu0 %v4010
        %v6315 = vpop.f32.mrb[0].mxu0
        %v6316 = vadd.f32 0.0, %v6315
        %v6317 = vpop.f32.mrb[0].mxu0
        %v6318 = vadd.f32 0.0, %v6317
        %v6319 = vpop.f32.mrb[0].mxu0
        %v6320 = vadd.f32 0.0, %v6319
        %v6321 = vpop.f32.mrb[0].mxu0
        %v6322 = vadd.f32 0.0, %v6321
        %6323 = vmatprep.mubr.bf16.mxu0 %v4013
        %6324 = vmatmul.mubr.bf16.gmra.mrb[0].mxu0 %v4012
        %v6325 = vpop.f32.mrb[0].mxu0
        %v6326 = vadd.f32 0.0, %v6325
        %v6327 = vpop.f32.mrb[0].mxu0
        %v6328 = vadd.f32 0.0, %v6327
        %v6329 = vpop.f32.mrb[0].mxu0
        %v6330 = vadd.f32 0.0, %v6329
        %v6331 = vpop.f32.mrb[0].mxu0
        %v6332 = vadd.f32 0.0, %v6331
        %6333 = vmatprep.mubr.bf16.mxu0 %v4015
        %6334 = vmatmul.mubr.bf16.gmra.mrb[0].mxu0 %v4014
        %v6335 = vpop.f32.mrb[0].mxu0
        %v6336 = vadd.f32 0.0, %v6335
        %v6337 = vpop.f32.mrb[0].mxu0
        %v6338 = vadd.f32 0.0, %v6337
        %v6339 = vpop.f32.mrb[0].mxu0
        %v6340 = vadd.f32 0.0, %v6339
        %v6341 = vpop.f32.mrb[0].mxu0
        %v6342 = vadd.f32 0.0, %v6341
        %6343 = vmatprep.mubr.bf16.mxu0 %v4017
        %6344 = vmatmul.mubr.bf16.gmra.mrb[0].mxu0 %v4016
        %v6345 = vpop.f32.mrb[0].mxu0
        %v6346 = vadd.f32 0.0, %v6345
        %v6347 = vpop.f32.mrb[0].mxu0
        %v6348 = vadd.f32 0.0, %v6347
        %v6349 = vpop.f32.mrb[0].mxu0
        %v6350 = vadd.f32 0.0, %v6349
        %v6351 = vpop.f32.mrb[0].mxu0
        %v6352 = vadd.f32 0.0, %v6351
        %6353 = vmatprep.mubr.bf16.mxu0 %v4019
        %6354 = vmatmul.mubr.bf16.gmra.mrb[0].mxu0 %v4018
        %v6355 = vpop.f32.mrb[0].mxu0
        %v6356 = vadd.f32 0.0, %v6355
        %v6357 = vpop.f32.mrb[0].mxu0
        %v6358 = vadd.f32 0.0, %v6357
        %v6359 = vpop.f32.mrb[0].mxu0
        %v6360 = vadd.f32 0.0, %v6359
        %v6361 = vpop.f32.mrb[0].mxu0
        %v6362 = vadd.f32 0.0, %v6361
        %6363 = vmatprep.mubr.bf16.mxu0 %v4021
        %6364 = vmatmul.mubr.bf16.gmra.mrb[0].mxu0 %v4020
        %v6365 = vpop.f32.mrb[0].mxu0
        %v6366 = vadd.f32 0.0, %v6365
        %v6367 = vpop.f32.mrb[0].mxu0
        %v6368 = vadd.f32 0.0, %v6367
        %v6369 = vpop.f32.mrb[0].mxu0
        %v6370 = vadd.f32 0.0, %v6369
        %v6371 = vpop.f32.mrb[0].mxu0
        %v6372 = vadd.f32 0.0, %v6371
        %6373 = vmatprep.mubr.bf16.mxu0 %v4023
        %6374 = vmatmul.mubr.bf16.gmra.mrb[0].mxu0 %v4022
        %v6375 = vpop.f32.mrb[0].mxu0
        %v6376 = vadd.f32 0.0, %v6375
        %v6377 = vpop.f32.mrb[0].mxu0
        %v6378 = vadd.f32 0.0, %v6377
        %v6379 = vpop.f32.mrb[0].mxu0
        %v6380 = vadd.f32 0.0, %v6379
        %v6381 = vpop.f32.mrb[0].mxu0
        %v6382 = vadd.f32 0.0, %v6381
        %6383 = vmatprep.mubr.bf16.mxu0 %v4025
        %6384 = vmatmul.mubr.bf16.gmra.mrb[0].mxu0 %v4024
        %v6385 = vpop.f32.mrb[0].mxu0
        %v6386 = vadd.f32 0.0, %v6385
        %v6387 = vpop.f32.mrb[0].mxu0
        %v6388 = vadd.f32 0.0, %v6387
        %v6389 = vpop.f32.mrb[0].mxu0
        %v6390 = vadd.f32 0.0, %v6389
        %v6391 = vpop.f32.mrb[0].mxu0
        %v6392 = vadd.f32 0.0, %v6391
        %6393 = vmatprep.mubr.bf16.mxu0 %v4027
        %6394 = vmatmul.mubr.bf16.gmra.mrb[0].mxu0 %v4026
        %v6395 = vpop.f32.mrb[0].mxu0
        %v6396 = vadd.f32 0.0, %v6395
        %v6397 = vpop.f32.mrb[0].mxu0
        %v6398 = vadd.f32 0.0, %v6397
        %v6399 = vpop.f32.mrb[0].mxu0
        %v6400 = vadd.f32 0.0, %v6399
        %v6401 = vpop.f32.mrb[0].mxu0
        %v6402 = vadd.f32 0.0, %v6401
        %6403 = vmatprep.mubr.bf16.mxu0 %v4029
        %6404 = vmatmul.mubr.bf16.gmra.mrb[0].mxu0 %v4028
        %v6405 = vpop.f32.mrb[0].mxu0
        %v6406 = vadd.f32 0.0, %v6405
        %v6407 = vpop.f32.mrb[0].mxu0
        %v6408 = vadd.f32 0.0, %v6407
        %v6409 = vpop.f32.mrb[0].mxu0
        %v6410 = vadd.f32 0.0, %v6409
        %v6411 = vpop.f32.mrb[0].mxu0
        %v6412 = vadd.f32 0.0, %v6411
        %6413 = vmatprep.mubr.bf16.mxu0 %v4031
        %6414 = vmatmul.mubr.bf16.gmra.mrb[0].mxu0 %v4030
        %v6415 = vpop.f32.mrb[0].mxu0
        %v6416 = vadd.f32 0.0, %v6415
        %v6417 = vpop.f32.mrb[0].mxu0
        %v6418 = vadd.f32 0.0, %v6417
        %v6419 = vpop.f32.mrb[0].mxu0
        %v6420 = vadd.f32 0.0, %v6419
        %v6421 = vpop.f32.mrb[0].mxu0
        %v6422 = vadd.f32 0.0, %v6421
        %6423 = vmatprep.mubr.bf16.mxu0 %v4033
        %6424 = vmatmul.mubr.bf16.gmra.mrb[0].mxu0 %v4032
        %v6425 = vpop.f32.mrb[0].mxu0
        %v6426 = vadd.f32 0.0, %v6425
        %v6427 = vpop.f32.mrb[0].mxu0
        %v6428 = vadd.f32 0.0, %v6427
        %v6429 = vpop.f32.mrb[0].mxu0
        %v6430 = vadd.f32 0.0, %v6429
        %v6431 = vpop.f32.mrb[0].mxu0
        %v6432 = vadd.f32 0.0, %v6431
        %6433 = vmatprep.mubr.bf16.mxu0 %v4035
        %6434 = vmatmul.mubr.bf16.gmra.mrb[0].mxu0 %v4034
        %v6435 = vpop.f32.mrb[0].mxu0
        %v6436 = vadd.f32 0.0, %v6435
        %v6437 = vpop.f32.mrb[0].mxu0
        %v6438 = vadd.f32 0.0, %v6437
        %v6439 = vpop.f32.mrb[0].mxu0
        %v6440 = vadd.f32 0.0, %v6439
        %v6441 = vpop.f32.mrb[0].mxu0
        %v6442 = vadd.f32 0.0, %v6441
        %6443 = vmatprep.mubr.bf16.mxu0 %v4037
        %6444 = vmatmul.mubr.bf16.gmra.mrb[0].mxu0 %v4036
        %v6445 = vpop.f32.mrb[0].mxu0
        %v6446 = vadd.f32 0.0, %v6445
        %v6447 = vpop.f32.mrb[0].mxu0
        %v6448 = vadd.f32 0.0, %v6447
        %v6449 = vpop.f32.mrb[0].mxu0
        %v6450 = vadd.f32 0.0, %v6449
        %v6451 = vpop.f32.mrb[0].mxu0
        %v6452 = vadd.f32 0.0, %v6451
        %6453 = vmatprep.mubr.bf16.mxu0 %v4039
        %6454 = vmatmul.mubr.bf16.gmra.mrb[0].mxu0 %v4038
        %v6455 = vpop.f32.mrb[0].mxu0
        %v6456 = vadd.f32 0.0, %v6455
        %v6457 = vpop.f32.mrb[0].mxu0
        %v6458 = vadd.f32 0.0, %v6457
        %v6459 = vpop.f32.mrb[0].mxu0
        %v6460 = vadd.f32 0.0, %v6459
        %v6461 = vpop.f32.mrb[0].mxu0
        %v6462 = vadd.f32 0.0, %v6461
        %6463 = vmatprep.mubr.bf16.mxu0 %v4041
        %6464 = vmatmul.mubr.bf16.gmra.mrb[0].mxu0 %v4040
        %v6465 = vpop.f32.mrb[0].mxu0
        %v6466 = vadd.f32 0.0, %v6465
        %v6467 = vpop.f32.mrb[0].mxu0
        %v6468 = vadd.f32 0.0, %v6467
        %v6469 = vpop.f32.mrb[0].mxu0
        %v6470 = vadd.f32 0.0, %v6469
        %v6471 = vpop.f32.mrb[0].mxu0
        %v6472 = vadd.f32 0.0, %v6471
        %6473 = vdwg.mxu0
        %6474 = vmatprep.subr.bf16.mxu0 %v6028
        %6475 = vmatpush1.bf16.msra.mxu0 %v6027
        %6476 = vmatprep.subr.bf16.mxu0 %v6036
        %6477 = vmatpush1.bf16.msra.mxu0 %v6035
        %6478 = vmatprep.subr.bf16.mxu0 %v6044
        %6479 = vmatpush1.bf16.msra.mxu0 %v6043
        %6480 = vmatprep.subr.bf16.mxu0 %v6052
        %6481 = vmatpush1.bf16.msra.mxu0 %v6051
        %6482 = vmatprep.subr.bf16.mxu0 %v6060
        %6483 = vmatpush1.bf16.msra.mxu0 %v6059
        %6484 = vmatprep.subr.bf16.mxu0 %v6068
        %6485 = vmatpush1.bf16.msra.mxu0 %v6067
        %6486 = vmatprep.subr.bf16.mxu0 %v6076
        %6487 = vmatpush1.bf16.msra.mxu0 %v6075
        %6488 = vmatprep.subr.bf16.mxu0 %v6084
        %6489 = vmatpush1.bf16.msra.mxu0 %v6083
        %6490 = vmatprep.subr.bf16.mxu0 %v6092
        %6491 = vmatpush1.bf16.msra.mxu0 %v6091
        %6492 = vmatprep.subr.bf16.mxu0 %v6100
        %6493 = vmatpush1.bf16.msra.mxu0 %v6099
        %6494 = vmatprep.subr.bf16.mxu0 %v6108
        %6495 = vmatpush1.bf16.msra.mxu0 %v6107
        %6496 = vmatprep.subr.bf16.mxu0 %v6116
        %6497 = vmatpush1.bf16.msra.mxu0 %v6115
        %6498 = vmatprep.subr.bf16.mxu0 %v6124
        %6499 = vmatpush1.bf16.msra.mxu0 %v6123
        %6500 = vmatprep.subr.bf16.mxu0 %v6132
        %6501 = vmatpush1.bf16.msra.mxu0 %v6131
        %6502 = vmatprep.subr.bf16.mxu0 %v6140
        %6503 = vmatpush1.bf16.msra.mxu0 %v6139
        %6504 = vmatprep.subr.bf16.mxu0 %v6148
        %6505 = vmatpush1.bf16.msra.mxu0 %v6147
        %6506 = vmatprep.mubr.bf16.mxu0 %v4011
        %6507 = vmatmul.mubr.bf16.gmra.mrb[0].mxu0 %v4010
        %v6508 = vpop.f32.mrb[0].mxu0
        %v6509 = vadd.f32 0.0, %v6508
        %v6510 = vpop.f32.mrb[0].mxu0
        %v6511 = vadd.f32 0.0, %v6510
        %v6512 = vpop.f32.mrb[0].mxu0
        %v6513 = vadd.f32 0.0, %v6512
        %v6514 = vpop.f32.mrb[0].mxu0
        %v6515 = vadd.f32 0.0, %v6514
        %6516 = vmatprep.mubr.bf16.mxu0 %v4013
        %6517 = vmatmul.mubr.bf16.gmra.mrb[0].mxu0 %v4012
        %v6518 = vpop.f32.mrb[0].mxu0
        %v6519 = vadd.f32 0.0, %v6518
        %v6520 = vpop.f32.mrb[0].mxu0
        %v6521 = vadd.f32 0.0, %v6520
        %v6522 = vpop.f32.mrb[0].mxu0
        %v6523 = vadd.f32 0.0, %v6522
        %v6524 = vpop.f32.mrb[0].mxu0
        %v6525 = vadd.f32 0.0, %v6524
        %6526 = vmatprep.mubr.bf16.mxu0 %v4015
        %6527 = vmatmul.mubr.bf16.gmra.mrb[0].mxu0 %v4014
        %v6528 = vpop.f32.mrb[0].mxu0
        %v6529 = vadd.f32 0.0, %v6528
        %v6530 = vpop.f32.mrb[0].mxu0
        %v6531 = vadd.f32 0.0, %v6530
        %v6532 = vpop.f32.mrb[0].mxu0
        %v6533 = vadd.f32 0.0, %v6532
        %v6534 = vpop.f32.mrb[0].mxu0
        %v6535 = vadd.f32 0.0, %v6534
        %6536 = vmatprep.mubr.bf16.mxu0 %v4017
        %6537 = vmatmul.mubr.bf16.gmra.mrb[0].mxu0 %v4016
        %v6538 = vpop.f32.mrb[0].mxu0
        %v6539 = vadd.f32 0.0, %v6538
        %v6540 = vpop.f32.mrb[0].mxu0
        %v6541 = vadd.f32 0.0, %v6540
        %v6542 = vpop.f32.mrb[0].mxu0
        %v6543 = vadd.f32 0.0, %v6542
        %v6544 = vpop.f32.mrb[0].mxu0
        %v6545 = vadd.f32 0.0, %v6544
        %6546 = vmatprep.mubr.bf16.mxu0 %v4019
        %6547 = vmatmul.mubr.bf16.gmra.mrb[0].mxu0 %v4018
        %v6548 = vpop.f32.mrb[0].mxu0
        %v6549 = vadd.f32 0.0, %v6548
        %v6550 = vpop.f32.mrb[0].mxu0
        %v6551 = vadd.f32 0.0, %v6550
        %v6552 = vpop.f32.mrb[0].mxu0
        %v6553 = vadd.f32 0.0, %v6552
        %v6554 = vpop.f32.mrb[0].mxu0
        %v6555 = vadd.f32 0.0, %v6554
        %6556 = vmatprep.mubr.bf16.mxu0 %v4021
        %6557 = vmatmul.mubr.bf16.gmra.mrb[0].mxu0 %v4020
        %v6558 = vpop.f32.mrb[0].mxu0
        %v6559 = vadd.f32 0.0, %v6558
        %v6560 = vpop.f32.mrb[0].mxu0
        %v6561 = vadd.f32 0.0, %v6560
        %v6562 = vpop.f32.mrb[0].mxu0
        %v6563 = vadd.f32 0.0, %v6562
        %v6564 = vpop.f32.mrb[0].mxu0
        %v6565 = vadd.f32 0.0, %v6564
        %6566 = vmatprep.mubr.bf16.mxu0 %v4023
        %6567 = vmatmul.mubr.bf16.gmra.mrb[0].mxu0 %v4022
        %v6568 = vpop.f32.mrb[0].mxu0
        %v6569 = vadd.f32 0.0, %v6568
        %v6570 = vpop.f32.mrb[0].mxu0
        %v6571 = vadd.f32 0.0, %v6570
        %v6572 = vpop.f32.mrb[0].mxu0
        %v6573 = vadd.f32 0.0, %v6572
        %v6574 = vpop.f32.mrb[0].mxu0
        %v6575 = vadd.f32 0.0, %v6574
        %6576 = vmatprep.mubr.bf16.mxu0 %v4025
        %6577 = vmatmul.mubr.bf16.gmra.mrb[0].mxu0 %v4024
        %v6578 = vpop.f32.mrb[0].mxu0
        %v6579 = vadd.f32 0.0, %v6578
        %v6580 = vpop.f32.mrb[0].mxu0
        %v6581 = vadd.f32 0.0, %v6580
        %v6582 = vpop.f32.mrb[0].mxu0
        %v6583 = vadd.f32 0.0, %v6582
        %v6584 = vpop.f32.mrb[0].mxu0
        %v6585 = vadd.f32 0.0, %v6584
        %6586 = vmatprep.mubr.bf16.mxu0 %v4027
        %6587 = vmatmul.mubr.bf16.gmra.mrb[0].mxu0 %v4026
        %v6588 = vpop.f32.mrb[0].mxu0
        %v6589 = vadd.f32 0.0, %v6588
        %v6590 = vpop.f32.mrb[0].mxu0
        %v6591 = vadd.f32 0.0, %v6590
        %v6592 = vpop.f32.mrb[0].mxu0
        %v6593 = vadd.f32 0.0, %v6592
        %v6594 = vpop.f32.mrb[0].mxu0
        %v6595 = vadd.f32 0.0, %v6594
        %6596 = vmatprep.mubr.bf16.mxu0 %v4029
        %6597 = vmatmul.mubr.bf16.gmra.mrb[0].mxu0 %v4028
        %v6598 = vpop.f32.mrb[0].mxu0
        %v6599 = vadd.f32 0.0, %v6598
        %v6600 = vpop.f32.mrb[0].mxu0
        %v6601 = vadd.f32 0.0, %v6600
        %v6602 = vpop.f32.mrb[0].mxu0
        %v6603 = vadd.f32 0.0, %v6602
        %v6604 = vpop.f32.mrb[0].mxu0
        %v6605 = vadd.f32 0.0, %v6604
        %6606 = vmatprep.mubr.bf16.mxu0 %v4031
        %6607 = vmatmul.mubr.bf16.gmra.mrb[0].mxu0 %v4030
        %v6608 = vpop.f32.mrb[0].mxu0
        %v6609 = vadd.f32 0.0, %v6608
        %v6610 = vpop.f32.mrb[0].mxu0
        %v6611 = vadd.f32 0.0, %v6610
        %v6612 = vpop.f32.mrb[0].mxu0
        %v6613 = vadd.f32 0.0, %v6612
        %v6614 = vpop.f32.mrb[0].mxu0
        %v6615 = vadd.f32 0.0, %v6614
        %6616 = vmatprep.mubr.bf16.mxu0 %v4033
        %6617 = vmatmul.mubr.bf16.gmra.mrb[0].mxu0 %v4032
        %v6618 = vpop.f32.mrb[0].mxu0
        %v6619 = vadd.f32 0.0, %v6618
        %v6620 = vpop.f32.mrb[0].mxu0
        %v6621 = vadd.f32 0.0, %v6620
        %v6622 = vpop.f32.mrb[0].mxu0
        %v6623 = vadd.f32 0.0, %v6622
        %v6624 = vpop.f32.mrb[0].mxu0
        %v6625 = vadd.f32 0.0, %v6624
        %6626 = vmatprep.mubr.bf16.mxu0 %v4035
        %6627 = vmatmul.mubr.bf16.gmra.mrb[0].mxu0 %v4034
        %v6628 = vpop.f32.mrb[0].mxu0
        %v6629 = vadd.f32 0.0, %v6628
        %v6630 = vpop.f32.mrb[0].mxu0
        %v6631 = vadd.f32 0.0, %v6630
        %v6632 = vpop.f32.mrb[0].mxu0
        %v6633 = vadd.f32 0.0, %v6632
        %v6634 = vpop.f32.mrb[0].mxu0
        %v6635 = vadd.f32 0.0, %v6634
        %6636 = vmatprep.mubr.bf16.mxu0 %v4037
        %6637 = vmatmul.mubr.bf16.gmra.mrb[0].mxu0 %v4036
        %v6638 = vpop.f32.mrb[0].mxu0
        %v6639 = vadd.f32 0.0, %v6638
        %v6640 = vpop.f32.mrb[0].mxu0
        %v6641 = vadd.f32 0.0, %v6640
        %v6642 = vpop.f32.mrb[0].mxu0
        %v6643 = vadd.f32 0.0, %v6642
        %v6644 = vpop.f32.mrb[0].mxu0
        %v6645 = vadd.f32 0.0, %v6644
        %6646 = vmatprep.mubr.bf16.mxu0 %v4039
        %6647 = vmatmul.mubr.bf16.gmra.mrb[0].mxu0 %v4038
        %v6648 = vpop.f32.mrb[0].mxu0
        %v6649 = vadd.f32 0.0, %v6648
        %v6650 = vpop.f32.mrb[0].mxu0
        %v6651 = vadd.f32 0.0, %v6650
        %v6652 = vpop.f32.mrb[0].mxu0
        %v6653 = vadd.f32 0.0, %v6652
        %v6654 = vpop.f32.mrb[0].mxu0
        %v6655 = vadd.f32 0.0, %v6654
        %6656 = vmatprep.mubr.bf16.mxu0 %v4041
        %6657 = vmatmul.mubr.bf16.gmra.mrb[0].mxu0 %v4040
        %v6658 = vpop.f32.mrb[0].mxu0
        %v6659 = vadd.f32 0.0, %v6658
        %v6660 = vpop.f32.mrb[0].mxu0
        %v6661 = vadd.f32 0.0, %v6660
        %v6662 = vpop.f32.mrb[0].mxu0
        %v6663 = vadd.f32 0.0, %v6662
        %v6664 = vpop.f32.mrb[0].mxu0
        %v6665 = vadd.f32 0.0, %v6664
        %6666 = vdwg.mxu0
        %6667 = vmatprep.subr.bf16.mxu0 %v6030
        %6668 = vmatpush1.bf16.msra.mxu0 %v6029
        %6669 = vmatprep.subr.bf16.mxu0 %v6038
        %6670 = vmatpush1.bf16.msra.mxu0 %v6037
        %6671 = vmatprep.subr.bf16.mxu0 %v6046
        %6672 = vmatpush1.bf16.msra.mxu0 %v6045
        %6673 = vmatprep.subr.bf16.mxu0 %v6054
        %6674 = vmatpush1.bf16.msra.mxu0 %v6053
        %6675 = vmatprep.subr.bf16.mxu0 %v6062
        %6676 = vmatpush1.bf16.msra.mxu0 %v6061
        %6677 = vmatprep.subr.bf16.mxu0 %v6070
        %6678 = vmatpush1.bf16.msra.mxu0 %v6069
        %6679 = vmatprep.subr.bf16.mxu0 %v6078
        %6680 = vmatpush1.bf16.msra.mxu0 %v6077
        %6681 = vmatprep.subr.bf16.mxu0 %v6086
        %6682 = vmatpush1.bf16.msra.mxu0 %v6085
        %6683 = vmatprep.subr.bf16.mxu0 %v6094
        %6684 = vmatpush1.bf16.msra.mxu0 %v6093
        %6685 = vmatprep.subr.bf16.mxu0 %v6102
        %6686 = vmatpush1.bf16.msra.mxu0 %v6101
        %6687 = vmatprep.subr.bf16.mxu0 %v6110
        %6688 = vmatpush1.bf16.msra.mxu0 %v6109
        %6689 = vmatprep.subr.bf16.mxu0 %v6118
        %6690 = vmatpush1.bf16.msra.mxu0 %v6117
        %6691 = vmatprep.subr.bf16.mxu0 %v6126
        %6692 = vmatpush1.bf16.msra.mxu0 %v6125
        %6693 = vmatprep.subr.bf16.mxu0 %v6134
        %6694 = vmatpush1.bf16.msra.mxu0 %v6133
        %6695 = vmatprep.subr.bf16.mxu0 %v6142
        %6696 = vmatpush1.bf16.msra.mxu0 %v6141
        %6697 = vmatprep.subr.bf16.mxu0 %v6150
        %6698 = vmatpush1.bf16.msra.mxu0 %v6149
        %6699 = vmatprep.mubr.bf16.mxu0 %v4011
        %6700 = vmatmul.mubr.bf16.gmra.mrb[0].mxu0 %v4010
        %v6701 = vpop.f32.mrb[0].mxu0
        %v6702 = vadd.f32 0.0, %v6701
        %v6703 = vpop.f32.mrb[0].mxu0
        %v6704 = vadd.f32 0.0, %v6703
        %v6705 = vpop.f32.mrb[0].mxu0
        %v6706 = vadd.f32 0.0, %v6705
        %v6707 = vpop.f32.mrb[0].mxu0
        %v6708 = vadd.f32 0.0, %v6707
        %6709 = vmatprep.mubr.bf16.mxu0 %v4013
        %6710 = vmatmul.mubr.bf16.gmra.mrb[0].mxu0 %v4012
        %v6711 = vpop.f32.mrb[0].mxu0
        %v6712 = vadd.f32 0.0, %v6711
        %v6713 = vpop.f32.mrb[0].mxu0
        %v6714 = vadd.f32 0.0, %v6713
        %v6715 = vpop.f32.mrb[0].mxu0
        %v6716 = vadd.f32 0.0, %v6715
        %v6717 = vpop.f32.mrb[0].mxu0
        %v6718 = vadd.f32 0.0, %v6717
        %6719 = vmatprep.mubr.bf16.mxu0 %v4015
        %6720 = vmatmul.mubr.bf16.gmra.mrb[0].mxu0 %v4014
        %v6721 = vpop.f32.mrb[0].mxu0
        %v6722 = vadd.f32 0.0, %v6721
        %v6723 = vpop.f32.mrb[0].mxu0
        %v6724 = vadd.f32 0.0, %v6723
        %v6725 = vpop.f32.mrb[0].mxu0
        %v6726 = vadd.f32 0.0, %v6725
        %v6727 = vpop.f32.mrb[0].mxu0
        %v6728 = vadd.f32 0.0, %v6727
        %6729 = vmatprep.mubr.bf16.mxu0 %v4017
        %6730 = vmatmul.mubr.bf16.gmra.mrb[0].mxu0 %v4016
        %v6731 = vpop.f32.mrb[0].mxu0
        %v6732 = vadd.f32 0.0, %v6731
        %v6733 = vpop.f32.mrb[0].mxu0
        %v6734 = vadd.f32 0.0, %v6733
        %v6735 = vpop.f32.mrb[0].mxu0
        %v6736 = vadd.f32 0.0, %v6735
        %v6737 = vpop.f32.mrb[0].mxu0
        %v6738 = vadd.f32 0.0, %v6737
        %6739 = vmatprep.mubr.bf16.mxu0 %v4019
        %6740 = vmatmul.mubr.bf16.gmra.mrb[0].mxu0 %v4018
        %v6741 = vpop.f32.mrb[0].mxu0
        %v6742 = vadd.f32 0.0, %v6741
        %v6743 = vpop.f32.mrb[0].mxu0
        %v6744 = vadd.f32 0.0, %v6743
        %v6745 = vpop.f32.mrb[0].mxu0
        %v6746 = vadd.f32 0.0, %v6745
        %v6747 = vpop.f32.mrb[0].mxu0
        %v6748 = vadd.f32 0.0, %v6747
        %6749 = vmatprep.mubr.bf16.mxu0 %v4021
        %6750 = vmatmul.mubr.bf16.gmra.mrb[0].mxu0 %v4020
        %v6751 = vpop.f32.mrb[0].mxu0
        %v6752 = vadd.f32 0.0, %v6751
        %v6753 = vpop.f32.mrb[0].mxu0
        %v6754 = vadd.f32 0.0, %v6753
        %v6755 = vpop.f32.mrb[0].mxu0
        %v6756 = vadd.f32 0.0, %v6755
        %v6757 = vpop.f32.mrb[0].mxu0
        %v6758 = vadd.f32 0.0, %v6757
        %6759 = vmatprep.mubr.bf16.mxu0 %v4023
        %6760 = vmatmul.mubr.bf16.gmra.mrb[0].mxu0 %v4022
        %v6761 = vpop.f32.mrb[0].mxu0
        %v6762 = vadd.f32 0.0, %v6761
        %v6763 = vpop.f32.mrb[0].mxu0
        %v6764 = vadd.f32 0.0, %v6763
        %v6765 = vpop.f32.mrb[0].mxu0
        %v6766 = vadd.f32 0.0, %v6765
        %v6767 = vpop.f32.mrb[0].mxu0
        %v6768 = vadd.f32 0.0, %v6767
        %6769 = vmatprep.mubr.bf16.mxu0 %v4025
        %6770 = vmatmul.mubr.bf16.gmra.mrb[0].mxu0 %v4024
        %v6771 = vpop.f32.mrb[0].mxu0
        %v6772 = vadd.f32 0.0, %v6771
        %v6773 = vpop.f32.mrb[0].mxu0
        %v6774 = vadd.f32 0.0, %v6773
        %v6775 = vpop.f32.mrb[0].mxu0
        %v6776 = vadd.f32 0.0, %v6775
        %v6777 = vpop.f32.mrb[0].mxu0
        %v6778 = vadd.f32 0.0, %v6777
        %6779 = vmatprep.mubr.bf16.mxu0 %v4027
        %6780 = vmatmul.mubr.bf16.gmra.mrb[0].mxu0 %v4026
        %v6781 = vpop.f32.mrb[0].mxu0
        %v6782 = vadd.f32 0.0, %v6781
        %v6783 = vpop.f32.mrb[0].mxu0
        %v6784 = vadd.f32 0.0, %v6783
        %v6785 = vpop.f32.mrb[0].mxu0
        %v6786 = vadd.f32 0.0, %v6785
        %v6787 = vpop.f32.mrb[0].mxu0
        %v6788 = vadd.f32 0.0, %v6787
        %6789 = vmatprep.mubr.bf16.mxu0 %v4029
        %6790 = vmatmul.mubr.bf16.gmra.mrb[0].mxu0 %v4028
        %v6791 = vpop.f32.mrb[0].mxu0
        %v6792 = vadd.f32 0.0, %v6791
        %v6793 = vpop.f32.mrb[0].mxu0
        %v6794 = vadd.f32 0.0, %v6793
        %v6795 = vpop.f32.mrb[0].mxu0
        %v6796 = vadd.f32 0.0, %v6795
        %v6797 = vpop.f32.mrb[0].mxu0
        %v6798 = vadd.f32 0.0, %v6797
        %6799 = vmatprep.mubr.bf16.mxu0 %v4031
        %6800 = vmatmul.mubr.bf16.gmra.mrb[0].mxu0 %v4030
        %v6801 = vpop.f32.mrb[0].mxu0
        %v6802 = vadd.f32 0.0, %v6801
        %v6803 = vpop.f32.mrb[0].mxu0
        %v6804 = vadd.f32 0.0, %v6803
        %v6805 = vpop.f32.mrb[0].mxu0
        %v6806 = vadd.f32 0.0, %v6805
        %v6807 = vpop.f32.mrb[0].mxu0
        %v6808 = vadd.f32 0.0, %v6807
        %6809 = vmatprep.mubr.bf16.mxu0 %v4033
        %6810 = vmatmul.mubr.bf16.gmra.mrb[0].mxu0 %v4032
        %v6811 = vpop.f32.mrb[0].mxu0
        %v6812 = vadd.f32 0.0, %v6811
        %v6813 = vpop.f32.mrb[0].mxu0
        %v6814 = vadd.f32 0.0, %v6813
        %v6815 = vpop.f32.mrb[0].mxu0
        %v6816 = vadd.f32 0.0, %v6815
        %v6817 = vpop.f32.mrb[0].mxu0
        %v6818 = vadd.f32 0.0, %v6817
        %6819 = vmatprep.mubr.bf16.mxu0 %v4035
        %6820 = vmatmul.mubr.bf16.gmra.mrb[0].mxu0 %v4034
        %v6821 = vpop.f32.mrb[0].mxu0
        %v6822 = vadd.f32 0.0, %v6821
        %v6823 = vpop.f32.mrb[0].mxu0
        %v6824 = vadd.f32 0.0, %v6823
        %v6825 = vpop.f32.mrb[0].mxu0
        %v6826 = vadd.f32 0.0, %v6825
        %v6827 = vpop.f32.mrb[0].mxu0
        %v6828 = vadd.f32 0.0, %v6827
        %6829 = vmatprep.mubr.bf16.mxu0 %v4037
        %6830 = vmatmul.mubr.bf16.gmra.mrb[0].mxu0 %v4036
        %v6831 = vpop.f32.mrb[0].mxu0
        %v6832 = vadd.f32 0.0, %v6831
        %v6833 = vpop.f32.mrb[0].mxu0
        %v6834 = vadd.f32 0.0, %v6833
        %v6835 = vpop.f32.mrb[0].mxu0
        %v6836 = vadd.f32 0.0, %v6835
        %v6837 = vpop.f32.mrb[0].mxu0
        %v6838 = vadd.f32 0.0, %v6837
        %6839 = vmatprep.mubr.bf16.mxu0 %v4039
        %6840 = vmatmul.mubr.bf16.gmra.mrb[0].mxu0 %v4038
        %v6841 = vpop.f32.mrb[0].mxu0
        %v6842 = vadd.f32 0.0, %v6841
        %v6843 = vpop.f32.mrb[0].mxu0
        %v6844 = vadd.f32 0.0, %v6843
        %v6845 = vpop.f32.mrb[0].mxu0
        %v6846 = vadd.f32 0.0, %v6845
        %v6847 = vpop.f32.mrb[0].mxu0
        %v6848 = vadd.f32 0.0, %v6847
        %6849 = vmatprep.mubr.bf16.mxu0 %v4041
        %6850 = vmatmul.mubr.bf16.gmra.mrb[0].mxu0 %v4040
        %v6851 = vpop.f32.mrb[0].mxu0
        %v6852 = vadd.f32 0.0, %v6851
        %v6853 = vpop.f32.mrb[0].mxu0
        %v6854 = vadd.f32 0.0, %v6853
        %v6855 = vpop.f32.mrb[0].mxu0
        %v6856 = vadd.f32 0.0, %v6855
        %v6857 = vpop.f32.mrb[0].mxu0
        %v6858 = vadd.f32 0.0, %v6857
        %6859 = vdwg.mxu0
        %6860 = vmatprep.subr.bf16.mxu0 %v6032
        %6861 = vmatpush1.bf16.msra.mxu0 %v6031
        %6862 = vmatprep.subr.bf16.mxu0 %v6040
        %6863 = vmatpush1.bf16.msra.mxu0 %v6039
        %6864 = vmatprep.subr.bf16.mxu0 %v6048
        %6865 = vmatpush1.bf16.msra.mxu0 %v6047
        %6866 = vmatprep.subr.bf16.mxu0 %v6056
        %6867 = vmatpush1.bf16.msra.mxu0 %v6055
        %6868 = vmatprep.subr.bf16.mxu0 %v6064
        %6869 = vmatpush1.bf16.msra.mxu0 %v6063
        %6870 = vmatprep.subr.bf16.mxu0 %v6072
        %6871 = vmatpush1.bf16.msra.mxu0 %v6071
        %6872 = vmatprep.subr.bf16.mxu0 %v6080
        %6873 = vmatpush1.bf16.msra.mxu0 %v6079
        %6874 = vmatprep.subr.bf16.mxu0 %v6088
        %6875 = vmatpush1.bf16.msra.mxu0 %v6087
        %6876 = vmatprep.subr.bf16.mxu0 %v6096
        %6877 = vmatpush1.bf16.msra.mxu0 %v6095
        %6878 = vmatprep.subr.bf16.mxu0 %v6104
        %6879 = vmatpush1.bf16.msra.mxu0 %v6103
        %6880 = vmatprep.subr.bf16.mxu0 %v6112
        %6881 = vmatpush1.bf16.msra.mxu0 %v6111
        %6882 = vmatprep.subr.bf16.mxu0 %v6120
        %6883 = vmatpush1.bf16.msra.mxu0 %v6119
        %6884 = vmatprep.subr.bf16.mxu0 %v6128
        %6885 = vmatpush1.bf16.msra.mxu0 %v6127
        %6886 = vmatprep.subr.bf16.mxu0 %v6136
        %6887 = vmatpush1.bf16.msra.mxu0 %v6135
        %6888 = vmatprep.subr.bf16.mxu0 %v6144
        %6889 = vmatpush1.bf16.msra.mxu0 %v6143
        %6890 = vmatprep.subr.bf16.mxu0 %v6152
        %6891 = vmatpush1.bf16.msra.mxu0 %v6151
        %6892 = vmatprep.mubr.bf16.mxu0 %v4011
        %6893 = vmatmul.mubr.bf16.gmra.mrb[0].mxu0 %v4010
        %v6894 = vpop.f32.mrb[0].mxu0
        %v6895 = vadd.f32 0.0, %v6894
        %v6896 = vpop.f32.mrb[0].mxu0
        %v6897 = vadd.f32 0.0, %v6896
        %v6898 = vpop.f32.mrb[0].mxu0
        %v6899 = vadd.f32 0.0, %v6898
        %v6900 = vpop.f32.mrb[0].mxu0
        %v6901 = vadd.f32 0.0, %v6900
        %6902 = vmatprep.mubr.bf16.mxu0 %v4013
        %6903 = vmatmul.mubr.bf16.gmra.mrb[0].mxu0 %v4012
        %v6904 = vpop.f32.mrb[0].mxu0
        %v6905 = vadd.f32 0.0, %v6904
        %v6906 = vpop.f32.mrb[0].mxu0
        %v6907 = vadd.f32 0.0, %v6906
        %v6908 = vpop.f32.mrb[0].mxu0
        %v6909 = vadd.f32 0.0, %v6908
        %v6910 = vpop.f32.mrb[0].mxu0
        %v6911 = vadd.f32 0.0, %v6910
        %6912 = vmatprep.mubr.bf16.mxu0 %v4015
        %6913 = vmatmul.mubr.bf16.gmra.mrb[0].mxu0 %v4014
        %v6914 = vpop.f32.mrb[0].mxu0
        %v6915 = vadd.f32 0.0, %v6914
        %v6916 = vpop.f32.mrb[0].mxu0
        %v6917 = vadd.f32 0.0, %v6916
        %v6918 = vpop.f32.mrb[0].mxu0
        %v6919 = vadd.f32 0.0, %v6918
        %v6920 = vpop.f32.mrb[0].mxu0
        %v6921 = vadd.f32 0.0, %v6920
        %6922 = vmatprep.mubr.bf16.mxu0 %v4017
        %6923 = vmatmul.mubr.bf16.gmra.mrb[0].mxu0 %v4016
        %v6924 = vpop.f32.mrb[0].mxu0
        %v6925 = vadd.f32 0.0, %v6924
        %v6926 = vpop.f32.mrb[0].mxu0
        %v6927 = vadd.f32 0.0, %v6926
        %v6928 = vpop.f32.mrb[0].mxu0
        %v6929 = vadd.f32 0.0, %v6928
        %v6930 = vpop.f32.mrb[0].mxu0
        %v6931 = vadd.f32 0.0, %v6930
        %6932 = vmatprep.mubr.bf16.mxu0 %v4019
        %6933 = vmatmul.mubr.bf16.gmra.mrb[0].mxu0 %v4018
        %v6934 = vpop.f32.mrb[0].mxu0
        %v6935 = vadd.f32 0.0, %v6934
        %v6936 = vpop.f32.mrb[0].mxu0
        %v6937 = vadd.f32 0.0, %v6936
        %v6938 = vpop.f32.mrb[0].mxu0
        %v6939 = vadd.f32 0.0, %v6938
        %v6940 = vpop.f32.mrb[0].mxu0
        %v6941 = vadd.f32 0.0, %v6940
        %6942 = vmatprep.mubr.bf16.mxu0 %v4021
        %6943 = vmatmul.mubr.bf16.gmra.mrb[0].mxu0 %v4020
        %v6944 = vpop.f32.mrb[0].mxu0
        %v6945 = vadd.f32 0.0, %v6944
        %v6946 = vpop.f32.mrb[0].mxu0
        %v6947 = vadd.f32 0.0, %v6946
        %v6948 = vpop.f32.mrb[0].mxu0
        %v6949 = vadd.f32 0.0, %v6948
        %v6950 = vpop.f32.mrb[0].mxu0
        %v6951 = vadd.f32 0.0, %v6950
        %6952 = vmatprep.mubr.bf16.mxu0 %v4023
        %6953 = vmatmul.mubr.bf16.gmra.mrb[0].mxu0 %v4022
        %v6954 = vpop.f32.mrb[0].mxu0
        %v6955 = vadd.f32 0.0, %v6954
        %v6956 = vpop.f32.mrb[0].mxu0
        %v6957 = vadd.f32 0.0, %v6956
        %v6958 = vpop.f32.mrb[0].mxu0
        %v6959 = vadd.f32 0.0, %v6958
        %v6960 = vpop.f32.mrb[0].mxu0
        %v6961 = vadd.f32 0.0, %v6960
        %6962 = vmatprep.mubr.bf16.mxu0 %v4025
        %6963 = vmatmul.mubr.bf16.gmra.mrb[0].mxu0 %v4024
        %v6964 = vpop.f32.mrb[0].mxu0
        %v6965 = vadd.f32 0.0, %v6964
        %v6966 = vpop.f32.mrb[0].mxu0
        %v6967 = vadd.f32 0.0, %v6966
        %v6968 = vpop.f32.mrb[0].mxu0
        %v6969 = vadd.f32 0.0, %v6968
        %v6970 = vpop.f32.mrb[0].mxu0
        %v6971 = vadd.f32 0.0, %v6970
        %6972 = vmatprep.mubr.bf16.mxu0 %v4027
        %6973 = vmatmul.mubr.bf16.gmra.mrb[0].mxu0 %v4026
        %v6974 = vpop.f32.mrb[0].mxu0
        %v6975 = vadd.f32 0.0, %v6974
        %v6976 = vpop.f32.mrb[0].mxu0
        %v6977 = vadd.f32 0.0, %v6976
        %v6978 = vpop.f32.mrb[0].mxu0
        %v6979 = vadd.f32 0.0, %v6978
        %v6980 = vpop.f32.mrb[0].mxu0
        %v6981 = vadd.f32 0.0, %v6980
        %6982 = vmatprep.mubr.bf16.mxu0 %v4029
        %6983 = vmatmul.mubr.bf16.gmra.mrb[0].mxu0 %v4028
        %v6984 = vpop.f32.mrb[0].mxu0
        %v6985 = vadd.f32 0.0, %v6984
        %v6986 = vpop.f32.mrb[0].mxu0
        %v6987 = vadd.f32 0.0, %v6986
        %v6988 = vpop.f32.mrb[0].mxu0
        %v6989 = vadd.f32 0.0, %v6988
        %v6990 = vpop.f32.mrb[0].mxu0
        %v6991 = vadd.f32 0.0, %v6990
        %6992 = vmatprep.mubr.bf16.mxu0 %v4031
        %6993 = vmatmul.mubr.bf16.gmra.mrb[0].mxu0 %v4030
        %v6994 = vpop.f32.mrb[0].mxu0
        %v6995 = vadd.f32 0.0, %v6994
        %v6996 = vpop.f32.mrb[0].mxu0
        %v6997 = vadd.f32 0.0, %v6996
        %v6998 = vpop.f32.mrb[0].mxu0
        %v6999 = vadd.f32 0.0, %v6998
        %v7000 = vpop.f32.mrb[0].mxu0
        %v7001 = vadd.f32 0.0, %v7000
        %7002 = vmatprep.mubr.bf16.mxu0 %v4033
        %7003 = vmatmul.mubr.bf16.gmra.mrb[0].mxu0 %v4032
        %v7004 = vpop.f32.mrb[0].mxu0
        %v7005 = vadd.f32 0.0, %v7004
        %v7006 = vpop.f32.mrb[0].mxu0
        %v7007 = vadd.f32 0.0, %v7006
        %v7008 = vpop.f32.mrb[0].mxu0
        %v7009 = vadd.f32 0.0, %v7008
        %v7010 = vpop.f32.mrb[0].mxu0
        %v7011 = vadd.f32 0.0, %v7010
        %7012 = vmatprep.mubr.bf16.mxu0 %v4035
        %7013 = vmatmul.mubr.bf16.gmra.mrb[0].mxu0 %v4034
        %v7014 = vpop.f32.mrb[0].mxu0
        %v7015 = vadd.f32 0.0, %v7014
        %v7016 = vpop.f32.mrb[0].mxu0
        %v7017 = vadd.f32 0.0, %v7016
        %v7018 = vpop.f32.mrb[0].mxu0
        %v7019 = vadd.f32 0.0, %v7018
        %v7020 = vpop.f32.mrb[0].mxu0
        %v7021 = vadd.f32 0.0, %v7020
        %7022 = vmatprep.mubr.bf16.mxu0 %v4037
        %7023 = vmatmul.mubr.bf16.gmra.mrb[0].mxu0 %v4036
        %v7024 = vpop.f32.mrb[0].mxu0
        %v7025 = vadd.f32 0.0, %v7024
        %v7026 = vpop.f32.mrb[0].mxu0
        %v7027 = vadd.f32 0.0, %v7026
        %v7028 = vpop.f32.mrb[0].mxu0
        %v7029 = vadd.f32 0.0, %v7028
        %v7030 = vpop.f32.mrb[0].mxu0
        %v7031 = vadd.f32 0.0, %v7030
        %7032 = vmatprep.mubr.bf16.mxu0 %v4039
        %7033 = vmatmul.mubr.bf16.gmra.mrb[0].mxu0 %v4038
        %v7034 = vpop.f32.mrb[0].mxu0
        %v7035 = vadd.f32 0.0, %v7034
        %v7036 = vpop.f32.mrb[0].mxu0
        %v7037 = vadd.f32 0.0, %v7036
        %v7038 = vpop.f32.mrb[0].mxu0
        %v7039 = vadd.f32 0.0, %v7038
        %v7040 = vpop.f32.mrb[0].mxu0
        %v7041 = vadd.f32 0.0, %v7040
        %7042 = vmatprep.mubr.bf16.mxu0 %v4041
        %7043 = vmatmul.mubr.bf16.gmra.mrb[0].mxu0 %v4040
        %v7044 = vpop.f32.mrb[0].mxu0
        %v7045 = vadd.f32 0.0, %v7044
        %v7046 = vpop.f32.mrb[0].mxu0
        %v7047 = vadd.f32 0.0, %v7046
        %v7048 = vpop.f32.mrb[0].mxu0
        %v7049 = vadd.f32 0.0, %v7048
        %v7050 = vpop.f32.mrb[0].mxu0
        %v7051 = vadd.f32 0.0, %v7050
        %7052 = vdwg.mxu0
        %v7181 = vunpack.c.l.b16 %v5385
        %v7182 = vunpack.c.h.b16 %v5385
        %v7183 = vunpack.c.l.b16 %v5386
        %v7184 = vunpack.c.h.b16 %v5386
        %v7185 = vunpack.c.l.b16 %v5387
        %v7186 = vunpack.c.h.b16 %v5387
        %v7187 = vunpack.c.l.b16 %v5388
        %v7188 = vunpack.c.h.b16 %v5388
        %v7189 = vunpack.c.l.b16 %v5389
        %v7190 = vunpack.c.h.b16 %v5389
        %v7191 = vunpack.c.l.b16 %v5390
        %v7192 = vunpack.c.h.b16 %v5390
        %v7193 = vunpack.c.l.b16 %v5391
        %v7194 = vunpack.c.h.b16 %v5391
        %v7195 = vunpack.c.l.b16 %v5392
        %v7196 = vunpack.c.h.b16 %v5392
        %v7197 = vunpack.c.l.b16 %v5393
        %v7198 = vunpack.c.h.b16 %v5393
        %v7199 = vunpack.c.l.b16 %v5394
        %v7200 = vunpack.c.h.b16 %v5394
        %v7201 = vunpack.c.l.b16 %v5395
        %v7202 = vunpack.c.h.b16 %v5395
        %v7203 = vunpack.c.l.b16 %v5396
        %v7204 = vunpack.c.h.b16 %v5396
        %v7205 = vunpack.c.l.b16 %v5397
        %v7206 = vunpack.c.h.b16 %v5397
        %v7207 = vunpack.c.l.b16 %v5398
        %v7208 = vunpack.c.h.b16 %v5398
        %v7209 = vunpack.c.l.b16 %v5399
        %v7210 = vunpack.c.h.b16 %v5399
        %v7211 = vunpack.c.l.b16 %v5400
        %v7212 = vunpack.c.h.b16 %v5400
        %v7213 = vunpack.c.l.b16 %v5401
        %v7214 = vunpack.c.h.b16 %v5401
        %v7215 = vunpack.c.l.b16 %v5402
        %v7216 = vunpack.c.h.b16 %v5402
        %v7217 = vunpack.c.l.b16 %v5403
        %v7218 = vunpack.c.h.b16 %v5403
        %v7219 = vunpack.c.l.b16 %v5404
        %v7220 = vunpack.c.h.b16 %v5404
        %v7221 = vunpack.c.l.b16 %v5405
        %v7222 = vunpack.c.h.b16 %v5405
        %v7223 = vunpack.c.l.b16 %v5406
        %v7224 = vunpack.c.h.b16 %v5406
        %v7225 = vunpack.c.l.b16 %v5407
        %v7226 = vunpack.c.h.b16 %v5407
        %v7227 = vunpack.c.l.b16 %v5408
        %v7228 = vunpack.c.h.b16 %v5408
        %v7229 = vunpack.c.l.b16 %v5409
        %v7230 = vunpack.c.h.b16 %v5409
        %v7231 = vunpack.c.l.b16 %v5410
        %v7232 = vunpack.c.h.b16 %v5410
        %v7233 = vunpack.c.l.b16 %v5411
        %v7234 = vunpack.c.h.b16 %v5411
        %v7235 = vunpack.c.l.b16 %v5412
        %v7236 = vunpack.c.h.b16 %v5412
        %v7237 = vunpack.c.l.b16 %v5413
        %v7238 = vunpack.c.h.b16 %v5413
        %v7239 = vunpack.c.l.b16 %v5414
        %v7240 = vunpack.c.h.b16 %v5414
        %v7241 = vunpack.c.l.b16 %v5415
        %v7242 = vunpack.c.h.b16 %v5415
        %v7243 = vunpack.c.l.b16 %v5416
        %v7244 = vunpack.c.h.b16 %v5416
        %v7245 = vunpack.c.l.b16 %v5417
        %v7246 = vunpack.c.h.b16 %v5417
        %v7247 = vunpack.c.l.b16 %v5418
        %v7248 = vunpack.c.h.b16 %v5418
        %v7249 = vunpack.c.l.b16 %v5419
        %v7250 = vunpack.c.h.b16 %v5419
        %v7251 = vunpack.c.l.b16 %v5420
        %v7252 = vunpack.c.h.b16 %v5420
        %v7253 = vunpack.c.l.b16 %v5421
        %v7254 = vunpack.c.h.b16 %v5421
        %v7255 = vunpack.c.l.b16 %v5422
        %v7256 = vunpack.c.h.b16 %v5422
        %v7257 = vunpack.c.l.b16 %v5423
        %v7258 = vunpack.c.h.b16 %v5423
        %v7259 = vunpack.c.l.b16 %v5424
        %v7260 = vunpack.c.h.b16 %v5424
        %v7261 = vunpack.c.l.b16 %v5425
        %v7262 = vunpack.c.h.b16 %v5425
        %v7263 = vunpack.c.l.b16 %v5426
        %v7264 = vunpack.c.h.b16 %v5426
        %v7265 = vunpack.c.l.b16 %v5427
        %v7266 = vunpack.c.h.b16 %v5427
        %v7267 = vunpack.c.l.b16 %v5428
        %v7268 = vunpack.c.h.b16 %v5428
        %v7269 = vunpack.c.l.b16 %v5429
        %v7270 = vunpack.c.h.b16 %v5429
        %v7271 = vunpack.c.l.b16 %v5430
        %v7272 = vunpack.c.h.b16 %v5430
        %v7273 = vunpack.c.l.b16 %v5431
        %v7274 = vunpack.c.h.b16 %v5431
        %v7275 = vunpack.c.l.b16 %v5432
        %v7276 = vunpack.c.h.b16 %v5432
        %v7277 = vunpack.c.l.b16 %v5433
        %v7278 = vunpack.c.h.b16 %v5433
        %v7279 = vunpack.c.l.b16 %v5434
        %v7280 = vunpack.c.h.b16 %v5434
        %v7281 = vunpack.c.l.b16 %v5435
        %v7282 = vunpack.c.h.b16 %v5435
        %v7283 = vunpack.c.l.b16 %v5436
        %v7284 = vunpack.c.h.b16 %v5436
        %v7285 = vunpack.c.l.b16 %v5437
        %v7286 = vunpack.c.h.b16 %v5437
        %v7287 = vunpack.c.l.b16 %v5438
        %v7288 = vunpack.c.h.b16 %v5438
        %v7289 = vunpack.c.l.b16 %v5439
        %v7290 = vunpack.c.h.b16 %v5439
        %v7291 = vunpack.c.l.b16 %v5440
        %v7292 = vunpack.c.h.b16 %v5440
        %v7293 = vunpack.c.l.b16 %v5441
        %v7294 = vunpack.c.h.b16 %v5441
        %v7295 = vunpack.c.l.b16 %v5442
        %v7296 = vunpack.c.h.b16 %v5442
        %v7297 = vunpack.c.l.b16 %v5443
        %v7298 = vunpack.c.h.b16 %v5443
        %v7299 = vunpack.c.l.b16 %v5444
        %v7300 = vunpack.c.h.b16 %v5444
        %v7301 = vunpack.c.l.b16 %v5445
        %v7302 = vunpack.c.h.b16 %v5445
        %v7303 = vunpack.c.l.b16 %v5446
        %v7304 = vunpack.c.h.b16 %v5446
        %v7305 = vunpack.c.l.b16 %v5447
        %v7306 = vunpack.c.h.b16 %v5447
        %v7307 = vunpack.c.l.b16 %v5448
        %v7308 = vunpack.c.h.b16 %v5448
        %v7309 = vunpack.c.l.b16 %v5449
        %v7310 = vunpack.c.h.b16 %v5449
        %v7311 = vunpack.c.l.b16 %v5450
        %v7312 = vunpack.c.h.b16 %v5450
        %v7313 = vunpack.c.l.b16 %v5451
        %v7314 = vunpack.c.h.b16 %v5451
        %v7315 = vunpack.c.l.b16 %v5452
        %v7316 = vunpack.c.h.b16 %v5452
        %v7317 = vunpack.c.l.b16 %v5453
        %v7318 = vunpack.c.h.b16 %v5453
        %v7319 = vunpack.c.l.b16 %v5454
        %v7320 = vunpack.c.h.b16 %v5454
        %v7321 = vunpack.c.l.b16 %v5455
        %v7322 = vunpack.c.h.b16 %v5455
        %v7323 = vunpack.c.l.b16 %v5456
        %v7324 = vunpack.c.h.b16 %v5456
        %v7325 = vunpack.c.l.b16 %v5457
        %v7326 = vunpack.c.h.b16 %v5457
        %v7327 = vunpack.c.l.b16 %v5458
        %v7328 = vunpack.c.h.b16 %v5458
        %v7329 = vunpack.c.l.b16 %v5459
        %v7330 = vunpack.c.h.b16 %v5459
        %v7331 = vunpack.c.l.b16 %v5460
        %v7332 = vunpack.c.h.b16 %v5460
        %v7333 = vunpack.c.l.b16 %v5461
        %v7334 = vunpack.c.h.b16 %v5461
        %v7335 = vunpack.c.l.b16 %v5462
        %v7336 = vunpack.c.h.b16 %v5462
        %v7337 = vunpack.c.l.b16 %v5463
        %v7338 = vunpack.c.h.b16 %v5463
        %v7339 = vunpack.c.l.b16 %v5464
        %v7340 = vunpack.c.h.b16 %v5464
        %v7341 = vunpack.c.l.b16 %v5465
        %v7342 = vunpack.c.h.b16 %v5465
        %v7343 = vunpack.c.l.b16 %v5466
        %v7344 = vunpack.c.h.b16 %v5466
        %v7345 = vunpack.c.l.b16 %v5467
        %v7346 = vunpack.c.h.b16 %v5467
        %v7347 = vunpack.c.l.b16 %v5468
        %v7348 = vunpack.c.h.b16 %v5468
        %v7349 = vunpack.c.l.b16 %v5469
        %v7350 = vunpack.c.h.b16 %v5469
        %v7351 = vunpack.c.l.b16 %v5470
        %v7352 = vunpack.c.h.b16 %v5470
        %v7353 = vunpack.c.l.b16 %v5471
        %v7354 = vunpack.c.h.b16 %v5471
        %v7355 = vunpack.c.l.b16 %v5472
        %v7356 = vunpack.c.h.b16 %v5472
        %v7357 = vunpack.c.l.b16 %v5473
        %v7358 = vunpack.c.h.b16 %v5473
        %v7359 = vunpack.c.l.b16 %v5474
        %v7360 = vunpack.c.h.b16 %v5474
        %v7361 = vunpack.c.l.b16 %v5475
        %v7362 = vunpack.c.h.b16 %v5475
        %v7363 = vunpack.c.l.b16 %v5476
        %v7364 = vunpack.c.h.b16 %v5476
        %v7365 = vunpack.c.l.b16 %v5477
        %v7366 = vunpack.c.h.b16 %v5477
        %v7367 = vunpack.c.l.b16 %v5478
        %v7368 = vunpack.c.h.b16 %v5478
        %v7369 = vunpack.c.l.b16 %v5479
        %v7370 = vunpack.c.h.b16 %v5479
        %v7371 = vunpack.c.l.b16 %v5480
        %v7372 = vunpack.c.h.b16 %v5480
        %v7373 = vunpack.c.l.b16 %v5481
        %v7374 = vunpack.c.h.b16 %v5481
        %v7375 = vunpack.c.l.b16 %v5482
        %v7376 = vunpack.c.h.b16 %v5482
        %v7377 = vunpack.c.l.b16 %v5483
        %v7378 = vunpack.c.h.b16 %v5483
        %v7379 = vunpack.c.l.b16 %v5484
        %v7380 = vunpack.c.h.b16 %v5484
        %v7381 = vunpack.c.l.b16 %v5485
        %v7382 = vunpack.c.h.b16 %v5485
        %v7383 = vunpack.c.l.b16 %v5486
        %v7384 = vunpack.c.h.b16 %v5486
        %v7385 = vunpack.c.l.b16 %v5487
        %v7386 = vunpack.c.h.b16 %v5487
        %v7387 = vunpack.c.l.b16 %v5488
        %v7388 = vunpack.c.h.b16 %v5488
        %v7389 = vunpack.c.l.b16 %v5489
        %v7390 = vunpack.c.h.b16 %v5489
        %v7391 = vunpack.c.l.b16 %v5490
        %v7392 = vunpack.c.h.b16 %v5490
        %v7393 = vunpack.c.l.b16 %v5491
        %v7394 = vunpack.c.h.b16 %v5491
        %v7395 = vunpack.c.l.b16 %v5492
        %v7396 = vunpack.c.h.b16 %v5492
        %v7397 = vunpack.c.l.b16 %v5493
        %v7398 = vunpack.c.h.b16 %v5493
        %v7399 = vunpack.c.l.b16 %v5494
        %v7400 = vunpack.c.h.b16 %v5494
        %v7401 = vunpack.c.l.b16 %v5495
        %v7402 = vunpack.c.h.b16 %v5495
        %v7403 = vunpack.c.l.b16 %v5496
        %v7404 = vunpack.c.h.b16 %v5496
        %v7405 = vunpack.c.l.b16 %v5497
        %v7406 = vunpack.c.h.b16 %v5497
        %v7407 = vunpack.c.l.b16 %v5498
        %v7408 = vunpack.c.h.b16 %v5498
        %v7409 = vunpack.c.l.b16 %v5499
        %v7410 = vunpack.c.h.b16 %v5499
        %v7411 = vunpack.c.l.b16 %v5500
        %v7412 = vunpack.c.h.b16 %v5500
        %v7413 = vunpack.c.l.b16 %v5501
        %v7414 = vunpack.c.h.b16 %v5501
        %v7415 = vunpack.c.l.b16 %v5502
        %v7416 = vunpack.c.h.b16 %v5502
        %v7417 = vunpack.c.l.b16 %v5503
        %v7418 = vunpack.c.h.b16 %v5503
        %v7419 = vunpack.c.l.b16 %v5504
        %v7420 = vunpack.c.h.b16 %v5504
        %v7421 = vunpack.c.l.b16 %v5505
        %v7422 = vunpack.c.h.b16 %v5505
        %v7423 = vunpack.c.l.b16 %v5506
        %v7424 = vunpack.c.h.b16 %v5506
        %v7425 = vunpack.c.l.b16 %v5507
        %v7426 = vunpack.c.h.b16 %v5507
        %v7427 = vunpack.c.l.b16 %v5508
        %v7428 = vunpack.c.h.b16 %v5508
        %v7429 = vunpack.c.l.b16 %v5509
        %v7430 = vunpack.c.h.b16 %v5509
        %v7431 = vunpack.c.l.b16 %v5510
        %v7432 = vunpack.c.h.b16 %v5510
        %v7433 = vunpack.c.l.b16 %v5511
        %v7434 = vunpack.c.h.b16 %v5511
        %v7435 = vunpack.c.l.b16 %v5512
        %v7436 = vunpack.c.h.b16 %v5512
        %v7437 = vpack.c.b16 %v7189, %v7181
        %v7438 = vpack.c.b16 %v7190, %v7182
        %v7439 = vpack.c.b16 %v7191, %v7183
        %v7440 = vpack.c.b16 %v7192, %v7184
        %v7441 = vpack.c.b16 %v7193, %v7185
        %v7442 = vpack.c.b16 %v7194, %v7186
        %v7443 = vpack.c.b16 %v7195, %v7187
        %v7444 = vpack.c.b16 %v7196, %v7188
        %v7445 = vpack.c.b16 %v7205, %v7197
        %v7446 = vpack.c.b16 %v7206, %v7198
        %v7447 = vpack.c.b16 %v7207, %v7199
        %v7448 = vpack.c.b16 %v7208, %v7200
        %v7449 = vpack.c.b16 %v7209, %v7201
        %v7450 = vpack.c.b16 %v7210, %v7202
        %v7451 = vpack.c.b16 %v7211, %v7203
        %v7452 = vpack.c.b16 %v7212, %v7204
        %v7453 = vpack.c.b16 %v7221, %v7213
        %v7454 = vpack.c.b16 %v7222, %v7214
        %v7455 = vpack.c.b16 %v7223, %v7215
        %v7456 = vpack.c.b16 %v7224, %v7216
        %v7457 = vpack.c.b16 %v7225, %v7217
        %v7458 = vpack.c.b16 %v7226, %v7218
        %v7459 = vpack.c.b16 %v7227, %v7219
        %v7460 = vpack.c.b16 %v7228, %v7220
        %v7461 = vpack.c.b16 %v7237, %v7229
        %v7462 = vpack.c.b16 %v7238, %v7230
        %v7463 = vpack.c.b16 %v7239, %v7231
        %v7464 = vpack.c.b16 %v7240, %v7232
        %v7465 = vpack.c.b16 %v7241, %v7233
        %v7466 = vpack.c.b16 %v7242, %v7234
        %v7467 = vpack.c.b16 %v7243, %v7235
        %v7468 = vpack.c.b16 %v7244, %v7236
        %v7469 = vpack.c.b16 %v7253, %v7245
        %v7470 = vpack.c.b16 %v7254, %v7246
        %v7471 = vpack.c.b16 %v7255, %v7247
        %v7472 = vpack.c.b16 %v7256, %v7248
        %v7473 = vpack.c.b16 %v7257, %v7249
        %v7474 = vpack.c.b16 %v7258, %v7250
        %v7475 = vpack.c.b16 %v7259, %v7251
        %v7476 = vpack.c.b16 %v7260, %v7252
        %v7477 = vpack.c.b16 %v7269, %v7261
        %v7478 = vpack.c.b16 %v7270, %v7262
        %v7479 = vpack.c.b16 %v7271, %v7263
        %v7480 = vpack.c.b16 %v7272, %v7264
        %v7481 = vpack.c.b16 %v7273, %v7265
        %v7482 = vpack.c.b16 %v7274, %v7266
        %v7483 = vpack.c.b16 %v7275, %v7267
        %v7484 = vpack.c.b16 %v7276, %v7268
        %v7485 = vpack.c.b16 %v7285, %v7277
        %v7486 = vpack.c.b16 %v7286, %v7278
        %v7487 = vpack.c.b16 %v7287, %v7279
        %v7488 = vpack.c.b16 %v7288, %v7280
        %v7489 = vpack.c.b16 %v7289, %v7281
        %v7490 = vpack.c.b16 %v7290, %v7282
        %v7491 = vpack.c.b16 %v7291, %v7283
        %v7492 = vpack.c.b16 %v7292, %v7284
        %v7493 = vpack.c.b16 %v7301, %v7293
        %v7494 = vpack.c.b16 %v7302, %v7294
        %v7495 = vpack.c.b16 %v7303, %v7295
        %v7496 = vpack.c.b16 %v7304, %v7296
        %v7497 = vpack.c.b16 %v7305, %v7297
        %v7498 = vpack.c.b16 %v7306, %v7298
        %v7499 = vpack.c.b16 %v7307, %v7299
        %v7500 = vpack.c.b16 %v7308, %v7300
        %v7501 = vpack.c.b16 %v7317, %v7309
        %v7502 = vpack.c.b16 %v7318, %v7310
        %v7503 = vpack.c.b16 %v7319, %v7311
        %v7504 = vpack.c.b16 %v7320, %v7312
        %v7505 = vpack.c.b16 %v7321, %v7313
        %v7506 = vpack.c.b16 %v7322, %v7314
        %v7507 = vpack.c.b16 %v7323, %v7315
        %v7508 = vpack.c.b16 %v7324, %v7316
        %v7509 = vpack.c.b16 %v7333, %v7325
        %v7510 = vpack.c.b16 %v7334, %v7326
        %v7511 = vpack.c.b16 %v7335, %v7327
        %v7512 = vpack.c.b16 %v7336, %v7328
        %v7513 = vpack.c.b16 %v7337, %v7329
        %v7514 = vpack.c.b16 %v7338, %v7330
        %v7515 = vpack.c.b16 %v7339, %v7331
        %v7516 = vpack.c.b16 %v7340, %v7332
        %v7517 = vpack.c.b16 %v7349, %v7341
        %v7518 = vpack.c.b16 %v7350, %v7342
        %v7519 = vpack.c.b16 %v7351, %v7343
        %v7520 = vpack.c.b16 %v7352, %v7344
        %v7521 = vpack.c.b16 %v7353, %v7345
        %v7522 = vpack.c.b16 %v7354, %v7346
        %v7523 = vpack.c.b16 %v7355, %v7347
        %v7524 = vpack.c.b16 %v7356, %v7348
        %v7525 = vpack.c.b16 %v7365, %v7357
        %v7526 = vpack.c.b16 %v7366, %v7358
        %v7527 = vpack.c.b16 %v7367, %v7359
        %v7528 = vpack.c.b16 %v7368, %v7360
        %v7529 = vpack.c.b16 %v7369, %v7361
        %v7530 = vpack.c.b16 %v7370, %v7362
        %v7531 = vpack.c.b16 %v7371, %v7363
        %v7532 = vpack.c.b16 %v7372, %v7364
        %v7533 = vpack.c.b16 %v7381, %v7373
        %v7534 = vpack.c.b16 %v7382, %v7374
        %v7535 = vpack.c.b16 %v7383, %v7375
        %v7536 = vpack.c.b16 %v7384, %v7376
        %v7537 = vpack.c.b16 %v7385, %v7377
        %v7538 = vpack.c.b16 %v7386, %v7378
        %v7539 = vpack.c.b16 %v7387, %v7379
        %v7540 = vpack.c.b16 %v7388, %v7380
        %v7541 = vpack.c.b16 %v7397, %v7389
        %v7542 = vpack.c.b16 %v7398, %v7390
        %v7543 = vpack.c.b16 %v7399, %v7391
        %v7544 = vpack.c.b16 %v7400, %v7392
        %v7545 = vpack.c.b16 %v7401, %v7393
        %v7546 = vpack.c.b16 %v7402, %v7394
        %v7547 = vpack.c.b16 %v7403, %v7395
        %v7548 = vpack.c.b16 %v7404, %v7396
        %v7549 = vpack.c.b16 %v7413, %v7405
        %v7550 = vpack.c.b16 %v7414, %v7406
        %v7551 = vpack.c.b16 %v7415, %v7407
        %v7552 = vpack.c.b16 %v7416, %v7408
        %v7553 = vpack.c.b16 %v7417, %v7409
        %v7554 = vpack.c.b16 %v7418, %v7410
        %v7555 = vpack.c.b16 %v7419, %v7411
        %v7556 = vpack.c.b16 %v7420, %v7412
        %v7557 = vpack.c.b16 %v7429, %v7421
        %v7558 = vpack.c.b16 %v7430, %v7422
        %v7559 = vpack.c.b16 %v7431, %v7423
        %v7560 = vpack.c.b16 %v7432, %v7424
        %v7561 = vpack.c.b16 %v7433, %v7425
        %v7562 = vpack.c.b16 %v7434, %v7426
        %v7563 = vpack.c.b16 %v7435, %v7427
        %v7564 = vpack.c.b16 %v7436, %v7428
        %7693 = vmatprep.subr.bf16.mxu0 %v7438
        %7694 = vmatpush1.bf16.msra.mxu0 %v7437
        %7695 = vmatprep.subr.bf16.mxu0 %v7446
        %7696 = vmatpush1.bf16.msra.mxu0 %v7445
        %7697 = vmatprep.subr.bf16.mxu0 %v7454
        %7698 = vmatpush1.bf16.msra.mxu0 %v7453
        %7699 = vmatprep.subr.bf16.mxu0 %v7462
        %7700 = vmatpush1.bf16.msra.mxu0 %v7461
        %7701 = vmatprep.subr.bf16.mxu0 %v7470
        %7702 = vmatpush1.bf16.msra.mxu0 %v7469
        %7703 = vmatprep.subr.bf16.mxu0 %v7478
        %7704 = vmatpush1.bf16.msra.mxu0 %v7477
        %7705 = vmatprep.subr.bf16.mxu0 %v7486
        %7706 = vmatpush1.bf16.msra.mxu0 %v7485
        %7707 = vmatprep.subr.bf16.mxu0 %v7494
        %7708 = vmatpush1.bf16.msra.mxu0 %v7493
        %7709 = vmatprep.subr.bf16.mxu0 %v7502
        %7710 = vmatpush1.bf16.msra.mxu0 %v7501
        %7711 = vmatprep.subr.bf16.mxu0 %v7510
        %7712 = vmatpush1.bf16.msra.mxu0 %v7509
        %7713 = vmatprep.subr.bf16.mxu0 %v7518
        %7714 = vmatpush1.bf16.msra.mxu0 %v7517
        %7715 = vmatprep.subr.bf16.mxu0 %v7526
        %7716 = vmatpush1.bf16.msra.mxu0 %v7525
        %7717 = vmatprep.subr.bf16.mxu0 %v7534
        %7718 = vmatpush1.bf16.msra.mxu0 %v7533
        %7719 = vmatprep.subr.bf16.mxu0 %v7542
        %7720 = vmatpush1.bf16.msra.mxu0 %v7541
        %7721 = vmatprep.subr.bf16.mxu0 %v7550
        %7722 = vmatpush1.bf16.msra.mxu0 %v7549
        %7723 = vmatprep.subr.bf16.mxu0 %v7558
        %7724 = vmatpush1.bf16.msra.mxu0 %v7557
        %7725 = vmatprep.mubr.bf16.mxu0 %v5354
        %7726 = vmatmul.mubr.bf16.gmra.mrb[0].mxu0 %v5353
        %v7727 = vpop.f32.mrb[0].mxu0
        %v7728 = vadd.f32 %v6316, %v7727
        %v7729 = vpop.f32.mrb[0].mxu0
        %v7730 = vadd.f32 %v6318, %v7729
        %v7731 = vpop.f32.mrb[0].mxu0
        %v7732 = vadd.f32 %v6320, %v7731
        %v7733 = vpop.f32.mrb[0].mxu0
        %v7734 = vadd.f32 %v6322, %v7733
        %7735 = vmatprep.mubr.bf16.mxu0 %v5356
        %7736 = vmatmul.mubr.bf16.gmra.mrb[0].mxu0 %v5355
        %v7737 = vpop.f32.mrb[0].mxu0
        %v7738 = vadd.f32 %v6326, %v7737
        %v7739 = vpop.f32.mrb[0].mxu0
        %v7740 = vadd.f32 %v6328, %v7739
        %v7741 = vpop.f32.mrb[0].mxu0
        %v7742 = vadd.f32 %v6330, %v7741
        %v7743 = vpop.f32.mrb[0].mxu0
        %v7744 = vadd.f32 %v6332, %v7743
        %7745 = vmatprep.mubr.bf16.mxu0 %v5358
        %7746 = vmatmul.mubr.bf16.gmra.mrb[0].mxu0 %v5357
        %v7747 = vpop.f32.mrb[0].mxu0
        %v7748 = vadd.f32 %v6336, %v7747
        %v7749 = vpop.f32.mrb[0].mxu0
        %v7750 = vadd.f32 %v6338, %v7749
        %v7751 = vpop.f32.mrb[0].mxu0
        %v7752 = vadd.f32 %v6340, %v7751
        %v7753 = vpop.f32.mrb[0].mxu0
        %v7754 = vadd.f32 %v6342, %v7753
        %7755 = vmatprep.mubr.bf16.mxu0 %v5360
        %7756 = vmatmul.mubr.bf16.gmra.mrb[0].mxu0 %v5359
        %v7757 = vpop.f32.mrb[0].mxu0
        %v7758 = vadd.f32 %v6346, %v7757
        %v7759 = vpop.f32.mrb[0].mxu0
        %v7760 = vadd.f32 %v6348, %v7759
        %v7761 = vpop.f32.mrb[0].mxu0
        %v7762 = vadd.f32 %v6350, %v7761
        %v7763 = vpop.f32.mrb[0].mxu0
        %v7764 = vadd.f32 %v6352, %v7763
        %7765 = vmatprep.mubr.bf16.mxu0 %v5362
        %7766 = vmatmul.mubr.bf16.gmra.mrb[0].mxu0 %v5361
        %v7767 = vpop.f32.mrb[0].mxu0
        %v7768 = vadd.f32 %v6356, %v7767
        %v7769 = vpop.f32.mrb[0].mxu0
        %v7770 = vadd.f32 %v6358, %v7769
        %v7771 = vpop.f32.mrb[0].mxu0
        %v7772 = vadd.f32 %v6360, %v7771
        %v7773 = vpop.f32.mrb[0].mxu0
        %v7774 = vadd.f32 %v6362, %v7773
        %7775 = vmatprep.mubr.bf16.mxu0 %v5364
        %7776 = vmatmul.mubr.bf16.gmra.mrb[0].mxu0 %v5363
        %v7777 = vpop.f32.mrb[0].mxu0
        %v7778 = vadd.f32 %v6366, %v7777
        %v7779 = vpop.f32.mrb[0].mxu0
        %v7780 = vadd.f32 %v6368, %v7779
        %v7781 = vpop.f32.mrb[0].mxu0
        %v7782 = vadd.f32 %v6370, %v7781
        %v7783 = vpop.f32.mrb[0].mxu0
        %v7784 = vadd.f32 %v6372, %v7783
        %7785 = vmatprep.mubr.bf16.mxu0 %v5366
        %7786 = vmatmul.mubr.bf16.gmra.mrb[0].mxu0 %v5365
        %v7787 = vpop.f32.mrb[0].mxu0
        %v7788 = vadd.f32 %v6376, %v7787
        %v7789 = vpop.f32.mrb[0].mxu0
        %v7790 = vadd.f32 %v6378, %v7789
        %v7791 = vpop.f32.mrb[0].mxu0
        %v7792 = vadd.f32 %v6380, %v7791
        %v7793 = vpop.f32.mrb[0].mxu0
        %v7794 = vadd.f32 %v6382, %v7793
        %7795 = vmatprep.mubr.bf16.mxu0 %v5368
        %7796 = vmatmul.mubr.bf16.gmra.mrb[0].mxu0 %v5367
        %v7797 = vpop.f32.mrb[0].mxu0
        %v7798 = vadd.f32 %v6386, %v7797
        %v7799 = vpop.f32.mrb[0].mxu0
        %v7800 = vadd.f32 %v6388, %v7799
        %v7801 = vpop.f32.mrb[0].mxu0
        %v7802 = vadd.f32 %v6390, %v7801
        %v7803 = vpop.f32.mrb[0].mxu0
        %v7804 = vadd.f32 %v6392, %v7803
        %7805 = vmatprep.mubr.bf16.mxu0 %v5370
        %7806 = vmatmul.mubr.bf16.gmra.mrb[0].mxu0 %v5369
        %v7807 = vpop.f32.mrb[0].mxu0
        %v7808 = vadd.f32 %v6396, %v7807
        %v7809 = vpop.f32.mrb[0].mxu0
        %v7810 = vadd.f32 %v6398, %v7809
        %v7811 = vpop.f32.mrb[0].mxu0
        %v7812 = vadd.f32 %v6400, %v7811
        %v7813 = vpop.f32.mrb[0].mxu0
        %v7814 = vadd.f32 %v6402, %v7813
        %7815 = vmatprep.mubr.bf16.mxu0 %v5372
        %7816 = vmatmul.mubr.bf16.gmra.mrb[0].mxu0 %v5371
        %v7817 = vpop.f32.mrb[0].mxu0
        %v7818 = vadd.f32 %v6406, %v7817
        %v7819 = vpop.f32.mrb[0].mxu0
        %v7820 = vadd.f32 %v6408, %v7819
        %v7821 = vpop.f32.mrb[0].mxu0
        %v7822 = vadd.f32 %v6410, %v7821
        %v7823 = vpop.f32.mrb[0].mxu0
        %v7824 = vadd.f32 %v6412, %v7823
        %7825 = vmatprep.mubr.bf16.mxu0 %v5374
        %7826 = vmatmul.mubr.bf16.gmra.mrb[0].mxu0 %v5373
        %v7827 = vpop.f32.mrb[0].mxu0
        %v7828 = vadd.f32 %v6416, %v7827
        %v7829 = vpop.f32.mrb[0].mxu0
        %v7830 = vadd.f32 %v6418, %v7829
        %v7831 = vpop.f32.mrb[0].mxu0
        %v7832 = vadd.f32 %v6420, %v7831
        %v7833 = vpop.f32.mrb[0].mxu0
        %v7834 = vadd.f32 %v6422, %v7833
        %7835 = vmatprep.mubr.bf16.mxu0 %v5376
        %7836 = vmatmul.mubr.bf16.gmra.mrb[0].mxu0 %v5375
        %v7837 = vpop.f32.mrb[0].mxu0
        %v7838 = vadd.f32 %v6426, %v7837
        %v7839 = vpop.f32.mrb[0].mxu0
        %v7840 = vadd.f32 %v6428, %v7839
        %v7841 = vpop.f32.mrb[0].mxu0
        %v7842 = vadd.f32 %v6430, %v7841
        %v7843 = vpop.f32.mrb[0].mxu0
        %v7844 = vadd.f32 %v6432, %v7843
        %7845 = vmatprep.mubr.bf16.mxu0 %v5378
        %7846 = vmatmul.mubr.bf16.gmra.mrb[0].mxu0 %v5377
        %v7847 = vpop.f32.mrb[0].mxu0
        %v7848 = vadd.f32 %v6436, %v7847
        %v7849 = vpop.f32.mrb[0].mxu0
        %v7850 = vadd.f32 %v6438, %v7849
        %v7851 = vpop.f32.mrb[0].mxu0
        %v7852 = vadd.f32 %v6440, %v7851
        %v7853 = vpop.f32.mrb[0].mxu0
        %v7854 = vadd.f32 %v6442, %v7853
        %7855 = vmatprep.mubr.bf16.mxu0 %v5380
        %7856 = vmatmul.mubr.bf16.gmra.mrb[0].mxu0 %v5379
        %v7857 = vpop.f32.mrb[0].mxu0
        %v7858 = vadd.f32 %v6446, %v7857
        %v7859 = vpop.f32.mrb[0].mxu0
        %v7860 = vadd.f32 %v6448, %v7859
        %v7861 = vpop.f32.mrb[0].mxu0
        %v7862 = vadd.f32 %v6450, %v7861
        %v7863 = vpop.f32.mrb[0].mxu0
        %v7864 = vadd.f32 %v6452, %v7863
        %7865 = vmatprep.mubr.bf16.mxu0 %v5382
        %7866 = vmatmul.mubr.bf16.gmra.mrb[0].mxu0 %v5381
        %v7867 = vpop.f32.mrb[0].mxu0
        %v7868 = vadd.f32 %v6456, %v7867
        %v7869 = vpop.f32.mrb[0].mxu0
        %v7870 = vadd.f32 %v6458, %v7869
        %v7871 = vpop.f32.mrb[0].mxu0
        %v7872 = vadd.f32 %v6460, %v7871
        %v7873 = vpop.f32.mrb[0].mxu0
        %v7874 = vadd.f32 %v6462, %v7873
        %7875 = vmatprep.mubr.bf16.mxu0 %v5384
        %7876 = vmatmul.mubr.bf16.gmra.mrb[0].mxu0 %v5383
        %v7877 = vpop.f32.mrb[0].mxu0
        %v7878 = vadd.f32 %v6466, %v7877
        %v7879 = vpop.f32.mrb[0].mxu0
        %v7880 = vadd.f32 %v6468, %v7879
        %v7881 = vpop.f32.mrb[0].mxu0
        %v7882 = vadd.f32 %v6470, %v7881
        %v7883 = vpop.f32.mrb[0].mxu0
        %v7884 = vadd.f32 %v6472, %v7883
        %7885 = vdwg.mxu0
        %7886 = vmatprep.subr.bf16.mxu0 %v7440
        %7887 = vmatpush1.bf16.msra.mxu0 %v7439
        %7888 = vmatprep.subr.bf16.mxu0 %v7448
        %7889 = vmatpush1.bf16.msra.mxu0 %v7447
        %7890 = vmatprep.subr.bf16.mxu0 %v7456
        %7891 = vmatpush1.bf16.msra.mxu0 %v7455
        %7892 = vmatprep.subr.bf16.mxu0 %v7464
        %7893 = vmatpush1.bf16.msra.mxu0 %v7463
        %7894 = vmatprep.subr.bf16.mxu0 %v7472
        %7895 = vmatpush1.bf16.msra.mxu0 %v7471
        %7896 = vmatprep.subr.bf16.mxu0 %v7480
        %7897 = vmatpush1.bf16.msra.mxu0 %v7479
        %7898 = vmatprep.subr.bf16.mxu0 %v7488
        %7899 = vmatpush1.bf16.msra.mxu0 %v7487
        %7900 = vmatprep.subr.bf16.mxu0 %v7496
        %7901 = vmatpush1.bf16.msra.mxu0 %v7495
        %7902 = vmatprep.subr.bf16.mxu0 %v7504
        %7903 = vmatpush1.bf16.msra.mxu0 %v7503
        %7904 = vmatprep.subr.bf16.mxu0 %v7512
        %7905 = vmatpush1.bf16.msra.mxu0 %v7511
        %7906 = vmatprep.subr.bf16.mxu0 %v7520
        %7907 = vmatpush1.bf16.msra.mxu0 %v7519
        %7908 = vmatprep.subr.bf16.mxu0 %v7528
        %7909 = vmatpush1.bf16.msra.mxu0 %v7527
        %7910 = vmatprep.subr.bf16.mxu0 %v7536
        %7911 = vmatpush1.bf16.msra.mxu0 %v7535
        %7912 = vmatprep.subr.bf16.mxu0 %v7544
        %7913 = vmatpush1.bf16.msra.mxu0 %v7543
        %7914 = vmatprep.subr.bf16.mxu0 %v7552
        %7915 = vmatpush1.bf16.msra.mxu0 %v7551
        %7916 = vmatprep.subr.bf16.mxu0 %v7560
        %7917 = vmatpush1.bf16.msra.mxu0 %v7559
        %7918 = vmatprep.mubr.bf16.mxu0 %v5354
        %7919 = vmatmul.mubr.bf16.gmra.mrb[0].mxu0 %v5353
        %v7920 = vpop.f32.mrb[0].mxu0
        %v7921 = vadd.f32 %v6509, %v7920
        %v7922 = vpop.f32.mrb[0].mxu0
        %v7923 = vadd.f32 %v6511, %v7922
        %v7924 = vpop.f32.mrb[0].mxu0
        %v7925 = vadd.f32 %v6513, %v7924
        %v7926 = vpop.f32.mrb[0].mxu0
        %v7927 = vadd.f32 %v6515, %v7926
        %7928 = vmatprep.mubr.bf16.mxu0 %v5356
        %7929 = vmatmul.mubr.bf16.gmra.mrb[0].mxu0 %v5355
        %v7930 = vpop.f32.mrb[0].mxu0
        %v7931 = vadd.f32 %v6519, %v7930
        %v7932 = vpop.f32.mrb[0].mxu0
        %v7933 = vadd.f32 %v6521, %v7932
        %v7934 = vpop.f32.mrb[0].mxu0
        %v7935 = vadd.f32 %v6523, %v7934
        %v7936 = vpop.f32.mrb[0].mxu0
        %v7937 = vadd.f32 %v6525, %v7936
        %7938 = vmatprep.mubr.bf16.mxu0 %v5358
        %7939 = vmatmul.mubr.bf16.gmra.mrb[0].mxu0 %v5357
        %v7940 = vpop.f32.mrb[0].mxu0
        %v7941 = vadd.f32 %v6529, %v7940
        %v7942 = vpop.f32.mrb[0].mxu0
        %v7943 = vadd.f32 %v6531, %v7942
        %v7944 = vpop.f32.mrb[0].mxu0
        %v7945 = vadd.f32 %v6533, %v7944
        %v7946 = vpop.f32.mrb[0].mxu0
        %v7947 = vadd.f32 %v6535, %v7946
        %7948 = vmatprep.mubr.bf16.mxu0 %v5360
        %7949 = vmatmul.mubr.bf16.gmra.mrb[0].mxu0 %v5359
        %v7950 = vpop.f32.mrb[0].mxu0
        %v7951 = vadd.f32 %v6539, %v7950
        %v7952 = vpop.f32.mrb[0].mxu0
        %v7953 = vadd.f32 %v6541, %v7952
        %v7954 = vpop.f32.mrb[0].mxu0
        %v7955 = vadd.f32 %v6543, %v7954
        %v7956 = vpop.f32.mrb[0].mxu0
        %v7957 = vadd.f32 %v6545, %v7956
        %7958 = vmatprep.mubr.bf16.mxu0 %v5362
        %7959 = vmatmul.mubr.bf16.gmra.mrb[0].mxu0 %v5361
        %v7960 = vpop.f32.mrb[0].mxu0
        %v7961 = vadd.f32 %v6549, %v7960
        %v7962 = vpop.f32.mrb[0].mxu0
        %v7963 = vadd.f32 %v6551, %v7962
        %v7964 = vpop.f32.mrb[0].mxu0
        %v7965 = vadd.f32 %v6553, %v7964
        %v7966 = vpop.f32.mrb[0].mxu0
        %v7967 = vadd.f32 %v6555, %v7966
        %7968 = vmatprep.mubr.bf16.mxu0 %v5364
        %7969 = vmatmul.mubr.bf16.gmra.mrb[0].mxu0 %v5363
        %v7970 = vpop.f32.mrb[0].mxu0
        %v7971 = vadd.f32 %v6559, %v7970
        %v7972 = vpop.f32.mrb[0].mxu0
        %v7973 = vadd.f32 %v6561, %v7972
        %v7974 = vpop.f32.mrb[0].mxu0
        %v7975 = vadd.f32 %v6563, %v7974
        %v7976 = vpop.f32.mrb[0].mxu0
        %v7977 = vadd.f32 %v6565, %v7976
        %7978 = vmatprep.mubr.bf16.mxu0 %v5366
        %7979 = vmatmul.mubr.bf16.gmra.mrb[0].mxu0 %v5365
        %v7980 = vpop.f32.mrb[0].mxu0
        %v7981 = vadd.f32 %v6569, %v7980
        %v7982 = vpop.f32.mrb[0].mxu0
        %v7983 = vadd.f32 %v6571, %v7982
        %v7984 = vpop.f32.mrb[0].mxu0
        %v7985 = vadd.f32 %v6573, %v7984
        %v7986 = vpop.f32.mrb[0].mxu0
        %v7987 = vadd.f32 %v6575, %v7986
        %7988 = vmatprep.mubr.bf16.mxu0 %v5368
        %7989 = vmatmul.mubr.bf16.gmra.mrb[0].mxu0 %v5367
        %v7990 = vpop.f32.mrb[0].mxu0
        %v7991 = vadd.f32 %v6579, %v7990
        %v7992 = vpop.f32.mrb[0].mxu0
        %v7993 = vadd.f32 %v6581, %v7992
        %v7994 = vpop.f32.mrb[0].mxu0
        %v7995 = vadd.f32 %v6583, %v7994
        %v7996 = vpop.f32.mrb[0].mxu0
        %v7997 = vadd.f32 %v6585, %v7996
        %7998 = vmatprep.mubr.bf16.mxu0 %v5370
        %7999 = vmatmul.mubr.bf16.gmra.mrb[0].mxu0 %v5369
        %v8000 = vpop.f32.mrb[0].mxu0
        %v8001 = vadd.f32 %v6589, %v8000
        %v8002 = vpop.f32.mrb[0].mxu0
        %v8003 = vadd.f32 %v6591, %v8002
        %v8004 = vpop.f32.mrb[0].mxu0
        %v8005 = vadd.f32 %v6593, %v8004
        %v8006 = vpop.f32.mrb[0].mxu0
        %v8007 = vadd.f32 %v6595, %v8006
        %8008 = vmatprep.mubr.bf16.mxu0 %v5372
        %8009 = vmatmul.mubr.bf16.gmra.mrb[0].mxu0 %v5371
        %v8010 = vpop.f32.mrb[0].mxu0
        %v8011 = vadd.f32 %v6599, %v8010
        %v8012 = vpop.f32.mrb[0].mxu0
        %v8013 = vadd.f32 %v6601, %v8012
        %v8014 = vpop.f32.mrb[0].mxu0
        %v8015 = vadd.f32 %v6603, %v8014
        %v8016 = vpop.f32.mrb[0].mxu0
        %v8017 = vadd.f32 %v6605, %v8016
        %8018 = vmatprep.mubr.bf16.mxu0 %v5374
        %8019 = vmatmul.mubr.bf16.gmra.mrb[0].mxu0 %v5373
        %v8020 = vpop.f32.mrb[0].mxu0
        %v8021 = vadd.f32 %v6609, %v8020
        %v8022 = vpop.f32.mrb[0].mxu0
        %v8023 = vadd.f32 %v6611, %v8022
        %v8024 = vpop.f32.mrb[0].mxu0
        %v8025 = vadd.f32 %v6613, %v8024
        %v8026 = vpop.f32.mrb[0].mxu0
        %v8027 = vadd.f32 %v6615, %v8026
        %8028 = vmatprep.mubr.bf16.mxu0 %v5376
        %8029 = vmatmul.mubr.bf16.gmra.mrb[0].mxu0 %v5375
        %v8030 = vpop.f32.mrb[0].mxu0
        %v8031 = vadd.f32 %v6619, %v8030
        %v8032 = vpop.f32.mrb[0].mxu0
        %v8033 = vadd.f32 %v6621, %v8032
        %v8034 = vpop.f32.mrb[0].mxu0
        %v8035 = vadd.f32 %v6623, %v8034
        %v8036 = vpop.f32.mrb[0].mxu0
        %v8037 = vadd.f32 %v6625, %v8036
        %8038 = vmatprep.mubr.bf16.mxu0 %v5378
        %8039 = vmatmul.mubr.bf16.gmra.mrb[0].mxu0 %v5377
        %v8040 = vpop.f32.mrb[0].mxu0
        %v8041 = vadd.f32 %v6629, %v8040
        %v8042 = vpop.f32.mrb[0].mxu0
        %v8043 = vadd.f32 %v6631, %v8042
        %v8044 = vpop.f32.mrb[0].mxu0
        %v8045 = vadd.f32 %v6633, %v8044
        %v8046 = vpop.f32.mrb[0].mxu0
        %v8047 = vadd.f32 %v6635, %v8046
        %8048 = vmatprep.mubr.bf16.mxu0 %v5380
        %8049 = vmatmul.mubr.bf16.gmra.mrb[0].mxu0 %v5379
        %v8050 = vpop.f32.mrb[0].mxu0
        %v8051 = vadd.f32 %v6639, %v8050
        %v8052 = vpop.f32.mrb[0].mxu0
        %v8053 = vadd.f32 %v6641, %v8052
        %v8054 = vpop.f32.mrb[0].mxu0
        %v8055 = vadd.f32 %v6643, %v8054
        %v8056 = vpop.f32.mrb[0].mxu0
        %v8057 = vadd.f32 %v6645, %v8056
        %8058 = vmatprep.mubr.bf16.mxu0 %v5382
        %8059 = vmatmul.mubr.bf16.gmra.mrb[0].mxu0 %v5381
        %v8060 = vpop.f32.mrb[0].mxu0
        %v8061 = vadd.f32 %v6649, %v8060
        %v8062 = vpop.f32.mrb[0].mxu0
        %v8063 = vadd.f32 %v6651, %v8062
        %v8064 = vpop.f32.mrb[0].mxu0
        %v8065 = vadd.f32 %v6653, %v8064
        %v8066 = vpop.f32.mrb[0].mxu0
        %v8067 = vadd.f32 %v6655, %v8066
        %8068 = vmatprep.mubr.bf16.mxu0 %v5384
        %8069 = vmatmul.mubr.bf16.gmra.mrb[0].mxu0 %v5383
        %v8070 = vpop.f32.mrb[0].mxu0
        %v8071 = vadd.f32 %v6659, %v8070
        %v8072 = vpop.f32.mrb[0].mxu0
        %v8073 = vadd.f32 %v6661, %v8072
        %v8074 = vpop.f32.mrb[0].mxu0
        %v8075 = vadd.f32 %v6663, %v8074
        %v8076 = vpop.f32.mrb[0].mxu0
        %v8077 = vadd.f32 %v6665, %v8076
        %8078 = vdwg.mxu0
        %8079 = vmatprep.subr.bf16.mxu0 %v7442
        %8080 = vmatpush1.bf16.msra.mxu0 %v7441
        %8081 = vmatprep.subr.bf16.mxu0 %v7450
        %8082 = vmatpush1.bf16.msra.mxu0 %v7449
        %8083 = vmatprep.subr.bf16.mxu0 %v7458
        %8084 = vmatpush1.bf16.msra.mxu0 %v7457
        %8085 = vmatprep.subr.bf16.mxu0 %v7466
        %8086 = vmatpush1.bf16.msra.mxu0 %v7465
        %8087 = vmatprep.subr.bf16.mxu0 %v7474
        %8088 = vmatpush1.bf16.msra.mxu0 %v7473
        %8089 = vmatprep.subr.bf16.mxu0 %v7482
        %8090 = vmatpush1.bf16.msra.mxu0 %v7481
        %8091 = vmatprep.subr.bf16.mxu0 %v7490
        %8092 = vmatpush1.bf16.msra.mxu0 %v7489
        %8093 = vmatprep.subr.bf16.mxu0 %v7498
        %8094 = vmatpush1.bf16.msra.mxu0 %v7497
        %8095 = vmatprep.subr.bf16.mxu0 %v7506
        %8096 = vmatpush1.bf16.msra.mxu0 %v7505
        %8097 = vmatprep.subr.bf16.mxu0 %v7514
        %8098 = vmatpush1.bf16.msra.mxu0 %v7513
        %8099 = vmatprep.subr.bf16.mxu0 %v7522
        %8100 = vmatpush1.bf16.msra.mxu0 %v7521
        %8101 = vmatprep.subr.bf16.mxu0 %v7530
        %8102 = vmatpush1.bf16.msra.mxu0 %v7529
        %8103 = vmatprep.subr.bf16.mxu0 %v7538
        %8104 = vmatpush1.bf16.msra.mxu0 %v7537
        %8105 = vmatprep.subr.bf16.mxu0 %v7546
        %8106 = vmatpush1.bf16.msra.mxu0 %v7545
        %8107 = vmatprep.subr.bf16.mxu0 %v7554
        %8108 = vmatpush1.bf16.msra.mxu0 %v7553
        %8109 = vmatprep.subr.bf16.mxu0 %v7562
        %8110 = vmatpush1.bf16.msra.mxu0 %v7561
        %8111 = vmatprep.mubr.bf16.mxu0 %v5354
        %8112 = vmatmul.mubr.bf16.gmra.mrb[0].mxu0 %v5353
        %v8113 = vpop.f32.mrb[0].mxu0
        %v8114 = vadd.f32 %v6702, %v8113
        %v8115 = vpop.f32.mrb[0].mxu0
        %v8116 = vadd.f32 %v6704, %v8115
        %v8117 = vpop.f32.mrb[0].mxu0
        %v8118 = vadd.f32 %v6706, %v8117
        %v8119 = vpop.f32.mrb[0].mxu0
        %v8120 = vadd.f32 %v6708, %v8119
        %8121 = vmatprep.mubr.bf16.mxu0 %v5356
        %8122 = vmatmul.mubr.bf16.gmra.mrb[0].mxu0 %v5355
        %v8123 = vpop.f32.mrb[0].mxu0
        %v8124 = vadd.f32 %v6712, %v8123
        %v8125 = vpop.f32.mrb[0].mxu0
        %v8126 = vadd.f32 %v6714, %v8125
        %v8127 = vpop.f32.mrb[0].mxu0
        %v8128 = vadd.f32 %v6716, %v8127
        %v8129 = vpop.f32.mrb[0].mxu0
        %v8130 = vadd.f32 %v6718, %v8129
        %8131 = vmatprep.mubr.bf16.mxu0 %v5358
        %8132 = vmatmul.mubr.bf16.gmra.mrb[0].mxu0 %v5357
        %v8133 = vpop.f32.mrb[0].mxu0
        %v8134 = vadd.f32 %v6722, %v8133
        %v8135 = vpop.f32.mrb[0].mxu0
        %v8136 = vadd.f32 %v6724, %v8135
        %v8137 = vpop.f32.mrb[0].mxu0
        %v8138 = vadd.f32 %v6726, %v8137
        %v8139 = vpop.f32.mrb[0].mxu0
        %v8140 = vadd.f32 %v6728, %v8139
        %8141 = vmatprep.mubr.bf16.mxu0 %v5360
        %8142 = vmatmul.mubr.bf16.gmra.mrb[0].mxu0 %v5359
        %v8143 = vpop.f32.mrb[0].mxu0
        %v8144 = vadd.f32 %v6732, %v8143
        %v8145 = vpop.f32.mrb[0].mxu0
        %v8146 = vadd.f32 %v6734, %v8145
        %v8147 = vpop.f32.mrb[0].mxu0
        %v8148 = vadd.f32 %v6736, %v8147
        %v8149 = vpop.f32.mrb[0].mxu0
        %v8150 = vadd.f32 %v6738, %v8149
        %8151 = vmatprep.mubr.bf16.mxu0 %v5362
        %8152 = vmatmul.mubr.bf16.gmra.mrb[0].mxu0 %v5361
        %v8153 = vpop.f32.mrb[0].mxu0
        %v8154 = vadd.f32 %v6742, %v8153
        %v8155 = vpop.f32.mrb[0].mxu0
        %v8156 = vadd.f32 %v6744, %v8155
        %v8157 = vpop.f32.mrb[0].mxu0
        %v8158 = vadd.f32 %v6746, %v8157
        %v8159 = vpop.f32.mrb[0].mxu0
        %v8160 = vadd.f32 %v6748, %v8159
        %8161 = vmatprep.mubr.bf16.mxu0 %v5364
        %8162 = vmatmul.mubr.bf16.gmra.mrb[0].mxu0 %v5363
        %v8163 = vpop.f32.mrb[0].mxu0
        %v8164 = vadd.f32 %v6752, %v8163
        %v8165 = vpop.f32.mrb[0].mxu0
        %v8166 = vadd.f32 %v6754, %v8165
        %v8167 = vpop.f32.mrb[0].mxu0
        %v8168 = vadd.f32 %v6756, %v8167
        %v8169 = vpop.f32.mrb[0].mxu0
        %v8170 = vadd.f32 %v6758, %v8169
        %8171 = vmatprep.mubr.bf16.mxu0 %v5366
        %8172 = vmatmul.mubr.bf16.gmra.mrb[0].mxu0 %v5365
        %v8173 = vpop.f32.mrb[0].mxu0
        %v8174 = vadd.f32 %v6762, %v8173
        %v8175 = vpop.f32.mrb[0].mxu0
        %v8176 = vadd.f32 %v6764, %v8175
        %v8177 = vpop.f32.mrb[0].mxu0
        %v8178 = vadd.f32 %v6766, %v8177
        %v8179 = vpop.f32.mrb[0].mxu0
        %v8180 = vadd.f32 %v6768, %v8179
        %8181 = vmatprep.mubr.bf16.mxu0 %v5368
        %8182 = vmatmul.mubr.bf16.gmra.mrb[0].mxu0 %v5367
        %v8183 = vpop.f32.mrb[0].mxu0
        %v8184 = vadd.f32 %v6772, %v8183
        %v8185 = vpop.f32.mrb[0].mxu0
        %v8186 = vadd.f32 %v6774, %v8185
        %v8187 = vpop.f32.mrb[0].mxu0
        %v8188 = vadd.f32 %v6776, %v8187
        %v8189 = vpop.f32.mrb[0].mxu0
        %v8190 = vadd.f32 %v6778, %v8189
        %8191 = vmatprep.mubr.bf16.mxu0 %v5370
        %8192 = vmatmul.mubr.bf16.gmra.mrb[0].mxu0 %v5369
        %v8193 = vpop.f32.mrb[0].mxu0
        %v8194 = vadd.f32 %v6782, %v8193
        %v8195 = vpop.f32.mrb[0].mxu0
        %v8196 = vadd.f32 %v6784, %v8195
        %v8197 = vpop.f32.mrb[0].mxu0
        %v8198 = vadd.f32 %v6786, %v8197
        %v8199 = vpop.f32.mrb[0].mxu0
        %v8200 = vadd.f32 %v6788, %v8199
        %8201 = vmatprep.mubr.bf16.mxu0 %v5372
        %8202 = vmatmul.mubr.bf16.gmra.mrb[0].mxu0 %v5371
        %v8203 = vpop.f32.mrb[0].mxu0
        %v8204 = vadd.f32 %v6792, %v8203
        %v8205 = vpop.f32.mrb[0].mxu0
        %v8206 = vadd.f32 %v6794, %v8205
        %v8207 = vpop.f32.mrb[0].mxu0
        %v8208 = vadd.f32 %v6796, %v8207
        %v8209 = vpop.f32.mrb[0].mxu0
        %v8210 = vadd.f32 %v6798, %v8209
        %8211 = vmatprep.mubr.bf16.mxu0 %v5374
        %8212 = vmatmul.mubr.bf16.gmra.mrb[0].mxu0 %v5373
        %v8213 = vpop.f32.mrb[0].mxu0
        %v8214 = vadd.f32 %v6802, %v8213
        %v8215 = vpop.f32.mrb[0].mxu0
        %v8216 = vadd.f32 %v6804, %v8215
        %v8217 = vpop.f32.mrb[0].mxu0
        %v8218 = vadd.f32 %v6806, %v8217
        %v8219 = vpop.f32.mrb[0].mxu0
        %v8220 = vadd.f32 %v6808, %v8219
        %8221 = vmatprep.mubr.bf16.mxu0 %v5376
        %8222 = vmatmul.mubr.bf16.gmra.mrb[0].mxu0 %v5375
        %v8223 = vpop.f32.mrb[0].mxu0
        %v8224 = vadd.f32 %v6812, %v8223
        %v8225 = vpop.f32.mrb[0].mxu0
        %v8226 = vadd.f32 %v6814, %v8225
        %v8227 = vpop.f32.mrb[0].mxu0
        %v8228 = vadd.f32 %v6816, %v8227
        %v8229 = vpop.f32.mrb[0].mxu0
        %v8230 = vadd.f32 %v6818, %v8229
        %8231 = vmatprep.mubr.bf16.mxu0 %v5378
        %8232 = vmatmul.mubr.bf16.gmra.mrb[0].mxu0 %v5377
        %v8233 = vpop.f32.mrb[0].mxu0
        %v8234 = vadd.f32 %v6822, %v8233
        %v8235 = vpop.f32.mrb[0].mxu0
        %v8236 = vadd.f32 %v6824, %v8235
        %v8237 = vpop.f32.mrb[0].mxu0
        %v8238 = vadd.f32 %v6826, %v8237
        %v8239 = vpop.f32.mrb[0].mxu0
        %v8240 = vadd.f32 %v6828, %v8239
        %8241 = vmatprep.mubr.bf16.mxu0 %v5380
        %8242 = vmatmul.mubr.bf16.gmra.mrb[0].mxu0 %v5379
        %v8243 = vpop.f32.mrb[0].mxu0
        %v8244 = vadd.f32 %v6832, %v8243
        %v8245 = vpop.f32.mrb[0].mxu0
        %v8246 = vadd.f32 %v6834, %v8245
        %v8247 = vpop.f32.mrb[0].mxu0
        %v8248 = vadd.f32 %v6836, %v8247
        %v8249 = vpop.f32.mrb[0].mxu0
        %v8250 = vadd.f32 %v6838, %v8249
        %8251 = vmatprep.mubr.bf16.mxu0 %v5382
        %8252 = vmatmul.mubr.bf16.gmra.mrb[0].mxu0 %v5381
        %v8253 = vpop.f32.mrb[0].mxu0
        %v8254 = vadd.f32 %v6842, %v8253
        %v8255 = vpop.f32.mrb[0].mxu0
        %v8256 = vadd.f32 %v6844, %v8255
        %v8257 = vpop.f32.mrb[0].mxu0
        %v8258 = vadd.f32 %v6846, %v8257
        %v8259 = vpop.f32.mrb[0].mxu0
        %v8260 = vadd.f32 %v6848, %v8259
        %8261 = vmatprep.mubr.bf16.mxu0 %v5384
        %8262 = vmatmul.mubr.bf16.gmra.mrb[0].mxu0 %v5383
        %v8263 = vpop.f32.mrb[0].mxu0
        %v8264 = vadd.f32 %v6852, %v8263
        %v8265 = vpop.f32.mrb[0].mxu0
        %v8266 = vadd.f32 %v6854, %v8265
        %v8267 = vpop.f32.mrb[0].mxu0
        %v8268 = vadd.f32 %v6856, %v8267
        %v8269 = vpop.f32.mrb[0].mxu0
        %v8270 = vadd.f32 %v6858, %v8269
        %8271 = vdwg.mxu0
        %8272 = vmatprep.subr.bf16.mxu0 %v7444
        %8273 = vmatpush1.bf16.msra.mxu0 %v7443
        %8274 = vmatprep.subr.bf16.mxu0 %v7452
        %8275 = vmatpush1.bf16.msra.mxu0 %v7451
        %8276 = vmatprep.subr.bf16.mxu0 %v7460
        %8277 = vmatpush1.bf16.msra.mxu0 %v7459
        %8278 = vmatprep.subr.bf16.mxu0 %v7468
        %8279 = vmatpush1.bf16.msra.mxu0 %v7467
        %8280 = vmatprep.subr.bf16.mxu0 %v7476
        %8281 = vmatpush1.bf16.msra.mxu0 %v7475
        %8282 = vmatprep.subr.bf16.mxu0 %v7484
        %8283 = vmatpush1.bf16.msra.mxu0 %v7483
        %8284 = vmatprep.subr.bf16.mxu0 %v7492
        %8285 = vmatpush1.bf16.msra.mxu0 %v7491
        %8286 = vmatprep.subr.bf16.mxu0 %v7500
        %8287 = vmatpush1.bf16.msra.mxu0 %v7499
        %8288 = vmatprep.subr.bf16.mxu0 %v7508
        %8289 = vmatpush1.bf16.msra.mxu0 %v7507
        %8290 = vmatprep.subr.bf16.mxu0 %v7516
        %8291 = vmatpush1.bf16.msra.mxu0 %v7515
        %8292 = vmatprep.subr.bf16.mxu0 %v7524
        %8293 = vmatpush1.bf16.msra.mxu0 %v7523
        %8294 = vmatprep.subr.bf16.mxu0 %v7532
        %8295 = vmatpush1.bf16.msra.mxu0 %v7531
        %8296 = vmatprep.subr.bf16.mxu0 %v7540
        %8297 = vmatpush1.bf16.msra.mxu0 %v7539
        %8298 = vmatprep.subr.bf16.mxu0 %v7548
        %8299 = vmatpush1.bf16.msra.mxu0 %v7547
        %8300 = vmatprep.subr.bf16.mxu0 %v7556
        %8301 = vmatpush1.bf16.msra.mxu0 %v7555
        %8302 = vmatprep.subr.bf16.mxu0 %v7564
        %8303 = vmatpush1.bf16.msra.mxu0 %v7563
        %8304 = vmatprep.mubr.bf16.mxu0 %v5354
        %8305 = vmatmul.mubr.bf16.gmra.mrb[0].mxu0 %v5353
        %v8306 = vpop.f32.mrb[0].mxu0
        %v8307 = vadd.f32 %v6895, %v8306
        %v8308 = vpop.f32.mrb[0].mxu0
        %v8309 = vadd.f32 %v6897, %v8308
        %v8310 = vpop.f32.mrb[0].mxu0
        %v8311 = vadd.f32 %v6899, %v8310
        %v8312 = vpop.f32.mrb[0].mxu0
        %v8313 = vadd.f32 %v6901, %v8312
        %8314 = vmatprep.mubr.bf16.mxu0 %v5356
        %8315 = vmatmul.mubr.bf16.gmra.mrb[0].mxu0 %v5355
        %v8316 = vpop.f32.mrb[0].mxu0
        %v8317 = vadd.f32 %v6905, %v8316
        %v8318 = vpop.f32.mrb[0].mxu0
        %v8319 = vadd.f32 %v6907, %v8318
        %v8320 = vpop.f32.mrb[0].mxu0
        %v8321 = vadd.f32 %v6909, %v8320
        %v8322 = vpop.f32.mrb[0].mxu0
        %v8323 = vadd.f32 %v6911, %v8322
        %8324 = vmatprep.mubr.bf16.mxu0 %v5358
        %8325 = vmatmul.mubr.bf16.gmra.mrb[0].mxu0 %v5357
        %v8326 = vpop.f32.mrb[0].mxu0
        %v8327 = vadd.f32 %v6915, %v8326
        %v8328 = vpop.f32.mrb[0].mxu0
        %v8329 = vadd.f32 %v6917, %v8328
        %v8330 = vpop.f32.mrb[0].mxu0
        %v8331 = vadd.f32 %v6919, %v8330
        %v8332 = vpop.f32.mrb[0].mxu0
        %v8333 = vadd.f32 %v6921, %v8332
        %8334 = vmatprep.mubr.bf16.mxu0 %v5360
        %8335 = vmatmul.mubr.bf16.gmra.mrb[0].mxu0 %v5359
        %v8336 = vpop.f32.mrb[0].mxu0
        %v8337 = vadd.f32 %v6925, %v8336
        %v8338 = vpop.f32.mrb[0].mxu0
        %v8339 = vadd.f32 %v6927, %v8338
        %v8340 = vpop.f32.mrb[0].mxu0
        %v8341 = vadd.f32 %v6929, %v8340
        %v8342 = vpop.f32.mrb[0].mxu0
        %v8343 = vadd.f32 %v6931, %v8342
        %8344 = vmatprep.mubr.bf16.mxu0 %v5362
        %8345 = vmatmul.mubr.bf16.gmra.mrb[0].mxu0 %v5361
        %v8346 = vpop.f32.mrb[0].mxu0
        %v8347 = vadd.f32 %v6935, %v8346
        %v8348 = vpop.f32.mrb[0].mxu0
        %v8349 = vadd.f32 %v6937, %v8348
        %v8350 = vpop.f32.mrb[0].mxu0
        %v8351 = vadd.f32 %v6939, %v8350
        %v8352 = vpop.f32.mrb[0].mxu0
        %v8353 = vadd.f32 %v6941, %v8352
        %8354 = vmatprep.mubr.bf16.mxu0 %v5364
        %8355 = vmatmul.mubr.bf16.gmra.mrb[0].mxu0 %v5363
        %v8356 = vpop.f32.mrb[0].mxu0
        %v8357 = vadd.f32 %v6945, %v8356
        %v8358 = vpop.f32.mrb[0].mxu0
        %v8359 = vadd.f32 %v6947, %v8358
        %v8360 = vpop.f32.mrb[0].mxu0
        %v8361 = vadd.f32 %v6949, %v8360
        %v8362 = vpop.f32.mrb[0].mxu0
        %v8363 = vadd.f32 %v6951, %v8362
        %8364 = vmatprep.mubr.bf16.mxu0 %v5366
        %8365 = vmatmul.mubr.bf16.gmra.mrb[0].mxu0 %v5365
        %v8366 = vpop.f32.mrb[0].mxu0
        %v8367 = vadd.f32 %v6955, %v8366
        %v8368 = vpop.f32.mrb[0].mxu0
        %v8369 = vadd.f32 %v6957, %v8368
        %v8370 = vpop.f32.mrb[0].mxu0
        %v8371 = vadd.f32 %v6959, %v8370
        %v8372 = vpop.f32.mrb[0].mxu0
        %v8373 = vadd.f32 %v6961, %v8372
        %8374 = vmatprep.mubr.bf16.mxu0 %v5368
        %8375 = vmatmul.mubr.bf16.gmra.mrb[0].mxu0 %v5367
        %v8376 = vpop.f32.mrb[0].mxu0
        %v8377 = vadd.f32 %v6965, %v8376
        %v8378 = vpop.f32.mrb[0].mxu0
        %v8379 = vadd.f32 %v6967, %v8378
        %v8380 = vpop.f32.mrb[0].mxu0
        %v8381 = vadd.f32 %v6969, %v8380
        %v8382 = vpop.f32.mrb[0].mxu0
        %v8383 = vadd.f32 %v6971, %v8382
        %8384 = vmatprep.mubr.bf16.mxu0 %v5370
        %8385 = vmatmul.mubr.bf16.gmra.mrb[0].mxu0 %v5369
        %v8386 = vpop.f32.mrb[0].mxu0
        %v8387 = vadd.f32 %v6975, %v8386
        %v8388 = vpop.f32.mrb[0].mxu0
        %v8389 = vadd.f32 %v6977, %v8388
        %v8390 = vpop.f32.mrb[0].mxu0
        %v8391 = vadd.f32 %v6979, %v8390
        %v8392 = vpop.f32.mrb[0].mxu0
        %v8393 = vadd.f32 %v6981, %v8392
        %8394 = vmatprep.mubr.bf16.mxu0 %v5372
        %8395 = vmatmul.mubr.bf16.gmra.mrb[0].mxu0 %v5371
        %v8396 = vpop.f32.mrb[0].mxu0
        %v8397 = vadd.f32 %v6985, %v8396
        %v8398 = vpop.f32.mrb[0].mxu0
        %v8399 = vadd.f32 %v6987, %v8398
        %v8400 = vpop.f32.mrb[0].mxu0
        %v8401 = vadd.f32 %v6989, %v8400
        %v8402 = vpop.f32.mrb[0].mxu0
        %v8403 = vadd.f32 %v6991, %v8402
        %8404 = vmatprep.mubr.bf16.mxu0 %v5374
        %8405 = vmatmul.mubr.bf16.gmra.mrb[0].mxu0 %v5373
        %v8406 = vpop.f32.mrb[0].mxu0
        %v8407 = vadd.f32 %v6995, %v8406
        %v8408 = vpop.f32.mrb[0].mxu0
        %v8409 = vadd.f32 %v6997, %v8408
        %v8410 = vpop.f32.mrb[0].mxu0
        %v8411 = vadd.f32 %v6999, %v8410
        %v8412 = vpop.f32.mrb[0].mxu0
        %v8413 = vadd.f32 %v7001, %v8412
        %8414 = vmatprep.mubr.bf16.mxu0 %v5376
        %8415 = vmatmul.mubr.bf16.gmra.mrb[0].mxu0 %v5375
        %v8416 = vpop.f32.mrb[0].mxu0
        %v8417 = vadd.f32 %v7005, %v8416
        %v8418 = vpop.f32.mrb[0].mxu0
        %v8419 = vadd.f32 %v7007, %v8418
        %v8420 = vpop.f32.mrb[0].mxu0
        %v8421 = vadd.f32 %v7009, %v8420
        %v8422 = vpop.f32.mrb[0].mxu0
        %v8423 = vadd.f32 %v7011, %v8422
        %8424 = vmatprep.mubr.bf16.mxu0 %v5378
        %8425 = vmatmul.mubr.bf16.gmra.mrb[0].mxu0 %v5377
        %v8426 = vpop.f32.mrb[0].mxu0
        %v8427 = vadd.f32 %v7015, %v8426
        %v8428 = vpop.f32.mrb[0].mxu0
        %v8429 = vadd.f32 %v7017, %v8428
        %v8430 = vpop.f32.mrb[0].mxu0
        %v8431 = vadd.f32 %v7019, %v8430
        %v8432 = vpop.f32.mrb[0].mxu0
        %v8433 = vadd.f32 %v7021, %v8432
        %8434 = vmatprep.mubr.bf16.mxu0 %v5380
        %8435 = vmatmul.mubr.bf16.gmra.mrb[0].mxu0 %v5379
        %v8436 = vpop.f32.mrb[0].mxu0
        %v8437 = vadd.f32 %v7025, %v8436
        %v8438 = vpop.f32.mrb[0].mxu0
        %v8439 = vadd.f32 %v7027, %v8438
        %v8440 = vpop.f32.mrb[0].mxu0
        %v8441 = vadd.f32 %v7029, %v8440
        %v8442 = vpop.f32.mrb[0].mxu0
        %v8443 = vadd.f32 %v7031, %v8442
        %8444 = vmatprep.mubr.bf16.mxu0 %v5382
        %8445 = vmatmul.mubr.bf16.gmra.mrb[0].mxu0 %v5381
        %v8446 = vpop.f32.mrb[0].mxu0
        %v8447 = vadd.f32 %v7035, %v8446
        %v8448 = vpop.f32.mrb[0].mxu0
        %v8449 = vadd.f32 %v7037, %v8448
        %v8450 = vpop.f32.mrb[0].mxu0
        %v8451 = vadd.f32 %v7039, %v8450
        %v8452 = vpop.f32.mrb[0].mxu0
        %v8453 = vadd.f32 %v7041, %v8452
        %8454 = vmatprep.mubr.bf16.mxu0 %v5384
        %8455 = vmatmul.mubr.bf16.gmra.mrb[0].mxu0 %v5383
        %v8456 = vpop.f32.mrb[0].mxu0
        %v8457 = vadd.f32 %v7045, %v8456
        %v8458 = vpop.f32.mrb[0].mxu0
        %v8459 = vadd.f32 %v7047, %v8458
        %v8460 = vpop.f32.mrb[0].mxu0
        %v8461 = vadd.f32 %v7049, %v8460
        %v8462 = vpop.f32.mrb[0].mxu0
        %v8463 = vadd.f32 %v7051, %v8462
        %8464 = vdwg.mxu0
        %v8465 = vld [vmem:[%s14] sm:$0xff]
        %v8467 = vlaneseq
        %v8468 = vshrl.u32 %v8467, 7
        %v8469 = vsub.s32 0, %v8468
        %v8470 = vrot.slane %v8465, %v8469
        %v8471 = vlaneseq
        %v8472 = vshrl.u32 %v8471, 7
        %v8473 = vsub.s32 1, %v8472
        %v8474 = vrot.slane %v8465, %v8473
        %v8475 = vlaneseq
        %v8476 = vshrl.u32 %v8475, 7
        %v8477 = vsub.s32 2, %v8476
        %v8478 = vrot.slane %v8465, %v8477
        %v8479 = vlaneseq
        %v8480 = vshrl.u32 %v8479, 7
        %v8481 = vsub.s32 3, %v8480
        %v8482 = vrot.slane %v8465, %v8481
        %v8483 = vlaneseq
        %v8484 = vshrl.u32 %v8483, 7
        %v8485 = vsub.s32 4, %v8484
        %v8486 = vrot.slane %v8465, %v8485
        %v8487 = vlaneseq
        %v8488 = vshrl.u32 %v8487, 7
        %v8489 = vsub.s32 5, %v8488
        %v8490 = vrot.slane %v8465, %v8489
        %v8491 = vlaneseq
        %v8492 = vshrl.u32 %v8491, 7
        %v8493 = vsub.s32 6, %v8492
        %v8494 = vrot.slane %v8465, %v8493
        %v8495 = vlaneseq
        %v8496 = vshrl.u32 %v8495, 7
        %v8497 = vsub.s32 7, %v8496
        %v8498 = vrot.slane %v8465, %v8497
        %v8507 = vadd.f32 %v7728, %v8470
        %v8508 = vadd.f32 %v7730, %v8474
        %v8509 = vadd.f32 %v7921, %v8478
        %v8510 = vadd.f32 %v7923, %v8482
        %v8511 = vadd.f32 %v8114, %v8486
        %v8512 = vadd.f32 %v8116, %v8490
        %v8513 = vadd.f32 %v8307, %v8494
        %v8514 = vadd.f32 %v8309, %v8498
        %v8515 = vadd.f32 %v7732, %v8470
        %v8516 = vadd.f32 %v7734, %v8474
        %v8517 = vadd.f32 %v7925, %v8478
        %v8518 = vadd.f32 %v7927, %v8482
        %v8519 = vadd.f32 %v8118, %v8486
        %v8520 = vadd.f32 %v8120, %v8490
        %v8521 = vadd.f32 %v8311, %v8494
        %v8522 = vadd.f32 %v8313, %v8498
        %v8523 = vadd.f32 %v7738, %v8470
        %v8524 = vadd.f32 %v7740, %v8474
        %v8525 = vadd.f32 %v7931, %v8478
        %v8526 = vadd.f32 %v7933, %v8482
        %v8527 = vadd.f32 %v8124, %v8486
        %v8528 = vadd.f32 %v8126, %v8490
        %v8529 = vadd.f32 %v8317, %v8494
        %v8530 = vadd.f32 %v8319, %v8498
        %v8531 = vadd.f32 %v7742, %v8470
        %v8532 = vadd.f32 %v7744, %v8474
        %v8533 = vadd.f32 %v7935, %v8478
        %v8534 = vadd.f32 %v7937, %v8482
        %v8535 = vadd.f32 %v8128, %v8486
        %v8536 = vadd.f32 %v8130, %v8490
        %v8537 = vadd.f32 %v8321, %v8494
        %v8538 = vadd.f32 %v8323, %v8498
        %v8539 = vadd.f32 %v7748, %v8470
        %v8540 = vadd.f32 %v7750, %v8474
        %v8541 = vadd.f32 %v7941, %v8478
        %v8542 = vadd.f32 %v7943, %v8482
        %v8543 = vadd.f32 %v8134, %v8486
        %v8544 = vadd.f32 %v8136, %v8490
        %v8545 = vadd.f32 %v8327, %v8494
        %v8546 = vadd.f32 %v8329, %v8498
        %v8547 = vadd.f32 %v7752, %v8470
        %v8548 = vadd.f32 %v7754, %v8474
        %v8549 = vadd.f32 %v7945, %v8478
        %v8550 = vadd.f32 %v7947, %v8482
        %v8551 = vadd.f32 %v8138, %v8486
        %v8552 = vadd.f32 %v8140, %v8490
        %v8553 = vadd.f32 %v8331, %v8494
        %v8554 = vadd.f32 %v8333, %v8498
        %v8555 = vadd.f32 %v7758, %v8470
        %v8556 = vadd.f32 %v7760, %v8474
        %v8557 = vadd.f32 %v7951, %v8478
        %v8558 = vadd.f32 %v7953, %v8482
        %v8559 = vadd.f32 %v8144, %v8486
        %v8560 = vadd.f32 %v8146, %v8490
        %v8561 = vadd.f32 %v8337, %v8494
        %v8562 = vadd.f32 %v8339, %v8498
        %v8563 = vadd.f32 %v7762, %v8470
        %v8564 = vadd.f32 %v7764, %v8474
        %v8565 = vadd.f32 %v7955, %v8478
        %v8566 = vadd.f32 %v7957, %v8482
        %v8567 = vadd.f32 %v8148, %v8486
        %v8568 = vadd.f32 %v8150, %v8490
        %v8569 = vadd.f32 %v8341, %v8494
        %v8570 = vadd.f32 %v8343, %v8498
        %v8571 = vadd.f32 %v7768, %v8470
        %v8572 = vadd.f32 %v7770, %v8474
        %v8573 = vadd.f32 %v7961, %v8478
        %v8574 = vadd.f32 %v7963, %v8482
        %v8575 = vadd.f32 %v8154, %v8486
        %v8576 = vadd.f32 %v8156, %v8490
        %v8577 = vadd.f32 %v8347, %v8494
        %v8578 = vadd.f32 %v8349, %v8498
        %v8579 = vadd.f32 %v7772, %v8470
        %v8580 = vadd.f32 %v7774, %v8474
        %v8581 = vadd.f32 %v7965, %v8478
        %v8582 = vadd.f32 %v7967, %v8482
        %v8583 = vadd.f32 %v8158, %v8486
        %v8584 = vadd.f32 %v8160, %v8490
        %v8585 = vadd.f32 %v8351, %v8494
        %v8586 = vadd.f32 %v8353, %v8498
        %v8587 = vadd.f32 %v7778, %v8470
        %v8588 = vadd.f32 %v7780, %v8474
        %v8589 = vadd.f32 %v7971, %v8478
        %v8590 = vadd.f32 %v7973, %v8482
        %v8591 = vadd.f32 %v8164, %v8486
        %v8592 = vadd.f32 %v8166, %v8490
        %v8593 = vadd.f32 %v8357, %v8494
        %v8594 = vadd.f32 %v8359, %v8498
        %v8595 = vadd.f32 %v7782, %v8470
        %v8596 = vadd.f32 %v7784, %v8474
        %v8597 = vadd.f32 %v7975, %v8478
        %v8598 = vadd.f32 %v7977, %v8482
        %v8599 = vadd.f32 %v8168, %v8486
        %v8600 = vadd.f32 %v8170, %v8490
        %v8601 = vadd.f32 %v8361, %v8494
        %v8602 = vadd.f32 %v8363, %v8498
        %v8603 = vadd.f32 %v7788, %v8470
        %v8604 = vadd.f32 %v7790, %v8474
        %v8605 = vadd.f32 %v7981, %v8478
        %v8606 = vadd.f32 %v7983, %v8482
        %v8607 = vadd.f32 %v8174, %v8486
        %v8608 = vadd.f32 %v8176, %v8490
        %v8609 = vadd.f32 %v8367, %v8494
        %v8610 = vadd.f32 %v8369, %v8498
        %v8611 = vadd.f32 %v7792, %v8470
        %v8612 = vadd.f32 %v7794, %v8474
        %v8613 = vadd.f32 %v7985, %v8478
        %v8614 = vadd.f32 %v7987, %v8482
        %v8615 = vadd.f32 %v8178, %v8486
        %v8616 = vadd.f32 %v8180, %v8490
        %v8617 = vadd.f32 %v8371, %v8494
        %v8618 = vadd.f32 %v8373, %v8498
        %v8619 = vadd.f32 %v7798, %v8470
        %v8620 = vadd.f32 %v7800, %v8474
        %v8621 = vadd.f32 %v7991, %v8478
        %v8622 = vadd.f32 %v7993, %v8482
        %v8623 = vadd.f32 %v8184, %v8486
        %v8624 = vadd.f32 %v8186, %v8490
        %v8625 = vadd.f32 %v8377, %v8494
        %v8626 = vadd.f32 %v8379, %v8498
        %v8627 = vadd.f32 %v7802, %v8470
        %v8628 = vadd.f32 %v7804, %v8474
        %v8629 = vadd.f32 %v7995, %v8478
        %v8630 = vadd.f32 %v7997, %v8482
        %v8631 = vadd.f32 %v8188, %v8486
        %v8632 = vadd.f32 %v8190, %v8490
        %v8633 = vadd.f32 %v8381, %v8494
        %v8634 = vadd.f32 %v8383, %v8498
        %v8635 = vadd.f32 %v7808, %v8470
        %v8636 = vadd.f32 %v7810, %v8474
        %v8637 = vadd.f32 %v8001, %v8478
        %v8638 = vadd.f32 %v8003, %v8482
        %v8639 = vadd.f32 %v8194, %v8486
        %v8640 = vadd.f32 %v8196, %v8490
        %v8641 = vadd.f32 %v8387, %v8494
        %v8642 = vadd.f32 %v8389, %v8498
        %v8643 = vadd.f32 %v7812, %v8470
        %v8644 = vadd.f32 %v7814, %v8474
        %v8645 = vadd.f32 %v8005, %v8478
        %v8646 = vadd.f32 %v8007, %v8482
        %v8647 = vadd.f32 %v8198, %v8486
        %v8648 = vadd.f32 %v8200, %v8490
        %v8649 = vadd.f32 %v8391, %v8494
        %v8650 = vadd.f32 %v8393, %v8498
        %v8651 = vadd.f32 %v7818, %v8470
        %v8652 = vadd.f32 %v7820, %v8474
        %v8653 = vadd.f32 %v8011, %v8478
        %v8654 = vadd.f32 %v8013, %v8482
        %v8655 = vadd.f32 %v8204, %v8486
        %v8656 = vadd.f32 %v8206, %v8490
        %v8657 = vadd.f32 %v8397, %v8494
        %v8658 = vadd.f32 %v8399, %v8498
        %v8659 = vadd.f32 %v7822, %v8470
        %v8660 = vadd.f32 %v7824, %v8474
        %v8661 = vadd.f32 %v8015, %v8478
        %v8662 = vadd.f32 %v8017, %v8482
        %v8663 = vadd.f32 %v8208, %v8486
        %v8664 = vadd.f32 %v8210, %v8490
        %v8665 = vadd.f32 %v8401, %v8494
        %v8666 = vadd.f32 %v8403, %v8498
        %v8667 = vadd.f32 %v7828, %v8470
        %v8668 = vadd.f32 %v7830, %v8474
        %v8669 = vadd.f32 %v8021, %v8478
        %v8670 = vadd.f32 %v8023, %v8482
        %v8671 = vadd.f32 %v8214, %v8486
        %v8672 = vadd.f32 %v8216, %v8490
        %v8673 = vadd.f32 %v8407, %v8494
        %v8674 = vadd.f32 %v8409, %v8498
        %v8675 = vadd.f32 %v7832, %v8470
        %v8676 = vadd.f32 %v7834, %v8474
        %v8677 = vadd.f32 %v8025, %v8478
        %v8678 = vadd.f32 %v8027, %v8482
        %v8679 = vadd.f32 %v8218, %v8486
        %v8680 = vadd.f32 %v8220, %v8490
        %v8681 = vadd.f32 %v8411, %v8494
        %v8682 = vadd.f32 %v8413, %v8498
        %v8683 = vadd.f32 %v7838, %v8470
        %v8684 = vadd.f32 %v7840, %v8474
        %v8685 = vadd.f32 %v8031, %v8478
        %v8686 = vadd.f32 %v8033, %v8482
        %v8687 = vadd.f32 %v8224, %v8486
        %v8688 = vadd.f32 %v8226, %v8490
        %v8689 = vadd.f32 %v8417, %v8494
        %v8690 = vadd.f32 %v8419, %v8498
        %v8691 = vadd.f32 %v7842, %v8470
        %v8692 = vadd.f32 %v7844, %v8474
        %v8693 = vadd.f32 %v8035, %v8478
        %v8694 = vadd.f32 %v8037, %v8482
        %v8695 = vadd.f32 %v8228, %v8486
        %v8696 = vadd.f32 %v8230, %v8490
        %v8697 = vadd.f32 %v8421, %v8494
        %v8698 = vadd.f32 %v8423, %v8498
        %v8699 = vadd.f32 %v7848, %v8470
        %v8700 = vadd.f32 %v7850, %v8474
        %v8701 = vadd.f32 %v8041, %v8478
        %v8702 = vadd.f32 %v8043, %v8482
        %v8703 = vadd.f32 %v8234, %v8486
        %v8704 = vadd.f32 %v8236, %v8490
        %v8705 = vadd.f32 %v8427, %v8494
        %v8706 = vadd.f32 %v8429, %v8498
        %v8707 = vadd.f32 %v7852, %v8470
        %v8708 = vadd.f32 %v7854, %v8474
        %v8709 = vadd.f32 %v8045, %v8478
        %v8710 = vadd.f32 %v8047, %v8482
        %v8711 = vadd.f32 %v8238, %v8486
        %v8712 = vadd.f32 %v8240, %v8490
        %v8713 = vadd.f32 %v8431, %v8494
        %v8714 = vadd.f32 %v8433, %v8498
        %v8715 = vadd.f32 %v7858, %v8470
        %v8716 = vadd.f32 %v7860, %v8474
        %v8717 = vadd.f32 %v8051, %v8478
        %v8718 = vadd.f32 %v8053, %v8482
        %v8719 = vadd.f32 %v8244, %v8486
        %v8720 = vadd.f32 %v8246, %v8490
        %v8721 = vadd.f32 %v8437, %v8494
        %v8722 = vadd.f32 %v8439, %v8498
        %v8723 = vadd.f32 %v7862, %v8470
        %v8724 = vadd.f32 %v7864, %v8474
        %v8725 = vadd.f32 %v8055, %v8478
        %v8726 = vadd.f32 %v8057, %v8482
        %v8727 = vadd.f32 %v8248, %v8486
        %v8728 = vadd.f32 %v8250, %v8490
        %v8729 = vadd.f32 %v8441, %v8494
        %v8730 = vadd.f32 %v8443, %v8498
        %v8731 = vadd.f32 %v7868, %v8470
        %v8732 = vadd.f32 %v7870, %v8474
        %v8733 = vadd.f32 %v8061, %v8478
        %v8734 = vadd.f32 %v8063, %v8482
        %v8735 = vadd.f32 %v8254, %v8486
        %v8736 = vadd.f32 %v8256, %v8490
        %v8737 = vadd.f32 %v8447, %v8494
        %v8738 = vadd.f32 %v8449, %v8498
        %v8739 = vadd.f32 %v7872, %v8470
        %v8740 = vadd.f32 %v7874, %v8474
        %v8741 = vadd.f32 %v8065, %v8478
        %v8742 = vadd.f32 %v8067, %v8482
        %v8743 = vadd.f32 %v8258, %v8486
        %v8744 = vadd.f32 %v8260, %v8490
        %v8745 = vadd.f32 %v8451, %v8494
        %v8746 = vadd.f32 %v8453, %v8498
        %v8747 = vadd.f32 %v7878, %v8470
        %v8748 = vadd.f32 %v7880, %v8474
        %v8749 = vadd.f32 %v8071, %v8478
        %v8750 = vadd.f32 %v8073, %v8482
        %v8751 = vadd.f32 %v8264, %v8486
        %v8752 = vadd.f32 %v8266, %v8490
        %v8753 = vadd.f32 %v8457, %v8494
        %v8754 = vadd.f32 %v8459, %v8498
        %v8755 = vadd.f32 %v7882, %v8470
        %v8756 = vadd.f32 %v7884, %v8474
        %v8757 = vadd.f32 %v8075, %v8478
        %v8758 = vadd.f32 %v8077, %v8482
        %v8759 = vadd.f32 %v8268, %v8486
        %v8760 = vadd.f32 %v8270, %v8490
        %v8761 = vadd.f32 %v8461, %v8494
        %v8762 = vadd.f32 %v8463, %v8498
        %v8763 = vmax.f32 %v8507, 0.0
        %v8764 = vmax.f32 %v8508, 0.0
        %v8765 = vmax.f32 %v8509, 0.0
        %v8766 = vmax.f32 %v8510, 0.0
        %v8767 = vmax.f32 %v8511, 0.0
        %v8768 = vmax.f32 %v8512, 0.0
        %v8769 = vmax.f32 %v8513, 0.0
        %v8770 = vmax.f32 %v8514, 0.0
        %v8771 = vmax.f32 %v8515, 0.0
        %v8772 = vmax.f32 %v8516, 0.0
        %v8773 = vmax.f32 %v8517, 0.0
        %v8774 = vmax.f32 %v8518, 0.0
        %v8775 = vmax.f32 %v8519, 0.0
        %v8776 = vmax.f32 %v8520, 0.0
        %v8777 = vmax.f32 %v8521, 0.0
        %v8778 = vmax.f32 %v8522, 0.0
        %v8779 = vmax.f32 %v8523, 0.0
        %v8780 = vmax.f32 %v8524, 0.0
        %v8781 = vmax.f32 %v8525, 0.0
        %v8782 = vmax.f32 %v8526, 0.0
        %v8783 = vmax.f32 %v8527, 0.0
        %v8784 = vmax.f32 %v8528, 0.0
        %v8785 = vmax.f32 %v8529, 0.0
        %v8786 = vmax.f32 %v8530, 0.0
        %v8787 = vmax.f32 %v8531, 0.0
        %v8788 = vmax.f32 %v8532, 0.0
        %v8789 = vmax.f32 %v8533, 0.0
        %v8790 = vmax.f32 %v8534, 0.0
        %v8791 = vmax.f32 %v8535, 0.0
        %v8792 = vmax.f32 %v8536, 0.0
        %v8793 = vmax.f32 %v8537, 0.0
        %v8794 = vmax.f32 %v8538, 0.0
        %v8795 = vmax.f32 %v8539, 0.0
        %v8796 = vmax.f32 %v8540, 0.0
        %v8797 = vmax.f32 %v8541, 0.0
        %v8798 = vmax.f32 %v8542, 0.0
        %v8799 = vmax.f32 %v8543, 0.0
        %v8800 = vmax.f32 %v8544, 0.0
        %v8801 = vmax.f32 %v8545, 0.0
        %v8802 = vmax.f32 %v8546, 0.0
        %v8803 = vmax.f32 %v8547, 0.0
        %v8804 = vmax.f32 %v8548, 0.0
        %v8805 = vmax.f32 %v8549, 0.0
        %v8806 = vmax.f32 %v8550, 0.0
        %v8807 = vmax.f32 %v8551, 0.0
        %v8808 = vmax.f32 %v8552, 0.0
        %v8809 = vmax.f32 %v8553, 0.0
        %v8810 = vmax.f32 %v8554, 0.0
        %v8811 = vmax.f32 %v8555, 0.0
        %v8812 = vmax.f32 %v8556, 0.0
        %v8813 = vmax.f32 %v8557, 0.0
        %v8814 = vmax.f32 %v8558, 0.0
        %v8815 = vmax.f32 %v8559, 0.0
        %v8816 = vmax.f32 %v8560, 0.0
        %v8817 = vmax.f32 %v8561, 0.0
        %v8818 = vmax.f32 %v8562, 0.0
        %v8819 = vmax.f32 %v8563, 0.0
        %v8820 = vmax.f32 %v8564, 0.0
        %v8821 = vmax.f32 %v8565, 0.0
        %v8822 = vmax.f32 %v8566, 0.0
        %v8823 = vmax.f32 %v8567, 0.0
        %v8824 = vmax.f32 %v8568, 0.0
        %v8825 = vmax.f32 %v8569, 0.0
        %v8826 = vmax.f32 %v8570, 0.0
        %v8827 = vmax.f32 %v8571, 0.0
        %v8828 = vmax.f32 %v8572, 0.0
        %v8829 = vmax.f32 %v8573, 0.0
        %v8830 = vmax.f32 %v8574, 0.0
        %v8831 = vmax.f32 %v8575, 0.0
        %v8832 = vmax.f32 %v8576, 0.0
        %v8833 = vmax.f32 %v8577, 0.0
        %v8834 = vmax.f32 %v8578, 0.0
        %v8835 = vmax.f32 %v8579, 0.0
        %v8836 = vmax.f32 %v8580, 0.0
        %v8837 = vmax.f32 %v8581, 0.0
        %v8838 = vmax.f32 %v8582, 0.0
        %v8839 = vmax.f32 %v8583, 0.0
        %v8840 = vmax.f32 %v8584, 0.0
        %v8841 = vmax.f32 %v8585, 0.0
        %v8842 = vmax.f32 %v8586, 0.0
        %v8843 = vmax.f32 %v8587, 0.0
        %v8844 = vmax.f32 %v8588, 0.0
        %v8845 = vmax.f32 %v8589, 0.0
        %v8846 = vmax.f32 %v8590, 0.0
        %v8847 = vmax.f32 %v8591, 0.0
        %v8848 = vmax.f32 %v8592, 0.0
        %v8849 = vmax.f32 %v8593, 0.0
        %v8850 = vmax.f32 %v8594, 0.0
        %v8851 = vmax.f32 %v8595, 0.0
        %v8852 = vmax.f32 %v8596, 0.0
        %v8853 = vmax.f32 %v8597, 0.0
        %v8854 = vmax.f32 %v8598, 0.0
        %v8855 = vmax.f32 %v8599, 0.0
        %v8856 = vmax.f32 %v8600, 0.0
        %v8857 = vmax.f32 %v8601, 0.0
        %v8858 = vmax.f32 %v8602, 0.0
        %v8859 = vmax.f32 %v8603, 0.0
        %v8860 = vmax.f32 %v8604, 0.0
        %v8861 = vmax.f32 %v8605, 0.0
        %v8862 = vmax.f32 %v8606, 0.0
        %v8863 = vmax.f32 %v8607, 0.0
        %v8864 = vmax.f32 %v8608, 0.0
        %v8865 = vmax.f32 %v8609, 0.0
        %v8866 = vmax.f32 %v8610, 0.0
        %v8867 = vmax.f32 %v8611, 0.0
        %v8868 = vmax.f32 %v8612, 0.0
        %v8869 = vmax.f32 %v8613, 0.0
        %v8870 = vmax.f32 %v8614, 0.0
        %v8871 = vmax.f32 %v8615, 0.0
        %v8872 = vmax.f32 %v8616, 0.0
        %v8873 = vmax.f32 %v8617, 0.0
        %v8874 = vmax.f32 %v8618, 0.0
        %v8875 = vmax.f32 %v8619, 0.0
        %v8876 = vmax.f32 %v8620, 0.0
        %v8877 = vmax.f32 %v8621, 0.0
        %v8878 = vmax.f32 %v8622, 0.0
        %v8879 = vmax.f32 %v8623, 0.0
        %v8880 = vmax.f32 %v8624, 0.0
        %v8881 = vmax.f32 %v8625, 0.0
        %v8882 = vmax.f32 %v8626, 0.0
        %v8883 = vmax.f32 %v8627, 0.0
        %v8884 = vmax.f32 %v8628, 0.0
        %v8885 = vmax.f32 %v8629, 0.0
        %v8886 = vmax.f32 %v8630, 0.0
        %v8887 = vmax.f32 %v8631, 0.0
        %v8888 = vmax.f32 %v8632, 0.0
        %v8889 = vmax.f32 %v8633, 0.0
        %v8890 = vmax.f32 %v8634, 0.0
        %v8891 = vmax.f32 %v8635, 0.0
        %v8892 = vmax.f32 %v8636, 0.0
        %v8893 = vmax.f32 %v8637, 0.0
        %v8894 = vmax.f32 %v8638, 0.0
        %v8895 = vmax.f32 %v8639, 0.0
        %v8896 = vmax.f32 %v8640, 0.0
        %v8897 = vmax.f32 %v8641, 0.0
        %v8898 = vmax.f32 %v8642, 0.0
        %v8899 = vmax.f32 %v8643, 0.0
        %v8900 = vmax.f32 %v8644, 0.0
        %v8901 = vmax.f32 %v8645, 0.0
        %v8902 = vmax.f32 %v8646, 0.0
        %v8903 = vmax.f32 %v8647, 0.0
        %v8904 = vmax.f32 %v8648, 0.0
        %v8905 = vmax.f32 %v8649, 0.0
        %v8906 = vmax.f32 %v8650, 0.0
        %v8907 = vmax.f32 %v8651, 0.0
        %v8908 = vmax.f32 %v8652, 0.0
        %v8909 = vmax.f32 %v8653, 0.0
        %v8910 = vmax.f32 %v8654, 0.0
        %v8911 = vmax.f32 %v8655, 0.0
        %v8912 = vmax.f32 %v8656, 0.0
        %v8913 = vmax.f32 %v8657, 0.0
        %v8914 = vmax.f32 %v8658, 0.0
        %v8915 = vmax.f32 %v8659, 0.0
        %v8916 = vmax.f32 %v8660, 0.0
        %v8917 = vmax.f32 %v8661, 0.0
        %v8918 = vmax.f32 %v8662, 0.0
        %v8919 = vmax.f32 %v8663, 0.0
        %v8920 = vmax.f32 %v8664, 0.0
        %v8921 = vmax.f32 %v8665, 0.0
        %v8922 = vmax.f32 %v8666, 0.0
        %v8923 = vmax.f32 %v8667, 0.0
        %v8924 = vmax.f32 %v8668, 0.0
        %v8925 = vmax.f32 %v8669, 0.0
        %v8926 = vmax.f32 %v8670, 0.0
        %v8927 = vmax.f32 %v8671, 0.0
        %v8928 = vmax.f32 %v8672, 0.0
        %v8929 = vmax.f32 %v8673, 0.0
        %v8930 = vmax.f32 %v8674, 0.0
        %v8931 = vmax.f32 %v8675, 0.0
        %v8932 = vmax.f32 %v8676, 0.0
        %v8933 = vmax.f32 %v8677, 0.0
        %v8934 = vmax.f32 %v8678, 0.0
        %v8935 = vmax.f32 %v8679, 0.0
        %v8936 = vmax.f32 %v8680, 0.0
        %v8937 = vmax.f32 %v8681, 0.0
        %v8938 = vmax.f32 %v8682, 0.0
        %v8939 = vmax.f32 %v8683, 0.0
        %v8940 = vmax.f32 %v8684, 0.0
        %v8941 = vmax.f32 %v8685, 0.0
        %v8942 = vmax.f32 %v8686, 0.0
        %v8943 = vmax.f32 %v8687, 0.0
        %v8944 = vmax.f32 %v8688, 0.0
        %v8945 = vmax.f32 %v8689, 0.0
        %v8946 = vmax.f32 %v8690, 0.0
        %v8947 = vmax.f32 %v8691, 0.0
        %v8948 = vmax.f32 %v8692, 0.0
        %v8949 = vmax.f32 %v8693, 0.0
        %v8950 = vmax.f32 %v8694, 0.0
        %v8951 = vmax.f32 %v8695, 0.0
        %v8952 = vmax.f32 %v8696, 0.0
        %v8953 = vmax.f32 %v8697, 0.0
        %v8954 = vmax.f32 %v8698, 0.0
        %v8955 = vmax.f32 %v8699, 0.0
        %v8956 = vmax.f32 %v8700, 0.0
        %v8957 = vmax.f32 %v8701, 0.0
        %v8958 = vmax.f32 %v8702, 0.0
        %v8959 = vmax.f32 %v8703, 0.0
        %v8960 = vmax.f32 %v8704, 0.0
        %v8961 = vmax.f32 %v8705, 0.0
        %v8962 = vmax.f32 %v8706, 0.0
        %v8963 = vmax.f32 %v8707, 0.0
        %v8964 = vmax.f32 %v8708, 0.0
        %v8965 = vmax.f32 %v8709, 0.0
        %v8966 = vmax.f32 %v8710, 0.0
        %v8967 = vmax.f32 %v8711, 0.0
        %v8968 = vmax.f32 %v8712, 0.0
        %v8969 = vmax.f32 %v8713, 0.0
        %v8970 = vmax.f32 %v8714, 0.0
        %v8971 = vmax.f32 %v8715, 0.0
        %v8972 = vmax.f32 %v8716, 0.0
        %v8973 = vmax.f32 %v8717, 0.0
        %v8974 = vmax.f32 %v8718, 0.0
        %v8975 = vmax.f32 %v8719, 0.0
        %v8976 = vmax.f32 %v8720, 0.0
        %v8977 = vmax.f32 %v8721, 0.0
        %v8978 = vmax.f32 %v8722, 0.0
        %v8979 = vmax.f32 %v8723, 0.0
        %v8980 = vmax.f32 %v8724, 0.0
        %v8981 = vmax.f32 %v8725, 0.0
        %v8982 = vmax.f32 %v8726, 0.0
        %v8983 = vmax.f32 %v8727, 0.0
        %v8984 = vmax.f32 %v8728, 0.0
        %v8985 = vmax.f32 %v8729, 0.0
        %v8986 = vmax.f32 %v8730, 0.0
        %v8987 = vmax.f32 %v8731, 0.0
        %v8988 = vmax.f32 %v8732, 0.0
        %v8989 = vmax.f32 %v8733, 0.0
        %v8990 = vmax.f32 %v8734, 0.0
        %v8991 = vmax.f32 %v8735, 0.0
        %v8992 = vmax.f32 %v8736, 0.0
        %v8993 = vmax.f32 %v8737, 0.0
        %v8994 = vmax.f32 %v8738, 0.0
        %v8995 = vmax.f32 %v8739, 0.0
        %v8996 = vmax.f32 %v8740, 0.0
        %v8997 = vmax.f32 %v8741, 0.0
        %v8998 = vmax.f32 %v8742, 0.0
        %v8999 = vmax.f32 %v8743, 0.0
        %v9000 = vmax.f32 %v8744, 0.0
        %v9001 = vmax.f32 %v8745, 0.0
        %v9002 = vmax.f32 %v8746, 0.0
        %v9003 = vmax.f32 %v8747, 0.0
        %v9004 = vmax.f32 %v8748, 0.0
        %v9005 = vmax.f32 %v8749, 0.0
        %v9006 = vmax.f32 %v8750, 0.0
        %v9007 = vmax.f32 %v8751, 0.0
        %v9008 = vmax.f32 %v8752, 0.0
        %v9009 = vmax.f32 %v8753, 0.0
        %v9010 = vmax.f32 %v8754, 0.0
        %v9011 = vmax.f32 %v8755, 0.0
        %v9012 = vmax.f32 %v8756, 0.0
        %v9013 = vmax.f32 %v8757, 0.0
        %v9014 = vmax.f32 %v8758, 0.0
        %v9015 = vmax.f32 %v8759, 0.0
        %v9016 = vmax.f32 %v8760, 0.0
        %v9017 = vmax.f32 %v8761, 0.0
        %v9018 = vmax.f32 %v8762, 0.0
        %v9019 = vpack.c.bf16 %v8771, %v8763
        %v9020 = vpack.c.bf16 %v8772, %v8764
        %v9021 = vpack.c.bf16 %v8773, %v8765
        %v9022 = vpack.c.bf16 %v8774, %v8766
        %v9023 = vpack.c.bf16 %v8775, %v8767
        %v9024 = vpack.c.bf16 %v8776, %v8768
        %v9025 = vpack.c.bf16 %v8777, %v8769
        %v9026 = vpack.c.bf16 %v8778, %v8770
        %v9027 = vpack.c.bf16 %v8787, %v8779
        %v9028 = vpack.c.bf16 %v8788, %v8780
        %v9029 = vpack.c.bf16 %v8789, %v8781
        %v9030 = vpack.c.bf16 %v8790, %v8782
        %v9031 = vpack.c.bf16 %v8791, %v8783
        %v9032 = vpack.c.bf16 %v8792, %v8784
        %v9033 = vpack.c.bf16 %v8793, %v8785
        %v9034 = vpack.c.bf16 %v8794, %v8786
        %v9035 = vpack.c.bf16 %v8803, %v8795
        %v9036 = vpack.c.bf16 %v8804, %v8796
        %v9037 = vpack.c.bf16 %v8805, %v8797
        %v9038 = vpack.c.bf16 %v8806, %v8798
        %v9039 = vpack.c.bf16 %v8807, %v8799
        %v9040 = vpack.c.bf16 %v8808, %v8800
        %v9041 = vpack.c.bf16 %v8809, %v8801
        %v9042 = vpack.c.bf16 %v8810, %v8802
        %v9043 = vpack.c.bf16 %v8819, %v8811
        %v9044 = vpack.c.bf16 %v8820, %v8812
        %v9045 = vpack.c.bf16 %v8821, %v8813
        %v9046 = vpack.c.bf16 %v8822, %v8814
        %v9047 = vpack.c.bf16 %v8823, %v8815
        %v9048 = vpack.c.bf16 %v8824, %v8816
        %v9049 = vpack.c.bf16 %v8825, %v8817
        %v9050 = vpack.c.bf16 %v8826, %v8818
        %v9051 = vpack.c.bf16 %v8835, %v8827
        %v9052 = vpack.c.bf16 %v8836, %v8828
        %v9053 = vpack.c.bf16 %v8837, %v8829
        %v9054 = vpack.c.bf16 %v8838, %v8830
        %v9055 = vpack.c.bf16 %v8839, %v8831
        %v9056 = vpack.c.bf16 %v8840, %v8832
        %v9057 = vpack.c.bf16 %v8841, %v8833
        %v9058 = vpack.c.bf16 %v8842, %v8834
        %v9059 = vpack.c.bf16 %v8851, %v8843
        %v9060 = vpack.c.bf16 %v8852, %v8844
        %v9061 = vpack.c.bf16 %v8853, %v8845
        %v9062 = vpack.c.bf16 %v8854, %v8846
        %v9063 = vpack.c.bf16 %v8855, %v8847
        %v9064 = vpack.c.bf16 %v8856, %v8848
        %v9065 = vpack.c.bf16 %v8857, %v8849
        %v9066 = vpack.c.bf16 %v8858, %v8850
        %v9067 = vpack.c.bf16 %v8867, %v8859
        %v9068 = vpack.c.bf16 %v8868, %v8860
        %v9069 = vpack.c.bf16 %v8869, %v8861
        %v9070 = vpack.c.bf16 %v8870, %v8862
        %v9071 = vpack.c.bf16 %v8871, %v8863
        %v9072 = vpack.c.bf16 %v8872, %v8864
        %v9073 = vpack.c.bf16 %v8873, %v8865
        %v9074 = vpack.c.bf16 %v8874, %v8866
        %v9075 = vpack.c.bf16 %v8883, %v8875
        %v9076 = vpack.c.bf16 %v8884, %v8876
        %v9077 = vpack.c.bf16 %v8885, %v8877
        %v9078 = vpack.c.bf16 %v8886, %v8878
        %v9079 = vpack.c.bf16 %v8887, %v8879
        %v9080 = vpack.c.bf16 %v8888, %v8880
        %v9081 = vpack.c.bf16 %v8889, %v8881
        %v9082 = vpack.c.bf16 %v8890, %v8882
        %v9083 = vpack.c.bf16 %v8899, %v8891
        %v9084 = vpack.c.bf16 %v8900, %v8892
        %v9085 = vpack.c.bf16 %v8901, %v8893
        %v9086 = vpack.c.bf16 %v8902, %v8894
        %v9087 = vpack.c.bf16 %v8903, %v8895
        %v9088 = vpack.c.bf16 %v8904, %v8896
        %v9089 = vpack.c.bf16 %v8905, %v8897
        %v9090 = vpack.c.bf16 %v8906, %v8898
        %v9091 = vpack.c.bf16 %v8915, %v8907
        %v9092 = vpack.c.bf16 %v8916, %v8908
        %v9093 = vpack.c.bf16 %v8917, %v8909
        %v9094 = vpack.c.bf16 %v8918, %v8910
        %v9095 = vpack.c.bf16 %v8919, %v8911
        %v9096 = vpack.c.bf16 %v8920, %v8912
        %v9097 = vpack.c.bf16 %v8921, %v8913
        %v9098 = vpack.c.bf16 %v8922, %v8914
        %v9099 = vpack.c.bf16 %v8931, %v8923
        %v9100 = vpack.c.bf16 %v8932, %v8924
        %v9101 = vpack.c.bf16 %v8933, %v8925
        %v9102 = vpack.c.bf16 %v8934, %v8926
        %v9103 = vpack.c.bf16 %v8935, %v8927
        %v9104 = vpack.c.bf16 %v8936, %v8928
        %v9105 = vpack.c.bf16 %v8937, %v8929
        %v9106 = vpack.c.bf16 %v8938, %v8930
        %v9107 = vpack.c.bf16 %v8947, %v8939
        %v9108 = vpack.c.bf16 %v8948, %v8940
        %v9109 = vpack.c.bf16 %v8949, %v8941
        %v9110 = vpack.c.bf16 %v8950, %v8942
        %v9111 = vpack.c.bf16 %v8951, %v8943
        %v9112 = vpack.c.bf16 %v8952, %v8944
        %v9113 = vpack.c.bf16 %v8953, %v8945
        %v9114 = vpack.c.bf16 %v8954, %v8946
        %v9115 = vpack.c.bf16 %v8963, %v8955
        %v9116 = vpack.c.bf16 %v8964, %v8956
        %v9117 = vpack.c.bf16 %v8965, %v8957
        %v9118 = vpack.c.bf16 %v8966, %v8958
        %v9119 = vpack.c.bf16 %v8967, %v8959
        %v9120 = vpack.c.bf16 %v8968, %v8960
        %v9121 = vpack.c.bf16 %v8969, %v8961
        %v9122 = vpack.c.bf16 %v8970, %v8962
        %v9123 = vpack.c.bf16 %v8979, %v8971
        %v9124 = vpack.c.bf16 %v8980, %v8972
        %v9125 = vpack.c.bf16 %v8981, %v8973
        %v9126 = vpack.c.bf16 %v8982, %v8974
        %v9127 = vpack.c.bf16 %v8983, %v8975
        %v9128 = vpack.c.bf16 %v8984, %v8976
        %v9129 = vpack.c.bf16 %v8985, %v8977
        %v9130 = vpack.c.bf16 %v8986, %v8978
        %v9131 = vpack.c.bf16 %v8995, %v8987
        %v9132 = vpack.c.bf16 %v8996, %v8988
        %v9133 = vpack.c.bf16 %v8997, %v8989
        %v9134 = vpack.c.bf16 %v8998, %v8990
        %v9135 = vpack.c.bf16 %v8999, %v8991
        %v9136 = vpack.c.bf16 %v9000, %v8992
        %v9137 = vpack.c.bf16 %v9001, %v8993
        %v9138 = vpack.c.bf16 %v9002, %v8994
        %v9139 = vpack.c.bf16 %v9011, %v9003
        %v9140 = vpack.c.bf16 %v9012, %v9004
        %v9141 = vpack.c.bf16 %v9013, %v9005
        %v9142 = vpack.c.bf16 %v9014, %v9006
        %v9143 = vpack.c.bf16 %v9015, %v9007
        %v9144 = vpack.c.bf16 %v9016, %v9008
        %v9145 = vpack.c.bf16 %v9017, %v9009
        %v9146 = vpack.c.bf16 %v9018, %v9010
        %v9147 = vld [vmem:[#allocation11] sm:$0xf]
        %v9148 = vld [vmem:[#allocation11 + $0x4] sm:$0xf]
        %v9149 = vld [vmem:[#allocation11 + $0x8] sm:$0xf]
        %v9150 = vld [vmem:[#allocation11 + $0xc] sm:$0xf]
        %v9151 = vld [vmem:[#allocation11 + $0x10] sm:$0xf]
        %v9152 = vld [vmem:[#allocation11 + $0x14] sm:$0xf]
        %v9153 = vld [vmem:[#allocation11 + $0x18] sm:$0xf]
        %v9154 = vld [vmem:[#allocation11 + $0x1c] sm:$0xf]
        %v9155 = vld [vmem:[#allocation11 + $0x20] sm:$0xf]
        %v9156 = vld [vmem:[#allocation11 + $0x24] sm:$0xf]
        %v9157 = vld [vmem:[#allocation11 + $0x28] sm:$0xf]
        %v9158 = vld [vmem:[#allocation11 + $0x2c] sm:$0xf]
        %v9159 = vld [vmem:[#allocation11 + $0x30] sm:$0xf]
        %v9160 = vld [vmem:[#allocation11 + $0x34] sm:$0xf]
        %v9161 = vld [vmem:[#allocation11 + $0x38] sm:$0xf]
        %v9162 = vld [vmem:[#allocation11 + $0x3c] sm:$0xf]
        %v9163 = vld [vmem:[#allocation11 + $0x40] sm:$0xf]
        %v9164 = vld [vmem:[#allocation11 + $0x44] sm:$0xf]
        %v9165 = vld [vmem:[#allocation11 + $0x48] sm:$0xf]
        %v9166 = vld [vmem:[#allocation11 + $0x4c] sm:$0xf]
        %v9167 = vld [vmem:[#allocation11 + $0x50] sm:$0xf]
        %v9168 = vld [vmem:[#allocation11 + $0x54] sm:$0xf]
        %v9169 = vld [vmem:[#allocation11 + $0x58] sm:$0xf]
        %v9170 = vld [vmem:[#allocation11 + $0x5c] sm:$0xf]
        %v9171 = vld [vmem:[#allocation11 + $0x60] sm:$0xf]
        %v9172 = vld [vmem:[#allocation11 + $0x64] sm:$0xf]
        %v9173 = vld [vmem:[#allocation11 + $0x68] sm:$0xf]
        %v9174 = vld [vmem:[#allocation11 + $0x6c] sm:$0xf]
        %v9175 = vld [vmem:[#allocation11 + $0x70] sm:$0xf]
        %v9176 = vld [vmem:[#allocation11 + $0x74] sm:$0xf]
        %v9177 = vld [vmem:[#allocation11 + $0x78] sm:$0xf]
        %v9178 = vld [vmem:[#allocation11 + $0x7c] sm:$0xf]
        %v9179 = vld [vmem:[#allocation11 + $0x80] sm:$0xf]
        %v9180 = vld [vmem:[#allocation11 + $0x84] sm:$0xf]
        %v9181 = vld [vmem:[#allocation11 + $0x88] sm:$0xf]
        %v9182 = vld [vmem:[#allocation11 + $0x8c] sm:$0xf]
        %v9183 = vld [vmem:[#allocation11 + $0x90] sm:$0xf]
        %v9184 = vld [vmem:[#allocation11 + $0x94] sm:$0xf]
        %v9185 = vld [vmem:[#allocation11 + $0x98] sm:$0xf]
        %v9186 = vld [vmem:[#allocation11 + $0x9c] sm:$0xf]
        %v9187 = vld [vmem:[#allocation11 + $0xa0] sm:$0xf]
        %v9188 = vld [vmem:[#allocation11 + $0xa4] sm:$0xf]
        %v9189 = vld [vmem:[#allocation11 + $0xa8] sm:$0xf]
        %v9190 = vld [vmem:[#allocation11 + $0xac] sm:$0xf]
        %v9191 = vld [vmem:[#allocation11 + $0xb0] sm:$0xf]
        %v9192 = vld [vmem:[#allocation11 + $0xb4] sm:$0xf]
        %v9193 = vld [vmem:[#allocation11 + $0xb8] sm:$0xf]
        %v9194 = vld [vmem:[#allocation11 + $0xbc] sm:$0xf]
        %v9195 = vld [vmem:[#allocation11 + $0xc0] sm:$0xf]
        %v9196 = vld [vmem:[#allocation11 + $0xc4] sm:$0xf]
        %v9197 = vld [vmem:[#allocation11 + $0xc8] sm:$0xf]
        %v9198 = vld [vmem:[#allocation11 + $0xcc] sm:$0xf]
        %v9199 = vld [vmem:[#allocation11 + $0xd0] sm:$0xf]
        %v9200 = vld [vmem:[#allocation11 + $0xd4] sm:$0xf]
        %v9201 = vld [vmem:[#allocation11 + $0xd8] sm:$0xf]
        %v9202 = vld [vmem:[#allocation11 + $0xdc] sm:$0xf]
        %v9203 = vld [vmem:[#allocation11 + $0xe0] sm:$0xf]
        %v9204 = vld [vmem:[#allocation11 + $0xe4] sm:$0xf]
        %v9205 = vld [vmem:[#allocation11 + $0xe8] sm:$0xf]
        %v9206 = vld [vmem:[#allocation11 + $0xec] sm:$0xf]
        %v9207 = vld [vmem:[#allocation11 + $0xf0] sm:$0xf]
        %v9208 = vld [vmem:[#allocation11 + $0xf4] sm:$0xf]
        %v9209 = vld [vmem:[#allocation11 + $0xf8] sm:$0xf]
        %v9210 = vld [vmem:[#allocation11 + $0xfc] sm:$0xf]
        %v9211 = vld [vmem:[#allocation11 + $0x100] sm:$0xf]
        %v9212 = vld [vmem:[#allocation11 + $0x104] sm:$0xf]
        %v9213 = vld [vmem:[#allocation11 + $0x108] sm:$0xf]
        %v9214 = vld [vmem:[#allocation11 + $0x10c] sm:$0xf]
        %v9215 = vld [vmem:[#allocation11 + $0x110] sm:$0xf]
        %v9216 = vld [vmem:[#allocation11 + $0x114] sm:$0xf]
        %v9217 = vld [vmem:[#allocation11 + $0x118] sm:$0xf]
        %v9218 = vld [vmem:[#allocation11 + $0x11c] sm:$0xf]
        %v9219 = vld [vmem:[#allocation11 + $0x120] sm:$0xf]
        %v9220 = vld [vmem:[#allocation11 + $0x124] sm:$0xf]
        %v9221 = vld [vmem:[#allocation11 + $0x128] sm:$0xf]
        %v9222 = vld [vmem:[#allocation11 + $0x12c] sm:$0xf]
        %v9223 = vld [vmem:[#allocation11 + $0x130] sm:$0xf]
        %v9224 = vld [vmem:[#allocation11 + $0x134] sm:$0xf]
        %v9225 = vld [vmem:[#allocation11 + $0x138] sm:$0xf]
        %v9226 = vld [vmem:[#allocation11 + $0x13c] sm:$0xf]
        %v9227 = vld [vmem:[#allocation11 + $0x140] sm:$0xf]
        %v9228 = vld [vmem:[#allocation11 + $0x144] sm:$0xf]
        %v9229 = vld [vmem:[#allocation11 + $0x148] sm:$0xf]
        %v9230 = vld [vmem:[#allocation11 + $0x14c] sm:$0xf]
        %v9231 = vld [vmem:[#allocation11 + $0x150] sm:$0xf]
        %v9232 = vld [vmem:[#allocation11 + $0x154] sm:$0xf]
        %v9233 = vld [vmem:[#allocation11 + $0x158] sm:$0xf]
        %v9234 = vld [vmem:[#allocation11 + $0x15c] sm:$0xf]
        %v9235 = vld [vmem:[#allocation11 + $0x160] sm:$0xf]
        %v9236 = vld [vmem:[#allocation11 + $0x164] sm:$0xf]
        %v9237 = vld [vmem:[#allocation11 + $0x168] sm:$0xf]
        %v9238 = vld [vmem:[#allocation11 + $0x16c] sm:$0xf]
        %v9239 = vld [vmem:[#allocation11 + $0x170] sm:$0xf]
        %v9240 = vld [vmem:[#allocation11 + $0x174] sm:$0xf]
        %v9241 = vld [vmem:[#allocation11 + $0x178] sm:$0xf]
        %v9242 = vld [vmem:[#allocation11 + $0x17c] sm:$0xf]
        %v9243 = vld [vmem:[#allocation11 + $0x180] sm:$0xf]
        %v9244 = vld [vmem:[#allocation11 + $0x184] sm:$0xf]
        %v9245 = vld [vmem:[#allocation11 + $0x188] sm:$0xf]
        %v9246 = vld [vmem:[#allocation11 + $0x18c] sm:$0xf]
        %v9247 = vld [vmem:[#allocation11 + $0x190] sm:$0xf]
        %v9248 = vld [vmem:[#allocation11 + $0x194] sm:$0xf]
        %v9249 = vld [vmem:[#allocation11 + $0x198] sm:$0xf]
        %v9250 = vld [vmem:[#allocation11 + $0x19c] sm:$0xf]
        %v9251 = vld [vmem:[#allocation11 + $0x1a0] sm:$0xf]
        %v9252 = vld [vmem:[#allocation11 + $0x1a4] sm:$0xf]
        %v9253 = vld [vmem:[#allocation11 + $0x1a8] sm:$0xf]
        %v9254 = vld [vmem:[#allocation11 + $0x1ac] sm:$0xf]
        %v9255 = vld [vmem:[#allocation11 + $0x1b0] sm:$0xf]
        %v9256 = vld [vmem:[#allocation11 + $0x1b4] sm:$0xf]
        %v9257 = vld [vmem:[#allocation11 + $0x1b8] sm:$0xf]
        %v9258 = vld [vmem:[#allocation11 + $0x1bc] sm:$0xf]
        %v9259 = vld [vmem:[#allocation11 + $0x1c0] sm:$0xf]
        %v9260 = vld [vmem:[#allocation11 + $0x1c4] sm:$0xf]
        %v9261 = vld [vmem:[#allocation11 + $0x1c8] sm:$0xf]
        %v9262 = vld [vmem:[#allocation11 + $0x1cc] sm:$0xf]
        %v9263 = vld [vmem:[#allocation11 + $0x1d0] sm:$0xf]
        %v9264 = vld [vmem:[#allocation11 + $0x1d4] sm:$0xf]
        %v9265 = vld [vmem:[#allocation11 + $0x1d8] sm:$0xf]
        %v9266 = vld [vmem:[#allocation11 + $0x1dc] sm:$0xf]
        %v9267 = vld [vmem:[#allocation11 + $0x1e0] sm:$0xf]
        %v9268 = vld [vmem:[#allocation11 + $0x1e4] sm:$0xf]
        %v9269 = vld [vmem:[#allocation11 + $0x1e8] sm:$0xf]
        %v9270 = vld [vmem:[#allocation11 + $0x1ec] sm:$0xf]
        %v9271 = vld [vmem:[#allocation11 + $0x1f0] sm:$0xf]
        %v9272 = vld [vmem:[#allocation11 + $0x1f4] sm:$0xf]
        %v9273 = vld [vmem:[#allocation11 + $0x1f8] sm:$0xf]
        %v9274 = vld [vmem:[#allocation11 + $0x1fc] sm:$0xf]
        %v9275 = vld [vmem:[#allocation13] sm:$0xf]
        %v9276 = vld [vmem:[#allocation13 + $0x4] sm:$0xf]
        %v9277 = vld [vmem:[#allocation13 + $0x8] sm:$0xf]
        %v9278 = vld [vmem:[#allocation13 + $0xc] sm:$0xf]
        %v9279 = vld [vmem:[#allocation13 + $0x10] sm:$0xf]
        %v9280 = vld [vmem:[#allocation13 + $0x14] sm:$0xf]
        %v9281 = vld [vmem:[#allocation13 + $0x18] sm:$0xf]
        %v9282 = vld [vmem:[#allocation13 + $0x1c] sm:$0xf]
        %v9283 = vld [vmem:[#allocation13 + $0x20] sm:$0xf]
        %v9284 = vld [vmem:[#allocation13 + $0x24] sm:$0xf]
        %v9285 = vld [vmem:[#allocation13 + $0x28] sm:$0xf]
        %v9286 = vld [vmem:[#allocation13 + $0x2c] sm:$0xf]
        %v9287 = vld [vmem:[#allocation13 + $0x30] sm:$0xf]
        %v9288 = vld [vmem:[#allocation13 + $0x34] sm:$0xf]
        %v9289 = vld [vmem:[#allocation13 + $0x38] sm:$0xf]
        %v9290 = vld [vmem:[#allocation13 + $0x3c] sm:$0xf]
        %v9291 = vld [vmem:[#allocation13 + $0x40] sm:$0xf]
        %v9292 = vld [vmem:[#allocation13 + $0x44] sm:$0xf]
        %v9293 = vld [vmem:[#allocation13 + $0x48] sm:$0xf]
        %v9294 = vld [vmem:[#allocation13 + $0x4c] sm:$0xf]
        %v9295 = vld [vmem:[#allocation13 + $0x50] sm:$0xf]
        %v9296 = vld [vmem:[#allocation13 + $0x54] sm:$0xf]
        %v9297 = vld [vmem:[#allocation13 + $0x58] sm:$0xf]
        %v9298 = vld [vmem:[#allocation13 + $0x5c] sm:$0xf]
        %v9299 = vld [vmem:[#allocation13 + $0x60] sm:$0xf]
        %v9300 = vld [vmem:[#allocation13 + $0x64] sm:$0xf]
        %v9301 = vld [vmem:[#allocation13 + $0x68] sm:$0xf]
        %v9302 = vld [vmem:[#allocation13 + $0x6c] sm:$0xf]
        %v9303 = vld [vmem:[#allocation13 + $0x70] sm:$0xf]
        %v9304 = vld [vmem:[#allocation13 + $0x74] sm:$0xf]
        %v9305 = vld [vmem:[#allocation13 + $0x78] sm:$0xf]
        %v9306 = vld [vmem:[#allocation13 + $0x7c] sm:$0xf]
        %v9307 = vld [vmem:[#allocation13 + $0x80] sm:$0xf]
        %v9308 = vld [vmem:[#allocation13 + $0x84] sm:$0xf]
        %v9309 = vld [vmem:[#allocation13 + $0x88] sm:$0xf]
        %v9310 = vld [vmem:[#allocation13 + $0x8c] sm:$0xf]
        %v9311 = vld [vmem:[#allocation13 + $0x90] sm:$0xf]
        %v9312 = vld [vmem:[#allocation13 + $0x94] sm:$0xf]
        %v9313 = vld [vmem:[#allocation13 + $0x98] sm:$0xf]
        %v9314 = vld [vmem:[#allocation13 + $0x9c] sm:$0xf]
        %v9315 = vld [vmem:[#allocation13 + $0xa0] sm:$0xf]
        %v9316 = vld [vmem:[#allocation13 + $0xa4] sm:$0xf]
        %v9317 = vld [vmem:[#allocation13 + $0xa8] sm:$0xf]
        %v9318 = vld [vmem:[#allocation13 + $0xac] sm:$0xf]
        %v9319 = vld [vmem:[#allocation13 + $0xb0] sm:$0xf]
        %v9320 = vld [vmem:[#allocation13 + $0xb4] sm:$0xf]
        %v9321 = vld [vmem:[#allocation13 + $0xb8] sm:$0xf]
        %v9322 = vld [vmem:[#allocation13 + $0xbc] sm:$0xf]
        %v9323 = vld [vmem:[#allocation13 + $0xc0] sm:$0xf]
        %v9324 = vld [vmem:[#allocation13 + $0xc4] sm:$0xf]
        %v9325 = vld [vmem:[#allocation13 + $0xc8] sm:$0xf]
        %v9326 = vld [vmem:[#allocation13 + $0xcc] sm:$0xf]
        %v9327 = vld [vmem:[#allocation13 + $0xd0] sm:$0xf]
        %v9328 = vld [vmem:[#allocation13 + $0xd4] sm:$0xf]
        %v9329 = vld [vmem:[#allocation13 + $0xd8] sm:$0xf]
        %v9330 = vld [vmem:[#allocation13 + $0xdc] sm:$0xf]
        %v9331 = vld [vmem:[#allocation13 + $0xe0] sm:$0xf]
        %v9332 = vld [vmem:[#allocation13 + $0xe4] sm:$0xf]
        %v9333 = vld [vmem:[#allocation13 + $0xe8] sm:$0xf]
        %v9334 = vld [vmem:[#allocation13 + $0xec] sm:$0xf]
        %v9335 = vld [vmem:[#allocation13 + $0xf0] sm:$0xf]
        %v9336 = vld [vmem:[#allocation13 + $0xf4] sm:$0xf]
        %v9337 = vld [vmem:[#allocation13 + $0xf8] sm:$0xf]
        %v9338 = vld [vmem:[#allocation13 + $0xfc] sm:$0xf]
        %v9339 = vld [vmem:[#allocation13 + $0x100] sm:$0xf]
        %v9340 = vld [vmem:[#allocation13 + $0x104] sm:$0xf]
        %v9341 = vld [vmem:[#allocation13 + $0x108] sm:$0xf]
        %v9342 = vld [vmem:[#allocation13 + $0x10c] sm:$0xf]
        %v9343 = vld [vmem:[#allocation13 + $0x110] sm:$0xf]
        %v9344 = vld [vmem:[#allocation13 + $0x114] sm:$0xf]
        %v9345 = vld [vmem:[#allocation13 + $0x118] sm:$0xf]
        %v9346 = vld [vmem:[#allocation13 + $0x11c] sm:$0xf]
        %v9347 = vld [vmem:[#allocation13 + $0x120] sm:$0xf]
        %v9348 = vld [vmem:[#allocation13 + $0x124] sm:$0xf]
        %v9349 = vld [vmem:[#allocation13 + $0x128] sm:$0xf]
        %v9350 = vld [vmem:[#allocation13 + $0x12c] sm:$0xf]
        %v9351 = vld [vmem:[#allocation13 + $0x130] sm:$0xf]
        %v9352 = vld [vmem:[#allocation13 + $0x134] sm:$0xf]
        %v9353 = vld [vmem:[#allocation13 + $0x138] sm:$0xf]
        %v9354 = vld [vmem:[#allocation13 + $0x13c] sm:$0xf]
        %v9355 = vld [vmem:[#allocation13 + $0x140] sm:$0xf]
        %v9356 = vld [vmem:[#allocation13 + $0x144] sm:$0xf]
        %v9357 = vld [vmem:[#allocation13 + $0x148] sm:$0xf]
        %v9358 = vld [vmem:[#allocation13 + $0x14c] sm:$0xf]
        %v9359 = vld [vmem:[#allocation13 + $0x150] sm:$0xf]
        %v9360 = vld [vmem:[#allocation13 + $0x154] sm:$0xf]
        %v9361 = vld [vmem:[#allocation13 + $0x158] sm:$0xf]
        %v9362 = vld [vmem:[#allocation13 + $0x15c] sm:$0xf]
        %v9363 = vld [vmem:[#allocation13 + $0x160] sm:$0xf]
        %v9364 = vld [vmem:[#allocation13 + $0x164] sm:$0xf]
        %v9365 = vld [vmem:[#allocation13 + $0x168] sm:$0xf]
        %v9366 = vld [vmem:[#allocation13 + $0x16c] sm:$0xf]
        %v9367 = vld [vmem:[#allocation13 + $0x170] sm:$0xf]
        %v9368 = vld [vmem:[#allocation13 + $0x174] sm:$0xf]
        %v9369 = vld [vmem:[#allocation13 + $0x178] sm:$0xf]
        %v9370 = vld [vmem:[#allocation13 + $0x17c] sm:$0xf]
        %v9371 = vld [vmem:[#allocation13 + $0x180] sm:$0xf]
        %v9372 = vld [vmem:[#allocation13 + $0x184] sm:$0xf]
        %v9373 = vld [vmem:[#allocation13 + $0x188] sm:$0xf]
        %v9374 = vld [vmem:[#allocation13 + $0x18c] sm:$0xf]
        %v9375 = vld [vmem:[#allocation13 + $0x190] sm:$0xf]
        %v9376 = vld [vmem:[#allocation13 + $0x194] sm:$0xf]
        %v9377 = vld [vmem:[#allocation13 + $0x198] sm:$0xf]
        %v9378 = vld [vmem:[#allocation13 + $0x19c] sm:$0xf]
        %v9379 = vld [vmem:[#allocation13 + $0x1a0] sm:$0xf]
        %v9380 = vld [vmem:[#allocation13 + $0x1a4] sm:$0xf]
        %v9381 = vld [vmem:[#allocation13 + $0x1a8] sm:$0xf]
        %v9382 = vld [vmem:[#allocation13 + $0x1ac] sm:$0xf]
        %v9383 = vld [vmem:[#allocation13 + $0x1b0] sm:$0xf]
        %v9384 = vld [vmem:[#allocation13 + $0x1b4] sm:$0xf]
        %v9385 = vld [vmem:[#allocation13 + $0x1b8] sm:$0xf]
        %v9386 = vld [vmem:[#allocation13 + $0x1bc] sm:$0xf]
        %v9387 = vld [vmem:[#allocation13 + $0x1c0] sm:$0xf]
        %v9388 = vld [vmem:[#allocation13 + $0x1c4] sm:$0xf]
        %v9389 = vld [vmem:[#allocation13 + $0x1c8] sm:$0xf]
        %v9390 = vld [vmem:[#allocation13 + $0x1cc] sm:$0xf]
        %v9391 = vld [vmem:[#allocation13 + $0x1d0] sm:$0xf]
        %v9392 = vld [vmem:[#allocation13 + $0x1d4] sm:$0xf]
        %v9393 = vld [vmem:[#allocation13 + $0x1d8] sm:$0xf]
        %v9394 = vld [vmem:[#allocation13 + $0x1dc] sm:$0xf]
        %v9395 = vld [vmem:[#allocation13 + $0x1e0] sm:$0xf]
        %v9396 = vld [vmem:[#allocation13 + $0x1e4] sm:$0xf]
        %v9397 = vld [vmem:[#allocation13 + $0x1e8] sm:$0xf]
        %v9398 = vld [vmem:[#allocation13 + $0x1ec] sm:$0xf]
        %v9399 = vld [vmem:[#allocation13 + $0x1f0] sm:$0xf]
        %v9400 = vld [vmem:[#allocation13 + $0x1f4] sm:$0xf]
        %v9401 = vld [vmem:[#allocation13 + $0x1f8] sm:$0xf]
        %v9402 = vld [vmem:[#allocation13 + $0x1fc] sm:$0xf]
        %v9531 = vunpack.c.l.b16 %v9275
        %v9532 = vunpack.c.l.b16 %v9276
        %v9533 = vunpack.c.l.b16 %v9277
        %v9534 = vunpack.c.l.b16 %v9278
        %v9535 = vunpack.c.l.b16 %v9279
        %v9536 = vunpack.c.l.b16 %v9280
        %v9537 = vunpack.c.l.b16 %v9281
        %v9538 = vunpack.c.l.b16 %v9282
        %v9539 = vunpack.c.l.b16 %v9283
        %v9540 = vunpack.c.l.b16 %v9284
        %v9541 = vunpack.c.l.b16 %v9285
        %v9542 = vunpack.c.l.b16 %v9286
        %v9543 = vunpack.c.l.b16 %v9287
        %v9544 = vunpack.c.l.b16 %v9288
        %v9545 = vunpack.c.l.b16 %v9289
        %v9546 = vunpack.c.l.b16 %v9290
        %v9547 = vunpack.c.l.b16 %v9291
        %v9548 = vunpack.c.l.b16 %v9292
        %v9549 = vunpack.c.l.b16 %v9293
        %v9550 = vunpack.c.l.b16 %v9294
        %v9551 = vunpack.c.l.b16 %v9295
        %v9552 = vunpack.c.l.b16 %v9296
        %v9553 = vunpack.c.l.b16 %v9297
        %v9554 = vunpack.c.l.b16 %v9298
        %v9555 = vunpack.c.l.b16 %v9299
        %v9556 = vunpack.c.l.b16 %v9300
        %v9557 = vunpack.c.l.b16 %v9301
        %v9558 = vunpack.c.l.b16 %v9302
        %v9559 = vunpack.c.l.b16 %v9303
        %v9560 = vunpack.c.l.b16 %v9304
        %v9561 = vunpack.c.l.b16 %v9305
        %v9562 = vunpack.c.l.b16 %v9306
        %v9563 = vunpack.c.l.b16 %v9307
        %v9564 = vunpack.c.l.b16 %v9308
        %v9565 = vunpack.c.l.b16 %v9309
        %v9566 = vunpack.c.l.b16 %v9310
        %v9567 = vunpack.c.l.b16 %v9311
        %v9568 = vunpack.c.l.b16 %v9312
        %v9569 = vunpack.c.l.b16 %v9313
        %v9570 = vunpack.c.l.b16 %v9314
        %v9571 = vunpack.c.l.b16 %v9315
        %v9572 = vunpack.c.l.b16 %v9316
        %v9573 = vunpack.c.l.b16 %v9317
        %v9574 = vunpack.c.l.b16 %v9318
        %v9575 = vunpack.c.l.b16 %v9319
        %v9576 = vunpack.c.l.b16 %v9320
        %v9577 = vunpack.c.l.b16 %v9321
        %v9578 = vunpack.c.l.b16 %v9322
        %v9579 = vunpack.c.l.b16 %v9323
        %v9580 = vunpack.c.l.b16 %v9324
        %v9581 = vunpack.c.l.b16 %v9325
        %v9582 = vunpack.c.l.b16 %v9326
        %v9583 = vunpack.c.l.b16 %v9327
        %v9584 = vunpack.c.l.b16 %v9328
        %v9585 = vunpack.c.l.b16 %v9329
        %v9586 = vunpack.c.l.b16 %v9330
        %v9587 = vunpack.c.l.b16 %v9331
        %v9588 = vunpack.c.l.b16 %v9332
        %v9589 = vunpack.c.l.b16 %v9333
        %v9590 = vunpack.c.l.b16 %v9334
        %v9591 = vunpack.c.l.b16 %v9335
        %v9592 = vunpack.c.l.b16 %v9336
        %v9593 = vunpack.c.l.b16 %v9337
        %v9594 = vunpack.c.l.b16 %v9338
        %v9595 = vunpack.c.l.b16 %v9339
        %v9596 = vunpack.c.l.b16 %v9340
        %v9597 = vunpack.c.l.b16 %v9341
        %v9598 = vunpack.c.l.b16 %v9342
        %v9599 = vunpack.c.l.b16 %v9343
        %v9600 = vunpack.c.l.b16 %v9344
        %v9601 = vunpack.c.l.b16 %v9345
        %v9602 = vunpack.c.l.b16 %v9346
        %v9603 = vunpack.c.l.b16 %v9347
        %v9604 = vunpack.c.l.b16 %v9348
        %v9605 = vunpack.c.l.b16 %v9349
        %v9606 = vunpack.c.l.b16 %v9350
        %v9607 = vunpack.c.l.b16 %v9351
        %v9608 = vunpack.c.l.b16 %v9352
        %v9609 = vunpack.c.l.b16 %v9353
        %v9610 = vunpack.c.l.b16 %v9354
        %v9611 = vunpack.c.l.b16 %v9355
        %v9612 = vunpack.c.l.b16 %v9356
        %v9613 = vunpack.c.l.b16 %v9357
        %v9614 = vunpack.c.l.b16 %v9358
        %v9615 = vunpack.c.l.b16 %v9359
        %v9616 = vunpack.c.l.b16 %v9360
        %v9617 = vunpack.c.l.b16 %v9361
        %v9618 = vunpack.c.l.b16 %v9362
        %v9619 = vunpack.c.l.b16 %v9363
        %v9620 = vunpack.c.l.b16 %v9364
        %v9621 = vunpack.c.l.b16 %v9365
        %v9622 = vunpack.c.l.b16 %v9366
        %v9623 = vunpack.c.l.b16 %v9367
        %v9624 = vunpack.c.l.b16 %v9368
        %v9625 = vunpack.c.l.b16 %v9369
        %v9626 = vunpack.c.l.b16 %v9370
        %v9627 = vunpack.c.l.b16 %v9371
        %v9628 = vunpack.c.l.b16 %v9372
        %v9629 = vunpack.c.l.b16 %v9373
        %v9630 = vunpack.c.l.b16 %v9374
        %v9631 = vunpack.c.l.b16 %v9375
        %v9632 = vunpack.c.l.b16 %v9376
        %v9633 = vunpack.c.l.b16 %v9377
        %v9634 = vunpack.c.l.b16 %v9378
        %v9635 = vunpack.c.l.b16 %v9379
        %v9636 = vunpack.c.l.b16 %v9380
        %v9637 = vunpack.c.l.b16 %v9381
        %v9638 = vunpack.c.l.b16 %v9382
        %v9639 = vunpack.c.l.b16 %v9383
        %v9640 = vunpack.c.l.b16 %v9384
        %v9641 = vunpack.c.l.b16 %v9385
        %v9642 = vunpack.c.l.b16 %v9386
        %v9643 = vunpack.c.l.b16 %v9387
        %v9644 = vunpack.c.l.b16 %v9388
        %v9645 = vunpack.c.l.b16 %v9389
        %v9646 = vunpack.c.l.b16 %v9390
        %v9647 = vunpack.c.l.b16 %v9391
        %v9648 = vunpack.c.l.b16 %v9392
        %v9649 = vunpack.c.l.b16 %v9393
        %v9650 = vunpack.c.l.b16 %v9394
        %v9651 = vunpack.c.l.b16 %v9395
        %v9652 = vunpack.c.l.b16 %v9396
        %v9653 = vunpack.c.l.b16 %v9397
        %v9654 = vunpack.c.l.b16 %v9398
        %v9655 = vunpack.c.l.b16 %v9399
        %v9656 = vunpack.c.l.b16 %v9400
        %v9657 = vunpack.c.l.b16 %v9401
        %v9658 = vunpack.c.l.b16 %v9402
        %v9659 = vpack.c.b16 %v9532, %v9531
        %v9660 = vpack.c.b16 %v9534, %v9533
        %v9661 = vpack.c.b16 %v9536, %v9535
        %v9662 = vpack.c.b16 %v9538, %v9537
        %v9663 = vpack.c.b16 %v9540, %v9539
        %v9664 = vpack.c.b16 %v9542, %v9541
        %v9665 = vpack.c.b16 %v9544, %v9543
        %v9666 = vpack.c.b16 %v9546, %v9545
        %v9667 = vpack.c.b16 %v9548, %v9547
        %v9668 = vpack.c.b16 %v9550, %v9549
        %v9669 = vpack.c.b16 %v9552, %v9551
        %v9670 = vpack.c.b16 %v9554, %v9553
        %v9671 = vpack.c.b16 %v9556, %v9555
        %v9672 = vpack.c.b16 %v9558, %v9557
        %v9673 = vpack.c.b16 %v9560, %v9559
        %v9674 = vpack.c.b16 %v9562, %v9561
        %v9675 = vpack.c.b16 %v9564, %v9563
        %v9676 = vpack.c.b16 %v9566, %v9565
        %v9677 = vpack.c.b16 %v9568, %v9567
        %v9678 = vpack.c.b16 %v9570, %v9569
        %v9679 = vpack.c.b16 %v9572, %v9571
        %v9680 = vpack.c.b16 %v9574, %v9573
        %v9681 = vpack.c.b16 %v9576, %v9575
        %v9682 = vpack.c.b16 %v9578, %v9577
        %v9683 = vpack.c.b16 %v9580, %v9579
        %v9684 = vpack.c.b16 %v9582, %v9581
        %v9685 = vpack.c.b16 %v9584, %v9583
        %v9686 = vpack.c.b16 %v9586, %v9585
        %v9687 = vpack.c.b16 %v9588, %v9587
        %v9688 = vpack.c.b16 %v9590, %v9589
        %v9689 = vpack.c.b16 %v9592, %v9591
        %v9690 = vpack.c.b16 %v9594, %v9593
        %v9691 = vpack.c.b16 %v9596, %v9595
        %v9692 = vpack.c.b16 %v9598, %v9597
        %v9693 = vpack.c.b16 %v9600, %v9599
        %v9694 = vpack.c.b16 %v9602, %v9601
        %v9695 = vpack.c.b16 %v9604, %v9603
        %v9696 = vpack.c.b16 %v9606, %v9605
        %v9697 = vpack.c.b16 %v9608, %v9607
        %v9698 = vpack.c.b16 %v9610, %v9609
        %v9699 = vpack.c.b16 %v9612, %v9611
        %v9700 = vpack.c.b16 %v9614, %v9613
        %v9701 = vpack.c.b16 %v9616, %v9615
        %v9702 = vpack.c.b16 %v9618, %v9617
        %v9703 = vpack.c.b16 %v9620, %v9619
        %v9704 = vpack.c.b16 %v9622, %v9621
        %v9705 = vpack.c.b16 %v9624, %v9623
        %v9706 = vpack.c.b16 %v9626, %v9625
        %v9707 = vpack.c.b16 %v9628, %v9627
        %v9708 = vpack.c.b16 %v9630, %v9629
        %v9709 = vpack.c.b16 %v9632, %v9631
        %v9710 = vpack.c.b16 %v9634, %v9633
        %v9711 = vpack.c.b16 %v9636, %v9635
        %v9712 = vpack.c.b16 %v9638, %v9637
        %v9713 = vpack.c.b16 %v9640, %v9639
        %v9714 = vpack.c.b16 %v9642, %v9641
        %v9715 = vpack.c.b16 %v9644, %v9643
        %v9716 = vpack.c.b16 %v9646, %v9645
        %v9717 = vpack.c.b16 %v9648, %v9647
        %v9718 = vpack.c.b16 %v9650, %v9649
        %v9719 = vpack.c.b16 %v9652, %v9651
        %v9720 = vpack.c.b16 %v9654, %v9653
        %v9721 = vpack.c.b16 %v9656, %v9655
        %v9722 = vpack.c.b16 %v9658, %v9657
        %9787 = vmatprep.subr.bf16.mxu0 0
        %9788 = vmatpush1.bf16.msra.mxu0 %v9659
        %9789 = vmatprep.subr.bf16.mxu0 0
        %9790 = vmatpush1.bf16.msra.mxu0 %v9660
        %9791 = vmatprep.subr.bf16.mxu0 0
        %9792 = vmatpush1.bf16.msra.mxu0 %v9661
        %9793 = vmatprep.subr.bf16.mxu0 0
        %9794 = vmatpush1.bf16.msra.mxu0 %v9662
        %9795 = vmatprep.subr.bf16.mxu0 0
        %9796 = vmatpush1.bf16.msra.mxu0 %v9663
        %9797 = vmatprep.subr.bf16.mxu0 0
        %9798 = vmatpush1.bf16.msra.mxu0 %v9664
        %9799 = vmatprep.subr.bf16.mxu0 0
        %9800 = vmatpush1.bf16.msra.mxu0 %v9665
        %9801 = vmatprep.subr.bf16.mxu0 0
        %9802 = vmatpush1.bf16.msra.mxu0 %v9666
        %9803 = vmatprep.subr.bf16.mxu0 0
        %9804 = vmatpush1.bf16.msra.mxu0 %v9667
        %9805 = vmatprep.subr.bf16.mxu0 0
        %9806 = vmatpush1.bf16.msra.mxu0 %v9668
        %9807 = vmatprep.subr.bf16.mxu0 0
        %9808 = vmatpush1.bf16.msra.mxu0 %v9669
        %9809 = vmatprep.subr.bf16.mxu0 0
        %9810 = vmatpush1.bf16.msra.mxu0 %v9670
        %9811 = vmatprep.subr.bf16.mxu0 0
        %9812 = vmatpush1.bf16.msra.mxu0 %v9671
        %9813 = vmatprep.subr.bf16.mxu0 0
        %9814 = vmatpush1.bf16.msra.mxu0 %v9672
        %9815 = vmatprep.subr.bf16.mxu0 0
        %9816 = vmatpush1.bf16.msra.mxu0 %v9673
        %9817 = vmatprep.subr.bf16.mxu0 0
        %9818 = vmatpush1.bf16.msra.mxu0 %v9674
        %9819 = vmatprep.mubr.bf16.mxu0 %v2267
        %9820 = vmatmul.mubr.bf16.gmra.mrb[0].mxu0 %v2266
        %v9821 = vpop.f32.mrb[0].mxu0
        %v9822 = vadd.f32 0.0, %v9821
        %v9823 = vpop.f32.mrb[0].mxu0
        %v9824 = vpop.f32.mrb[0].mxu0
        %v9825 = vadd.f32 0.0, %v9824
        %v9826 = vpop.f32.mrb[0].mxu0
        %9827 = vmatprep.mubr.bf16.mxu0 %v2275
        %9828 = vmatmul.mubr.bf16.gmra.mrb[0].mxu0 %v2274
        %v9829 = vpop.f32.mrb[0].mxu0
        %v9830 = vadd.f32 0.0, %v9829
        %v9831 = vpop.f32.mrb[0].mxu0
        %v9832 = vpop.f32.mrb[0].mxu0
        %v9833 = vadd.f32 0.0, %v9832
        %v9834 = vpop.f32.mrb[0].mxu0
        %9835 = vmatprep.mubr.bf16.mxu0 %v2283
        %9836 = vmatmul.mubr.bf16.gmra.mrb[0].mxu0 %v2282
        %v9837 = vpop.f32.mrb[0].mxu0
        %v9838 = vadd.f32 0.0, %v9837
        %v9839 = vpop.f32.mrb[0].mxu0
        %v9840 = vpop.f32.mrb[0].mxu0
        %v9841 = vadd.f32 0.0, %v9840
        %v9842 = vpop.f32.mrb[0].mxu0
        %9843 = vmatprep.mubr.bf16.mxu0 %v2291
        %9844 = vmatmul.mubr.bf16.gmra.mrb[0].mxu0 %v2290
        %v9845 = vpop.f32.mrb[0].mxu0
        %v9846 = vadd.f32 0.0, %v9845
        %v9847 = vpop.f32.mrb[0].mxu0
        %v9848 = vpop.f32.mrb[0].mxu0
        %v9849 = vadd.f32 0.0, %v9848
        %v9850 = vpop.f32.mrb[0].mxu0
        %9851 = vmatprep.mubr.bf16.mxu0 %v2299
        %9852 = vmatmul.mubr.bf16.gmra.mrb[0].mxu0 %v2298
        %v9853 = vpop.f32.mrb[0].mxu0
        %v9854 = vadd.f32 0.0, %v9853
        %v9855 = vpop.f32.mrb[0].mxu0
        %v9856 = vpop.f32.mrb[0].mxu0
        %v9857 = vadd.f32 0.0, %v9856
        %v9858 = vpop.f32.mrb[0].mxu0
        %9859 = vmatprep.mubr.bf16.mxu0 %v2307
        %9860 = vmatmul.mubr.bf16.gmra.mrb[0].mxu0 %v2306
        %v9861 = vpop.f32.mrb[0].mxu0
        %v9862 = vadd.f32 0.0, %v9861
        %v9863 = vpop.f32.mrb[0].mxu0
        %v9864 = vpop.f32.mrb[0].mxu0
        %v9865 = vadd.f32 0.0, %v9864
        %v9866 = vpop.f32.mrb[0].mxu0
        %9867 = vmatprep.mubr.bf16.mxu0 %v2315
        %9868 = vmatmul.mubr.bf16.gmra.mrb[0].mxu0 %v2314
        %v9869 = vpop.f32.mrb[0].mxu0
        %v9870 = vadd.f32 0.0, %v9869
        %v9871 = vpop.f32.mrb[0].mxu0
        %v9872 = vpop.f32.mrb[0].mxu0
        %v9873 = vadd.f32 0.0, %v9872
        %v9874 = vpop.f32.mrb[0].mxu0
        %9875 = vmatprep.mubr.bf16.mxu0 %v2323
        %9876 = vmatmul.mubr.bf16.gmra.mrb[0].mxu0 %v2322
        %v9877 = vpop.f32.mrb[0].mxu0
        %v9878 = vadd.f32 0.0, %v9877
        %v9879 = vpop.f32.mrb[0].mxu0
        %v9880 = vpop.f32.mrb[0].mxu0
        %v9881 = vadd.f32 0.0, %v9880
        %v9882 = vpop.f32.mrb[0].mxu0
        %9883 = vmatprep.mubr.bf16.mxu0 %v2331
        %9884 = vmatmul.mubr.bf16.gmra.mrb[0].mxu0 %v2330
        %v9885 = vpop.f32.mrb[0].mxu0
        %v9886 = vadd.f32 0.0, %v9885
        %v9887 = vpop.f32.mrb[0].mxu0
        %v9888 = vpop.f32.mrb[0].mxu0
        %v9889 = vadd.f32 0.0, %v9888
        %v9890 = vpop.f32.mrb[0].mxu0
        %9891 = vmatprep.mubr.bf16.mxu0 %v2339
        %9892 = vmatmul.mubr.bf16.gmra.mrb[0].mxu0 %v2338
        %v9893 = vpop.f32.mrb[0].mxu0
        %v9894 = vadd.f32 0.0, %v9893
        %v9895 = vpop.f32.mrb[0].mxu0
        %v9896 = vpop.f32.mrb[0].mxu0
        %v9897 = vadd.f32 0.0, %v9896
        %v9898 = vpop.f32.mrb[0].mxu0
        %9899 = vmatprep.mubr.bf16.mxu0 %v2347
        %9900 = vmatmul.mubr.bf16.gmra.mrb[0].mxu0 %v2346
        %v9901 = vpop.f32.mrb[0].mxu0
        %v9902 = vadd.f32 0.0, %v9901
        %v9903 = vpop.f32.mrb[0].mxu0
        %v9904 = vpop.f32.mrb[0].mxu0
        %v9905 = vadd.f32 0.0, %v9904
        %v9906 = vpop.f32.mrb[0].mxu0
        %9907 = vmatprep.mubr.bf16.mxu0 %v2355
        %9908 = vmatmul.mubr.bf16.gmra.mrb[0].mxu0 %v2354
        %v9909 = vpop.f32.mrb[0].mxu0
        %v9910 = vadd.f32 0.0, %v9909
        %v9911 = vpop.f32.mrb[0].mxu0
        %v9912 = vpop.f32.mrb[0].mxu0
        %v9913 = vadd.f32 0.0, %v9912
        %v9914 = vpop.f32.mrb[0].mxu0
        %9915 = vmatprep.mubr.bf16.mxu0 %v2363
        %9916 = vmatmul.mubr.bf16.gmra.mrb[0].mxu0 %v2362
        %v9917 = vpop.f32.mrb[0].mxu0
        %v9918 = vadd.f32 0.0, %v9917
        %v9919 = vpop.f32.mrb[0].mxu0
        %v9920 = vpop.f32.mrb[0].mxu0
        %v9921 = vadd.f32 0.0, %v9920
        %v9922 = vpop.f32.mrb[0].mxu0
        %9923 = vmatprep.mubr.bf16.mxu0 %v2371
        %9924 = vmatmul.mubr.bf16.gmra.mrb[0].mxu0 %v2370
        %v9925 = vpop.f32.mrb[0].mxu0
        %v9926 = vadd.f32 0.0, %v9925
        %v9927 = vpop.f32.mrb[0].mxu0
        %v9928 = vpop.f32.mrb[0].mxu0
        %v9929 = vadd.f32 0.0, %v9928
        %v9930 = vpop.f32.mrb[0].mxu0
        %9931 = vmatprep.mubr.bf16.mxu0 %v2379
        %9932 = vmatmul.mubr.bf16.gmra.mrb[0].mxu0 %v2378
        %v9933 = vpop.f32.mrb[0].mxu0
        %v9934 = vadd.f32 0.0, %v9933
        %v9935 = vpop.f32.mrb[0].mxu0
        %v9936 = vpop.f32.mrb[0].mxu0
        %v9937 = vadd.f32 0.0, %v9936
        %v9938 = vpop.f32.mrb[0].mxu0
        %9939 = vmatprep.mubr.bf16.mxu0 %v2387
        %9940 = vmatmul.mubr.bf16.gmra.mrb[0].mxu0 %v2386
        %v9941 = vpop.f32.mrb[0].mxu0
        %v9942 = vadd.f32 0.0, %v9941
        %v9943 = vpop.f32.mrb[0].mxu0
        %v9944 = vpop.f32.mrb[0].mxu0
        %v9945 = vadd.f32 0.0, %v9944
        %v9946 = vpop.f32.mrb[0].mxu0
        %9947 = vdwg.mxu0
        %9948 = vmatprep.subr.bf16.mxu0 0
        %9949 = vmatpush1.bf16.msra.mxu0 %v9675
        %9950 = vmatprep.subr.bf16.mxu0 0
        %9951 = vmatpush1.bf16.msra.mxu0 %v9676
        %9952 = vmatprep.subr.bf16.mxu0 0
        %9953 = vmatpush1.bf16.msra.mxu0 %v9677
        %9954 = vmatprep.subr.bf16.mxu0 0
        %9955 = vmatpush1.bf16.msra.mxu0 %v9678
        %9956 = vmatprep.subr.bf16.mxu0 0
        %9957 = vmatpush1.bf16.msra.mxu0 %v9679
        %9958 = vmatprep.subr.bf16.mxu0 0
        %9959 = vmatpush1.bf16.msra.mxu0 %v9680
        %9960 = vmatprep.subr.bf16.mxu0 0
        %9961 = vmatpush1.bf16.msra.mxu0 %v9681
        %9962 = vmatprep.subr.bf16.mxu0 0
        %9963 = vmatpush1.bf16.msra.mxu0 %v9682
        %9964 = vmatprep.subr.bf16.mxu0 0
        %9965 = vmatpush1.bf16.msra.mxu0 %v9683
        %9966 = vmatprep.subr.bf16.mxu0 0
        %9967 = vmatpush1.bf16.msra.mxu0 %v9684
        %9968 = vmatprep.subr.bf16.mxu0 0
        %9969 = vmatpush1.bf16.msra.mxu0 %v9685
        %9970 = vmatprep.subr.bf16.mxu0 0
        %9971 = vmatpush1.bf16.msra.mxu0 %v9686
        %9972 = vmatprep.subr.bf16.mxu0 0
        %9973 = vmatpush1.bf16.msra.mxu0 %v9687
        %9974 = vmatprep.subr.bf16.mxu0 0
        %9975 = vmatpush1.bf16.msra.mxu0 %v9688
        %9976 = vmatprep.subr.bf16.mxu0 0
        %9977 = vmatpush1.bf16.msra.mxu0 %v9689
        %9978 = vmatprep.subr.bf16.mxu0 0
        %9979 = vmatpush1.bf16.msra.mxu0 %v9690
        %9980 = vmatprep.mubr.bf16.mxu0 %v2269
        %9981 = vmatmul.mubr.bf16.gmra.mrb[0].mxu0 %v2268
        %v9982 = vpop.f32.mrb[0].mxu0
        %v9983 = vadd.f32 %v9822, %v9982
        %v9984 = vpop.f32.mrb[0].mxu0
        %v9985 = vpop.f32.mrb[0].mxu0
        %v9986 = vadd.f32 %v9825, %v9985
        %v9987 = vpop.f32.mrb[0].mxu0
        %9988 = vmatprep.mubr.bf16.mxu0 %v2277
        %9989 = vmatmul.mubr.bf16.gmra.mrb[0].mxu0 %v2276
        %v9990 = vpop.f32.mrb[0].mxu0
        %v9991 = vadd.f32 %v9830, %v9990
        %v9992 = vpop.f32.mrb[0].mxu0
        %v9993 = vpop.f32.mrb[0].mxu0
        %v9994 = vadd.f32 %v9833, %v9993
        %v9995 = vpop.f32.mrb[0].mxu0
        %9996 = vmatprep.mubr.bf16.mxu0 %v2285
        %9997 = vmatmul.mubr.bf16.gmra.mrb[0].mxu0 %v2284
        %v9998 = vpop.f32.mrb[0].mxu0
        %v9999 = vadd.f32 %v9838, %v9998
        %v10000 = vpop.f32.mrb[0].mxu0
        %v10001 = vpop.f32.mrb[0].mxu0
        %v10002 = vadd.f32 %v9841, %v10001
        %v10003 = vpop.f32.mrb[0].mxu0
        %10004 = vmatprep.mubr.bf16.mxu0 %v2293
        %10005 = vmatmul.mubr.bf16.gmra.mrb[0].mxu0 %v2292
        %v10006 = vpop.f32.mrb[0].mxu0
        %v10007 = vadd.f32 %v9846, %v10006
        %v10008 = vpop.f32.mrb[0].mxu0
        %v10009 = vpop.f32.mrb[0].mxu0
        %v10010 = vadd.f32 %v9849, %v10009
        %v10011 = vpop.f32.mrb[0].mxu0
        %10012 = vmatprep.mubr.bf16.mxu0 %v2301
        %10013 = vmatmul.mubr.bf16.gmra.mrb[0].mxu0 %v2300
        %v10014 = vpop.f32.mrb[0].mxu0
        %v10015 = vadd.f32 %v9854, %v10014
        %v10016 = vpop.f32.mrb[0].mxu0
        %v10017 = vpop.f32.mrb[0].mxu0
        %v10018 = vadd.f32 %v9857, %v10017
        %v10019 = vpop.f32.mrb[0].mxu0
        %10020 = vmatprep.mubr.bf16.mxu0 %v2309
        %10021 = vmatmul.mubr.bf16.gmra.mrb[0].mxu0 %v2308
        %v10022 = vpop.f32.mrb[0].mxu0
        %v10023 = vadd.f32 %v9862, %v10022
        %v10024 = vpop.f32.mrb[0].mxu0
        %v10025 = vpop.f32.mrb[0].mxu0
        %v10026 = vadd.f32 %v9865, %v10025
        %v10027 = vpop.f32.mrb[0].mxu0
        %10028 = vmatprep.mubr.bf16.mxu0 %v2317
        %10029 = vmatmul.mubr.bf16.gmra.mrb[0].mxu0 %v2316
        %v10030 = vpop.f32.mrb[0].mxu0
        %v10031 = vadd.f32 %v9870, %v10030
        %v10032 = vpop.f32.mrb[0].mxu0
        %v10033 = vpop.f32.mrb[0].mxu0
        %v10034 = vadd.f32 %v9873, %v10033
        %v10035 = vpop.f32.mrb[0].mxu0
        %10036 = vmatprep.mubr.bf16.mxu0 %v2325
        %10037 = vmatmul.mubr.bf16.gmra.mrb[0].mxu0 %v2324
        %v10038 = vpop.f32.mrb[0].mxu0
        %v10039 = vadd.f32 %v9878, %v10038
        %v10040 = vpop.f32.mrb[0].mxu0
        %v10041 = vpop.f32.mrb[0].mxu0
        %v10042 = vadd.f32 %v9881, %v10041
        %v10043 = vpop.f32.mrb[0].mxu0
        %10044 = vmatprep.mubr.bf16.mxu0 %v2333
        %10045 = vmatmul.mubr.bf16.gmra.mrb[0].mxu0 %v2332
        %v10046 = vpop.f32.mrb[0].mxu0
        %v10047 = vadd.f32 %v9886, %v10046
        %v10048 = vpop.f32.mrb[0].mxu0
        %v10049 = vpop.f32.mrb[0].mxu0
        %v10050 = vadd.f32 %v9889, %v10049
        %v10051 = vpop.f32.mrb[0].mxu0
        %10052 = vmatprep.mubr.bf16.mxu0 %v2341
        %10053 = vmatmul.mubr.bf16.gmra.mrb[0].mxu0 %v2340
        %v10054 = vpop.f32.mrb[0].mxu0
        %v10055 = vadd.f32 %v9894, %v10054
        %v10056 = vpop.f32.mrb[0].mxu0
        %v10057 = vpop.f32.mrb[0].mxu0
        %v10058 = vadd.f32 %v9897, %v10057
        %v10059 = vpop.f32.mrb[0].mxu0
        %10060 = vmatprep.mubr.bf16.mxu0 %v2349
        %10061 = vmatmul.mubr.bf16.gmra.mrb[0].mxu0 %v2348
        %v10062 = vpop.f32.mrb[0].mxu0
        %v10063 = vadd.f32 %v9902, %v10062
        %v10064 = vpop.f32.mrb[0].mxu0
        %v10065 = vpop.f32.mrb[0].mxu0
        %v10066 = vadd.f32 %v9905, %v10065
        %v10067 = vpop.f32.mrb[0].mxu0
        %10068 = vmatprep.mubr.bf16.mxu0 %v2357
        %10069 = vmatmul.mubr.bf16.gmra.mrb[0].mxu0 %v2356
        %v10070 = vpop.f32.mrb[0].mxu0
        %v10071 = vadd.f32 %v9910, %v10070
        %v10072 = vpop.f32.mrb[0].mxu0
        %v10073 = vpop.f32.mrb[0].mxu0
        %v10074 = vadd.f32 %v9913, %v10073
        %v10075 = vpop.f32.mrb[0].mxu0
        %10076 = vmatprep.mubr.bf16.mxu0 %v2365
        %10077 = vmatmul.mubr.bf16.gmra.mrb[0].mxu0 %v2364
        %v10078 = vpop.f32.mrb[0].mxu0
        %v10079 = vadd.f32 %v9918, %v10078
        %v10080 = vpop.f32.mrb[0].mxu0
        %v10081 = vpop.f32.mrb[0].mxu0
        %v10082 = vadd.f32 %v9921, %v10081
        %v10083 = vpop.f32.mrb[0].mxu0
        %10084 = vmatprep.mubr.bf16.mxu0 %v2373
        %10085 = vmatmul.mubr.bf16.gmra.mrb[0].mxu0 %v2372
        %v10086 = vpop.f32.mrb[0].mxu0
        %v10087 = vadd.f32 %v9926, %v10086
        %v10088 = vpop.f32.mrb[0].mxu0
        %v10089 = vpop.f32.mrb[0].mxu0
        %v10090 = vadd.f32 %v9929, %v10089
        %v10091 = vpop.f32.mrb[0].mxu0
        %10092 = vmatprep.mubr.bf16.mxu0 %v2381
        %10093 = vmatmul.mubr.bf16.gmra.mrb[0].mxu0 %v2380
        %v10094 = vpop.f32.mrb[0].mxu0
        %v10095 = vadd.f32 %v9934, %v10094
        %v10096 = vpop.f32.mrb[0].mxu0
        %v10097 = vpop.f32.mrb[0].mxu0
        %v10098 = vadd.f32 %v9937, %v10097
        %v10099 = vpop.f32.mrb[0].mxu0
        %10100 = vmatprep.mubr.bf16.mxu0 %v2389
        %10101 = vmatmul.mubr.bf16.gmra.mrb[0].mxu0 %v2388
        %v10102 = vpop.f32.mrb[0].mxu0
        %v10103 = vadd.f32 %v9942, %v10102
        %v10104 = vpop.f32.mrb[0].mxu0
        %v10105 = vpop.f32.mrb[0].mxu0
        %v10106 = vadd.f32 %v9945, %v10105
        %v10107 = vpop.f32.mrb[0].mxu0
        %10108 = vdwg.mxu0
        %10109 = vmatprep.subr.bf16.mxu0 0
        %10110 = vmatpush1.bf16.msra.mxu0 %v9691
        %10111 = vmatprep.subr.bf16.mxu0 0
        %10112 = vmatpush1.bf16.msra.mxu0 %v9692
        %10113 = vmatprep.subr.bf16.mxu0 0
        %10114 = vmatpush1.bf16.msra.mxu0 %v9693
        %10115 = vmatprep.subr.bf16.mxu0 0
        %10116 = vmatpush1.bf16.msra.mxu0 %v9694
        %10117 = vmatprep.subr.bf16.mxu0 0
        %10118 = vmatpush1.bf16.msra.mxu0 %v9695
        %10119 = vmatprep.subr.bf16.mxu0 0
        %10120 = vmatpush1.bf16.msra.mxu0 %v9696
        %10121 = vmatprep.subr.bf16.mxu0 0
        %10122 = vmatpush1.bf16.msra.mxu0 %v9697
        %10123 = vmatprep.subr.bf16.mxu0 0
        %10124 = vmatpush1.bf16.msra.mxu0 %v9698
        %10125 = vmatprep.subr.bf16.mxu0 0
        %10126 = vmatpush1.bf16.msra.mxu0 %v9699
        %10127 = vmatprep.subr.bf16.mxu0 0
        %10128 = vmatpush1.bf16.msra.mxu0 %v9700
        %10129 = vmatprep.subr.bf16.mxu0 0
        %10130 = vmatpush1.bf16.msra.mxu0 %v9701
        %10131 = vmatprep.subr.bf16.mxu0 0
        %10132 = vmatpush1.bf16.msra.mxu0 %v9702
        %10133 = vmatprep.subr.bf16.mxu0 0
        %10134 = vmatpush1.bf16.msra.mxu0 %v9703
        %10135 = vmatprep.subr.bf16.mxu0 0
        %10136 = vmatpush1.bf16.msra.mxu0 %v9704
        %10137 = vmatprep.subr.bf16.mxu0 0
        %10138 = vmatpush1.bf16.msra.mxu0 %v9705
        %10139 = vmatprep.subr.bf16.mxu0 0
        %10140 = vmatpush1.bf16.msra.mxu0 %v9706
        %10141 = vmatprep.mubr.bf16.mxu0 %v2271
        %10142 = vmatmul.mubr.bf16.gmra.mrb[0].mxu0 %v2270
        %v10143 = vpop.f32.mrb[0].mxu0
        %v10144 = vadd.f32 %v9983, %v10143
        %v10145 = vpop.f32.mrb[0].mxu0
        %v10146 = vpop.f32.mrb[0].mxu0
        %v10147 = vadd.f32 %v9986, %v10146
        %v10148 = vpop.f32.mrb[0].mxu0
        %10149 = vmatprep.mubr.bf16.mxu0 %v2279
        %10150 = vmatmul.mubr.bf16.gmra.mrb[0].mxu0 %v2278
        %v10151 = vpop.f32.mrb[0].mxu0
        %v10152 = vadd.f32 %v9991, %v10151
        %v10153 = vpop.f32.mrb[0].mxu0
        %v10154 = vpop.f32.mrb[0].mxu0
        %v10155 = vadd.f32 %v9994, %v10154
        %v10156 = vpop.f32.mrb[0].mxu0
        %10157 = vmatprep.mubr.bf16.mxu0 %v2287
        %10158 = vmatmul.mubr.bf16.gmra.mrb[0].mxu0 %v2286
        %v10159 = vpop.f32.mrb[0].mxu0
        %v10160 = vadd.f32 %v9999, %v10159
        %v10161 = vpop.f32.mrb[0].mxu0
        %v10162 = vpop.f32.mrb[0].mxu0
        %v10163 = vadd.f32 %v10002, %v10162
        %v10164 = vpop.f32.mrb[0].mxu0
        %10165 = vmatprep.mubr.bf16.mxu0 %v2295
        %10166 = vmatmul.mubr.bf16.gmra.mrb[0].mxu0 %v2294
        %v10167 = vpop.f32.mrb[0].mxu0
        %v10168 = vadd.f32 %v10007, %v10167
        %v10169 = vpop.f32.mrb[0].mxu0
        %v10170 = vpop.f32.mrb[0].mxu0
        %v10171 = vadd.f32 %v10010, %v10170
        %v10172 = vpop.f32.mrb[0].mxu0
        %10173 = vmatprep.mubr.bf16.mxu0 %v2303
        %10174 = vmatmul.mubr.bf16.gmra.mrb[0].mxu0 %v2302
        %v10175 = vpop.f32.mrb[0].mxu0
        %v10176 = vadd.f32 %v10015, %v10175
        %v10177 = vpop.f32.mrb[0].mxu0
        %v10178 = vpop.f32.mrb[0].mxu0
        %v10179 = vadd.f32 %v10018, %v10178
        %v10180 = vpop.f32.mrb[0].mxu0
        %10181 = vmatprep.mubr.bf16.mxu0 %v2311
        %10182 = vmatmul.mubr.bf16.gmra.mrb[0].mxu0 %v2310
        %v10183 = vpop.f32.mrb[0].mxu0
        %v10184 = vadd.f32 %v10023, %v10183
        %v10185 = vpop.f32.mrb[0].mxu0
        %v10186 = vpop.f32.mrb[0].mxu0
        %v10187 = vadd.f32 %v10026, %v10186
        %v10188 = vpop.f32.mrb[0].mxu0
        %10189 = vmatprep.mubr.bf16.mxu0 %v2319
        %10190 = vmatmul.mubr.bf16.gmra.mrb[0].mxu0 %v2318
        %v10191 = vpop.f32.mrb[0].mxu0
        %v10192 = vadd.f32 %v10031, %v10191
        %v10193 = vpop.f32.mrb[0].mxu0
        %v10194 = vpop.f32.mrb[0].mxu0
        %v10195 = vadd.f32 %v10034, %v10194
        %v10196 = vpop.f32.mrb[0].mxu0
        %10197 = vmatprep.mubr.bf16.mxu0 %v2327
        %10198 = vmatmul.mubr.bf16.gmra.mrb[0].mxu0 %v2326
        %v10199 = vpop.f32.mrb[0].mxu0
        %v10200 = vadd.f32 %v10039, %v10199
        %v10201 = vpop.f32.mrb[0].mxu0
        %v10202 = vpop.f32.mrb[0].mxu0
        %v10203 = vadd.f32 %v10042, %v10202
        %v10204 = vpop.f32.mrb[0].mxu0
        %10205 = vmatprep.mubr.bf16.mxu0 %v2335
        %10206 = vmatmul.mubr.bf16.gmra.mrb[0].mxu0 %v2334
        %v10207 = vpop.f32.mrb[0].mxu0
        %v10208 = vadd.f32 %v10047, %v10207
        %v10209 = vpop.f32.mrb[0].mxu0
        %v10210 = vpop.f32.mrb[0].mxu0
        %v10211 = vadd.f32 %v10050, %v10210
        %v10212 = vpop.f32.mrb[0].mxu0
        %10213 = vmatprep.mubr.bf16.mxu0 %v2343
        %10214 = vmatmul.mubr.bf16.gmra.mrb[0].mxu0 %v2342
        %v10215 = vpop.f32.mrb[0].mxu0
        %v10216 = vadd.f32 %v10055, %v10215
        %v10217 = vpop.f32.mrb[0].mxu0
        %v10218 = vpop.f32.mrb[0].mxu0
        %v10219 = vadd.f32 %v10058, %v10218
        %v10220 = vpop.f32.mrb[0].mxu0
        %10221 = vmatprep.mubr.bf16.mxu0 %v2351
        %10222 = vmatmul.mubr.bf16.gmra.mrb[0].mxu0 %v2350
        %v10223 = vpop.f32.mrb[0].mxu0
        %v10224 = vadd.f32 %v10063, %v10223
        %v10225 = vpop.f32.mrb[0].mxu0
        %v10226 = vpop.f32.mrb[0].mxu0
        %v10227 = vadd.f32 %v10066, %v10226
        %v10228 = vpop.f32.mrb[0].mxu0
        %10229 = vmatprep.mubr.bf16.mxu0 %v2359
        %10230 = vmatmul.mubr.bf16.gmra.mrb[0].mxu0 %v2358
        %v10231 = vpop.f32.mrb[0].mxu0
        %v10232 = vadd.f32 %v10071, %v10231
        %v10233 = vpop.f32.mrb[0].mxu0
        %v10234 = vpop.f32.mrb[0].mxu0
        %v10235 = vadd.f32 %v10074, %v10234
        %v10236 = vpop.f32.mrb[0].mxu0
        %10237 = vmatprep.mubr.bf16.mxu0 %v2367
        %10238 = vmatmul.mubr.bf16.gmra.mrb[0].mxu0 %v2366
        %v10239 = vpop.f32.mrb[0].mxu0
        %v10240 = vadd.f32 %v10079, %v10239
        %v10241 = vpop.f32.mrb[0].mxu0
        %v10242 = vpop.f32.mrb[0].mxu0
        %v10243 = vadd.f32 %v10082, %v10242
        %v10244 = vpop.f32.mrb[0].mxu0
        %10245 = vmatprep.mubr.bf16.mxu0 %v2375
        %10246 = vmatmul.mubr.bf16.gmra.mrb[0].mxu0 %v2374
        %v10247 = vpop.f32.mrb[0].mxu0
        %v10248 = vadd.f32 %v10087, %v10247
        %v10249 = vpop.f32.mrb[0].mxu0
        %v10250 = vpop.f32.mrb[0].mxu0
        %v10251 = vadd.f32 %v10090, %v10250
        %v10252 = vpop.f32.mrb[0].mxu0
        %10253 = vmatprep.mubr.bf16.mxu0 %v2383
        %10254 = vmatmul.mubr.bf16.gmra.mrb[0].mxu0 %v2382
        %v10255 = vpop.f32.mrb[0].mxu0
        %v10256 = vadd.f32 %v10095, %v10255
        %v10257 = vpop.f32.mrb[0].mxu0
        %v10258 = vpop.f32.mrb[0].mxu0
        %v10259 = vadd.f32 %v10098, %v10258
        %v10260 = vpop.f32.mrb[0].mxu0
        %10261 = vmatprep.mubr.bf16.mxu0 %v2391
        %10262 = vmatmul.mubr.bf16.gmra.mrb[0].mxu0 %v2390
        %v10263 = vpop.f32.mrb[0].mxu0
        %v10264 = vadd.f32 %v10103, %v10263
        %v10265 = vpop.f32.mrb[0].mxu0
        %v10266 = vpop.f32.mrb[0].mxu0
        %v10267 = vadd.f32 %v10106, %v10266
        %v10268 = vpop.f32.mrb[0].mxu0
        %10269 = vdwg.mxu0
        %10270 = vmatprep.subr.bf16.mxu0 0
        %10271 = vmatpush1.bf16.msra.mxu0 %v9707
        %10272 = vmatprep.subr.bf16.mxu0 0
        %10273 = vmatpush1.bf16.msra.mxu0 %v9708
        %10274 = vmatprep.subr.bf16.mxu0 0
        %10275 = vmatpush1.bf16.msra.mxu0 %v9709
        %10276 = vmatprep.subr.bf16.mxu0 0
        %10277 = vmatpush1.bf16.msra.mxu0 %v9710
        %10278 = vmatprep.subr.bf16.mxu0 0
        %10279 = vmatpush1.bf16.msra.mxu0 %v9711
        %10280 = vmatprep.subr.bf16.mxu0 0
        %10281 = vmatpush1.bf16.msra.mxu0 %v9712
        %10282 = vmatprep.subr.bf16.mxu0 0
        %10283 = vmatpush1.bf16.msra.mxu0 %v9713
        %10284 = vmatprep.subr.bf16.mxu0 0
        %10285 = vmatpush1.bf16.msra.mxu0 %v9714
        %10286 = vmatprep.subr.bf16.mxu0 0
        %10287 = vmatpush1.bf16.msra.mxu0 %v9715
        %10288 = vmatprep.subr.bf16.mxu0 0
        %10289 = vmatpush1.bf16.msra.mxu0 %v9716
        %10290 = vmatprep.subr.bf16.mxu0 0
        %10291 = vmatpush1.bf16.msra.mxu0 %v9717
        %10292 = vmatprep.subr.bf16.mxu0 0
        %10293 = vmatpush1.bf16.msra.mxu0 %v9718
        %10294 = vmatprep.subr.bf16.mxu0 0
        %10295 = vmatpush1.bf16.msra.mxu0 %v9719
        %10296 = vmatprep.subr.bf16.mxu0 0
        %10297 = vmatpush1.bf16.msra.mxu0 %v9720
        %10298 = vmatprep.subr.bf16.mxu0 0
        %10299 = vmatpush1.bf16.msra.mxu0 %v9721
        %10300 = vmatprep.subr.bf16.mxu0 0
        %10301 = vmatpush1.bf16.msra.mxu0 %v9722
        %10302 = vmatprep.mubr.bf16.mxu0 %v2273
        %10303 = vmatmul.mubr.bf16.gmra.mrb[0].mxu0 %v2272
        %v10304 = vpop.f32.mrb[0].mxu0
        %v10305 = vadd.f32 %v10144, %v10304
        %v10306 = vpop.f32.mrb[0].mxu0
        %v10307 = vpop.f32.mrb[0].mxu0
        %v10308 = vadd.f32 %v10147, %v10307
        %v10309 = vpop.f32.mrb[0].mxu0
        %10310 = vmatprep.mubr.bf16.mxu0 %v2281
        %10311 = vmatmul.mubr.bf16.gmra.mrb[0].mxu0 %v2280
        %v10312 = vpop.f32.mrb[0].mxu0
        %v10313 = vadd.f32 %v10152, %v10312
        %v10314 = vpop.f32.mrb[0].mxu0
        %v10315 = vpop.f32.mrb[0].mxu0
        %v10316 = vadd.f32 %v10155, %v10315
        %v10317 = vpop.f32.mrb[0].mxu0
        %10318 = vmatprep.mubr.bf16.mxu0 %v2289
        %10319 = vmatmul.mubr.bf16.gmra.mrb[0].mxu0 %v2288
        %v10320 = vpop.f32.mrb[0].mxu0
        %v10321 = vadd.f32 %v10160, %v10320
        %v10322 = vpop.f32.mrb[0].mxu0
        %v10323 = vpop.f32.mrb[0].mxu0
        %v10324 = vadd.f32 %v10163, %v10323
        %v10325 = vpop.f32.mrb[0].mxu0
        %10326 = vmatprep.mubr.bf16.mxu0 %v2297
        %10327 = vmatmul.mubr.bf16.gmra.mrb[0].mxu0 %v2296
        %v10328 = vpop.f32.mrb[0].mxu0
        %v10329 = vadd.f32 %v10168, %v10328
        %v10330 = vpop.f32.mrb[0].mxu0
        %v10331 = vpop.f32.mrb[0].mxu0
        %v10332 = vadd.f32 %v10171, %v10331
        %v10333 = vpop.f32.mrb[0].mxu0
        %10334 = vmatprep.mubr.bf16.mxu0 %v2305
        %10335 = vmatmul.mubr.bf16.gmra.mrb[0].mxu0 %v2304
        %v10336 = vpop.f32.mrb[0].mxu0
        %v10337 = vadd.f32 %v10176, %v10336
        %v10338 = vpop.f32.mrb[0].mxu0
        %v10339 = vpop.f32.mrb[0].mxu0
        %v10340 = vadd.f32 %v10179, %v10339
        %v10341 = vpop.f32.mrb[0].mxu0
        %10342 = vmatprep.mubr.bf16.mxu0 %v2313
        %10343 = vmatmul.mubr.bf16.gmra.mrb[0].mxu0 %v2312
        %v10344 = vpop.f32.mrb[0].mxu0
        %v10345 = vadd.f32 %v10184, %v10344
        %v10346 = vpop.f32.mrb[0].mxu0
        %v10347 = vpop.f32.mrb[0].mxu0
        %v10348 = vadd.f32 %v10187, %v10347
        %v10349 = vpop.f32.mrb[0].mxu0
        %10350 = vmatprep.mubr.bf16.mxu0 %v2321
        %10351 = vmatmul.mubr.bf16.gmra.mrb[0].mxu0 %v2320
        %v10352 = vpop.f32.mrb[0].mxu0
        %v10353 = vadd.f32 %v10192, %v10352
        %v10354 = vpop.f32.mrb[0].mxu0
        %v10355 = vpop.f32.mrb[0].mxu0
        %v10356 = vadd.f32 %v10195, %v10355
        %v10357 = vpop.f32.mrb[0].mxu0
        %10358 = vmatprep.mubr.bf16.mxu0 %v2329
        %10359 = vmatmul.mubr.bf16.gmra.mrb[0].mxu0 %v2328
        %v10360 = vpop.f32.mrb[0].mxu0
        %v10361 = vadd.f32 %v10200, %v10360
        %v10362 = vpop.f32.mrb[0].mxu0
        %v10363 = vpop.f32.mrb[0].mxu0
        %v10364 = vadd.f32 %v10203, %v10363
        %v10365 = vpop.f32.mrb[0].mxu0
        %10366 = vmatprep.mubr.bf16.mxu0 %v2337
        %10367 = vmatmul.mubr.bf16.gmra.mrb[0].mxu0 %v2336
        %v10368 = vpop.f32.mrb[0].mxu0
        %v10369 = vadd.f32 %v10208, %v10368
        %v10370 = vpop.f32.mrb[0].mxu0
        %v10371 = vpop.f32.mrb[0].mxu0
        %v10372 = vadd.f32 %v10211, %v10371
        %v10373 = vpop.f32.mrb[0].mxu0
        %10374 = vmatprep.mubr.bf16.mxu0 %v2345
        %10375 = vmatmul.mubr.bf16.gmra.mrb[0].mxu0 %v2344
        %v10376 = vpop.f32.mrb[0].mxu0
        %v10377 = vadd.f32 %v10216, %v10376
        %v10378 = vpop.f32.mrb[0].mxu0
        %v10379 = vpop.f32.mrb[0].mxu0
        %v10380 = vadd.f32 %v10219, %v10379
        %v10381 = vpop.f32.mrb[0].mxu0
        %10382 = vmatprep.mubr.bf16.mxu0 %v2353
        %10383 = vmatmul.mubr.bf16.gmra.mrb[0].mxu0 %v2352
        %v10384 = vpop.f32.mrb[0].mxu0
        %v10385 = vadd.f32 %v10224, %v10384
        %v10386 = vpop.f32.mrb[0].mxu0
        %v10387 = vpop.f32.mrb[0].mxu0
        %v10388 = vadd.f32 %v10227, %v10387
        %v10389 = vpop.f32.mrb[0].mxu0
        %10390 = vmatprep.mubr.bf16.mxu0 %v2361
        %10391 = vmatmul.mubr.bf16.gmra.mrb[0].mxu0 %v2360
        %v10392 = vpop.f32.mrb[0].mxu0
        %v10393 = vadd.f32 %v10232, %v10392
        %v10394 = vpop.f32.mrb[0].mxu0
        %v10395 = vpop.f32.mrb[0].mxu0
        %v10396 = vadd.f32 %v10235, %v10395
        %v10397 = vpop.f32.mrb[0].mxu0
        %10398 = vmatprep.mubr.bf16.mxu0 %v2369
        %10399 = vmatmul.mubr.bf16.gmra.mrb[0].mxu0 %v2368
        %v10400 = vpop.f32.mrb[0].mxu0
        %v10401 = vadd.f32 %v10240, %v10400
        %v10402 = vpop.f32.mrb[0].mxu0
        %v10403 = vpop.f32.mrb[0].mxu0
        %v10404 = vadd.f32 %v10243, %v10403
        %v10405 = vpop.f32.mrb[0].mxu0
        %10406 = vmatprep.mubr.bf16.mxu0 %v2377
        %10407 = vmatmul.mubr.bf16.gmra.mrb[0].mxu0 %v2376
        %v10408 = vpop.f32.mrb[0].mxu0
        %v10409 = vadd.f32 %v10248, %v10408
        %v10410 = vpop.f32.mrb[0].mxu0
        %v10411 = vpop.f32.mrb[0].mxu0
        %v10412 = vadd.f32 %v10251, %v10411
        %v10413 = vpop.f32.mrb[0].mxu0
        %10414 = vmatprep.mubr.bf16.mxu0 %v2385
        %10415 = vmatmul.mubr.bf16.gmra.mrb[0].mxu0 %v2384
        %v10416 = vpop.f32.mrb[0].mxu0
        %v10417 = vadd.f32 %v10256, %v10416
        %v10418 = vpop.f32.mrb[0].mxu0
        %v10419 = vpop.f32.mrb[0].mxu0
        %v10420 = vadd.f32 %v10259, %v10419
        %v10421 = vpop.f32.mrb[0].mxu0
        %10422 = vmatprep.mubr.bf16.mxu0 %v2393
        %10423 = vmatmul.mubr.bf16.gmra.mrb[0].mxu0 %v2392
        %v10424 = vpop.f32.mrb[0].mxu0
        %v10425 = vadd.f32 %v10264, %v10424
        %v10426 = vpop.f32.mrb[0].mxu0
        %v10427 = vpop.f32.mrb[0].mxu0
        %v10428 = vadd.f32 %v10267, %v10427
        %v10429 = vpop.f32.mrb[0].mxu0
        %10430 = vdwg.mxu0
        %v10559 = vunpack.c.l.b16 %v9147
        %v10560 = vunpack.c.l.b16 %v9148
        %v10561 = vunpack.c.l.b16 %v9149
        %v10562 = vunpack.c.l.b16 %v9150
        %v10563 = vunpack.c.l.b16 %v9151
        %v10564 = vunpack.c.l.b16 %v9152
        %v10565 = vunpack.c.l.b16 %v9153
        %v10566 = vunpack.c.l.b16 %v9154
        %v10567 = vunpack.c.l.b16 %v9155
        %v10568 = vunpack.c.l.b16 %v9156
        %v10569 = vunpack.c.l.b16 %v9157
        %v10570 = vunpack.c.l.b16 %v9158
        %v10571 = vunpack.c.l.b16 %v9159
        %v10572 = vunpack.c.l.b16 %v9160
        %v10573 = vunpack.c.l.b16 %v9161
        %v10574 = vunpack.c.l.b16 %v9162
        %v10575 = vunpack.c.l.b16 %v9163
        %v10576 = vunpack.c.l.b16 %v9164
        %v10577 = vunpack.c.l.b16 %v9165
        %v10578 = vunpack.c.l.b16 %v9166
        %v10579 = vunpack.c.l.b16 %v9167
        %v10580 = vunpack.c.l.b16 %v9168
        %v10581 = vunpack.c.l.b16 %v9169
        %v10582 = vunpack.c.l.b16 %v9170
        %v10583 = vunpack.c.l.b16 %v9171
        %v10584 = vunpack.c.l.b16 %v9172
        %v10585 = vunpack.c.l.b16 %v9173
        %v10586 = vunpack.c.l.b16 %v9174
        %v10587 = vunpack.c.l.b16 %v9175
        %v10588 = vunpack.c.l.b16 %v9176
        %v10589 = vunpack.c.l.b16 %v9177
        %v10590 = vunpack.c.l.b16 %v9178
        %v10591 = vunpack.c.l.b16 %v9179
        %v10592 = vunpack.c.l.b16 %v9180
        %v10593 = vunpack.c.l.b16 %v9181
        %v10594 = vunpack.c.l.b16 %v9182
        %v10595 = vunpack.c.l.b16 %v9183
        %v10596 = vunpack.c.l.b16 %v9184
        %v10597 = vunpack.c.l.b16 %v9185
        %v10598 = vunpack.c.l.b16 %v9186
        %v10599 = vunpack.c.l.b16 %v9187
        %v10600 = vunpack.c.l.b16 %v9188
        %v10601 = vunpack.c.l.b16 %v9189
        %v10602 = vunpack.c.l.b16 %v9190
        %v10603 = vunpack.c.l.b16 %v9191
        %v10604 = vunpack.c.l.b16 %v9192
        %v10605 = vunpack.c.l.b16 %v9193
        %v10606 = vunpack.c.l.b16 %v9194
        %v10607 = vunpack.c.l.b16 %v9195
        %v10608 = vunpack.c.l.b16 %v9196
        %v10609 = vunpack.c.l.b16 %v9197
        %v10610 = vunpack.c.l.b16 %v9198
        %v10611 = vunpack.c.l.b16 %v9199
        %v10612 = vunpack.c.l.b16 %v9200
        %v10613 = vunpack.c.l.b16 %v9201
        %v10614 = vunpack.c.l.b16 %v9202
        %v10615 = vunpack.c.l.b16 %v9203
        %v10616 = vunpack.c.l.b16 %v9204
        %v10617 = vunpack.c.l.b16 %v9205
        %v10618 = vunpack.c.l.b16 %v9206
        %v10619 = vunpack.c.l.b16 %v9207
        %v10620 = vunpack.c.l.b16 %v9208
        %v10621 = vunpack.c.l.b16 %v9209
        %v10622 = vunpack.c.l.b16 %v9210
        %v10623 = vunpack.c.l.b16 %v9211
        %v10624 = vunpack.c.l.b16 %v9212
        %v10625 = vunpack.c.l.b16 %v9213
        %v10626 = vunpack.c.l.b16 %v9214
        %v10627 = vunpack.c.l.b16 %v9215
        %v10628 = vunpack.c.l.b16 %v9216
        %v10629 = vunpack.c.l.b16 %v9217
        %v10630 = vunpack.c.l.b16 %v9218
        %v10631 = vunpack.c.l.b16 %v9219
        %v10632 = vunpack.c.l.b16 %v9220
        %v10633 = vunpack.c.l.b16 %v9221
        %v10634 = vunpack.c.l.b16 %v9222
        %v10635 = vunpack.c.l.b16 %v9223
        %v10636 = vunpack.c.l.b16 %v9224
        %v10637 = vunpack.c.l.b16 %v9225
        %v10638 = vunpack.c.l.b16 %v9226
        %v10639 = vunpack.c.l.b16 %v9227
        %v10640 = vunpack.c.l.b16 %v9228
        %v10641 = vunpack.c.l.b16 %v9229
        %v10642 = vunpack.c.l.b16 %v9230
        %v10643 = vunpack.c.l.b16 %v9231
        %v10644 = vunpack.c.l.b16 %v9232
        %v10645 = vunpack.c.l.b16 %v9233
        %v10646 = vunpack.c.l.b16 %v9234
        %v10647 = vunpack.c.l.b16 %v9235
        %v10648 = vunpack.c.l.b16 %v9236
        %v10649 = vunpack.c.l.b16 %v9237
        %v10650 = vunpack.c.l.b16 %v9238
        %v10651 = vunpack.c.l.b16 %v9239
        %v10652 = vunpack.c.l.b16 %v9240
        %v10653 = vunpack.c.l.b16 %v9241
        %v10654 = vunpack.c.l.b16 %v9242
        %v10655 = vunpack.c.l.b16 %v9243
        %v10656 = vunpack.c.l.b16 %v9244
        %v10657 = vunpack.c.l.b16 %v9245
        %v10658 = vunpack.c.l.b16 %v9246
        %v10659 = vunpack.c.l.b16 %v9247
        %v10660 = vunpack.c.l.b16 %v9248
        %v10661 = vunpack.c.l.b16 %v9249
        %v10662 = vunpack.c.l.b16 %v9250
        %v10663 = vunpack.c.l.b16 %v9251
        %v10664 = vunpack.c.l.b16 %v9252
        %v10665 = vunpack.c.l.b16 %v9253
        %v10666 = vunpack.c.l.b16 %v9254
        %v10667 = vunpack.c.l.b16 %v9255
        %v10668 = vunpack.c.l.b16 %v9256
        %v10669 = vunpack.c.l.b16 %v9257
        %v10670 = vunpack.c.l.b16 %v9258
        %v10671 = vunpack.c.l.b16 %v9259
        %v10672 = vunpack.c.l.b16 %v9260
        %v10673 = vunpack.c.l.b16 %v9261
        %v10674 = vunpack.c.l.b16 %v9262
        %v10675 = vunpack.c.l.b16 %v9263
        %v10676 = vunpack.c.l.b16 %v9264
        %v10677 = vunpack.c.l.b16 %v9265
        %v10678 = vunpack.c.l.b16 %v9266
        %v10679 = vunpack.c.l.b16 %v9267
        %v10680 = vunpack.c.l.b16 %v9268
        %v10681 = vunpack.c.l.b16 %v9269
        %v10682 = vunpack.c.l.b16 %v9270
        %v10683 = vunpack.c.l.b16 %v9271
        %v10684 = vunpack.c.l.b16 %v9272
        %v10685 = vunpack.c.l.b16 %v9273
        %v10686 = vunpack.c.l.b16 %v9274
        %v10687 = vpack.c.b16 %v10560, %v10559
        %v10688 = vpack.c.b16 %v10562, %v10561
        %v10689 = vpack.c.b16 %v10564, %v10563
        %v10690 = vpack.c.b16 %v10566, %v10565
        %v10691 = vpack.c.b16 %v10568, %v10567
        %v10692 = vpack.c.b16 %v10570, %v10569
        %v10693 = vpack.c.b16 %v10572, %v10571
        %v10694 = vpack.c.b16 %v10574, %v10573
        %v10695 = vpack.c.b16 %v10576, %v10575
        %v10696 = vpack.c.b16 %v10578, %v10577
        %v10697 = vpack.c.b16 %v10580, %v10579
        %v10698 = vpack.c.b16 %v10582, %v10581
        %v10699 = vpack.c.b16 %v10584, %v10583
        %v10700 = vpack.c.b16 %v10586, %v10585
        %v10701 = vpack.c.b16 %v10588, %v10587
        %v10702 = vpack.c.b16 %v10590, %v10589
        %v10703 = vpack.c.b16 %v10592, %v10591
        %v10704 = vpack.c.b16 %v10594, %v10593
        %v10705 = vpack.c.b16 %v10596, %v10595
        %v10706 = vpack.c.b16 %v10598, %v10597
        %v10707 = vpack.c.b16 %v10600, %v10599
        %v10708 = vpack.c.b16 %v10602, %v10601
        %v10709 = vpack.c.b16 %v10604, %v10603
        %v10710 = vpack.c.b16 %v10606, %v10605
        %v10711 = vpack.c.b16 %v10608, %v10607
        %v10712 = vpack.c.b16 %v10610, %v10609
        %v10713 = vpack.c.b16 %v10612, %v10611
        %v10714 = vpack.c.b16 %v10614, %v10613
        %v10715 = vpack.c.b16 %v10616, %v10615
        %v10716 = vpack.c.b16 %v10618, %v10617
        %v10717 = vpack.c.b16 %v10620, %v10619
        %v10718 = vpack.c.b16 %v10622, %v10621
        %v10719 = vpack.c.b16 %v10624, %v10623
        %v10720 = vpack.c.b16 %v10626, %v10625
        %v10721 = vpack.c.b16 %v10628, %v10627
        %v10722 = vpack.c.b16 %v10630, %v10629
        %v10723 = vpack.c.b16 %v10632, %v10631
        %v10724 = vpack.c.b16 %v10634, %v10633
        %v10725 = vpack.c.b16 %v10636, %v10635
        %v10726 = vpack.c.b16 %v10638, %v10637
        %v10727 = vpack.c.b16 %v10640, %v10639
        %v10728 = vpack.c.b16 %v10642, %v10641
        %v10729 = vpack.c.b16 %v10644, %v10643
        %v10730 = vpack.c.b16 %v10646, %v10645
        %v10731 = vpack.c.b16 %v10648, %v10647
        %v10732 = vpack.c.b16 %v10650, %v10649
        %v10733 = vpack.c.b16 %v10652, %v10651
        %v10734 = vpack.c.b16 %v10654, %v10653
        %v10735 = vpack.c.b16 %v10656, %v10655
        %v10736 = vpack.c.b16 %v10658, %v10657
        %v10737 = vpack.c.b16 %v10660, %v10659
        %v10738 = vpack.c.b16 %v10662, %v10661
        %v10739 = vpack.c.b16 %v10664, %v10663
        %v10740 = vpack.c.b16 %v10666, %v10665
        %v10741 = vpack.c.b16 %v10668, %v10667
        %v10742 = vpack.c.b16 %v10670, %v10669
        %v10743 = vpack.c.b16 %v10672, %v10671
        %v10744 = vpack.c.b16 %v10674, %v10673
        %v10745 = vpack.c.b16 %v10676, %v10675
        %v10746 = vpack.c.b16 %v10678, %v10677
        %v10747 = vpack.c.b16 %v10680, %v10679
        %v10748 = vpack.c.b16 %v10682, %v10681
        %v10749 = vpack.c.b16 %v10684, %v10683
        %v10750 = vpack.c.b16 %v10686, %v10685
        %10815 = vmatprep.subr.bf16.mxu0 0
        %10816 = vmatpush1.bf16.msra.mxu0 %v10687
        %10817 = vmatprep.subr.bf16.mxu0 0
        %10818 = vmatpush1.bf16.msra.mxu0 %v10688
        %10819 = vmatprep.subr.bf16.mxu0 0
        %10820 = vmatpush1.bf16.msra.mxu0 %v10689
        %10821 = vmatprep.subr.bf16.mxu0 0
        %10822 = vmatpush1.bf16.msra.mxu0 %v10690
        %10823 = vmatprep.subr.bf16.mxu0 0
        %10824 = vmatpush1.bf16.msra.mxu0 %v10691
        %10825 = vmatprep.subr.bf16.mxu0 0
        %10826 = vmatpush1.bf16.msra.mxu0 %v10692
        %10827 = vmatprep.subr.bf16.mxu0 0
        %10828 = vmatpush1.bf16.msra.mxu0 %v10693
        %10829 = vmatprep.subr.bf16.mxu0 0
        %10830 = vmatpush1.bf16.msra.mxu0 %v10694
        %10831 = vmatprep.subr.bf16.mxu0 0
        %10832 = vmatpush1.bf16.msra.mxu0 %v10695
        %10833 = vmatprep.subr.bf16.mxu0 0
        %10834 = vmatpush1.bf16.msra.mxu0 %v10696
        %10835 = vmatprep.subr.bf16.mxu0 0
        %10836 = vmatpush1.bf16.msra.mxu0 %v10697
        %10837 = vmatprep.subr.bf16.mxu0 0
        %10838 = vmatpush1.bf16.msra.mxu0 %v10698
        %10839 = vmatprep.subr.bf16.mxu0 0
        %10840 = vmatpush1.bf16.msra.mxu0 %v10699
        %10841 = vmatprep.subr.bf16.mxu0 0
        %10842 = vmatpush1.bf16.msra.mxu0 %v10700
        %10843 = vmatprep.subr.bf16.mxu0 0
        %10844 = vmatpush1.bf16.msra.mxu0 %v10701
        %10845 = vmatprep.subr.bf16.mxu0 0
        %10846 = vmatpush1.bf16.msra.mxu0 %v10702
        %10847 = vmatprep.mubr.bf16.mxu0 %v9020
        %10848 = vmatmul.mubr.bf16.gmra.mrb[0].mxu0 %v9019
        %v10849 = vpop.f32.mrb[0].mxu0
        %v10850 = vadd.f32 %v10305, %v10849
        %v10851 = vpop.f32.mrb[0].mxu0
        %v10852 = vpop.f32.mrb[0].mxu0
        %v10853 = vadd.f32 %v10308, %v10852
        %v10854 = vpop.f32.mrb[0].mxu0
        %10855 = vmatprep.mubr.bf16.mxu0 %v9028
        %10856 = vmatmul.mubr.bf16.gmra.mrb[0].mxu0 %v9027
        %v10857 = vpop.f32.mrb[0].mxu0
        %v10858 = vadd.f32 %v10313, %v10857
        %v10859 = vpop.f32.mrb[0].mxu0
        %v10860 = vpop.f32.mrb[0].mxu0
        %v10861 = vadd.f32 %v10316, %v10860
        %v10862 = vpop.f32.mrb[0].mxu0
        %10863 = vmatprep.mubr.bf16.mxu0 %v9036
        %10864 = vmatmul.mubr.bf16.gmra.mrb[0].mxu0 %v9035
        %v10865 = vpop.f32.mrb[0].mxu0
        %v10866 = vadd.f32 %v10321, %v10865
        %v10867 = vpop.f32.mrb[0].mxu0
        %v10868 = vpop.f32.mrb[0].mxu0
        %v10869 = vadd.f32 %v10324, %v10868
        %v10870 = vpop.f32.mrb[0].mxu0
        %10871 = vmatprep.mubr.bf16.mxu0 %v9044
        %10872 = vmatmul.mubr.bf16.gmra.mrb[0].mxu0 %v9043
        %v10873 = vpop.f32.mrb[0].mxu0
        %v10874 = vadd.f32 %v10329, %v10873
        %v10875 = vpop.f32.mrb[0].mxu0
        %v10876 = vpop.f32.mrb[0].mxu0
        %v10877 = vadd.f32 %v10332, %v10876
        %v10878 = vpop.f32.mrb[0].mxu0
        %10879 = vmatprep.mubr.bf16.mxu0 %v9052
        %10880 = vmatmul.mubr.bf16.gmra.mrb[0].mxu0 %v9051
        %v10881 = vpop.f32.mrb[0].mxu0
        %v10882 = vadd.f32 %v10337, %v10881
        %v10883 = vpop.f32.mrb[0].mxu0
        %v10884 = vpop.f32.mrb[0].mxu0
        %v10885 = vadd.f32 %v10340, %v10884
        %v10886 = vpop.f32.mrb[0].mxu0
        %10887 = vmatprep.mubr.bf16.mxu0 %v9060
        %10888 = vmatmul.mubr.bf16.gmra.mrb[0].mxu0 %v9059
        %v10889 = vpop.f32.mrb[0].mxu0
        %v10890 = vadd.f32 %v10345, %v10889
        %v10891 = vpop.f32.mrb[0].mxu0
        %v10892 = vpop.f32.mrb[0].mxu0
        %v10893 = vadd.f32 %v10348, %v10892
        %v10894 = vpop.f32.mrb[0].mxu0
        %10895 = vmatprep.mubr.bf16.mxu0 %v9068
        %10896 = vmatmul.mubr.bf16.gmra.mrb[0].mxu0 %v9067
        %v10897 = vpop.f32.mrb[0].mxu0
        %v10898 = vadd.f32 %v10353, %v10897
        %v10899 = vpop.f32.mrb[0].mxu0
        %v10900 = vpop.f32.mrb[0].mxu0
        %v10901 = vadd.f32 %v10356, %v10900
        %v10902 = vpop.f32.mrb[0].mxu0
        %10903 = vmatprep.mubr.bf16.mxu0 %v9076
        %10904 = vmatmul.mubr.bf16.gmra.mrb[0].mxu0 %v9075
        %v10905 = vpop.f32.mrb[0].mxu0
        %v10906 = vadd.f32 %v10361, %v10905
        %v10907 = vpop.f32.mrb[0].mxu0
        %v10908 = vpop.f32.mrb[0].mxu0
        %v10909 = vadd.f32 %v10364, %v10908
        %v10910 = vpop.f32.mrb[0].mxu0
        %10911 = vmatprep.mubr.bf16.mxu0 %v9084
        %10912 = vmatmul.mubr.bf16.gmra.mrb[0].mxu0 %v9083
        %v10913 = vpop.f32.mrb[0].mxu0
        %v10914 = vadd.f32 %v10369, %v10913
        %v10915 = vpop.f32.mrb[0].mxu0
        %v10916 = vpop.f32.mrb[0].mxu0
        %v10917 = vadd.f32 %v10372, %v10916
        %v10918 = vpop.f32.mrb[0].mxu0
        %10919 = vmatprep.mubr.bf16.mxu0 %v9092
        %10920 = vmatmul.mubr.bf16.gmra.mrb[0].mxu0 %v9091
        %v10921 = vpop.f32.mrb[0].mxu0
        %v10922 = vadd.f32 %v10377, %v10921
        %v10923 = vpop.f32.mrb[0].mxu0
        %v10924 = vpop.f32.mrb[0].mxu0
        %v10925 = vadd.f32 %v10380, %v10924
        %v10926 = vpop.f32.mrb[0].mxu0
        %10927 = vmatprep.mubr.bf16.mxu0 %v9100
        %10928 = vmatmul.mubr.bf16.gmra.mrb[0].mxu0 %v9099
        %v10929 = vpop.f32.mrb[0].mxu0
        %v10930 = vadd.f32 %v10385, %v10929
        %v10931 = vpop.f32.mrb[0].mxu0
        %v10932 = vpop.f32.mrb[0].mxu0
        %v10933 = vadd.f32 %v10388, %v10932
        %v10934 = vpop.f32.mrb[0].mxu0
        %10935 = vmatprep.mubr.bf16.mxu0 %v9108
        %10936 = vmatmul.mubr.bf16.gmra.mrb[0].mxu0 %v9107
        %v10937 = vpop.f32.mrb[0].mxu0
        %v10938 = vadd.f32 %v10393, %v10937
        %v10939 = vpop.f32.mrb[0].mxu0
        %v10940 = vpop.f32.mrb[0].mxu0
        %v10941 = vadd.f32 %v10396, %v10940
        %v10942 = vpop.f32.mrb[0].mxu0
        %10943 = vmatprep.mubr.bf16.mxu0 %v9116
        %10944 = vmatmul.mubr.bf16.gmra.mrb[0].mxu0 %v9115
        %v10945 = vpop.f32.mrb[0].mxu0
        %v10946 = vadd.f32 %v10401, %v10945
        %v10947 = vpop.f32.mrb[0].mxu0
        %v10948 = vpop.f32.mrb[0].mxu0
        %v10949 = vadd.f32 %v10404, %v10948
        %v10950 = vpop.f32.mrb[0].mxu0
        %10951 = vmatprep.mubr.bf16.mxu0 %v9124
        %10952 = vmatmul.mubr.bf16.gmra.mrb[0].mxu0 %v9123
        %v10953 = vpop.f32.mrb[0].mxu0
        %v10954 = vadd.f32 %v10409, %v10953
        %v10955 = vpop.f32.mrb[0].mxu0
        %v10956 = vpop.f32.mrb[0].mxu0
        %v10957 = vadd.f32 %v10412, %v10956
        %v10958 = vpop.f32.mrb[0].mxu0
        %10959 = vmatprep.mubr.bf16.mxu0 %v9132
        %10960 = vmatmul.mubr.bf16.gmra.mrb[0].mxu0 %v9131
        %v10961 = vpop.f32.mrb[0].mxu0
        %v10962 = vadd.f32 %v10417, %v10961
        %v10963 = vpop.f32.mrb[0].mxu0
        %v10964 = vpop.f32.mrb[0].mxu0
        %v10965 = vadd.f32 %v10420, %v10964
        %v10966 = vpop.f32.mrb[0].mxu0
        %10967 = vmatprep.mubr.bf16.mxu0 %v9140
        %10968 = vmatmul.mubr.bf16.gmra.mrb[0].mxu0 %v9139
        %v10969 = vpop.f32.mrb[0].mxu0
        %v10970 = vadd.f32 %v10425, %v10969
        %v10971 = vpop.f32.mrb[0].mxu0
        %v10972 = vpop.f32.mrb[0].mxu0
        %v10973 = vadd.f32 %v10428, %v10972
        %v10974 = vpop.f32.mrb[0].mxu0
        %10975 = vdwg.mxu0
        %10976 = vmatprep.subr.bf16.mxu0 0
        %10977 = vmatpush1.bf16.msra.mxu0 %v10703
        %10978 = vmatprep.subr.bf16.mxu0 0
        %10979 = vmatpush1.bf16.msra.mxu0 %v10704
        %10980 = vmatprep.subr.bf16.mxu0 0
        %10981 = vmatpush1.bf16.msra.mxu0 %v10705
        %10982 = vmatprep.subr.bf16.mxu0 0
        %10983 = vmatpush1.bf16.msra.mxu0 %v10706
        %10984 = vmatprep.subr.bf16.mxu0 0
        %10985 = vmatpush1.bf16.msra.mxu0 %v10707
        %10986 = vmatprep.subr.bf16.mxu0 0
        %10987 = vmatpush1.bf16.msra.mxu0 %v10708
        %10988 = vmatprep.subr.bf16.mxu0 0
        %10989 = vmatpush1.bf16.msra.mxu0 %v10709
        %10990 = vmatprep.subr.bf16.mxu0 0
        %10991 = vmatpush1.bf16.msra.mxu0 %v10710
        %10992 = vmatprep.subr.bf16.mxu0 0
        %10993 = vmatpush1.bf16.msra.mxu0 %v10711
        %10994 = vmatprep.subr.bf16.mxu0 0
        %10995 = vmatpush1.bf16.msra.mxu0 %v10712
        %10996 = vmatprep.subr.bf16.mxu0 0
        %10997 = vmatpush1.bf16.msra.mxu0 %v10713
        %10998 = vmatprep.subr.bf16.mxu0 0
        %10999 = vmatpush1.bf16.msra.mxu0 %v10714
        %11000 = vmatprep.subr.bf16.mxu0 0
        %11001 = vmatpush1.bf16.msra.mxu0 %v10715
        %11002 = vmatprep.subr.bf16.mxu0 0
        %11003 = vmatpush1.bf16.msra.mxu0 %v10716
        %11004 = vmatprep.subr.bf16.mxu0 0
        %11005 = vmatpush1.bf16.msra.mxu0 %v10717
        %11006 = vmatprep.subr.bf16.mxu0 0
        %11007 = vmatpush1.bf16.msra.mxu0 %v10718
        %11008 = vmatprep.mubr.bf16.mxu0 %v9022
        %11009 = vmatmul.mubr.bf16.gmra.mrb[0].mxu0 %v9021
        %v11010 = vpop.f32.mrb[0].mxu0
        %v11011 = vadd.f32 %v10850, %v11010
        %v11012 = vpop.f32.mrb[0].mxu0
        %v11013 = vpop.f32.mrb[0].mxu0
        %v11014 = vadd.f32 %v10853, %v11013
        %v11015 = vpop.f32.mrb[0].mxu0
        %11016 = vmatprep.mubr.bf16.mxu0 %v9030
        %11017 = vmatmul.mubr.bf16.gmra.mrb[0].mxu0 %v9029
        %v11018 = vpop.f32.mrb[0].mxu0
        %v11019 = vadd.f32 %v10858, %v11018
        %v11020 = vpop.f32.mrb[0].mxu0
        %v11021 = vpop.f32.mrb[0].mxu0
        %v11022 = vadd.f32 %v10861, %v11021
        %v11023 = vpop.f32.mrb[0].mxu0
        %11024 = vmatprep.mubr.bf16.mxu0 %v9038
        %11025 = vmatmul.mubr.bf16.gmra.mrb[0].mxu0 %v9037
        %v11026 = vpop.f32.mrb[0].mxu0
        %v11027 = vadd.f32 %v10866, %v11026
        %v11028 = vpop.f32.mrb[0].mxu0
        %v11029 = vpop.f32.mrb[0].mxu0
        %v11030 = vadd.f32 %v10869, %v11029
        %v11031 = vpop.f32.mrb[0].mxu0
        %11032 = vmatprep.mubr.bf16.mxu0 %v9046
        %11033 = vmatmul.mubr.bf16.gmra.mrb[0].mxu0 %v9045
        %v11034 = vpop.f32.mrb[0].mxu0
        %v11035 = vadd.f32 %v10874, %v11034
        %v11036 = vpop.f32.mrb[0].mxu0
        %v11037 = vpop.f32.mrb[0].mxu0
        %v11038 = vadd.f32 %v10877, %v11037
        %v11039 = vpop.f32.mrb[0].mxu0
        %11040 = vmatprep.mubr.bf16.mxu0 %v9054
        %11041 = vmatmul.mubr.bf16.gmra.mrb[0].mxu0 %v9053
        %v11042 = vpop.f32.mrb[0].mxu0
        %v11043 = vadd.f32 %v10882, %v11042
        %v11044 = vpop.f32.mrb[0].mxu0
        %v11045 = vpop.f32.mrb[0].mxu0
        %v11046 = vadd.f32 %v10885, %v11045
        %v11047 = vpop.f32.mrb[0].mxu0
        %11048 = vmatprep.mubr.bf16.mxu0 %v9062
        %11049 = vmatmul.mubr.bf16.gmra.mrb[0].mxu0 %v9061
        %v11050 = vpop.f32.mrb[0].mxu0
        %v11051 = vadd.f32 %v10890, %v11050
        %v11052 = vpop.f32.mrb[0].mxu0
        %v11053 = vpop.f32.mrb[0].mxu0
        %v11054 = vadd.f32 %v10893, %v11053
        %v11055 = vpop.f32.mrb[0].mxu0
        %11056 = vmatprep.mubr.bf16.mxu0 %v9070
        %11057 = vmatmul.mubr.bf16.gmra.mrb[0].mxu0 %v9069
        %v11058 = vpop.f32.mrb[0].mxu0
        %v11059 = vadd.f32 %v10898, %v11058
        %v11060 = vpop.f32.mrb[0].mxu0
        %v11061 = vpop.f32.mrb[0].mxu0
        %v11062 = vadd.f32 %v10901, %v11061
        %v11063 = vpop.f32.mrb[0].mxu0
        %11064 = vmatprep.mubr.bf16.mxu0 %v9078
        %11065 = vmatmul.mubr.bf16.gmra.mrb[0].mxu0 %v9077
        %v11066 = vpop.f32.mrb[0].mxu0
        %v11067 = vadd.f32 %v10906, %v11066
        %v11068 = vpop.f32.mrb[0].mxu0
        %v11069 = vpop.f32.mrb[0].mxu0
        %v11070 = vadd.f32 %v10909, %v11069
        %v11071 = vpop.f32.mrb[0].mxu0
        %11072 = vmatprep.mubr.bf16.mxu0 %v9086
        %11073 = vmatmul.mubr.bf16.gmra.mrb[0].mxu0 %v9085
        %v11074 = vpop.f32.mrb[0].mxu0
        %v11075 = vadd.f32 %v10914, %v11074
        %v11076 = vpop.f32.mrb[0].mxu0
        %v11077 = vpop.f32.mrb[0].mxu0
        %v11078 = vadd.f32 %v10917, %v11077
        %v11079 = vpop.f32.mrb[0].mxu0
        %11080 = vmatprep.mubr.bf16.mxu0 %v9094
        %11081 = vmatmul.mubr.bf16.gmra.mrb[0].mxu0 %v9093
        %v11082 = vpop.f32.mrb[0].mxu0
        %v11083 = vadd.f32 %v10922, %v11082
        %v11084 = vpop.f32.mrb[0].mxu0
        %v11085 = vpop.f32.mrb[0].mxu0
        %v11086 = vadd.f32 %v10925, %v11085
        %v11087 = vpop.f32.mrb[0].mxu0
        %11088 = vmatprep.mubr.bf16.mxu0 %v9102
        %11089 = vmatmul.mubr.bf16.gmra.mrb[0].mxu0 %v9101
        %v11090 = vpop.f32.mrb[0].mxu0
        %v11091 = vadd.f32 %v10930, %v11090
        %v11092 = vpop.f32.mrb[0].mxu0
        %v11093 = vpop.f32.mrb[0].mxu0
        %v11094 = vadd.f32 %v10933, %v11093
        %v11095 = vpop.f32.mrb[0].mxu0
        %11096 = vmatprep.mubr.bf16.mxu0 %v9110
        %11097 = vmatmul.mubr.bf16.gmra.mrb[0].mxu0 %v9109
        %v11098 = vpop.f32.mrb[0].mxu0
        %v11099 = vadd.f32 %v10938, %v11098
        %v11100 = vpop.f32.mrb[0].mxu0
        %v11101 = vpop.f32.mrb[0].mxu0
        %v11102 = vadd.f32 %v10941, %v11101
        %v11103 = vpop.f32.mrb[0].mxu0
        %11104 = vmatprep.mubr.bf16.mxu0 %v9118
        %11105 = vmatmul.mubr.bf16.gmra.mrb[0].mxu0 %v9117
        %v11106 = vpop.f32.mrb[0].mxu0
        %v11107 = vadd.f32 %v10946, %v11106
        %v11108 = vpop.f32.mrb[0].mxu0
        %v11109 = vpop.f32.mrb[0].mxu0
        %v11110 = vadd.f32 %v10949, %v11109
        %v11111 = vpop.f32.mrb[0].mxu0
        %11112 = vmatprep.mubr.bf16.mxu0 %v9126
        %11113 = vmatmul.mubr.bf16.gmra.mrb[0].mxu0 %v9125
        %v11114 = vpop.f32.mrb[0].mxu0
        %v11115 = vadd.f32 %v10954, %v11114
        %v11116 = vpop.f32.mrb[0].mxu0
        %v11117 = vpop.f32.mrb[0].mxu0
        %v11118 = vadd.f32 %v10957, %v11117
        %v11119 = vpop.f32.mrb[0].mxu0
        %11120 = vmatprep.mubr.bf16.mxu0 %v9134
        %11121 = vmatmul.mubr.bf16.gmra.mrb[0].mxu0 %v9133
        %v11122 = vpop.f32.mrb[0].mxu0
        %v11123 = vadd.f32 %v10962, %v11122
        %v11124 = vpop.f32.mrb[0].mxu0
        %v11125 = vpop.f32.mrb[0].mxu0
        %v11126 = vadd.f32 %v10965, %v11125
        %v11127 = vpop.f32.mrb[0].mxu0
        %11128 = vmatprep.mubr.bf16.mxu0 %v9142
        %11129 = vmatmul.mubr.bf16.gmra.mrb[0].mxu0 %v9141
        %v11130 = vpop.f32.mrb[0].mxu0
        %v11131 = vadd.f32 %v10970, %v11130
        %v11132 = vpop.f32.mrb[0].mxu0
        %v11133 = vpop.f32.mrb[0].mxu0
        %v11134 = vadd.f32 %v10973, %v11133
        %v11135 = vpop.f32.mrb[0].mxu0
        %11136 = vdwg.mxu0
        %11137 = vmatprep.subr.bf16.mxu0 0
        %11138 = vmatpush1.bf16.msra.mxu0 %v10719
        %11139 = vmatprep.subr.bf16.mxu0 0
        %11140 = vmatpush1.bf16.msra.mxu0 %v10720
        %11141 = vmatprep.subr.bf16.mxu0 0
        %11142 = vmatpush1.bf16.msra.mxu0 %v10721
        %11143 = vmatprep.subr.bf16.mxu0 0
        %11144 = vmatpush1.bf16.msra.mxu0 %v10722
        %11145 = vmatprep.subr.bf16.mxu0 0
        %11146 = vmatpush1.bf16.msra.mxu0 %v10723
        %11147 = vmatprep.subr.bf16.mxu0 0
        %11148 = vmatpush1.bf16.msra.mxu0 %v10724
        %11149 = vmatprep.subr.bf16.mxu0 0
        %11150 = vmatpush1.bf16.msra.mxu0 %v10725
        %11151 = vmatprep.subr.bf16.mxu0 0
        %11152 = vmatpush1.bf16.msra.mxu0 %v10726
        %11153 = vmatprep.subr.bf16.mxu0 0
        %11154 = vmatpush1.bf16.msra.mxu0 %v10727
        %11155 = vmatprep.subr.bf16.mxu0 0
        %11156 = vmatpush1.bf16.msra.mxu0 %v10728
        %11157 = vmatprep.subr.bf16.mxu0 0
        %11158 = vmatpush1.bf16.msra.mxu0 %v10729
        %11159 = vmatprep.subr.bf16.mxu0 0
        %11160 = vmatpush1.bf16.msra.mxu0 %v10730
        %11161 = vmatprep.subr.bf16.mxu0 0
        %11162 = vmatpush1.bf16.msra.mxu0 %v10731
        %11163 = vmatprep.subr.bf16.mxu0 0
        %11164 = vmatpush1.bf16.msra.mxu0 %v10732
        %11165 = vmatprep.subr.bf16.mxu0 0
        %11166 = vmatpush1.bf16.msra.mxu0 %v10733
        %11167 = vmatprep.subr.bf16.mxu0 0
        %11168 = vmatpush1.bf16.msra.mxu0 %v10734
        %11169 = vmatprep.mubr.bf16.mxu0 %v9024
        %11170 = vmatmul.mubr.bf16.gmra.mrb[0].mxu0 %v9023
        %v11171 = vpop.f32.mrb[0].mxu0
        %v11172 = vadd.f32 %v11011, %v11171
        %v11173 = vpop.f32.mrb[0].mxu0
        %v11174 = vpop.f32.mrb[0].mxu0
        %v11175 = vadd.f32 %v11014, %v11174
        %v11176 = vpop.f32.mrb[0].mxu0
        %11177 = vmatprep.mubr.bf16.mxu0 %v9032
        %11178 = vmatmul.mubr.bf16.gmra.mrb[0].mxu0 %v9031
        %v11179 = vpop.f32.mrb[0].mxu0
        %v11180 = vadd.f32 %v11019, %v11179
        %v11181 = vpop.f32.mrb[0].mxu0
        %v11182 = vpop.f32.mrb[0].mxu0
        %v11183 = vadd.f32 %v11022, %v11182
        %v11184 = vpop.f32.mrb[0].mxu0
        %11185 = vmatprep.mubr.bf16.mxu0 %v9040
        %11186 = vmatmul.mubr.bf16.gmra.mrb[0].mxu0 %v9039
        %v11187 = vpop.f32.mrb[0].mxu0
        %v11188 = vadd.f32 %v11027, %v11187
        %v11189 = vpop.f32.mrb[0].mxu0
        %v11190 = vpop.f32.mrb[0].mxu0
        %v11191 = vadd.f32 %v11030, %v11190
        %v11192 = vpop.f32.mrb[0].mxu0
        %11193 = vmatprep.mubr.bf16.mxu0 %v9048
        %11194 = vmatmul.mubr.bf16.gmra.mrb[0].mxu0 %v9047
        %v11195 = vpop.f32.mrb[0].mxu0
        %v11196 = vadd.f32 %v11035, %v11195
        %v11197 = vpop.f32.mrb[0].mxu0
        %v11198 = vpop.f32.mrb[0].mxu0
        %v11199 = vadd.f32 %v11038, %v11198
        %v11200 = vpop.f32.mrb[0].mxu0
        %11201 = vmatprep.mubr.bf16.mxu0 %v9056
        %11202 = vmatmul.mubr.bf16.gmra.mrb[0].mxu0 %v9055
        %v11203 = vpop.f32.mrb[0].mxu0
        %v11204 = vadd.f32 %v11043, %v11203
        %v11205 = vpop.f32.mrb[0].mxu0
        %v11206 = vpop.f32.mrb[0].mxu0
        %v11207 = vadd.f32 %v11046, %v11206
        %v11208 = vpop.f32.mrb[0].mxu0
        %11209 = vmatprep.mubr.bf16.mxu0 %v9064
        %11210 = vmatmul.mubr.bf16.gmra.mrb[0].mxu0 %v9063
        %v11211 = vpop.f32.mrb[0].mxu0
        %v11212 = vadd.f32 %v11051, %v11211
        %v11213 = vpop.f32.mrb[0].mxu0
        %v11214 = vpop.f32.mrb[0].mxu0
        %v11215 = vadd.f32 %v11054, %v11214
        %v11216 = vpop.f32.mrb[0].mxu0
        %11217 = vmatprep.mubr.bf16.mxu0 %v9072
        %11218 = vmatmul.mubr.bf16.gmra.mrb[0].mxu0 %v9071
        %v11219 = vpop.f32.mrb[0].mxu0
        %v11220 = vadd.f32 %v11059, %v11219
        %v11221 = vpop.f32.mrb[0].mxu0
        %v11222 = vpop.f32.mrb[0].mxu0
        %v11223 = vadd.f32 %v11062, %v11222
        %v11224 = vpop.f32.mrb[0].mxu0
        %11225 = vmatprep.mubr.bf16.mxu0 %v9080
        %11226 = vmatmul.mubr.bf16.gmra.mrb[0].mxu0 %v9079
        %v11227 = vpop.f32.mrb[0].mxu0
        %v11228 = vadd.f32 %v11067, %v11227
        %v11229 = vpop.f32.mrb[0].mxu0
        %v11230 = vpop.f32.mrb[0].mxu0
        %v11231 = vadd.f32 %v11070, %v11230
        %v11232 = vpop.f32.mrb[0].mxu0
        %11233 = vmatprep.mubr.bf16.mxu0 %v9088
        %11234 = vmatmul.mubr.bf16.gmra.mrb[0].mxu0 %v9087
        %v11235 = vpop.f32.mrb[0].mxu0
        %v11236 = vadd.f32 %v11075, %v11235
        %v11237 = vpop.f32.mrb[0].mxu0
        %v11238 = vpop.f32.mrb[0].mxu0
        %v11239 = vadd.f32 %v11078, %v11238
        %v11240 = vpop.f32.mrb[0].mxu0
        %11241 = vmatprep.mubr.bf16.mxu0 %v9096
        %11242 = vmatmul.mubr.bf16.gmra.mrb[0].mxu0 %v9095
        %v11243 = vpop.f32.mrb[0].mxu0
        %v11244 = vadd.f32 %v11083, %v11243
        %v11245 = vpop.f32.mrb[0].mxu0
        %v11246 = vpop.f32.mrb[0].mxu0
        %v11247 = vadd.f32 %v11086, %v11246
        %v11248 = vpop.f32.mrb[0].mxu0
        %11249 = vmatprep.mubr.bf16.mxu0 %v9104
        %11250 = vmatmul.mubr.bf16.gmra.mrb[0].mxu0 %v9103
        %v11251 = vpop.f32.mrb[0].mxu0
        %v11252 = vadd.f32 %v11091, %v11251
        %v11253 = vpop.f32.mrb[0].mxu0
        %v11254 = vpop.f32.mrb[0].mxu0
        %v11255 = vadd.f32 %v11094, %v11254
        %v11256 = vpop.f32.mrb[0].mxu0
        %11257 = vmatprep.mubr.bf16.mxu0 %v9112
        %11258 = vmatmul.mubr.bf16.gmra.mrb[0].mxu0 %v9111
        %v11259 = vpop.f32.mrb[0].mxu0
        %v11260 = vadd.f32 %v11099, %v11259
        %v11261 = vpop.f32.mrb[0].mxu0
        %v11262 = vpop.f32.mrb[0].mxu0
        %v11263 = vadd.f32 %v11102, %v11262
        %v11264 = vpop.f32.mrb[0].mxu0
        %11265 = vmatprep.mubr.bf16.mxu0 %v9120
        %11266 = vmatmul.mubr.bf16.gmra.mrb[0].mxu0 %v9119
        %v11267 = vpop.f32.mrb[0].mxu0
        %v11268 = vadd.f32 %v11107, %v11267
        %v11269 = vpop.f32.mrb[0].mxu0
        %v11270 = vpop.f32.mrb[0].mxu0
        %v11271 = vadd.f32 %v11110, %v11270
        %v11272 = vpop.f32.mrb[0].mxu0
        %11273 = vmatprep.mubr.bf16.mxu0 %v9128
        %11274 = vmatmul.mubr.bf16.gmra.mrb[0].mxu0 %v9127
        %v11275 = vpop.f32.mrb[0].mxu0
        %v11276 = vadd.f32 %v11115, %v11275
        %v11277 = vpop.f32.mrb[0].mxu0
        %v11278 = vpop.f32.mrb[0].mxu0
        %v11279 = vadd.f32 %v11118, %v11278
        %v11280 = vpop.f32.mrb[0].mxu0
        %11281 = vmatprep.mubr.bf16.mxu0 %v9136
        %11282 = vmatmul.mubr.bf16.gmra.mrb[0].mxu0 %v9135
        %v11283 = vpop.f32.mrb[0].mxu0
        %v11284 = vadd.f32 %v11123, %v11283
        %v11285 = vpop.f32.mrb[0].mxu0
        %v11286 = vpop.f32.mrb[0].mxu0
        %v11287 = vadd.f32 %v11126, %v11286
        %v11288 = vpop.f32.mrb[0].mxu0
        %11289 = vmatprep.mubr.bf16.mxu0 %v9144
        %11290 = vmatmul.mubr.bf16.gmra.mrb[0].mxu0 %v9143
        %v11291 = vpop.f32.mrb[0].mxu0
        %v11292 = vadd.f32 %v11131, %v11291
        %v11293 = vpop.f32.mrb[0].mxu0
        %v11294 = vpop.f32.mrb[0].mxu0
        %v11295 = vadd.f32 %v11134, %v11294
        %v11296 = vpop.f32.mrb[0].mxu0
        %11297 = vdwg.mxu0
        %11298 = vmatprep.subr.bf16.mxu0 0
        %11299 = vmatpush1.bf16.msra.mxu0 %v10735
        %11300 = vmatprep.subr.bf16.mxu0 0
        %11301 = vmatpush1.bf16.msra.mxu0 %v10736
        %11302 = vmatprep.subr.bf16.mxu0 0
        %11303 = vmatpush1.bf16.msra.mxu0 %v10737
        %11304 = vmatprep.subr.bf16.mxu0 0
        %11305 = vmatpush1.bf16.msra.mxu0 %v10738
        %11306 = vmatprep.subr.bf16.mxu0 0
        %11307 = vmatpush1.bf16.msra.mxu0 %v10739
        %11308 = vmatprep.subr.bf16.mxu0 0
        %11309 = vmatpush1.bf16.msra.mxu0 %v10740
        %11310 = vmatprep.subr.bf16.mxu0 0
        %11311 = vmatpush1.bf16.msra.mxu0 %v10741
        %11312 = vmatprep.subr.bf16.mxu0 0
        %11313 = vmatpush1.bf16.msra.mxu0 %v10742
        %11314 = vmatprep.subr.bf16.mxu0 0
        %11315 = vmatpush1.bf16.msra.mxu0 %v10743
        %11316 = vmatprep.subr.bf16.mxu0 0
        %11317 = vmatpush1.bf16.msra.mxu0 %v10744
        %11318 = vmatprep.subr.bf16.mxu0 0
        %11319 = vmatpush1.bf16.msra.mxu0 %v10745
        %11320 = vmatprep.subr.bf16.mxu0 0
        %11321 = vmatpush1.bf16.msra.mxu0 %v10746
        %11322 = vmatprep.subr.bf16.mxu0 0
        %11323 = vmatpush1.bf16.msra.mxu0 %v10747
        %11324 = vmatprep.subr.bf16.mxu0 0
        %11325 = vmatpush1.bf16.msra.mxu0 %v10748
        %11326 = vmatprep.subr.bf16.mxu0 0
        %11327 = vmatpush1.bf16.msra.mxu0 %v10749
        %11328 = vmatprep.subr.bf16.mxu0 0
        %11329 = vmatpush1.bf16.msra.mxu0 %v10750
        %11330 = vmatprep.mubr.bf16.mxu0 %v9026
        %11331 = vmatmul.mubr.bf16.gmra.mrb[0].mxu0 %v9025
        %v11332 = vpop.f32.mrb[0].mxu0
        %v11333 = vadd.f32 %v11172, %v11332
        %v11334 = vpop.f32.mrb[0].mxu0
        %v11335 = vpop.f32.mrb[0].mxu0
        %v11336 = vadd.f32 %v11175, %v11335
        %v11337 = vpop.f32.mrb[0].mxu0
        %11338 = vmatprep.mubr.bf16.mxu0 %v9034
        %11339 = vmatmul.mubr.bf16.gmra.mrb[0].mxu0 %v9033
        %v11340 = vpop.f32.mrb[0].mxu0
        %v11341 = vadd.f32 %v11180, %v11340
        %v11342 = vpop.f32.mrb[0].mxu0
        %v11343 = vpop.f32.mrb[0].mxu0
        %v11344 = vadd.f32 %v11183, %v11343
        %v11345 = vpop.f32.mrb[0].mxu0
        %11346 = vmatprep.mubr.bf16.mxu0 %v9042
        %11347 = vmatmul.mubr.bf16.gmra.mrb[0].mxu0 %v9041
        %v11348 = vpop.f32.mrb[0].mxu0
        %v11349 = vadd.f32 %v11188, %v11348
        %v11350 = vpop.f32.mrb[0].mxu0
        %v11351 = vpop.f32.mrb[0].mxu0
        %v11352 = vadd.f32 %v11191, %v11351
        %v11353 = vpop.f32.mrb[0].mxu0
        %11354 = vmatprep.mubr.bf16.mxu0 %v9050
        %11355 = vmatmul.mubr.bf16.gmra.mrb[0].mxu0 %v9049
        %v11356 = vpop.f32.mrb[0].mxu0
        %v11357 = vadd.f32 %v11196, %v11356
        %v11358 = vpop.f32.mrb[0].mxu0
        %v11359 = vpop.f32.mrb[0].mxu0
        %v11360 = vadd.f32 %v11199, %v11359
        %v11361 = vpop.f32.mrb[0].mxu0
        %11362 = vmatprep.mubr.bf16.mxu0 %v9058
        %11363 = vmatmul.mubr.bf16.gmra.mrb[0].mxu0 %v9057
        %v11364 = vpop.f32.mrb[0].mxu0
        %v11365 = vadd.f32 %v11204, %v11364
        %v11366 = vpop.f32.mrb[0].mxu0
        %v11367 = vpop.f32.mrb[0].mxu0
        %v11368 = vadd.f32 %v11207, %v11367
        %v11369 = vpop.f32.mrb[0].mxu0
        %11370 = vmatprep.mubr.bf16.mxu0 %v9066
        %11371 = vmatmul.mubr.bf16.gmra.mrb[0].mxu0 %v9065
        %v11372 = vpop.f32.mrb[0].mxu0
        %v11373 = vadd.f32 %v11212, %v11372
        %v11374 = vpop.f32.mrb[0].mxu0
        %v11375 = vpop.f32.mrb[0].mxu0
        %v11376 = vadd.f32 %v11215, %v11375
        %v11377 = vpop.f32.mrb[0].mxu0
        %11378 = vmatprep.mubr.bf16.mxu0 %v9074
        %11379 = vmatmul.mubr.bf16.gmra.mrb[0].mxu0 %v9073
        %v11380 = vpop.f32.mrb[0].mxu0
        %v11381 = vadd.f32 %v11220, %v11380
        %v11382 = vpop.f32.mrb[0].mxu0
        %v11383 = vpop.f32.mrb[0].mxu0
        %v11384 = vadd.f32 %v11223, %v11383
        %v11385 = vpop.f32.mrb[0].mxu0
        %11386 = vmatprep.mubr.bf16.mxu0 %v9082
        %11387 = vmatmul.mubr.bf16.gmra.mrb[0].mxu0 %v9081
        %v11388 = vpop.f32.mrb[0].mxu0
        %v11389 = vadd.f32 %v11228, %v11388
        %v11390 = vpop.f32.mrb[0].mxu0
        %v11391 = vpop.f32.mrb[0].mxu0
        %v11392 = vadd.f32 %v11231, %v11391
        %v11393 = vpop.f32.mrb[0].mxu0
        %11394 = vmatprep.mubr.bf16.mxu0 %v9090
        %11395 = vmatmul.mubr.bf16.gmra.mrb[0].mxu0 %v9089
        %v11396 = vpop.f32.mrb[0].mxu0
        %v11397 = vadd.f32 %v11236, %v11396
        %v11398 = vpop.f32.mrb[0].mxu0
        %v11399 = vpop.f32.mrb[0].mxu0
        %v11400 = vadd.f32 %v11239, %v11399
        %v11401 = vpop.f32.mrb[0].mxu0
        %11402 = vmatprep.mubr.bf16.mxu0 %v9098
        %11403 = vmatmul.mubr.bf16.gmra.mrb[0].mxu0 %v9097
        %v11404 = vpop.f32.mrb[0].mxu0
        %v11405 = vadd.f32 %v11244, %v11404
        %v11406 = vpop.f32.mrb[0].mxu0
        %v11407 = vpop.f32.mrb[0].mxu0
        %v11408 = vadd.f32 %v11247, %v11407
        %v11409 = vpop.f32.mrb[0].mxu0
        %11410 = vmatprep.mubr.bf16.mxu0 %v9106
        %11411 = vmatmul.mubr.bf16.gmra.mrb[0].mxu0 %v9105
        %v11412 = vpop.f32.mrb[0].mxu0
        %v11413 = vadd.f32 %v11252, %v11412
        %v11414 = vpop.f32.mrb[0].mxu0
        %v11415 = vpop.f32.mrb[0].mxu0
        %v11416 = vadd.f32 %v11255, %v11415
        %v11417 = vpop.f32.mrb[0].mxu0
        %11418 = vmatprep.mubr.bf16.mxu0 %v9114
        %11419 = vmatmul.mubr.bf16.gmra.mrb[0].mxu0 %v9113
        %v11420 = vpop.f32.mrb[0].mxu0
        %v11421 = vadd.f32 %v11260, %v11420
        %v11422 = vpop.f32.mrb[0].mxu0
        %v11423 = vpop.f32.mrb[0].mxu0
        %v11424 = vadd.f32 %v11263, %v11423
        %v11425 = vpop.f32.mrb[0].mxu0
        %11426 = vmatprep.mubr.bf16.mxu0 %v9122
        %11427 = vmatmul.mubr.bf16.gmra.mrb[0].mxu0 %v9121
        %v11428 = vpop.f32.mrb[0].mxu0
        %v11429 = vadd.f32 %v11268, %v11428
        %v11430 = vpop.f32.mrb[0].mxu0
        %v11431 = vpop.f32.mrb[0].mxu0
        %v11432 = vadd.f32 %v11271, %v11431
        %v11433 = vpop.f32.mrb[0].mxu0
        %11434 = vmatprep.mubr.bf16.mxu0 %v9130
        %11435 = vmatmul.mubr.bf16.gmra.mrb[0].mxu0 %v9129
        %v11436 = vpop.f32.mrb[0].mxu0
        %v11437 = vadd.f32 %v11276, %v11436
        %v11438 = vpop.f32.mrb[0].mxu0
        %v11439 = vpop.f32.mrb[0].mxu0
        %v11440 = vadd.f32 %v11279, %v11439
        %v11441 = vpop.f32.mrb[0].mxu0
        %11442 = vmatprep.mubr.bf16.mxu0 %v9138
        %11443 = vmatmul.mubr.bf16.gmra.mrb[0].mxu0 %v9137
        %v11444 = vpop.f32.mrb[0].mxu0
        %v11445 = vadd.f32 %v11284, %v11444
        %v11446 = vpop.f32.mrb[0].mxu0
        %v11447 = vpop.f32.mrb[0].mxu0
        %v11448 = vadd.f32 %v11287, %v11447
        %v11449 = vpop.f32.mrb[0].mxu0
        %11450 = vmatprep.mubr.bf16.mxu0 %v9146
        %11451 = vmatmul.mubr.bf16.gmra.mrb[0].mxu0 %v9145
        %v11452 = vpop.f32.mrb[0].mxu0
        %v11453 = vadd.f32 %v11292, %v11452
        %v11454 = vpop.f32.mrb[0].mxu0
        %v11455 = vpop.f32.mrb[0].mxu0
        %v11456 = vadd.f32 %v11295, %v11455
        %v11457 = vpop.f32.mrb[0].mxu0
        %11458 = vdwg.mxu0
        %v11459 = vld [vmem:[%s17] sm:$0x1]
        %v11461 = vlaneseq
        %v11462 = vshrl.u32 %v11461, 7
        %v11463 = vsub.s32 0, %v11462
        %v11464 = vrot.slane %v11459, %v11463
        %v11466 = vadd.f32 %v11333, %v11464
        %v11467 = vadd.f32 %v11336, %v11464
        %v11468 = vadd.f32 %v11341, %v11464
        %v11469 = vadd.f32 %v11344, %v11464
        %v11470 = vadd.f32 %v11349, %v11464
        %v11471 = vadd.f32 %v11352, %v11464
        %v11472 = vadd.f32 %v11357, %v11464
        %v11473 = vadd.f32 %v11360, %v11464
        %v11474 = vadd.f32 %v11365, %v11464
        %v11475 = vadd.f32 %v11368, %v11464
        %v11476 = vadd.f32 %v11373, %v11464
        %v11477 = vadd.f32 %v11376, %v11464
        %v11478 = vadd.f32 %v11381, %v11464
        %v11479 = vadd.f32 %v11384, %v11464
        %v11480 = vadd.f32 %v11389, %v11464
        %v11481 = vadd.f32 %v11392, %v11464
        %v11482 = vadd.f32 %v11397, %v11464
        %v11483 = vadd.f32 %v11400, %v11464
        %v11484 = vadd.f32 %v11405, %v11464
        %v11485 = vadd.f32 %v11408, %v11464
        %v11486 = vadd.f32 %v11413, %v11464
        %v11487 = vadd.f32 %v11416, %v11464
        %v11488 = vadd.f32 %v11421, %v11464
        %v11489 = vadd.f32 %v11424, %v11464
        %v11490 = vadd.f32 %v11429, %v11464
        %v11491 = vadd.f32 %v11432, %v11464
        %v11492 = vadd.f32 %v11437, %v11464
        %v11493 = vadd.f32 %v11440, %v11464
        %v11494 = vadd.f32 %v11445, %v11464
        %v11495 = vadd.f32 %v11448, %v11464
        %v11496 = vadd.f32 %v11453, %v11464
        %v11497 = vadd.f32 %v11456, %v11464
        %v11498 = vmax.f32 %v11466, 0.0
        %v11499 = vmax.f32 %v11467, 0.0
        %v11500 = vmax.f32 %v11468, 0.0
        %v11501 = vmax.f32 %v11469, 0.0
        %v11502 = vmax.f32 %v11470, 0.0
        %v11503 = vmax.f32 %v11471, 0.0
        %v11504 = vmax.f32 %v11472, 0.0
        %v11505 = vmax.f32 %v11473, 0.0
        %v11506 = vmax.f32 %v11474, 0.0
        %v11507 = vmax.f32 %v11475, 0.0
        %v11508 = vmax.f32 %v11476, 0.0
        %v11509 = vmax.f32 %v11477, 0.0
        %v11510 = vmax.f32 %v11478, 0.0
        %v11511 = vmax.f32 %v11479, 0.0
        %v11512 = vmax.f32 %v11480, 0.0
        %v11513 = vmax.f32 %v11481, 0.0
        %v11514 = vmax.f32 %v11482, 0.0
        %v11515 = vmax.f32 %v11483, 0.0
        %v11516 = vmax.f32 %v11484, 0.0
        %v11517 = vmax.f32 %v11485, 0.0
        %v11518 = vmax.f32 %v11486, 0.0
        %v11519 = vmax.f32 %v11487, 0.0
        %v11520 = vmax.f32 %v11488, 0.0
        %v11521 = vmax.f32 %v11489, 0.0
        %v11522 = vmax.f32 %v11490, 0.0
        %v11523 = vmax.f32 %v11491, 0.0
        %v11524 = vmax.f32 %v11492, 0.0
        %v11525 = vmax.f32 %v11493, 0.0
        %v11526 = vmax.f32 %v11494, 0.0
        %v11527 = vmax.f32 %v11495, 0.0
        %v11528 = vmax.f32 %v11496, 0.0
        %v11529 = vmax.f32 %v11497, 0.0
        %11530 = vst [vmem:[%s680] sm:$0xff] %v11498
        %11531 = vst [vmem:[%s680 + $0x8] sm:$0xff] %v11499
        %11532 = vst [vmem:[%s680 + $0x10] sm:$0xff] %v11500
        %11533 = vst [vmem:[%s680 + $0x18] sm:$0xff] %v11501
        %11534 = vst [vmem:[%s680 + $0x20] sm:$0xff] %v11502
        %11535 = vst [vmem:[%s680 + $0x28] sm:$0xff] %v11503
        %11536 = vst [vmem:[%s680 + $0x30] sm:$0xff] %v11504
        %11537 = vst [vmem:[%s680 + $0x38] sm:$0xff] %v11505
        %11538 = vst [vmem:[%s680 + $0x40] sm:$0xff] %v11506
        %11539 = vst [vmem:[%s680 + $0x48] sm:$0xff] %v11507
        %11540 = vst [vmem:[%s680 + $0x50] sm:$0xff] %v11508
        %11541 = vst [vmem:[%s680 + $0x58] sm:$0xff] %v11509
        %11542 = vst [vmem:[%s680 + $0x60] sm:$0xff] %v11510
        %11543 = vst [vmem:[%s680 + $0x68] sm:$0xff] %v11511
        %11544 = vst [vmem:[%s680 + $0x70] sm:$0xff] %v11512
        %11545 = vst [vmem:[%s680 + $0x78] sm:$0xff] %v11513
        %11546 = vst [vmem:[%s680 + $0x80] sm:$0xff] %v11514
        %11547 = vst [vmem:[%s680 + $0x88] sm:$0xff] %v11515
        %11548 = vst [vmem:[%s680 + $0x90] sm:$0xff] %v11516
        %11549 = vst [vmem:[%s680 + $0x98] sm:$0xff] %v11517
        %11550 = vst [vmem:[%s680 + $0xa0] sm:$0xff] %v11518
        %11551 = vst [vmem:[%s680 + $0xa8] sm:$0xff] %v11519
        %11552 = vst [vmem:[%s680 + $0xb0] sm:$0xff] %v11520
        %11553 = vst [vmem:[%s680 + $0xb8] sm:$0xff] %v11521
        %11554 = vst [vmem:[%s680 + $0xc0] sm:$0xff] %v11522
        %11555 = vst [vmem:[%s680 + $0xc8] sm:$0xff] %v11523
        %11556 = vst [vmem:[%s680 + $0xd0] sm:$0xff] %v11524
        %11557 = vst [vmem:[%s680 + $0xd8] sm:$0xff] %v11525
        %11558 = vst [vmem:[%s680 + $0xe0] sm:$0xff] %v11526
        %11559 = vst [vmem:[%s680 + $0xe8] sm:$0xff] %v11527
        %11560 = vst [vmem:[%s680 + $0xf0] sm:$0xff] %v11528
        %11561 = vst [vmem:[%s680 + $0xf8] sm:$0xff] %v11529
        %s11562 = sand.u32 %s429, 1
        %s11563 = scalar_lea.sflag [#allocation4], %s11562
        %s11564 = sand.u32 %s429, 1
        %s11565 = smul.addr %s11564, 256
        %s11566 = scalar_lea.vmem [#allocation14], %s11565
        // Predicated region
        $region121: #{tpu_custom_call.1} parent=91 // pred_check
          %p11567 = pneg %p439
        $region122: #{tpu_custom_call.1} parent=91 // pred_check_branch
          %11569 = sbr.rel (%p11567) target = $region124
        $region123: #{tpu_custom_call.1} parent=91 // pred_region
          %s11570 = smul.u32 32, %s38
          %s11572 = ssub.s32 4096, 4096
          %11573 = vsyncadd %s11563, %s11572
          %s11574 = smul.addr %s11570, 128
          %s11575 = scalar_lea.hbm %s18, %s11574
          %s11576 = sshll.u32 %s11566, 4
          %s11577 = int_to_ptr.vmem [resolvable:$true] %s11576
          %11582 = dma.vmem_to_hbm [thread:$0]  %s11577, 4096, %s11575, %s11563, 128, 128, 8
        $region124: #{tpu_custom_call.1} parent=91 // pred_fallthru
          _
      $region92: #{tpu_custom_call.1} parent=5 // pred_fallthru
        _
      %p11583 = scmp.le.s32.totalorder 2, %s33
      // Predicated region
      $region125: #{tpu_custom_call.1} parent=5 // pred_check
        %p11584 = pneg %p11583
      $region126: #{tpu_custom_call.1} parent=5 // pred_check_branch
        %11586 = sbr.rel (%p11584) target = $region128
      $region127: #{tpu_custom_call.1} parent=5 // pred_region
        %s11587 = ssub.s32 %s33, 2
        // Predicated region
        $region129: #{tpu_custom_call.1} parent=127 // pred_check
          %p11588 = pneg %p445
        $region130: #{tpu_custom_call.1} parent=127 // pred_check_branch
          %11590 = sbr.rel (%p11588) target = $region132
        $region131: #{tpu_custom_call.1} parent=127 // pred_region
          %s11591 = sand.u32 %s430, 1
          %s11592 = scalar_lea.sflag [#allocation4], %s11591
          %s11593 = sand.u32 %s430, 1
          %s11594 = smul.addr %s11593, 256
          %s11595 = scalar_lea.vmem [#allocation14], %s11594
          %11596 = dma.done %s11592, 4096
        $region132: #{tpu_custom_call.1} parent=127 // pred_fallthru
          _
      $region128: #{tpu_custom_call.1} parent=5 // pred_fallthru
        _
    $region6: #{tpu_custom_call.1} parent=1 // loop_footer
      %s37 = sadd.s32 1, %s33
    $region7: #{tpu_custom_call.1} parent=1 // loop_footer_branch
      %32 = sbr.rel target = $region3
    $region8: #{tpu_custom_call.1} parent=1 // loop_exit
      _
    %11597 = vsyncpa [#allocation3], 1
    %s11598 = scalar_lea.sflag [#allocation3], 1
    %11599 = vsyncpa %s11598, 1
    %11600 = vsyncpa [#allocation6], 1
    %11601 = vsyncpa [#allocation9], 1
    %11602 = vsyncpa [#allocation12], 1
    %11603 = vsyncpa [#allocation4], 1
    %s11604 = scalar_lea.sflag [#allocation4], 1
    %11605 = vsyncpa %s11604, 1

</llo_original>
